<compile_context>
chip_gen: v5e
topology: v5e:2x2
jax: 0.10.0
libtpu: 0.0.40
codegen_flags: <defaults>
</compile_context>

<pallas_src>
import jax
import jax.numpy as jnp
from jax.experimental import pallas as pl
from jax.experimental.pallas import tpu as pltpu

LRELU_SLOPE = 0.1
COMPUTE_DTYPE = jnp.bfloat16       # MXU input / inter-layer activation dtype
HALO_BLK = 128                     # lane-aligned halo block appended to each L tile
VMEM_BUDGET = 20 * 1024 * 1024     # target per-kernel working set (v7x headroom)
VMEM_LIMIT = 48 * 1024 * 1024


def _cdiv(a, b):
    return -(-a // b)


def _round_up(a, m):
    return _cdiv(a, m) * m


def _pick_l_tile(bytes_per_col, fixed_bytes, l_out):
    """Largest lane-dense L tile whose working-set estimate fits the VMEM budget."""
    cap = _round_up(max(l_out, 1), 128)
    for cand in (2048, 1024, 512, 256, 128):
        if cand <= cap and bytes_per_col * cand + fixed_bytes <= VMEM_BUDGET:
            return cand
    return 128


def _leaky_f32(x, slope):
    xf = x.astype(jnp.float32)
    return jnp.where(xf >= 0.0, xf, slope * xf)


# ----------------------------------------------------------------------------
# Generic tiled conv1d: one (C_out, K*C_in) x (K*C_in, L_TILE) MXU matmul per
# (batch, L-tile) grid step.  The tap halo comes from a 128-lane slice of the
# next tile (second operand over the same array).
# ----------------------------------------------------------------------------
def _make_conv_kernel(K, dilation, L_tile, pre_slope, post_tanh):
    def kernel(xc_ref, xh_ref, w_ref, b_ref, o_ref):
        x = jnp.concatenate([xc_ref[0], xh_ref[0]], axis=1)          # (C_in, L_tile+128)
        if pre_slope is not None:
            x = _leaky_f32(x, pre_slope).astype(COMPUTE_DTYPE)       # f32 VPU, bf16 MXU in
        cols = [x[:, k * dilation: k * dilation + L_tile] for k in range(K)]
        xcol = jnp.concatenate(cols, axis=0) if K > 1 else cols[0]   # (K*C_in, L_tile)
        acc = jnp.dot(w_ref[...], xcol, preferred_element_type=jnp.float32)
        acc = acc + b_ref[...]
        if post_tanh:
            acc = jnp.tanh(acc)
        o_ref[0] = acc.astype(o_ref.dtype)
    return kernel


def _conv_core(x, w2, b2, *, K, dilation, pad_l, pad_r, pre_slope=None,
               post_tanh=False, out_dtype=COMPUTE_DTYPE):
    """'Valid' correlation of x padded by (pad_l, pad_r) with pre-flattened weights.

    x : (B, C_in, L)            w2: (C_out, K*C_in)  (compute dtype)
    b2: (C_out, 1) float32      returns (B, C_out, L_out) in out_dtype.
    """
    B, C_in, L = x.shape
    C_out = w2.shape[0]
    halo = dilation * (K - 1)
    assert halo <= HALO_BLK, "tap halo must fit in one 128-lane halo block"
    L_out = L + pad_l + pad_r - halo
    assert L_out >= 1

    out_bytes = jnp.finfo(out_dtype).bits // 8
    L_tile = _pick_l_tile(
        bytes_per_col=(6 * C_in * 2            # input double-buffer + concat window (bf16)
                       + 8 * C_in              # f32 leaky temp
                       + 2 * K * C_in          # im2col (bf16)
                       + 4 * C_out             # f32 accumulator
                       + 2 * C_out * out_bytes),
        fixed_bytes=4 * w2.size + 4 * C_in * HALO_BLK,
        l_out=L_out)
    n_l = _cdiv(L_out, L_tile)
    L_total = n_l * L_tile + HALO_BLK
    x_p = jnp.pad(x.astype(COMPUTE_DTYPE),
                  ((0, 0), (0, 0), (pad_l, L_total - L - pad_l)))

    kernel = _make_conv_kernel(K, dilation, L_tile, pre_slope, post_tanh)
    n_ratio = L_tile // HALO_BLK
    flops = 2 * B * C_out * K * C_in * n_l * L_tile
    bytes_accessed = (x_p.size * 2 + 2 * w2.size + 4 * b2.size
                      + B * C_out * n_l * L_tile * out_bytes)
    out = pl.pallas_call(
        kernel,
        out_shape=jax.ShapeDtypeStruct((B, C_out, n_l * L_tile), out_dtype),
        grid=(B, n_l),
        in_specs=[
            pl.BlockSpec((1, C_in, L_tile), lambda b, l: (b, 0, l)),
            pl.BlockSpec((1, C_in, HALO_BLK), lambda b, l: (b, 0, (l + 1) * n_ratio)),
            pl.BlockSpec((C_out, K * C_in), lambda b, l: (0, 0)),
            pl.BlockSpec((C_out, 1), lambda b, l: (0, 0)),
        ],
        out_specs=pl.BlockSpec((1, C_out, L_tile), lambda b, l: (b, 0, l)),
        compiler_params=pltpu.CompilerParams(
            dimension_semantics=("parallel", "parallel"),
            vmem_limit_bytes=VMEM_LIMIT),
        cost_estimate=pl.CostEstimate(
            flops=flops,
            transcendentals=B * C_out * n_l * L_tile if post_tanh else 0,
            bytes_accessed=bytes_accessed),
    )(x_p, x_p, w2, b2)
    return out[:, :, :L_out]


# ----------------------------------------------------------------------------
# Weight preparation (done once at init; weights stored pre-laid-out in bf16)
# ----------------------------------------------------------------------------
def prep_conv(w, b):
    """torch Conv1d weight (C_out, C_in, K) -> (C_out, K*C_in) im2col layout."""
    C_out, C_in, K = w.shape
    w2 = jnp.transpose(w, (0, 2, 1)).reshape(C_out, K * C_in).astype(COMPUTE_DTYPE)
    b2 = jnp.asarray(b, jnp.float32).reshape(C_out, 1)
    return dict(w2=w2, b2=b2, K=K, C_in=C_in, C_out=C_out)


def conv1d(x, p, *, padding, dilation=1, pre_slope=None, post_tanh=False,
           out_dtype=COMPUTE_DTYPE):
    return _conv_core(x, p['w2'], p['b2'], K=p['K'], dilation=dilation,
                      pad_l=padding, pad_r=padding, pre_slope=pre_slope,
                      post_tanh=post_tanh, out_dtype=out_dtype)


def prep_conv_transpose(w, b, *, stride, padding):
    """torch ConvTranspose1d weight (C_in, C_out, K) -> polyphase layout.

    Output phase r (t + p = q*stride + r) is an ordinary correlation of x with
    M = ceil(K/stride) taps; all phases are stacked along the output-channel axis
    so one Pallas conv kernel computes them together (no zero insertion)."""
    C_in, C_out, K = w.shape
    s = int(stride)
    M = _cdiv(K, s)
    w_p = jnp.pad(jnp.asarray(w, jnp.float32), ((0, 0), (0, 0), (0, M * s - K)))
    w_p = w_p.reshape(C_in, C_out, M, s)          # [ci, co, m, r] -> original tap m*s + r
    w_f = jnp.flip(w_p, axis=2)                   # tap order for correlation form
    w2 = jnp.transpose(w_f, (3, 1, 2, 0)).reshape(s * C_out, M * C_in)
    b2 = jnp.tile(jnp.asarray(b, jnp.float32), s).reshape(s * C_out, 1)
    return dict(w2=w2.astype(COMPUTE_DTYPE), b2=b2, K=K, M=M, stride=s,
                padding=int(padding), C_in=C_in, C_out=C_out)


def conv_transpose1d(x, p, *, pre_slope=None, out_dtype=COMPUTE_DTYPE):
    """Exact PyTorch ConvTranspose1d via polyphase convolution (no zero-insertion)."""
    B, _, L = x.shape
    s, M, K, pad, C_out = p['stride'], p['M'], p['K'], p['padding'], p['C_out']
    L_out = (L - 1) * s + K - 2 * pad
    Lq = (L_out - 1 + pad) // s + 1               # per-phase output length
    y = _conv_core(x, p['w2'], p['b2'], K=M, dilation=1,
                   pad_l=M - 1, pad_r=Lq - L, pre_slope=pre_slope,
                   out_dtype=out_dtype)           # (B, s*C_out, Lq)
    z = y.reshape(B, s, C_out, Lq)
    z = jnp.transpose(z, (0, 2, 3, 1)).reshape(B, C_out, Lq * s)   # interleave phases
    return z[:, :, pad: pad + L_out]


# ----------------------------------------------------------------------------
# Fused ResBlock dilation branch: x + conv2(leaky(conv1(leaky(x)))) in one kernel.
# ----------------------------------------------------------------------------
def _make_branch_kernel(K, dilation, pad2, P, L_tile, L_real):
    L1 = L_tile + 2 * pad2          # intermediate columns the second conv needs

    def kernel(xc_ref, xh_ref, w1_ref, b1_ref, w2_ref, b2_ref, o_ref):
        l = pl.program_id(1)
        xw = jnp.concatenate([xc_ref[0], xh_ref[0]], axis=1)         # (C, L_tile+128)
        xa = _leaky_f32(xw, LRELU_SLOPE).astype(COMPUTE_DTYPE)
        # conv1 (dilated) over L1 columns, im2col + single MXU matmul
        cols1 = [xa[:, k * dilation: k * dilation + L1] for k in range(K)]
        xcol1 = jnp.concatenate(cols1, axis=0) if K > 1 else cols1[0]
        h = jnp.dot(w1_ref[...], xcol1, preferred_element_type=jnp.float32)
        h = _leaky_f32(h + b1_ref[...], LRELU_SLOPE)
        # zero positions that correspond to conv2's zero padding (exact torch semantics)
        pos = l * L_tile - pad2 + jax.lax.broadcasted_iota(jnp.int32, (1, L1), 1)
        h = jnp.where((pos >= 0) & (pos < L_real), h, 0.0).astype(COMPUTE_DTYPE)
        # conv2 (dilation 1) over L_tile columns
        cols2 = [h[:, j: j + L_tile] for j in range(K)]
        xcol2 = jnp.concatenate(cols2, axis=0) if K > 1 else cols2[0]
        acc = jnp.dot(w2_ref[...], xcol2, preferred_element_type=jnp.float32)
        acc = acc + b2_ref[...]
        acc = acc + xw[:, P: P + L_tile].astype(jnp.float32)         # residual
        o_ref[0] = acc.astype(o_ref.dtype)
    return kernel


def resblock_branch(x, p1, p2, *, dilation, out_dtype=COMPUTE_DTYPE):
    B, C, L = x.shape
    K = p1['K']
    pad1 = dilation * (K - 1) // 2
    pad2 = (K - 1) // 2
    P = pad1 + pad2
    assert 2 * P <= HALO_BLK

    out_bytes = jnp.finfo(out_dtype).bits // 8
    L_tile = _pick_l_tile(
        bytes_per_col=(6 * C * 2 + 8 * C          # inputs + window + f32 leaky temp
                       + 4 * K * C                # two im2col buffers (bf16)
                       + 6 * C + 4 * C            # f32/bf16 intermediate + f32 acc
                       + 2 * C * out_bytes),
        fixed_bytes=4 * (p1['w2'].size + p2['w2'].size) + 4 * C * HALO_BLK,
        l_out=L)
    n_l = _cdiv(L, L_tile)
    L_total = n_l * L_tile + HALO_BLK
    x_p = jnp.pad(x.astype(COMPUTE_DTYPE), ((0, 0), (0, 0), (P, L_total - L - P)))

    kernel = _make_branch_kernel(K, dilation, pad2, P, L_tile, L)
    n_ratio = L_tile // HALO_BLK
    flops = 2 * 2 * B * C * K * C * n_l * L_tile
    bytes_accessed = (x_p.size * 2 + 2 * (p1['w2'].size + p2['w2'].size)
                      + B * C * n_l * L_tile * out_bytes)
    out = pl.pallas_call(
        kernel,
        out_shape=jax.ShapeDtypeStruct((B, C, n_l * L_tile), out_dtype),
        grid=(B, n_l),
        in_specs=[
            pl.BlockSpec((1, C, L_tile), lambda b, l: (b, 0, l)),
            pl.BlockSpec((1, C, HALO_BLK), lambda b, l: (b, 0, (l + 1) * n_ratio)),
            pl.BlockSpec((C, K * C), lambda b, l: (0, 0)),
            pl.BlockSpec((C, 1), lambda b, l: (0, 0)),
            pl.BlockSpec((C, K * C), lambda b, l: (0, 0)),
            pl.BlockSpec((C, 1), lambda b, l: (0, 0)),
        ],
        out_specs=pl.BlockSpec((1, C, L_tile), lambda b, l: (b, 0, l)),
        compiler_params=pltpu.CompilerParams(
            dimension_semantics=("parallel", "parallel"),
            vmem_limit_bytes=VMEM_LIMIT),
        cost_estimate=pl.CostEstimate(flops=flops, transcendentals=0,
                                      bytes_accessed=bytes_accessed),
    )(x_p, x_p, p1['w2'], p1['b2'], p2['w2'], p2['b2'])
    return out[:, :, :L]


# ----------------------------------------------------------------------------
# Parameters (deterministic synthetic init; weight_norm is a reparameterization
# folded into the effective weights, so only effective weights are stored)
# ----------------------------------------------------------------------------
def _rand_conv(key, c_out, c_in, k, scale=0.05):
    kw, kb = jax.random.split(key)
    return prep_conv(scale * jax.random.normal(kw, (c_out, c_in, k), jnp.float32),
                     scale * jax.random.normal(kb, (c_out,), jnp.float32))


def init_params(cfg, key):
    keys = iter(jax.random.split(key, 512))
    uic = cfg['upsample_initial_channel']
    p = {'emb': 0.1 * jax.random.normal(
        next(keys), (cfg['num_embeddings'], cfg['embedding_dim']), jnp.float32)}
    p['conv_pre'] = _rand_conv(next(keys), uic, cfg['model_in_dim'], 7)
    p['ups'], p['resblocks'] = [], []
    ch = uic
    for i, (u, k) in enumerate(zip(cfg['upsample_rates'], cfg['upsample_kernel_sizes'])):
        c_in = uic // (2 ** i)
        ch = uic // (2 ** (i + 1))
        kw, kb = jax.random.split(next(keys))
        p['ups'].append(prep_conv_transpose(
            0.01 * jax.random.normal(kw, (c_in, ch, k), jnp.float32),   # torch CT layout
            0.01 * jax.random.normal(kb, (ch,), jnp.float32),
            stride=u, padding=(k - u) // 2))
        for rk, rd in zip(cfg['resblock_kernel_sizes'], cfg['resblock_dilation_sizes']):
            p['resblocks'].append(dict(
                d=tuple(rd),
                convs1=[_rand_conv(next(keys), ch, ch, rk) for _ in rd],
                convs2=[_rand_conv(next(keys), ch, ch, rk) for _ in rd]))
    p['conv_post'] = _rand_conv(next(keys), 1, ch, 7)
    return p


# ----------------------------------------------------------------------------
# Forward
# ----------------------------------------------------------------------------
# TODO(synk): ResBlock class is not in the provided snippet; the standard HiFiGAN
# ResBlock1 (leaky -> dilated conv -> leaky -> conv, residual add per dilation) is assumed.
def resblock_forward(rb, x):
    for p1, p2, d in zip(rb['convs1'], rb['convs2'], rb['d']):
        x = resblock_branch(x, p1, p2, dilation=d)
    return x


def code_generator_forward(params, cfg, code):
    # Embedding lookup (XLA gather) then transpose(1, 2) -> (B, D, T)
    x = jnp.take(params['emb'], code, axis=0)                   # (B, T, D)
    x = jnp.transpose(x, (0, 2, 1)).astype(COMPUTE_DTYPE)       # (B, D, T)
    # TODO(synk): dur_prediction / f0 / multispkr / multistyle branches are disabled
    # (None) in this cfg, so exactly as in PyTorch they are no-ops here.

    x = conv1d(x, params['conv_pre'], padding=3)
    nk = len(cfg['resblock_kernel_sizes'])
    for i in range(len(cfg['upsample_rates'])):
        # F.leaky_relu before each upsample is fused into the polyphase kernel (pre_slope)
        x = conv_transpose1d(x, params['ups'][i], pre_slope=LRELU_SLOPE)
        xs = None
        for j in range(nk):
            r = resblock_forward(params['resblocks'][i * nk + j], x)
            xs = r if xs is None else xs + r
        x = (xs / nk).astype(COMPUTE_DTYPE)
    # final F.leaky_relu uses the torch default slope 0.01; conv_post + tanh fused
    x = conv1d(x, params['conv_post'], padding=3, pre_slope=0.01,
               post_tanh=True, out_dtype=jnp.float32)
    return x


# ----------------------------------------------------------------------------
if __name__ == "__main__":
    cfg = dict(
        num_embeddings=16,
        embedding_dim=32,
        model_in_dim=32,                 # no f0 / spkr / style concat -> in == emb dim
        upsample_initial_channel=32,
        upsample_rates=[2, 2],
        upsample_kernel_sizes=[4, 4],
        resblock_kernel_sizes=[3, 5],
        resblock_dilation_sizes=[[1, 3], [1, 3]],
    )
    key = jax.random.PRNGKey(0)
    k_params, k_code = jax.random.split(key)
    params = init_params(cfg, k_params)

    B, T = 2, 8
    code = jax.random.randint(k_code, (B, T), 0, cfg['num_embeddings'], dtype=jnp.int32)

    fwd = jax.jit(lambda c: code_generator_forward(params, cfg, c))
    out = jax.block_until_ready(fwd(code))                      # (B, 1, T * prod(rates))
    assert out.shape == (B, 1, T * 4), out.shape
    assert bool(jnp.all(jnp.isfinite(out)))
    print("KERNEL_OK")
</pallas_src>

<mosaic_0001>
module attributes {stable_mosaic.version = 11 : i64} {
  func.func @kernel(%arg0: i32, %arg1: i32, %arg2: memref<1x16x128xbf16, #tpu.memory_space<vmem>>, %arg3: memref<1x16x128xbf16, #tpu.memory_space<vmem>>, %arg4: memref<16x48xbf16, #tpu.memory_space<vmem>>, %arg5: memref<16x1xf32, #tpu.memory_space<vmem>>, %arg6: memref<16x48xbf16, #tpu.memory_space<vmem>>, %arg7: memref<16x1xf32, #tpu.memory_space<vmem>>, %arg8: memref<1x16x128xbf16, #tpu.memory_space<vmem>>) attributes {dimension_semantics = [#tpu.dimension_semantics<parallel>, #tpu.dimension_semantics<parallel>], iteration_bounds = array<i64: 2, 1>, scalar_prefetch = 0 : i64, scratch_operands = 0 : i64, tpu.core_type = #tpu.core_type<tc>, window_params = [{transform_indices = @transform_0, window_bounds = array<i64: 1, 16, 128>}, {transform_indices = @transform_1, window_bounds = array<i64: 1, 16, 128>}, {pipeline_mode = #tpu.pipeline_mode<synchronous>, transform_indices = @transform_2, window_bounds = array<i64: 16, 48>}, {pipeline_mode = #tpu.pipeline_mode<synchronous>, transform_indices = @transform_3, window_bounds = array<i64: 16, 1>}, {pipeline_mode = #tpu.pipeline_mode<synchronous>, transform_indices = @transform_4, window_bounds = array<i64: 16, 48>}, {pipeline_mode = #tpu.pipeline_mode<synchronous>, transform_indices = @transform_5, window_bounds = array<i64: 16, 1>}, {transform_indices = @transform_6, window_bounds = array<i64: 1, 16, 128>}]} {
    %c0 = arith.constant 0 : index
    %c0_0 = arith.constant 0 : index
    %c0_1 = arith.constant 0 : index
    %0 = vector.load %arg2[%c0, %c0_0, %c0_1] : memref<1x16x128xbf16, #tpu.memory_space<vmem>>, vector<1x16x128xbf16>
    %1 = vector.shape_cast %0 : vector<1x16x128xbf16> to vector<16x128xbf16>
    %c0_2 = arith.constant 0 : index
    %c0_3 = arith.constant 0 : index
    %c0_4 = arith.constant 0 : index
    %2 = vector.load %arg3[%c0_2, %c0_3, %c0_4] : memref<1x16x128xbf16, #tpu.memory_space<vmem>>, vector<1x16x128xbf16>
    %3 = vector.shape_cast %2 : vector<1x16x128xbf16> to vector<16x128xbf16>
    %4 = tpu.concatenate %1, %3 in 1 : vector<16x128xbf16>, vector<16x128xbf16> -> vector<16x256xbf16>
    %5 = arith.extf %4 : vector<16x256xbf16> to vector<16x256xf32>
    %cst = arith.constant 0.000000e+00 : f32
    %6 = vector.broadcast %cst : f32 to vector<16x256xf32>
    %7 = arith.cmpf oge, %5, %6 : vector<16x256xf32>
    %cst_5 = arith.constant 1.000000e-01 : f32
    %8 = vector.broadcast %cst_5 : f32 to vector<16x256xf32>
    %9 = arith.mulf %8, %5 : vector<16x256xf32>
    %10 = arith.select %7, %5, %9 : vector<16x256xi1>, vector<16x256xf32>
    %11 = arith.truncf %10 : vector<16x256xf32> to vector<16x256xbf16>
    %12 = vector.extract_strided_slice %11 {offsets = [0, 0], sizes = [16, 130], strides = [1, 1]} : vector<16x256xbf16> to vector<16x130xbf16>
    %13 = vector.extract_strided_slice %11 {offsets = [0, 1], sizes = [16, 130], strides = [1, 1]} : vector<16x256xbf16> to vector<16x130xbf16>
    %14 = vector.extract_strided_slice %11 {offsets = [0, 2], sizes = [16, 130], strides = [1, 1]} : vector<16x256xbf16> to vector<16x130xbf16>
    %15 = tpu.concatenate %12, %13, %14 in 0 : vector<16x130xbf16>, vector<16x130xbf16>, vector<16x130xbf16> -> vector<48x130xbf16>
    %c0_6 = arith.constant 0 : index
    %c0_7 = arith.constant 0 : index
    %16 = vector.load %arg4[%c0_6, %c0_7] : memref<16x48xbf16, #tpu.memory_space<vmem>>, vector<16x48xbf16>
    %cst_8 = arith.constant dense<0.000000e+00> : vector<16x130xf32>
    %17 = tpu.matmul %16, %15, %cst_8 {dimension_numbers = #tpu.dot_dimension_numbers<[1], [0], [0], [1], [0, 0, 1, 1], [], []>} : vector<16x48xbf16>, vector<48x130xbf16>, vector<16x130xf32> -> vector<16x130xf32>
    %c0_9 = arith.constant 0 : index
    %c0_10 = arith.constant 0 : index
    %18 = vector.load %arg5[%c0_9, %c0_10] : memref<16x1xf32, #tpu.memory_space<vmem>>, vector<16x1xf32>
    %19 = vector.broadcast %18 : vector<16x1xf32> to vector<16x130xf32>
    %20 = arith.addf %17, %19 : vector<16x130xf32>
    %cst_11 = arith.constant 0.000000e+00 : f32
    %21 = vector.broadcast %cst_11 : f32 to vector<16x130xf32>
    %22 = arith.cmpf oge, %20, %21 : vector<16x130xf32>
    %cst_12 = arith.constant 1.000000e-01 : f32
    %23 = vector.broadcast %cst_12 : f32 to vector<16x130xf32>
    %24 = arith.mulf %23, %20 : vector<16x130xf32>
    %25 = arith.select %22, %20, %24 : vector<16x130xi1>, vector<16x130xf32>
    %c128_i32 = arith.constant 128 : i32
    %26 = arith.muli %arg1, %c128_i32 : i32
    %c1_i32 = arith.constant 1 : i32
    %27 = arith.subi %26, %c1_i32 : i32
    %28 = tpu.iota {dimensions = array<i32: 1>} : vector<1x130xi32>
    %29 = vector.broadcast %27 : i32 to vector<1x130xi32>
    %30 = arith.addi %29, %28 : vector<1x130xi32>
    %c0_i32 = arith.constant 0 : i32
    %31 = vector.broadcast %c0_i32 : i32 to vector<1x130xi32>
    %32 = arith.cmpi sge, %30, %31 : vector<1x130xi32>
    %c16_i32 = arith.constant 16 : i32
    %33 = vector.broadcast %c16_i32 : i32 to vector<1x130xi32>
    %34 = arith.cmpi slt, %30, %33 : vector<1x130xi32>
    %35 = arith.andi %32, %34 : vector<1x130xi1>
    %cst_13 = arith.constant 0.000000e+00 : f32
    %36 = vector.shape_cast %35 : vector<1x130xi1> to vector<1x130xi1>
    %37 = vector.broadcast %36 : vector<1x130xi1> to vector<16x130xi1>
    %38 = vector.broadcast %cst_13 : f32 to vector<16x130xf32>
    %39 = arith.select %37, %25, %38 : vector<16x130xi1>, vector<16x130xf32>
    %40 = arith.truncf %39 : vector<16x130xf32> to vector<16x130xbf16>
    %41 = vector.extract_strided_slice %40 {offsets = [0, 0], sizes = [16, 128], strides = [1, 1]} : vector<16x130xbf16> to vector<16x128xbf16>
    %42 = vector.extract_strided_slice %40 {offsets = [0, 1], sizes = [16, 128], strides = [1, 1]} : vector<16x130xbf16> to vector<16x128xbf16>
    %43 = vector.extract_strided_slice %40 {offsets = [0, 2], sizes = [16, 128], strides = [1, 1]} : vector<16x130xbf16> to vector<16x128xbf16>
    %44 = tpu.concatenate %41, %42, %43 in 0 : vector<16x128xbf16>, vector<16x128xbf16>, vector<16x128xbf16> -> vector<48x128xbf16>
    %c0_14 = arith.constant 0 : index
    %c0_15 = arith.constant 0 : index
    %45 = vector.load %arg6[%c0_14, %c0_15] : memref<16x48xbf16, #tpu.memory_space<vmem>>, vector<16x48xbf16>
    %cst_16 = arith.constant dense<0.000000e+00> : vector<16x128xf32>
    %46 = tpu.matmul %45, %44, %cst_16 {dimension_numbers = #tpu.dot_dimension_numbers<[1], [0], [0], [1], [0, 0, 1, 1], [], []>} : vector<16x48xbf16>, vector<48x128xbf16>, vector<16x128xf32> -> vector<16x128xf32>
    %c0_17 = arith.constant 0 : index
    %c0_18 = arith.constant 0 : index
    %47 = vector.load %arg7[%c0_17, %c0_18] : memref<16x1xf32, #tpu.memory_space<vmem>>, vector<16x1xf32>
    %48 = vector.broadcast %47 : vector<16x1xf32> to vector<16x128xf32>
    %49 = arith.addf %46, %48 : vector<16x128xf32>
    %50 = vector.extract_strided_slice %4 {offsets = [0, 2], sizes = [16, 128], strides = [1, 1]} : vector<16x256xbf16> to vector<16x128xbf16>
    %51 = arith.extf %50 : vector<16x128xbf16> to vector<16x128xf32>
    %52 = arith.addf %49, %51 : vector<16x128xf32>
    %53 = arith.truncf %52 : vector<16x128xf32> to vector<16x128xbf16>
    %c0_19 = arith.constant 0 : index
    %c0_20 = arith.constant 0 : index
    %c0_21 = arith.constant 0 : index
    %54 = vector.load %arg8[%c0_19, %c0_20, %c0_21] : memref<1x16x128xbf16, #tpu.memory_space<vmem>>, vector<1x16x128xbf16>
    %55 = vector.shape_cast %54 : vector<1x16x128xbf16> to vector<16x128xbf16>
    %56 = vector.shape_cast %53 : vector<16x128xbf16> to vector<1x16x128xbf16>
    tpu.vector_store %arg8[%c0_19, %c0_20, %c0_21], %56 {strides = array<i32>} : memref<1x16x128xbf16, #tpu.memory_space<vmem>>, vector<1x16x128xbf16>,
    return
  }
  func.func @transform_0(%arg0: i32, %arg1: i32) -> (i32, i32, i32) {
    %c0_i32 = arith.constant 0 : i32
    %c0_i32_0 = arith.constant 0 : i32
    return %arg0, %c0_i32, %arg1 : i32, i32, i32
  }
  func.func @transform_1(%arg0: i32, %arg1: i32) -> (i32, i32, i32) {
    %c1_i32 = arith.constant 1 : i32
    %0 = arith.addi %arg1, %c1_i32 : i32
    %c1_i32_0 = arith.constant 1 : i32
    %1 = arith.muli %0, %c1_i32_0 : i32
    %c0_i32 = arith.constant 0 : i32
    %c0_i32_1 = arith.constant 0 : i32
    return %arg0, %c0_i32, %1 : i32, i32, i32
  }
  func.func @transform_2(%arg0: i32, %arg1: i32) -> (i32, i32) {
    %c0_i32 = arith.constant 0 : i32
    %c0_i32_0 = arith.constant 0 : i32
    %c0_i32_1 = arith.constant 0 : i32
    return %c0_i32, %c0_i32_0 : i32, i32
  }
  func.func @transform_3(%arg0: i32, %arg1: i32) -> (i32, i32) {
    %c0_i32 = arith.constant 0 : i32
    %c0_i32_0 = arith.constant 0 : i32
    %c0_i32_1 = arith.constant 0 : i32
    return %c0_i32, %c0_i32_0 : i32, i32
  }
  func.func @transform_4(%arg0: i32, %arg1: i32) -> (i32, i32) {
    %c0_i32 = arith.constant 0 : i32
    %c0_i32_0 = arith.constant 0 : i32
    %c0_i32_1 = arith.constant 0 : i32
    return %c0_i32, %c0_i32_0 : i32, i32
  }
  func.func @transform_5(%arg0: i32, %arg1: i32) -> (i32, i32) {
    %c0_i32 = arith.constant 0 : i32
    %c0_i32_0 = arith.constant 0 : i32
    %c0_i32_1 = arith.constant 0 : i32
    return %c0_i32, %c0_i32_0 : i32, i32
  }
  func.func @transform_6(%arg0: i32, %arg1: i32) -> (i32, i32, i32) {
    %c0_i32 = arith.constant 0 : i32
    %c0_i32_0 = arith.constant 0 : i32
    return %arg0, %c0_i32, %arg1 : i32, i32, i32
  }
}

module attributes {stable_mosaic.version = 11 : i64} {
  func.func @kernel(%arg0: i32, %arg1: i32, %arg2: memref<1x32x128xbf16, #tpu.memory_space<vmem>>, %arg3: memref<1x32x128xbf16, #tpu.memory_space<vmem>>, %arg4: memref<32x224xbf16, #tpu.memory_space<vmem>>, %arg5: memref<32x1xf32, #tpu.memory_space<vmem>>, %arg6: memref<1x32x128xbf16, #tpu.memory_space<vmem>>) attributes {dimension_semantics = [#tpu.dimension_semantics<parallel>, #tpu.dimension_semantics<parallel>], iteration_bounds = array<i64: 2, 1>, scalar_prefetch = 0 : i64, scratch_operands = 0 : i64, tpu.core_type = #tpu.core_type<tc>, window_params = [{transform_indices = @transform_0, window_bounds = array<i64: 1, 32, 128>}, {transform_indices = @transform_1, window_bounds = array<i64: 1, 32, 128>}, {pipeline_mode = #tpu.pipeline_mode<synchronous>, transform_indices = @transform_2, window_bounds = array<i64: 32, 224>}, {pipeline_mode = #tpu.pipeline_mode<synchronous>, transform_indices = @transform_3, window_bounds = array<i64: 32, 1>}, {transform_indices = @transform_4, window_bounds = array<i64: 1, 32, 128>}]} {
    %c0 = arith.constant 0 : index
    %c0_0 = arith.constant 0 : index
    %c0_1 = arith.constant 0 : index
    %0 = vector.load %arg2[%c0, %c0_0, %c0_1] : memref<1x32x128xbf16, #tpu.memory_space<vmem>>, vector<1x32x128xbf16>
    %1 = vector.shape_cast %0 : vector<1x32x128xbf16> to vector<32x128xbf16>
    %c0_2 = arith.constant 0 : index
    %c0_3 = arith.constant 0 : index
    %c0_4 = arith.constant 0 : index
    %2 = vector.load %arg3[%c0_2, %c0_3, %c0_4] : memref<1x32x128xbf16, #tpu.memory_space<vmem>>, vector<1x32x128xbf16>
    %3 = vector.shape_cast %2 : vector<1x32x128xbf16> to vector<32x128xbf16>
    %4 = tpu.concatenate %1, %3 in 1 : vector<32x128xbf16>, vector<32x128xbf16> -> vector<32x256xbf16>
    %5 = vector.extract_strided_slice %4 {offsets = [0, 0], sizes = [32, 128], strides = [1, 1]} : vector<32x256xbf16> to vector<32x128xbf16>
    %6 = vector.extract_strided_slice %4 {offsets = [0, 1], sizes = [32, 128], strides = [1, 1]} : vector<32x256xbf16> to vector<32x128xbf16>
    %7 = vector.extract_strided_slice %4 {offsets = [0, 2], sizes = [32, 128], strides = [1, 1]} : vector<32x256xbf16> to vector<32x128xbf16>
    %8 = vector.extract_strided_slice %4 {offsets = [0, 3], sizes = [32, 128], strides = [1, 1]} : vector<32x256xbf16> to vector<32x128xbf16>
    %9 = vector.extract_strided_slice %4 {offsets = [0, 4], sizes = [32, 128], strides = [1, 1]} : vector<32x256xbf16> to vector<32x128xbf16>
    %10 = vector.extract_strided_slice %4 {offsets = [0, 5], sizes = [32, 128], strides = [1, 1]} : vector<32x256xbf16> to vector<32x128xbf16>
    %11 = vector.extract_strided_slice %4 {offsets = [0, 6], sizes = [32, 128], strides = [1, 1]} : vector<32x256xbf16> to vector<32x128xbf16>
    %12 = tpu.concatenate %5, %6, %7, %8, %9, %10, %11 in 0 : vector<32x128xbf16>, vector<32x128xbf16>, vector<32x128xbf16>, vector<32x128xbf16>, vector<32x128xbf16>, vector<32x128xbf16>, vector<32x128xbf16> -> vector<224x128xbf16>
    %c0_5 = arith.constant 0 : index
    %c0_6 = arith.constant 0 : index
    %13 = vector.load %arg4[%c0_5, %c0_6] : memref<32x224xbf16, #tpu.memory_space<vmem>>, vector<32x224xbf16>
    %cst = arith.constant dense<0.000000e+00> : vector<32x128xf32>
    %14 = tpu.matmul %13, %12, %cst {dimension_numbers = #tpu.dot_dimension_numbers<[1], [0], [0], [1], [0, 0, 1, 1], [], []>} : vector<32x224xbf16>, vector<224x128xbf16>, vector<32x128xf32> -> vector<32x128xf32>
    %c0_7 = arith.constant 0 : index
    %c0_8 = arith.constant 0 : index
    %15 = vector.load %arg5[%c0_7, %c0_8] : memref<32x1xf32, #tpu.memory_space<vmem>>, vector<32x1xf32>
    %16 = vector.broadcast %15 : vector<32x1xf32> to vector<32x128xf32>
    %17 = arith.addf %14, %16 : vector<32x128xf32>
    %18 = arith.truncf %17 : vector<32x128xf32> to vector<32x128xbf16>
    %c0_9 = arith.constant 0 : index
    %c0_10 = arith.constant 0 : index
    %c0_11 = arith.constant 0 : index
    %19 = vector.load %arg6[%c0_9, %c0_10, %c0_11] : memref<1x32x128xbf16, #tpu.memory_space<vmem>>, vector<1x32x128xbf16>
    %20 = vector.shape_cast %19 : vector<1x32x128xbf16> to vector<32x128xbf16>
    %21 = vector.shape_cast %18 : vector<32x128xbf16> to vector<1x32x128xbf16>
    tpu.vector_store %arg6[%c0_9, %c0_10, %c0_11], %21 {strides = array<i32>} : memref<1x32x128xbf16, #tpu.memory_space<vmem>>, vector<1x32x128xbf16>,
    return
  }
  func.func @transform_0(%arg0: i32, %arg1: i32) -> (i32, i32, i32) {
    %c0_i32 = arith.constant 0 : i32
    %c0_i32_0 = arith.constant 0 : i32
    return %arg0, %c0_i32, %arg1 : i32, i32, i32
  }
  func.func @transform_1(%arg0: i32, %arg1: i32) -> (i32, i32, i32) {
    %c1_i32 = arith.constant 1 : i32
    %0 = arith.addi %arg1, %c1_i32 : i32
    %c1_i32_0 = arith.constant 1 : i32
    %1 = arith.muli %0, %c1_i32_0 : i32
    %c0_i32 = arith.constant 0 : i32
    %c0_i32_1 = arith.constant 0 : i32
    return %arg0, %c0_i32, %1 : i32, i32, i32
  }
  func.func @transform_2(%arg0: i32, %arg1: i32) -> (i32, i32) {
    %c0_i32 = arith.constant 0 : i32
    %c0_i32_0 = arith.constant 0 : i32
    %c0_i32_1 = arith.constant 0 : i32
    return %c0_i32, %c0_i32_0 : i32, i32
  }
  func.func @transform_3(%arg0: i32, %arg1: i32) -> (i32, i32) {
    %c0_i32 = arith.constant 0 : i32
    %c0_i32_0 = arith.constant 0 : i32
    %c0_i32_1 = arith.constant 0 : i32
    return %c0_i32, %c0_i32_0 : i32, i32
  }
  func.func @transform_4(%arg0: i32, %arg1: i32) -> (i32, i32, i32) {
    %c0_i32 = arith.constant 0 : i32
    %c0_i32_0 = arith.constant 0 : i32
    return %arg0, %c0_i32, %arg1 : i32, i32, i32
  }
}

module attributes {stable_mosaic.version = 11 : i64} {
  func.func @kernel(%arg0: i32, %arg1: i32, %arg2: memref<1x32x128xbf16, #tpu.memory_space<vmem>>, %arg3: memref<1x32x128xbf16, #tpu.memory_space<vmem>>, %arg4: memref<32x64xbf16, #tpu.memory_space<vmem>>, %arg5: memref<32x1xf32, #tpu.memory_space<vmem>>, %arg6: memref<1x32x128xbf16, #tpu.memory_space<vmem>>) attributes {dimension_semantics = [#tpu.dimension_semantics<parallel>, #tpu.dimension_semantics<parallel>], iteration_bounds = array<i64: 2, 1>, scalar_prefetch = 0 : i64, scratch_operands = 0 : i64, tpu.core_type = #tpu.core_type<tc>, window_params = [{transform_indices = @transform_0, window_bounds = array<i64: 1, 32, 128>}, {transform_indices = @transform_1, window_bounds = array<i64: 1, 32, 128>}, {pipeline_mode = #tpu.pipeline_mode<synchronous>, transform_indices = @transform_2, window_bounds = array<i64: 32, 64>}, {pipeline_mode = #tpu.pipeline_mode<synchronous>, transform_indices = @transform_3, window_bounds = array<i64: 32, 1>}, {transform_indices = @transform_4, window_bounds = array<i64: 1, 32, 128>}]} {
    %c0 = arith.constant 0 : index
    %c0_0 = arith.constant 0 : index
    %c0_1 = arith.constant 0 : index
    %0 = vector.load %arg2[%c0, %c0_0, %c0_1] : memref<1x32x128xbf16, #tpu.memory_space<vmem>>, vector<1x32x128xbf16>
    %1 = vector.shape_cast %0 : vector<1x32x128xbf16> to vector<32x128xbf16>
    %c0_2 = arith.constant 0 : index
    %c0_3 = arith.constant 0 : index
    %c0_4 = arith.constant 0 : index
    %2 = vector.load %arg3[%c0_2, %c0_3, %c0_4] : memref<1x32x128xbf16, #tpu.memory_space<vmem>>, vector<1x32x128xbf16>
    %3 = vector.shape_cast %2 : vector<1x32x128xbf16> to vector<32x128xbf16>
    %4 = tpu.concatenate %1, %3 in 1 : vector<32x128xbf16>, vector<32x128xbf16> -> vector<32x256xbf16>
    %5 = arith.extf %4 : vector<32x256xbf16> to vector<32x256xf32>
    %cst = arith.constant 0.000000e+00 : f32
    %6 = vector.broadcast %cst : f32 to vector<32x256xf32>
    %7 = arith.cmpf oge, %5, %6 : vector<32x256xf32>
    %cst_5 = arith.constant 1.000000e-01 : f32
    %8 = vector.broadcast %cst_5 : f32 to vector<32x256xf32>
    %9 = arith.mulf %8, %5 : vector<32x256xf32>
    %10 = arith.select %7, %5, %9 : vector<32x256xi1>, vector<32x256xf32>
    %11 = arith.truncf %10 : vector<32x256xf32> to vector<32x256xbf16>
    %12 = vector.extract_strided_slice %11 {offsets = [0, 0], sizes = [32, 128], strides = [1, 1]} : vector<32x256xbf16> to vector<32x128xbf16>
    %13 = vector.extract_strided_slice %11 {offsets = [0, 1], sizes = [32, 128], strides = [1, 1]} : vector<32x256xbf16> to vector<32x128xbf16>
    %14 = tpu.concatenate %12, %13 in 0 : vector<32x128xbf16>, vector<32x128xbf16> -> vector<64x128xbf16>
    %c0_6 = arith.constant 0 : index
    %c0_7 = arith.constant 0 : index
    %15 = vector.load %arg4[%c0_6, %c0_7] : memref<32x64xbf16, #tpu.memory_space<vmem>>, vector<32x64xbf16>
    %cst_8 = arith.constant dense<0.000000e+00> : vector<32x128xf32>
    %16 = tpu.matmul %15, %14, %cst_8 {dimension_numbers = #tpu.dot_dimension_numbers<[1], [0], [0], [1], [0, 0, 1, 1], [], []>} : vector<32x64xbf16>, vector<64x128xbf16>, vector<32x128xf32> -> vector<32x128xf32>
    %c0_9 = arith.constant 0 : index
    %c0_10 = arith.constant 0 : index
    %17 = vector.load %arg5[%c0_9, %c0_10] : memref<32x1xf32, #tpu.memory_space<vmem>>, vector<32x1xf32>
    %18 = vector.broadcast %17 : vector<32x1xf32> to vector<32x128xf32>
    %19 = arith.addf %16, %18 : vector<32x128xf32>
    %20 = arith.truncf %19 : vector<32x128xf32> to vector<32x128xbf16>
    %c0_11 = arith.constant 0 : index
    %c0_12 = arith.constant 0 : index
    %c0_13 = arith.constant 0 : index
    %21 = vector.load %arg6[%c0_11, %c0_12, %c0_13] : memref<1x32x128xbf16, #tpu.memory_space<vmem>>, vector<1x32x128xbf16>
    %22 = vector.shape_cast %21 : vector<1x32x128xbf16> to vector<32x128xbf16>
    %23 = vector.shape_cast %20 : vector<32x128xbf16> to vector<1x32x128xbf16>
    tpu.vector_store %arg6[%c0_11, %c0_12, %c0_13], %23 {strides = array<i32>} : memref<1x32x128xbf16, #tpu.memory_space<vmem>>, vector<1x32x128xbf16>,
    return
  }
  func.func @transform_0(%arg0: i32, %arg1: i32) -> (i32, i32, i32) {
    %c0_i32 = arith.constant 0 : i32
    %c0_i32_0 = arith.constant 0 : i32
    return %arg0, %c0_i32, %arg1 : i32, i32, i32
  }
  func.func @transform_1(%arg0: i32, %arg1: i32) -> (i32, i32, i32) {
    %c1_i32 = arith.constant 1 : i32
    %0 = arith.addi %arg1, %c1_i32 : i32
    %c1_i32_0 = arith.constant 1 : i32
    %1 = arith.muli %0, %c1_i32_0 : i32
    %c0_i32 = arith.constant 0 : i32
    %c0_i32_1 = arith.constant 0 : i32
    return %arg0, %c0_i32, %1 : i32, i32, i32
  }
  func.func @transform_2(%arg0: i32, %arg1: i32) -> (i32, i32) {
    %c0_i32 = arith.constant 0 : i32
    %c0_i32_0 = arith.constant 0 : i32
    %c0_i32_1 = arith.constant 0 : i32
    return %c0_i32, %c0_i32_0 : i32, i32
  }
  func.func @transform_3(%arg0: i32, %arg1: i32) -> (i32, i32) {
    %c0_i32 = arith.constant 0 : i32
    %c0_i32_0 = arith.constant 0 : i32
    %c0_i32_1 = arith.constant 0 : i32
    return %c0_i32, %c0_i32_0 : i32, i32
  }
  func.func @transform_4(%arg0: i32, %arg1: i32) -> (i32, i32, i32) {
    %c0_i32 = arith.constant 0 : i32
    %c0_i32_0 = arith.constant 0 : i32
    return %arg0, %c0_i32, %arg1 : i32, i32, i32
  }
}

module attributes {stable_mosaic.version = 11 : i64} {
  func.func @kernel(%arg0: i32, %arg1: i32, %arg2: memref<1x16x128xbf16, #tpu.memory_space<vmem>>, %arg3: memref<1x16x128xbf16, #tpu.memory_space<vmem>>, %arg4: memref<16x48xbf16, #tpu.memory_space<vmem>>, %arg5: memref<16x1xf32, #tpu.memory_space<vmem>>, %arg6: memref<16x48xbf16, #tpu.memory_space<vmem>>, %arg7: memref<16x1xf32, #tpu.memory_space<vmem>>, %arg8: memref<1x16x128xbf16, #tpu.memory_space<vmem>>) attributes {dimension_semantics = [#tpu.dimension_semantics<parallel>, #tpu.dimension_semantics<parallel>], iteration_bounds = array<i64: 2, 1>, scalar_prefetch = 0 : i64, scratch_operands = 0 : i64, tpu.core_type = #tpu.core_type<tc>, window_params = [{transform_indices = @transform_0, window_bounds = array<i64: 1, 16, 128>}, {transform_indices = @transform_1, window_bounds = array<i64: 1, 16, 128>}, {pipeline_mode = #tpu.pipeline_mode<synchronous>, transform_indices = @transform_2, window_bounds = array<i64: 16, 48>}, {pipeline_mode = #tpu.pipeline_mode<synchronous>, transform_indices = @transform_3, window_bounds = array<i64: 16, 1>}, {pipeline_mode = #tpu.pipeline_mode<synchronous>, transform_indices = @transform_4, window_bounds = array<i64: 16, 48>}, {pipeline_mode = #tpu.pipeline_mode<synchronous>, transform_indices = @transform_5, window_bounds = array<i64: 16, 1>}, {transform_indices = @transform_6, window_bounds = array<i64: 1, 16, 128>}]} {
    %c0 = arith.constant 0 : index
    %c0_0 = arith.constant 0 : index
    %c0_1 = arith.constant 0 : index
    %0 = vector.load %arg2[%c0, %c0_0, %c0_1] : memref<1x16x128xbf16, #tpu.memory_space<vmem>>, vector<1x16x128xbf16>
    %1 = vector.shape_cast %0 : vector<1x16x128xbf16> to vector<16x128xbf16>
    %c0_2 = arith.constant 0 : index
    %c0_3 = arith.constant 0 : index
    %c0_4 = arith.constant 0 : index
    %2 = vector.load %arg3[%c0_2, %c0_3, %c0_4] : memref<1x16x128xbf16, #tpu.memory_space<vmem>>, vector<1x16x128xbf16>
    %3 = vector.shape_cast %2 : vector<1x16x128xbf16> to vector<16x128xbf16>
    %4 = tpu.concatenate %1, %3 in 1 : vector<16x128xbf16>, vector<16x128xbf16> -> vector<16x256xbf16>
    %5 = arith.extf %4 : vector<16x256xbf16> to vector<16x256xf32>
    %cst = arith.constant 0.000000e+00 : f32
    %6 = vector.broadcast %cst : f32 to vector<16x256xf32>
    %7 = arith.cmpf oge, %5, %6 : vector<16x256xf32>
    %cst_5 = arith.constant 1.000000e-01 : f32
    %8 = vector.broadcast %cst_5 : f32 to vector<16x256xf32>
    %9 = arith.mulf %8, %5 : vector<16x256xf32>
    %10 = arith.select %7, %5, %9 : vector<16x256xi1>, vector<16x256xf32>
    %11 = arith.truncf %10 : vector<16x256xf32> to vector<16x256xbf16>
    %12 = vector.extract_strided_slice %11 {offsets = [0, 0], sizes = [16, 130], strides = [1, 1]} : vector<16x256xbf16> to vector<16x130xbf16>
    %13 = vector.extract_strided_slice %11 {offsets = [0, 3], sizes = [16, 130], strides = [1, 1]} : vector<16x256xbf16> to vector<16x130xbf16>
    %14 = vector.extract_strided_slice %11 {offsets = [0, 6], sizes = [16, 130], strides = [1, 1]} : vector<16x256xbf16> to vector<16x130xbf16>
    %15 = tpu.concatenate %12, %13, %14 in 0 : vector<16x130xbf16>, vector<16x130xbf16>, vector<16x130xbf16> -> vector<48x130xbf16>
    %c0_6 = arith.constant 0 : index
    %c0_7 = arith.constant 0 : index
    %16 = vector.load %arg4[%c0_6, %c0_7] : memref<16x48xbf16, #tpu.memory_space<vmem>>, vector<16x48xbf16>
    %cst_8 = arith.constant dense<0.000000e+00> : vector<16x130xf32>
    %17 = tpu.matmul %16, %15, %cst_8 {dimension_numbers = #tpu.dot_dimension_numbers<[1], [0], [0], [1], [0, 0, 1, 1], [], []>} : vector<16x48xbf16>, vector<48x130xbf16>, vector<16x130xf32> -> vector<16x130xf32>
    %c0_9 = arith.constant 0 : index
    %c0_10 = arith.constant 0 : index
    %18 = vector.load %arg5[%c0_9, %c0_10] : memref<16x1xf32, #tpu.memory_space<vmem>>, vector<16x1xf32>
    %19 = vector.broadcast %18 : vector<16x1xf32> to vector<16x130xf32>
    %20 = arith.addf %17, %19 : vector<16x130xf32>
    %cst_11 = arith.constant 0.000000e+00 : f32
    %21 = vector.broadcast %cst_11 : f32 to vector<16x130xf32>
    %22 = arith.cmpf oge, %20, %21 : vector<16x130xf32>
    %cst_12 = arith.constant 1.000000e-01 : f32
    %23 = vector.broadcast %cst_12 : f32 to vector<16x130xf32>
    %24 = arith.mulf %23, %20 : vector<16x130xf32>
    %25 = arith.select %22, %20, %24 : vector<16x130xi1>, vector<16x130xf32>
    %c128_i32 = arith.constant 128 : i32
    %26 = arith.muli %arg1, %c128_i32 : i32
    %c1_i32 = arith.constant 1 : i32
    %27 = arith.subi %26, %c1_i32 : i32
    %28 = tpu.iota {dimensions = array<i32: 1>} : vector<1x130xi32>
    %29 = vector.broadcast %27 : i32 to vector<1x130xi32>
    %30 = arith.addi %29, %28 : vector<1x130xi32>
    %c0_i32 = arith.constant 0 : i32
    %31 = vector.broadcast %c0_i32 : i32 to vector<1x130xi32>
    %32 = arith.cmpi sge, %30, %31 : vector<1x130xi32>
    %c16_i32 = arith.constant 16 : i32
    %33 = vector.broadcast %c16_i32 : i32 to vector<1x130xi32>
    %34 = arith.cmpi slt, %30, %33 : vector<1x130xi32>
    %35 = arith.andi %32, %34 : vector<1x130xi1>
    %cst_13 = arith.constant 0.000000e+00 : f32
    %36 = vector.shape_cast %35 : vector<1x130xi1> to vector<1x130xi1>
    %37 = vector.broadcast %36 : vector<1x130xi1> to vector<16x130xi1>
    %38 = vector.broadcast %cst_13 : f32 to vector<16x130xf32>
    %39 = arith.select %37, %25, %38 : vector<16x130xi1>, vector<16x130xf32>
    %40 = arith.truncf %39 : vector<16x130xf32> to vector<16x130xbf16>
    %41 = vector.extract_strided_slice %40 {offsets = [0, 0], sizes = [16, 128], strides = [1, 1]} : vector<16x130xbf16> to vector<16x128xbf16>
    %42 = vector.extract_strided_slice %40 {offsets = [0, 1], sizes = [16, 128], strides = [1, 1]} : vector<16x130xbf16> to vector<16x128xbf16>
    %43 = vector.extract_strided_slice %40 {offsets = [0, 2], sizes = [16, 128], strides = [1, 1]} : vector<16x130xbf16> to vector<16x128xbf16>
    %44 = tpu.concatenate %41, %42, %43 in 0 : vector<16x128xbf16>, vector<16x128xbf16>, vector<16x128xbf16> -> vector<48x128xbf16>
    %c0_14 = arith.constant 0 : index
    %c0_15 = arith.constant 0 : index
    %45 = vector.load %arg6[%c0_14, %c0_15] : memref<16x48xbf16, #tpu.memory_space<vmem>>, vector<16x48xbf16>
    %cst_16 = arith.constant dense<0.000000e+00> : vector<16x128xf32>
    %46 = tpu.matmul %45, %44, %cst_16 {dimension_numbers = #tpu.dot_dimension_numbers<[1], [0], [0], [1], [0, 0, 1, 1], [], []>} : vector<16x48xbf16>, vector<48x128xbf16>, vector<16x128xf32> -> vector<16x128xf32>
    %c0_17 = arith.constant 0 : index
    %c0_18 = arith.constant 0 : index
    %47 = vector.load %arg7[%c0_17, %c0_18] : memref<16x1xf32, #tpu.memory_space<vmem>>, vector<16x1xf32>
    %48 = vector.broadcast %47 : vector<16x1xf32> to vector<16x128xf32>
    %49 = arith.addf %46, %48 : vector<16x128xf32>
    %50 = vector.extract_strided_slice %4 {offsets = [0, 4], sizes = [16, 128], strides = [1, 1]} : vector<16x256xbf16> to vector<16x128xbf16>
    %51 = arith.extf %50 : vector<16x128xbf16> to vector<16x128xf32>
    %52 = arith.addf %49, %51 : vector<16x128xf32>
    %53 = arith.truncf %52 : vector<16x128xf32> to vector<16x128xbf16>
    %c0_19 = arith.constant 0 : index
    %c0_20 = arith.constant 0 : index
    %c0_21 = arith.constant 0 : index
    %54 = vector.load %arg8[%c0_19, %c0_20, %c0_21] : memref<1x16x128xbf16, #tpu.memory_space<vmem>>, vector<1x16x128xbf16>
    %55 = vector.shape_cast %54 : vector<1x16x128xbf16> to vector<16x128xbf16>
    %56 = vector.shape_cast %53 : vector<16x128xbf16> to vector<1x16x128xbf16>
    tpu.vector_store %arg8[%c0_19, %c0_20, %c0_21], %56 {strides = array<i32>} : memref<1x16x128xbf16, #tpu.memory_space<vmem>>, vector<1x16x128xbf16>,
    return
  }
  func.func @transform_0(%arg0: i32, %arg1: i32) -> (i32, i32, i32) {
    %c0_i32 = arith.constant 0 : i32
    %c0_i32_0 = arith.constant 0 : i32
    return %arg0, %c0_i32, %arg1 : i32, i32, i32
  }
  func.func @transform_1(%arg0: i32, %arg1: i32) -> (i32, i32, i32) {
    %c1_i32 = arith.constant 1 : i32
    %0 = arith.addi %arg1, %c1_i32 : i32
    %c1_i32_0 = arith.constant 1 : i32
    %1 = arith.muli %0, %c1_i32_0 : i32
    %c0_i32 = arith.constant 0 : i32
    %c0_i32_1 = arith.constant 0 : i32
    return %arg0, %c0_i32, %1 : i32, i32, i32
  }
  func.func @transform_2(%arg0: i32, %arg1: i32) -> (i32, i32) {
    %c0_i32 = arith.constant 0 : i32
    %c0_i32_0 = arith.constant 0 : i32
    %c0_i32_1 = arith.constant 0 : i32
    return %c0_i32, %c0_i32_0 : i32, i32
  }
  func.func @transform_3(%arg0: i32, %arg1: i32) -> (i32, i32) {
    %c0_i32 = arith.constant 0 : i32
    %c0_i32_0 = arith.constant 0 : i32
    %c0_i32_1 = arith.constant 0 : i32
    return %c0_i32, %c0_i32_0 : i32, i32
  }
  func.func @transform_4(%arg0: i32, %arg1: i32) -> (i32, i32) {
    %c0_i32 = arith.constant 0 : i32
    %c0_i32_0 = arith.constant 0 : i32
    %c0_i32_1 = arith.constant 0 : i32
    return %c0_i32, %c0_i32_0 : i32, i32
  }
  func.func @transform_5(%arg0: i32, %arg1: i32) -> (i32, i32) {
    %c0_i32 = arith.constant 0 : i32
    %c0_i32_0 = arith.constant 0 : i32
    %c0_i32_1 = arith.constant 0 : i32
    return %c0_i32, %c0_i32_0 : i32, i32
  }
  func.func @transform_6(%arg0: i32, %arg1: i32) -> (i32, i32, i32) {
    %c0_i32 = arith.constant 0 : i32
    %c0_i32_0 = arith.constant 0 : i32
    return %arg0, %c0_i32, %arg1 : i32, i32, i32
  }
}

module attributes {stable_mosaic.version = 11 : i64} {
  func.func @kernel(%arg0: i32, %arg1: i32, %arg2: memref<1x16x128xbf16, #tpu.memory_space<vmem>>, %arg3: memref<1x16x128xbf16, #tpu.memory_space<vmem>>, %arg4: memref<16x80xbf16, #tpu.memory_space<vmem>>, %arg5: memref<16x1xf32, #tpu.memory_space<vmem>>, %arg6: memref<16x80xbf16, #tpu.memory_space<vmem>>, %arg7: memref<16x1xf32, #tpu.memory_space<vmem>>, %arg8: memref<1x16x128xbf16, #tpu.memory_space<vmem>>) attributes {dimension_semantics = [#tpu.dimension_semantics<parallel>, #tpu.dimension_semantics<parallel>], iteration_bounds = array<i64: 2, 1>, scalar_prefetch = 0 : i64, scratch_operands = 0 : i64, tpu.core_type = #tpu.core_type<tc>, window_params = [{transform_indices = @transform_0, window_bounds = array<i64: 1, 16, 128>}, {transform_indices = @transform_1, window_bounds = array<i64: 1, 16, 128>}, {pipeline_mode = #tpu.pipeline_mode<synchronous>, transform_indices = @transform_2, window_bounds = array<i64: 16, 80>}, {pipeline_mode = #tpu.pipeline_mode<synchronous>, transform_indices = @transform_3, window_bounds = array<i64: 16, 1>}, {pipeline_mode = #tpu.pipeline_mode<synchronous>, transform_indices = @transform_4, window_bounds = array<i64: 16, 80>}, {pipeline_mode = #tpu.pipeline_mode<synchronous>, transform_indices = @transform_5, window_bounds = array<i64: 16, 1>}, {transform_indices = @transform_6, window_bounds = array<i64: 1, 16, 128>}]} {
    %c0 = arith.constant 0 : index
    %c0_0 = arith.constant 0 : index
    %c0_1 = arith.constant 0 : index
    %0 = vector.load %arg2[%c0, %c0_0, %c0_1] : memref<1x16x128xbf16, #tpu.memory_space<vmem>>, vector<1x16x128xbf16>
    %1 = vector.shape_cast %0 : vector<1x16x128xbf16> to vector<16x128xbf16>
    %c0_2 = arith.constant 0 : index
    %c0_3 = arith.constant 0 : index
    %c0_4 = arith.constant 0 : index
    %2 = vector.load %arg3[%c0_2, %c0_3, %c0_4] : memref<1x16x128xbf16, #tpu.memory_space<vmem>>, vector<1x16x128xbf16>
    %3 = vector.shape_cast %2 : vector<1x16x128xbf16> to vector<16x128xbf16>
    %4 = tpu.concatenate %1, %3 in 1 : vector<16x128xbf16>, vector<16x128xbf16> -> vector<16x256xbf16>
    %5 = arith.extf %4 : vector<16x256xbf16> to vector<16x256xf32>
    %cst = arith.constant 0.000000e+00 : f32
    %6 = vector.broadcast %cst : f32 to vector<16x256xf32>
    %7 = arith.cmpf oge, %5, %6 : vector<16x256xf32>
    %cst_5 = arith.constant 1.000000e-01 : f32
    %8 = vector.broadcast %cst_5 : f32 to vector<16x256xf32>
    %9 = arith.mulf %8, %5 : vector<16x256xf32>
    %10 = arith.select %7, %5, %9 : vector<16x256xi1>, vector<16x256xf32>
    %11 = arith.truncf %10 : vector<16x256xf32> to vector<16x256xbf16>
    %12 = vector.extract_strided_slice %11 {offsets = [0, 0], sizes = [16, 132], strides = [1, 1]} : vector<16x256xbf16> to vector<16x132xbf16>
    %13 = vector.extract_strided_slice %11 {offsets = [0, 1], sizes = [16, 132], strides = [1, 1]} : vector<16x256xbf16> to vector<16x132xbf16>
    %14 = vector.extract_strided_slice %11 {offsets = [0, 2], sizes = [16, 132], strides = [1, 1]} : vector<16x256xbf16> to vector<16x132xbf16>
    %15 = vector.extract_strided_slice %11 {offsets = [0, 3], sizes = [16, 132], strides = [1, 1]} : vector<16x256xbf16> to vector<16x132xbf16>
    %16 = vector.extract_strided_slice %11 {offsets = [0, 4], sizes = [16, 132], strides = [1, 1]} : vector<16x256xbf16> to vector<16x132xbf16>
    %17 = tpu.concatenate %12, %13, %14, %15, %16 in 0 : vector<16x132xbf16>, vector<16x132xbf16>, vector<16x132xbf16>, vector<16x132xbf16>, vector<16x132xbf16> -> vector<80x132xbf16>
    %c0_6 = arith.constant 0 : index
    %c0_7 = arith.constant 0 : index
    %18 = vector.load %arg4[%c0_6, %c0_7] : memref<16x80xbf16, #tpu.memory_space<vmem>>, vector<16x80xbf16>
    %cst_8 = arith.constant dense<0.000000e+00> : vector<16x132xf32>
    %19 = tpu.matmul %18, %17, %cst_8 {dimension_numbers = #tpu.dot_dimension_numbers<[1], [0], [0], [1], [0, 0, 1, 1], [], []>} : vector<16x80xbf16>, vector<80x132xbf16>, vector<16x132xf32> -> vector<16x132xf32>
    %c0_9 = arith.constant 0 : index
    %c0_10 = arith.constant 0 : index
    %20 = vector.load %arg5[%c0_9, %c0_10] : memref<16x1xf32, #tpu.memory_space<vmem>>, vector<16x1xf32>
    %21 = vector.broadcast %20 : vector<16x1xf32> to vector<16x132xf32>
    %22 = arith.addf %19, %21 : vector<16x132xf32>
    %cst_11 = arith.constant 0.000000e+00 : f32
    %23 = vector.broadcast %cst_11 : f32 to vector<16x132xf32>
    %24 = arith.cmpf oge, %22, %23 : vector<16x132xf32>
    %cst_12 = arith.constant 1.000000e-01 : f32
    %25 = vector.broadcast %cst_12 : f32 to vector<16x132xf32>
    %26 = arith.mulf %25, %22 : vector<16x132xf32>
    %27 = arith.select %24, %22, %26 : vector<16x132xi1>, vector<16x132xf32>
    %c128_i32 = arith.constant 128 : i32
    %28 = arith.muli %arg1, %c128_i32 : i32
    %c2_i32 = arith.constant 2 : i32
    %29 = arith.subi %28, %c2_i32 : i32
    %30 = tpu.iota {dimensions = array<i32: 1>} : vector<1x132xi32>
    %31 = vector.broadcast %29 : i32 to vector<1x132xi32>
    %32 = arith.addi %31, %30 : vector<1x132xi32>
    %c0_i32 = arith.constant 0 : i32
    %33 = vector.broadcast %c0_i32 : i32 to vector<1x132xi32>
    %34 = arith.cmpi sge, %32, %33 : vector<1x132xi32>
    %c16_i32 = arith.constant 16 : i32
    %35 = vector.broadcast %c16_i32 : i32 to vector<1x132xi32>
    %36 = arith.cmpi slt, %32, %35 : vector<1x132xi32>
    %37 = arith.andi %34, %36 : vector<1x132xi1>
    %cst_13 = arith.constant 0.000000e+00 : f32
    %38 = vector.shape_cast %37 : vector<1x132xi1> to vector<1x132xi1>
    %39 = vector.broadcast %38 : vector<1x132xi1> to vector<16x132xi1>
    %40 = vector.broadcast %cst_13 : f32 to vector<16x132xf32>
    %41 = arith.select %39, %27, %40 : vector<16x132xi1>, vector<16x132xf32>
    %42 = arith.truncf %41 : vector<16x132xf32> to vector<16x132xbf16>
    %43 = vector.extract_strided_slice %42 {offsets = [0, 0], sizes = [16, 128], strides = [1, 1]} : vector<16x132xbf16> to vector<16x128xbf16>
    %44 = vector.extract_strided_slice %42 {offsets = [0, 1], sizes = [16, 128], strides = [1, 1]} : vector<16x132xbf16> to vector<16x128xbf16>
    %45 = vector.extract_strided_slice %42 {offsets = [0, 2], sizes = [16, 128], strides = [1, 1]} : vector<16x132xbf16> to vector<16x128xbf16>
    %46 = vector.extract_strided_slice %42 {offsets = [0, 3], sizes = [16, 128], strides = [1, 1]} : vector<16x132xbf16> to vector<16x128xbf16>
    %47 = vector.extract_strided_slice %42 {offsets = [0, 4], sizes = [16, 128], strides = [1, 1]} : vector<16x132xbf16> to vector<16x128xbf16>
    %48 = tpu.concatenate %43, %44, %45, %46, %47 in 0 : vector<16x128xbf16>, vector<16x128xbf16>, vector<16x128xbf16>, vector<16x128xbf16>, vector<16x128xbf16> -> vector<80x128xbf16>
    %c0_14 = arith.constant 0 : index
    %c0_15 = arith.constant 0 : index
    %49 = vector.load %arg6[%c0_14, %c0_15] : memref<16x80xbf16, #tpu.memory_space<vmem>>, vector<16x80xbf16>
    %cst_16 = arith.constant dense<0.000000e+00> : vector<16x128xf32>
    %50 = tpu.matmul %49, %48, %cst_16 {dimension_numbers = #tpu.dot_dimension_numbers<[1], [0], [0], [1], [0, 0, 1, 1], [], []>} : vector<16x80xbf16>, vector<80x128xbf16>, vector<16x128xf32> -> vector<16x128xf32>
    %c0_17 = arith.constant 0 : index
    %c0_18 = arith.constant 0 : index
    %51 = vector.load %arg7[%c0_17, %c0_18] : memref<16x1xf32, #tpu.memory_space<vmem>>, vector<16x1xf32>
    %52 = vector.broadcast %51 : vector<16x1xf32> to vector<16x128xf32>
    %53 = arith.addf %50, %52 : vector<16x128xf32>
    %54 = vector.extract_strided_slice %4 {offsets = [0, 4], sizes = [16, 128], strides = [1, 1]} : vector<16x256xbf16> to vector<16x128xbf16>
    %55 = arith.extf %54 : vector<16x128xbf16> to vector<16x128xf32>
    %56 = arith.addf %53, %55 : vector<16x128xf32>
    %57 = arith.truncf %56 : vector<16x128xf32> to vector<16x128xbf16>
    %c0_19 = arith.constant 0 : index
    %c0_20 = arith.constant 0 : index
    %c0_21 = arith.constant 0 : index
    %58 = vector.load %arg8[%c0_19, %c0_20, %c0_21] : memref<1x16x128xbf16, #tpu.memory_space<vmem>>, vector<1x16x128xbf16>
    %59 = vector.shape_cast %58 : vector<1x16x128xbf16> to vector<16x128xbf16>
    %60 = vector.shape_cast %57 : vector<16x128xbf16> to vector<1x16x128xbf16>
    tpu.vector_store %arg8[%c0_19, %c0_20, %c0_21], %60 {strides = array<i32>} : memref<1x16x128xbf16, #tpu.memory_space<vmem>>, vector<1x16x128xbf16>,
    return
  }
  func.func @transform_0(%arg0: i32, %arg1: i32) -> (i32, i32, i32) {
    %c0_i32 = arith.constant 0 : i32
    %c0_i32_0 = arith.constant 0 : i32
    return %arg0, %c0_i32, %arg1 : i32, i32, i32
  }
  func.func @transform_1(%arg0: i32, %arg1: i32) -> (i32, i32, i32) {
    %c1_i32 = arith.constant 1 : i32
    %0 = arith.addi %arg1, %c1_i32 : i32
    %c1_i32_0 = arith.constant 1 : i32
    %1 = arith.muli %0, %c1_i32_0 : i32
    %c0_i32 = arith.constant 0 : i32
    %c0_i32_1 = arith.constant 0 : i32
    return %arg0, %c0_i32, %1 : i32, i32, i32
  }
  func.func @transform_2(%arg0: i32, %arg1: i32) -> (i32, i32) {
    %c0_i32 = arith.constant 0 : i32
    %c0_i32_0 = arith.constant 0 : i32
    %c0_i32_1 = arith.constant 0 : i32
    return %c0_i32, %c0_i32_0 : i32, i32
  }
  func.func @transform_3(%arg0: i32, %arg1: i32) -> (i32, i32) {
    %c0_i32 = arith.constant 0 : i32
    %c0_i32_0 = arith.constant 0 : i32
    %c0_i32_1 = arith.constant 0 : i32
    return %c0_i32, %c0_i32_0 : i32, i32
  }
  func.func @transform_4(%arg0: i32, %arg1: i32) -> (i32, i32) {
    %c0_i32 = arith.constant 0 : i32
    %c0_i32_0 = arith.constant 0 : i32
    %c0_i32_1 = arith.constant 0 : i32
    return %c0_i32, %c0_i32_0 : i32, i32
  }
  func.func @transform_5(%arg0: i32, %arg1: i32) -> (i32, i32) {
    %c0_i32 = arith.constant 0 : i32
    %c0_i32_0 = arith.constant 0 : i32
    %c0_i32_1 = arith.constant 0 : i32
    return %c0_i32, %c0_i32_0 : i32, i32
  }
  func.func @transform_6(%arg0: i32, %arg1: i32) -> (i32, i32, i32) {
    %c0_i32 = arith.constant 0 : i32
    %c0_i32_0 = arith.constant 0 : i32
    return %arg0, %c0_i32, %arg1 : i32, i32, i32
  }
}

module attributes {stable_mosaic.version = 11 : i64} {
  func.func @kernel(%arg0: i32, %arg1: i32, %arg2: memref<1x16x128xbf16, #tpu.memory_space<vmem>>, %arg3: memref<1x16x128xbf16, #tpu.memory_space<vmem>>, %arg4: memref<16x80xbf16, #tpu.memory_space<vmem>>, %arg5: memref<16x1xf32, #tpu.memory_space<vmem>>, %arg6: memref<16x80xbf16, #tpu.memory_space<vmem>>, %arg7: memref<16x1xf32, #tpu.memory_space<vmem>>, %arg8: memref<1x16x128xbf16, #tpu.memory_space<vmem>>) attributes {dimension_semantics = [#tpu.dimension_semantics<parallel>, #tpu.dimension_semantics<parallel>], iteration_bounds = array<i64: 2, 1>, scalar_prefetch = 0 : i64, scratch_operands = 0 : i64, tpu.core_type = #tpu.core_type<tc>, window_params = [{transform_indices = @transform_0, window_bounds = array<i64: 1, 16, 128>}, {transform_indices = @transform_1, window_bounds = array<i64: 1, 16, 128>}, {pipeline_mode = #tpu.pipeline_mode<synchronous>, transform_indices = @transform_2, window_bounds = array<i64: 16, 80>}, {pipeline_mode = #tpu.pipeline_mode<synchronous>, transform_indices = @transform_3, window_bounds = array<i64: 16, 1>}, {pipeline_mode = #tpu.pipeline_mode<synchronous>, transform_indices = @transform_4, window_bounds = array<i64: 16, 80>}, {pipeline_mode = #tpu.pipeline_mode<synchronous>, transform_indices = @transform_5, window_bounds = array<i64: 16, 1>}, {transform_indices = @transform_6, window_bounds = array<i64: 1, 16, 128>}]} {
    %c0 = arith.constant 0 : index
    %c0_0 = arith.constant 0 : index
    %c0_1 = arith.constant 0 : index
    %0 = vector.load %arg2[%c0, %c0_0, %c0_1] : memref<1x16x128xbf16, #tpu.memory_space<vmem>>, vector<1x16x128xbf16>
    %1 = vector.shape_cast %0 : vector<1x16x128xbf16> to vector<16x128xbf16>
    %c0_2 = arith.constant 0 : index
    %c0_3 = arith.constant 0 : index
    %c0_4 = arith.constant 0 : index
    %2 = vector.load %arg3[%c0_2, %c0_3, %c0_4] : memref<1x16x128xbf16, #tpu.memory_space<vmem>>, vector<1x16x128xbf16>
    %3 = vector.shape_cast %2 : vector<1x16x128xbf16> to vector<16x128xbf16>
    %4 = tpu.concatenate %1, %3 in 1 : vector<16x128xbf16>, vector<16x128xbf16> -> vector<16x256xbf16>
    %5 = arith.extf %4 : vector<16x256xbf16> to vector<16x256xf32>
    %cst = arith.constant 0.000000e+00 : f32
    %6 = vector.broadcast %cst : f32 to vector<16x256xf32>
    %7 = arith.cmpf oge, %5, %6 : vector<16x256xf32>
    %cst_5 = arith.constant 1.000000e-01 : f32
    %8 = vector.broadcast %cst_5 : f32 to vector<16x256xf32>
    %9 = arith.mulf %8, %5 : vector<16x256xf32>
    %10 = arith.select %7, %5, %9 : vector<16x256xi1>, vector<16x256xf32>
    %11 = arith.truncf %10 : vector<16x256xf32> to vector<16x256xbf16>
    %12 = vector.extract_strided_slice %11 {offsets = [0, 0], sizes = [16, 132], strides = [1, 1]} : vector<16x256xbf16> to vector<16x132xbf16>
    %13 = vector.extract_strided_slice %11 {offsets = [0, 3], sizes = [16, 132], strides = [1, 1]} : vector<16x256xbf16> to vector<16x132xbf16>
    %14 = vector.extract_strided_slice %11 {offsets = [0, 6], sizes = [16, 132], strides = [1, 1]} : vector<16x256xbf16> to vector<16x132xbf16>
    %15 = vector.extract_strided_slice %11 {offsets = [0, 9], sizes = [16, 132], strides = [1, 1]} : vector<16x256xbf16> to vector<16x132xbf16>
    %16 = vector.extract_strided_slice %11 {offsets = [0, 12], sizes = [16, 132], strides = [1, 1]} : vector<16x256xbf16> to vector<16x132xbf16>
    %17 = tpu.concatenate %12, %13, %14, %15, %16 in 0 : vector<16x132xbf16>, vector<16x132xbf16>, vector<16x132xbf16>, vector<16x132xbf16>, vector<16x132xbf16> -> vector<80x132xbf16>
    %c0_6 = arith.constant 0 : index
    %c0_7 = arith.constant 0 : index
    %18 = vector.load %arg4[%c0_6, %c0_7] : memref<16x80xbf16, #tpu.memory_space<vmem>>, vector<16x80xbf16>
    %cst_8 = arith.constant dense<0.000000e+00> : vector<16x132xf32>
    %19 = tpu.matmul %18, %17, %cst_8 {dimension_numbers = #tpu.dot_dimension_numbers<[1], [0], [0], [1], [0, 0, 1, 1], [], []>} : vector<16x80xbf16>, vector<80x132xbf16>, vector<16x132xf32> -> vector<16x132xf32>
    %c0_9 = arith.constant 0 : index
    %c0_10 = arith.constant 0 : index
    %20 = vector.load %arg5[%c0_9, %c0_10] : memref<16x1xf32, #tpu.memory_space<vmem>>, vector<16x1xf32>
    %21 = vector.broadcast %20 : vector<16x1xf32> to vector<16x132xf32>
    %22 = arith.addf %19, %21 : vector<16x132xf32>
    %cst_11 = arith.constant 0.000000e+00 : f32
    %23 = vector.broadcast %cst_11 : f32 to vector<16x132xf32>
    %24 = arith.cmpf oge, %22, %23 : vector<16x132xf32>
    %cst_12 = arith.constant 1.000000e-01 : f32
    %25 = vector.broadcast %cst_12 : f32 to vector<16x132xf32>
    %26 = arith.mulf %25, %22 : vector<16x132xf32>
    %27 = arith.select %24, %22, %26 : vector<16x132xi1>, vector<16x132xf32>
    %c128_i32 = arith.constant 128 : i32
    %28 = arith.muli %arg1, %c128_i32 : i32
    %c2_i32 = arith.constant 2 : i32
    %29 = arith.subi %28, %c2_i32 : i32
    %30 = tpu.iota {dimensions = array<i32: 1>} : vector<1x132xi32>
    %31 = vector.broadcast %29 : i32 to vector<1x132xi32>
    %32 = arith.addi %31, %30 : vector<1x132xi32>
    %c0_i32 = arith.constant 0 : i32
    %33 = vector.broadcast %c0_i32 : i32 to vector<1x132xi32>
    %34 = arith.cmpi sge, %32, %33 : vector<1x132xi32>
    %c16_i32 = arith.constant 16 : i32
    %35 = vector.broadcast %c16_i32 : i32 to vector<1x132xi32>
    %36 = arith.cmpi slt, %32, %35 : vector<1x132xi32>
    %37 = arith.andi %34, %36 : vector<1x132xi1>
    %cst_13 = arith.constant 0.000000e+00 : f32
    %38 = vector.shape_cast %37 : vector<1x132xi1> to vector<1x132xi1>
    %39 = vector.broadcast %38 : vector<1x132xi1> to vector<16x132xi1>
    %40 = vector.broadcast %cst_13 : f32 to vector<16x132xf32>
    %41 = arith.select %39, %27, %40 : vector<16x132xi1>, vector<16x132xf32>
    %42 = arith.truncf %41 : vector<16x132xf32> to vector<16x132xbf16>
    %43 = vector.extract_strided_slice %42 {offsets = [0, 0], sizes = [16, 128], strides = [1, 1]} : vector<16x132xbf16> to vector<16x128xbf16>
    %44 = vector.extract_strided_slice %42 {offsets = [0, 1], sizes = [16, 128], strides = [1, 1]} : vector<16x132xbf16> to vector<16x128xbf16>
    %45 = vector.extract_strided_slice %42 {offsets = [0, 2], sizes = [16, 128], strides = [1, 1]} : vector<16x132xbf16> to vector<16x128xbf16>
    %46 = vector.extract_strided_slice %42 {offsets = [0, 3], sizes = [16, 128], strides = [1, 1]} : vector<16x132xbf16> to vector<16x128xbf16>
    %47 = vector.extract_strided_slice %42 {offsets = [0, 4], sizes = [16, 128], strides = [1, 1]} : vector<16x132xbf16> to vector<16x128xbf16>
    %48 = tpu.concatenate %43, %44, %45, %46, %47 in 0 : vector<16x128xbf16>, vector<16x128xbf16>, vector<16x128xbf16>, vector<16x128xbf16>, vector<16x128xbf16> -> vector<80x128xbf16>
    %c0_14 = arith.constant 0 : index
    %c0_15 = arith.constant 0 : index
    %49 = vector.load %arg6[%c0_14, %c0_15] : memref<16x80xbf16, #tpu.memory_space<vmem>>, vector<16x80xbf16>
    %cst_16 = arith.constant dense<0.000000e+00> : vector<16x128xf32>
    %50 = tpu.matmul %49, %48, %cst_16 {dimension_numbers = #tpu.dot_dimension_numbers<[1], [0], [0], [1], [0, 0, 1, 1], [], []>} : vector<16x80xbf16>, vector<80x128xbf16>, vector<16x128xf32> -> vector<16x128xf32>
    %c0_17 = arith.constant 0 : index
    %c0_18 = arith.constant 0 : index
    %51 = vector.load %arg7[%c0_17, %c0_18] : memref<16x1xf32, #tpu.memory_space<vmem>>, vector<16x1xf32>
    %52 = vector.broadcast %51 : vector<16x1xf32> to vector<16x128xf32>
    %53 = arith.addf %50, %52 : vector<16x128xf32>
    %54 = vector.extract_strided_slice %4 {offsets = [0, 8], sizes = [16, 128], strides = [1, 1]} : vector<16x256xbf16> to vector<16x128xbf16>
    %55 = arith.extf %54 : vector<16x128xbf16> to vector<16x128xf32>
    %56 = arith.addf %53, %55 : vector<16x128xf32>
    %57 = arith.truncf %56 : vector<16x128xf32> to vector<16x128xbf16>
    %c0_19 = arith.constant 0 : index
    %c0_20 = arith.constant 0 : index
    %c0_21 = arith.constant 0 : index
    %58 = vector.load %arg8[%c0_19, %c0_20, %c0_21] : memref<1x16x128xbf16, #tpu.memory_space<vmem>>, vector<1x16x128xbf16>
    %59 = vector.shape_cast %58 : vector<1x16x128xbf16> to vector<16x128xbf16>
    %60 = vector.shape_cast %57 : vector<16x128xbf16> to vector<1x16x128xbf16>
    tpu.vector_store %arg8[%c0_19, %c0_20, %c0_21], %60 {strides = array<i32>} : memref<1x16x128xbf16, #tpu.memory_space<vmem>>, vector<1x16x128xbf16>,
    return
  }
  func.func @transform_0(%arg0: i32, %arg1: i32) -> (i32, i32, i32) {
    %c0_i32 = arith.constant 0 : i32
    %c0_i32_0 = arith.constant 0 : i32
    return %arg0, %c0_i32, %arg1 : i32, i32, i32
  }
  func.func @transform_1(%arg0: i32, %arg1: i32) -> (i32, i32, i32) {
    %c1_i32 = arith.constant 1 : i32
    %0 = arith.addi %arg1, %c1_i32 : i32
    %c1_i32_0 = arith.constant 1 : i32
    %1 = arith.muli %0, %c1_i32_0 : i32
    %c0_i32 = arith.constant 0 : i32
    %c0_i32_1 = arith.constant 0 : i32
    return %arg0, %c0_i32, %1 : i32, i32, i32
  }
  func.func @transform_2(%arg0: i32, %arg1: i32) -> (i32, i32) {
    %c0_i32 = arith.constant 0 : i32
    %c0_i32_0 = arith.constant 0 : i32
    %c0_i32_1 = arith.constant 0 : i32
    return %c0_i32, %c0_i32_0 : i32, i32
  }
  func.func @transform_3(%arg0: i32, %arg1: i32) -> (i32, i32) {
    %c0_i32 = arith.constant 0 : i32
    %c0_i32_0 = arith.constant 0 : i32
    %c0_i32_1 = arith.constant 0 : i32
    return %c0_i32, %c0_i32_0 : i32, i32
  }
  func.func @transform_4(%arg0: i32, %arg1: i32) -> (i32, i32) {
    %c0_i32 = arith.constant 0 : i32
    %c0_i32_0 = arith.constant 0 : i32
    %c0_i32_1 = arith.constant 0 : i32
    return %c0_i32, %c0_i32_0 : i32, i32
  }
  func.func @transform_5(%arg0: i32, %arg1: i32) -> (i32, i32) {
    %c0_i32 = arith.constant 0 : i32
    %c0_i32_0 = arith.constant 0 : i32
    %c0_i32_1 = arith.constant 0 : i32
    return %c0_i32, %c0_i32_0 : i32, i32
  }
  func.func @transform_6(%arg0: i32, %arg1: i32) -> (i32, i32, i32) {
    %c0_i32 = arith.constant 0 : i32
    %c0_i32_0 = arith.constant 0 : i32
    return %arg0, %c0_i32, %arg1 : i32, i32, i32
  }
}

module attributes {stable_mosaic.version = 11 : i64} {
  func.func @kernel(%arg0: i32, %arg1: i32, %arg2: memref<1x16x128xbf16, #tpu.memory_space<vmem>>, %arg3: memref<1x16x128xbf16, #tpu.memory_space<vmem>>, %arg4: memref<16x32xbf16, #tpu.memory_space<vmem>>, %arg5: memref<16x1xf32, #tpu.memory_space<vmem>>, %arg6: memref<1x16x128xbf16, #tpu.memory_space<vmem>>) attributes {dimension_semantics = [#tpu.dimension_semantics<parallel>, #tpu.dimension_semantics<parallel>], iteration_bounds = array<i64: 2, 1>, scalar_prefetch = 0 : i64, scratch_operands = 0 : i64, tpu.core_type = #tpu.core_type<tc>, window_params = [{transform_indices = @transform_0, window_bounds = array<i64: 1, 16, 128>}, {transform_indices = @transform_1, window_bounds = array<i64: 1, 16, 128>}, {pipeline_mode = #tpu.pipeline_mode<synchronous>, transform_indices = @transform_2, window_bounds = array<i64: 16, 32>}, {pipeline_mode = #tpu.pipeline_mode<synchronous>, transform_indices = @transform_3, window_bounds = array<i64: 16, 1>}, {transform_indices = @transform_4, window_bounds = array<i64: 1, 16, 128>}]} {
    %c0 = arith.constant 0 : index
    %c0_0 = arith.constant 0 : index
    %c0_1 = arith.constant 0 : index
    %0 = vector.load %arg2[%c0, %c0_0, %c0_1] : memref<1x16x128xbf16, #tpu.memory_space<vmem>>, vector<1x16x128xbf16>
    %1 = vector.shape_cast %0 : vector<1x16x128xbf16> to vector<16x128xbf16>
    %c0_2 = arith.constant 0 : index
    %c0_3 = arith.constant 0 : index
    %c0_4 = arith.constant 0 : index
    %2 = vector.load %arg3[%c0_2, %c0_3, %c0_4] : memref<1x16x128xbf16, #tpu.memory_space<vmem>>, vector<1x16x128xbf16>
    %3 = vector.shape_cast %2 : vector<1x16x128xbf16> to vector<16x128xbf16>
    %4 = tpu.concatenate %1, %3 in 1 : vector<16x128xbf16>, vector<16x128xbf16> -> vector<16x256xbf16>
    %5 = arith.extf %4 : vector<16x256xbf16> to vector<16x256xf32>
    %cst = arith.constant 0.000000e+00 : f32
    %6 = vector.broadcast %cst : f32 to vector<16x256xf32>
    %7 = arith.cmpf oge, %5, %6 : vector<16x256xf32>
    %cst_5 = arith.constant 1.000000e-01 : f32
    %8 = vector.broadcast %cst_5 : f32 to vector<16x256xf32>
    %9 = arith.mulf %8, %5 : vector<16x256xf32>
    %10 = arith.select %7, %5, %9 : vector<16x256xi1>, vector<16x256xf32>
    %11 = arith.truncf %10 : vector<16x256xf32> to vector<16x256xbf16>
    %12 = vector.extract_strided_slice %11 {offsets = [0, 0], sizes = [16, 128], strides = [1, 1]} : vector<16x256xbf16> to vector<16x128xbf16>
    %13 = vector.extract_strided_slice %11 {offsets = [0, 1], sizes = [16, 128], strides = [1, 1]} : vector<16x256xbf16> to vector<16x128xbf16>
    %14 = tpu.concatenate %12, %13 in 0 : vector<16x128xbf16>, vector<16x128xbf16> -> vector<32x128xbf16>
    %c0_6 = arith.constant 0 : index
    %c0_7 = arith.constant 0 : index
    %15 = vector.load %arg4[%c0_6, %c0_7] : memref<16x32xbf16, #tpu.memory_space<vmem>>, vector<16x32xbf16>
    %cst_8 = arith.constant dense<0.000000e+00> : vector<16x128xf32>
    %16 = tpu.matmul %15, %14, %cst_8 {dimension_numbers = #tpu.dot_dimension_numbers<[1], [0], [0], [1], [0, 0, 1, 1], [], []>} : vector<16x32xbf16>, vector<32x128xbf16>, vector<16x128xf32> -> vector<16x128xf32>
    %c0_9 = arith.constant 0 : index
    %c0_10 = arith.constant 0 : index
    %17 = vector.load %arg5[%c0_9, %c0_10] : memref<16x1xf32, #tpu.memory_space<vmem>>, vector<16x1xf32>
    %18 = vector.broadcast %17 : vector<16x1xf32> to vector<16x128xf32>
    %19 = arith.addf %16, %18 : vector<16x128xf32>
    %20 = arith.truncf %19 : vector<16x128xf32> to vector<16x128xbf16>
    %c0_11 = arith.constant 0 : index
    %c0_12 = arith.constant 0 : index
    %c0_13 = arith.constant 0 : index
    %21 = vector.load %arg6[%c0_11, %c0_12, %c0_13] : memref<1x16x128xbf16, #tpu.memory_space<vmem>>, vector<1x16x128xbf16>
    %22 = vector.shape_cast %21 : vector<1x16x128xbf16> to vector<16x128xbf16>
    %23 = vector.shape_cast %20 : vector<16x128xbf16> to vector<1x16x128xbf16>
    tpu.vector_store %arg6[%c0_11, %c0_12, %c0_13], %23 {strides = array<i32>} : memref<1x16x128xbf16, #tpu.memory_space<vmem>>, vector<1x16x128xbf16>,
    return
  }
  func.func @transform_0(%arg0: i32, %arg1: i32) -> (i32, i32, i32) {
    %c0_i32 = arith.constant 0 : i32
    %c0_i32_0 = arith.constant 0 : i32
    return %arg0, %c0_i32, %arg1 : i32, i32, i32
  }
  func.func @transform_1(%arg0: i32, %arg1: i32) -> (i32, i32, i32) {
    %c1_i32 = arith.constant 1 : i32
    %0 = arith.addi %arg1, %c1_i32 : i32
    %c1_i32_0 = arith.constant 1 : i32
    %1 = arith.muli %0, %c1_i32_0 : i32
    %c0_i32 = arith.constant 0 : i32
    %c0_i32_1 = arith.constant 0 : i32
    return %arg0, %c0_i32, %1 : i32, i32, i32
  }
  func.func @transform_2(%arg0: i32, %arg1: i32) -> (i32, i32) {
    %c0_i32 = arith.constant 0 : i32
    %c0_i32_0 = arith.constant 0 : i32
    %c0_i32_1 = arith.constant 0 : i32
    return %c0_i32, %c0_i32_0 : i32, i32
  }
  func.func @transform_3(%arg0: i32, %arg1: i32) -> (i32, i32) {
    %c0_i32 = arith.constant 0 : i32
    %c0_i32_0 = arith.constant 0 : i32
    %c0_i32_1 = arith.constant 0 : i32
    return %c0_i32, %c0_i32_0 : i32, i32
  }
  func.func @transform_4(%arg0: i32, %arg1: i32) -> (i32, i32, i32) {
    %c0_i32 = arith.constant 0 : i32
    %c0_i32_0 = arith.constant 0 : i32
    return %arg0, %c0_i32, %arg1 : i32, i32, i32
  }
}

module attributes {stable_mosaic.version = 11 : i64} {
  func.func @kernel(%arg0: i32, %arg1: i32, %arg2: memref<1x8x128xbf16, #tpu.memory_space<vmem>>, %arg3: memref<1x8x128xbf16, #tpu.memory_space<vmem>>, %arg4: memref<8x24xbf16, #tpu.memory_space<vmem>>, %arg5: memref<8x1xf32, #tpu.memory_space<vmem>>, %arg6: memref<8x24xbf16, #tpu.memory_space<vmem>>, %arg7: memref<8x1xf32, #tpu.memory_space<vmem>>, %arg8: memref<1x8x128xbf16, #tpu.memory_space<vmem>>) attributes {dimension_semantics = [#tpu.dimension_semantics<parallel>, #tpu.dimension_semantics<parallel>], iteration_bounds = array<i64: 2, 1>, scalar_prefetch = 0 : i64, scratch_operands = 0 : i64, tpu.core_type = #tpu.core_type<tc>, window_params = [{transform_indices = @transform_0, window_bounds = array<i64: 1, 8, 128>}, {transform_indices = @transform_1, window_bounds = array<i64: 1, 8, 128>}, {pipeline_mode = #tpu.pipeline_mode<synchronous>, transform_indices = @transform_2, window_bounds = array<i64: 8, 24>}, {pipeline_mode = #tpu.pipeline_mode<synchronous>, transform_indices = @transform_3, window_bounds = array<i64: 8, 1>}, {pipeline_mode = #tpu.pipeline_mode<synchronous>, transform_indices = @transform_4, window_bounds = array<i64: 8, 24>}, {pipeline_mode = #tpu.pipeline_mode<synchronous>, transform_indices = @transform_5, window_bounds = array<i64: 8, 1>}, {transform_indices = @transform_6, window_bounds = array<i64: 1, 8, 128>}]} {
    %c0 = arith.constant 0 : index
    %c0_0 = arith.constant 0 : index
    %c0_1 = arith.constant 0 : index
    %0 = vector.load %arg2[%c0, %c0_0, %c0_1] : memref<1x8x128xbf16, #tpu.memory_space<vmem>>, vector<1x8x128xbf16>
    %1 = vector.shape_cast %0 : vector<1x8x128xbf16> to vector<8x128xbf16>
    %c0_2 = arith.constant 0 : index
    %c0_3 = arith.constant 0 : index
    %c0_4 = arith.constant 0 : index
    %2 = vector.load %arg3[%c0_2, %c0_3, %c0_4] : memref<1x8x128xbf16, #tpu.memory_space<vmem>>, vector<1x8x128xbf16>
    %3 = vector.shape_cast %2 : vector<1x8x128xbf16> to vector<8x128xbf16>
    %4 = tpu.concatenate %1, %3 in 1 : vector<8x128xbf16>, vector<8x128xbf16> -> vector<8x256xbf16>
    %5 = arith.extf %4 : vector<8x256xbf16> to vector<8x256xf32>
    %cst = arith.constant 0.000000e+00 : f32
    %6 = vector.broadcast %cst : f32 to vector<8x256xf32>
    %7 = arith.cmpf oge, %5, %6 : vector<8x256xf32>
    %cst_5 = arith.constant 1.000000e-01 : f32
    %8 = vector.broadcast %cst_5 : f32 to vector<8x256xf32>
    %9 = arith.mulf %8, %5 : vector<8x256xf32>
    %10 = arith.select %7, %5, %9 : vector<8x256xi1>, vector<8x256xf32>
    %11 = arith.truncf %10 : vector<8x256xf32> to vector<8x256xbf16>
    %12 = vector.extract_strided_slice %11 {offsets = [0, 0], sizes = [8, 130], strides = [1, 1]} : vector<8x256xbf16> to vector<8x130xbf16>
    %13 = vector.extract_strided_slice %11 {offsets = [0, 1], sizes = [8, 130], strides = [1, 1]} : vector<8x256xbf16> to vector<8x130xbf16>
    %14 = vector.extract_strided_slice %11 {offsets = [0, 2], sizes = [8, 130], strides = [1, 1]} : vector<8x256xbf16> to vector<8x130xbf16>
    %15 = tpu.concatenate %12, %13, %14 in 0 : vector<8x130xbf16>, vector<8x130xbf16>, vector<8x130xbf16> -> vector<24x130xbf16>
    %c0_6 = arith.constant 0 : index
    %c0_7 = arith.constant 0 : index
    %16 = vector.load %arg4[%c0_6, %c0_7] : memref<8x24xbf16, #tpu.memory_space<vmem>>, vector<8x24xbf16>
    %cst_8 = arith.constant dense<0.000000e+00> : vector<8x130xf32>
    %17 = tpu.matmul %16, %15, %cst_8 {dimension_numbers = #tpu.dot_dimension_numbers<[1], [0], [0], [1], [0, 0, 1, 1], [], []>} : vector<8x24xbf16>, vector<24x130xbf16>, vector<8x130xf32> -> vector<8x130xf32>
    %c0_9 = arith.constant 0 : index
    %c0_10 = arith.constant 0 : index
    %18 = vector.load %arg5[%c0_9, %c0_10] : memref<8x1xf32, #tpu.memory_space<vmem>>, vector<8x1xf32>
    %19 = vector.broadcast %18 : vector<8x1xf32> to vector<8x130xf32>
    %20 = arith.addf %17, %19 : vector<8x130xf32>
    %cst_11 = arith.constant 0.000000e+00 : f32
    %21 = vector.broadcast %cst_11 : f32 to vector<8x130xf32>
    %22 = arith.cmpf oge, %20, %21 : vector<8x130xf32>
    %cst_12 = arith.constant 1.000000e-01 : f32
    %23 = vector.broadcast %cst_12 : f32 to vector<8x130xf32>
    %24 = arith.mulf %23, %20 : vector<8x130xf32>
    %25 = arith.select %22, %20, %24 : vector<8x130xi1>, vector<8x130xf32>
    %c128_i32 = arith.constant 128 : i32
    %26 = arith.muli %arg1, %c128_i32 : i32
    %c1_i32 = arith.constant 1 : i32
    %27 = arith.subi %26, %c1_i32 : i32
    %28 = tpu.iota {dimensions = array<i32: 1>} : vector<1x130xi32>
    %29 = vector.broadcast %27 : i32 to vector<1x130xi32>
    %30 = arith.addi %29, %28 : vector<1x130xi32>
    %c0_i32 = arith.constant 0 : i32
    %31 = vector.broadcast %c0_i32 : i32 to vector<1x130xi32>
    %32 = arith.cmpi sge, %30, %31 : vector<1x130xi32>
    %c32_i32 = arith.constant 32 : i32
    %33 = vector.broadcast %c32_i32 : i32 to vector<1x130xi32>
    %34 = arith.cmpi slt, %30, %33 : vector<1x130xi32>
    %35 = arith.andi %32, %34 : vector<1x130xi1>
    %cst_13 = arith.constant 0.000000e+00 : f32
    %36 = vector.shape_cast %35 : vector<1x130xi1> to vector<1x130xi1>
    %37 = vector.broadcast %36 : vector<1x130xi1> to vector<8x130xi1>
    %38 = vector.broadcast %cst_13 : f32 to vector<8x130xf32>
    %39 = arith.select %37, %25, %38 : vector<8x130xi1>, vector<8x130xf32>
    %40 = arith.truncf %39 : vector<8x130xf32> to vector<8x130xbf16>
    %41 = vector.extract_strided_slice %40 {offsets = [0, 0], sizes = [8, 128], strides = [1, 1]} : vector<8x130xbf16> to vector<8x128xbf16>
    %42 = vector.extract_strided_slice %40 {offsets = [0, 1], sizes = [8, 128], strides = [1, 1]} : vector<8x130xbf16> to vector<8x128xbf16>
    %43 = vector.extract_strided_slice %40 {offsets = [0, 2], sizes = [8, 128], strides = [1, 1]} : vector<8x130xbf16> to vector<8x128xbf16>
    %44 = tpu.concatenate %41, %42, %43 in 0 : vector<8x128xbf16>, vector<8x128xbf16>, vector<8x128xbf16> -> vector<24x128xbf16>
    %c0_14 = arith.constant 0 : index
    %c0_15 = arith.constant 0 : index
    %45 = vector.load %arg6[%c0_14, %c0_15] : memref<8x24xbf16, #tpu.memory_space<vmem>>, vector<8x24xbf16>
    %cst_16 = arith.constant dense<0.000000e+00> : vector<8x128xf32>
    %46 = tpu.matmul %45, %44, %cst_16 {dimension_numbers = #tpu.dot_dimension_numbers<[1], [0], [0], [1], [0, 0, 1, 1], [], []>} : vector<8x24xbf16>, vector<24x128xbf16>, vector<8x128xf32> -> vector<8x128xf32>
    %c0_17 = arith.constant 0 : index
    %c0_18 = arith.constant 0 : index
    %47 = vector.load %arg7[%c0_17, %c0_18] : memref<8x1xf32, #tpu.memory_space<vmem>>, vector<8x1xf32>
    %48 = vector.broadcast %47 : vector<8x1xf32> to vector<8x128xf32>
    %49 = arith.addf %46, %48 : vector<8x128xf32>
    %50 = vector.extract_strided_slice %4 {offsets = [0, 2], sizes = [8, 128], strides = [1, 1]} : vector<8x256xbf16> to vector<8x128xbf16>
    %51 = arith.extf %50 : vector<8x128xbf16> to vector<8x128xf32>
    %52 = arith.addf %49, %51 : vector<8x128xf32>
    %53 = arith.truncf %52 : vector<8x128xf32> to vector<8x128xbf16>
    %c0_19 = arith.constant 0 : index
    %c0_20 = arith.constant 0 : index
    %c0_21 = arith.constant 0 : index
    %54 = vector.load %arg8[%c0_19, %c0_20, %c0_21] : memref<1x8x128xbf16, #tpu.memory_space<vmem>>, vector<1x8x128xbf16>
    %55 = vector.shape_cast %54 : vector<1x8x128xbf16> to vector<8x128xbf16>
    %56 = vector.shape_cast %53 : vector<8x128xbf16> to vector<1x8x128xbf16>
    tpu.vector_store %arg8[%c0_19, %c0_20, %c0_21], %56 {strides = array<i32>} : memref<1x8x128xbf16, #tpu.memory_space<vmem>>, vector<1x8x128xbf16>,
    return
  }
  func.func @transform_0(%arg0: i32, %arg1: i32) -> (i32, i32, i32) {
    %c0_i32 = arith.constant 0 : i32
    %c0_i32_0 = arith.constant 0 : i32
    return %arg0, %c0_i32, %arg1 : i32, i32, i32
  }
  func.func @transform_1(%arg0: i32, %arg1: i32) -> (i32, i32, i32) {
    %c1_i32 = arith.constant 1 : i32
    %0 = arith.addi %arg1, %c1_i32 : i32
    %c1_i32_0 = arith.constant 1 : i32
    %1 = arith.muli %0, %c1_i32_0 : i32
    %c0_i32 = arith.constant 0 : i32
    %c0_i32_1 = arith.constant 0 : i32
    return %arg0, %c0_i32, %1 : i32, i32, i32
  }
  func.func @transform_2(%arg0: i32, %arg1: i32) -> (i32, i32) {
    %c0_i32 = arith.constant 0 : i32
    %c0_i32_0 = arith.constant 0 : i32
    %c0_i32_1 = arith.constant 0 : i32
    return %c0_i32, %c0_i32_0 : i32, i32
  }
  func.func @transform_3(%arg0: i32, %arg1: i32) -> (i32, i32) {
    %c0_i32 = arith.constant 0 : i32
    %c0_i32_0 = arith.constant 0 : i32
    %c0_i32_1 = arith.constant 0 : i32
    return %c0_i32, %c0_i32_0 : i32, i32
  }
  func.func @transform_4(%arg0: i32, %arg1: i32) -> (i32, i32) {
    %c0_i32 = arith.constant 0 : i32
    %c0_i32_0 = arith.constant 0 : i32
    %c0_i32_1 = arith.constant 0 : i32
    return %c0_i32, %c0_i32_0 : i32, i32
  }
  func.func @transform_5(%arg0: i32, %arg1: i32) -> (i32, i32) {
    %c0_i32 = arith.constant 0 : i32
    %c0_i32_0 = arith.constant 0 : i32
    %c0_i32_1 = arith.constant 0 : i32
    return %c0_i32, %c0_i32_0 : i32, i32
  }
  func.func @transform_6(%arg0: i32, %arg1: i32) -> (i32, i32, i32) {
    %c0_i32 = arith.constant 0 : i32
    %c0_i32_0 = arith.constant 0 : i32
    return %arg0, %c0_i32, %arg1 : i32, i32, i32
  }
}

module attributes {stable_mosaic.version = 11 : i64} {
  func.func @kernel(%arg0: i32, %arg1: i32, %arg2: memref<1x8x128xbf16, #tpu.memory_space<vmem>>, %arg3: memref<1x8x128xbf16, #tpu.memory_space<vmem>>, %arg4: memref<8x40xbf16, #tpu.memory_space<vmem>>, %arg5: memref<8x1xf32, #tpu.memory_space<vmem>>, %arg6: memref<8x40xbf16, #tpu.memory_space<vmem>>, %arg7: memref<8x1xf32, #tpu.memory_space<vmem>>, %arg8: memref<1x8x128xbf16, #tpu.memory_space<vmem>>) attributes {dimension_semantics = [#tpu.dimension_semantics<parallel>, #tpu.dimension_semantics<parallel>], iteration_bounds = array<i64: 2, 1>, scalar_prefetch = 0 : i64, scratch_operands = 0 : i64, tpu.core_type = #tpu.core_type<tc>, window_params = [{transform_indices = @transform_0, window_bounds = array<i64: 1, 8, 128>}, {transform_indices = @transform_1, window_bounds = array<i64: 1, 8, 128>}, {pipeline_mode = #tpu.pipeline_mode<synchronous>, transform_indices = @transform_2, window_bounds = array<i64: 8, 40>}, {pipeline_mode = #tpu.pipeline_mode<synchronous>, transform_indices = @transform_3, window_bounds = array<i64: 8, 1>}, {pipeline_mode = #tpu.pipeline_mode<synchronous>, transform_indices = @transform_4, window_bounds = array<i64: 8, 40>}, {pipeline_mode = #tpu.pipeline_mode<synchronous>, transform_indices = @transform_5, window_bounds = array<i64: 8, 1>}, {transform_indices = @transform_6, window_bounds = array<i64: 1, 8, 128>}]} {
    %c0 = arith.constant 0 : index
    %c0_0 = arith.constant 0 : index
    %c0_1 = arith.constant 0 : index
    %0 = vector.load %arg2[%c0, %c0_0, %c0_1] : memref<1x8x128xbf16, #tpu.memory_space<vmem>>, vector<1x8x128xbf16>
    %1 = vector.shape_cast %0 : vector<1x8x128xbf16> to vector<8x128xbf16>
    %c0_2 = arith.constant 0 : index
    %c0_3 = arith.constant 0 : index
    %c0_4 = arith.constant 0 : index
    %2 = vector.load %arg3[%c0_2, %c0_3, %c0_4] : memref<1x8x128xbf16, #tpu.memory_space<vmem>>, vector<1x8x128xbf16>
    %3 = vector.shape_cast %2 : vector<1x8x128xbf16> to vector<8x128xbf16>
    %4 = tpu.concatenate %1, %3 in 1 : vector<8x128xbf16>, vector<8x128xbf16> -> vector<8x256xbf16>
    %5 = arith.extf %4 : vector<8x256xbf16> to vector<8x256xf32>
    %cst = arith.constant 0.000000e+00 : f32
    %6 = vector.broadcast %cst : f32 to vector<8x256xf32>
    %7 = arith.cmpf oge, %5, %6 : vector<8x256xf32>
    %cst_5 = arith.constant 1.000000e-01 : f32
    %8 = vector.broadcast %cst_5 : f32 to vector<8x256xf32>
    %9 = arith.mulf %8, %5 : vector<8x256xf32>
    %10 = arith.select %7, %5, %9 : vector<8x256xi1>, vector<8x256xf32>
    %11 = arith.truncf %10 : vector<8x256xf32> to vector<8x256xbf16>
    %12 = vector.extract_strided_slice %11 {offsets = [0, 0], sizes = [8, 132], strides = [1, 1]} : vector<8x256xbf16> to vector<8x132xbf16>
    %13 = vector.extract_strided_slice %11 {offsets = [0, 1], sizes = [8, 132], strides = [1, 1]} : vector<8x256xbf16> to vector<8x132xbf16>
    %14 = vector.extract_strided_slice %11 {offsets = [0, 2], sizes = [8, 132], strides = [1, 1]} : vector<8x256xbf16> to vector<8x132xbf16>
    %15 = vector.extract_strided_slice %11 {offsets = [0, 3], sizes = [8, 132], strides = [1, 1]} : vector<8x256xbf16> to vector<8x132xbf16>
    %16 = vector.extract_strided_slice %11 {offsets = [0, 4], sizes = [8, 132], strides = [1, 1]} : vector<8x256xbf16> to vector<8x132xbf16>
    %17 = tpu.concatenate %12, %13, %14, %15, %16 in 0 : vector<8x132xbf16>, vector<8x132xbf16>, vector<8x132xbf16>, vector<8x132xbf16>, vector<8x132xbf16> -> vector<40x132xbf16>
    %c0_6 = arith.constant 0 : index
    %c0_7 = arith.constant 0 : index
    %18 = vector.load %arg4[%c0_6, %c0_7] : memref<8x40xbf16, #tpu.memory_space<vmem>>, vector<8x40xbf16>
    %cst_8 = arith.constant dense<0.000000e+00> : vector<8x132xf32>
    %19 = tpu.matmul %18, %17, %cst_8 {dimension_numbers = #tpu.dot_dimension_numbers<[1], [0], [0], [1], [0, 0, 1, 1], [], []>} : vector<8x40xbf16>, vector<40x132xbf16>, vector<8x132xf32> -> vector<8x132xf32>
    %c0_9 = arith.constant 0 : index
    %c0_10 = arith.constant 0 : index
    %20 = vector.load %arg5[%c0_9, %c0_10] : memref<8x1xf32, #tpu.memory_space<vmem>>, vector<8x1xf32>
    %21 = vector.broadcast %20 : vector<8x1xf32> to vector<8x132xf32>
    %22 = arith.addf %19, %21 : vector<8x132xf32>
    %cst_11 = arith.constant 0.000000e+00 : f32
    %23 = vector.broadcast %cst_11 : f32 to vector<8x132xf32>
    %24 = arith.cmpf oge, %22, %23 : vector<8x132xf32>
    %cst_12 = arith.constant 1.000000e-01 : f32
    %25 = vector.broadcast %cst_12 : f32 to vector<8x132xf32>
    %26 = arith.mulf %25, %22 : vector<8x132xf32>
    %27 = arith.select %24, %22, %26 : vector<8x132xi1>, vector<8x132xf32>
    %c128_i32 = arith.constant 128 : i32
    %28 = arith.muli %arg1, %c128_i32 : i32
    %c2_i32 = arith.constant 2 : i32
    %29 = arith.subi %28, %c2_i32 : i32
    %30 = tpu.iota {dimensions = array<i32: 1>} : vector<1x132xi32>
    %31 = vector.broadcast %29 : i32 to vector<1x132xi32>
    %32 = arith.addi %31, %30 : vector<1x132xi32>
    %c0_i32 = arith.constant 0 : i32
    %33 = vector.broadcast %c0_i32 : i32 to vector<1x132xi32>
    %34 = arith.cmpi sge, %32, %33 : vector<1x132xi32>
    %c32_i32 = arith.constant 32 : i32
    %35 = vector.broadcast %c32_i32 : i32 to vector<1x132xi32>
    %36 = arith.cmpi slt, %32, %35 : vector<1x132xi32>
    %37 = arith.andi %34, %36 : vector<1x132xi1>
    %cst_13 = arith.constant 0.000000e+00 : f32
    %38 = vector.shape_cast %37 : vector<1x132xi1> to vector<1x132xi1>
    %39 = vector.broadcast %38 : vector<1x132xi1> to vector<8x132xi1>
    %40 = vector.broadcast %cst_13 : f32 to vector<8x132xf32>
    %41 = arith.select %39, %27, %40 : vector<8x132xi1>, vector<8x132xf32>
    %42 = arith.truncf %41 : vector<8x132xf32> to vector<8x132xbf16>
    %43 = vector.extract_strided_slice %42 {offsets = [0, 0], sizes = [8, 128], strides = [1, 1]} : vector<8x132xbf16> to vector<8x128xbf16>
    %44 = vector.extract_strided_slice %42 {offsets = [0, 1], sizes = [8, 128], strides = [1, 1]} : vector<8x132xbf16> to vector<8x128xbf16>
    %45 = vector.extract_strided_slice %42 {offsets = [0, 2], sizes = [8, 128], strides = [1, 1]} : vector<8x132xbf16> to vector<8x128xbf16>
    %46 = vector.extract_strided_slice %42 {offsets = [0, 3], sizes = [8, 128], strides = [1, 1]} : vector<8x132xbf16> to vector<8x128xbf16>
    %47 = vector.extract_strided_slice %42 {offsets = [0, 4], sizes = [8, 128], strides = [1, 1]} : vector<8x132xbf16> to vector<8x128xbf16>
    %48 = tpu.concatenate %43, %44, %45, %46, %47 in 0 : vector<8x128xbf16>, vector<8x128xbf16>, vector<8x128xbf16>, vector<8x128xbf16>, vector<8x128xbf16> -> vector<40x128xbf16>
    %c0_14 = arith.constant 0 : index
    %c0_15 = arith.constant 0 : index
    %49 = vector.load %arg6[%c0_14, %c0_15] : memref<8x40xbf16, #tpu.memory_space<vmem>>, vector<8x40xbf16>
    %cst_16 = arith.constant dense<0.000000e+00> : vector<8x128xf32>
    %50 = tpu.matmul %49, %48, %cst_16 {dimension_numbers = #tpu.dot_dimension_numbers<[1], [0], [0], [1], [0, 0, 1, 1], [], []>} : vector<8x40xbf16>, vector<40x128xbf16>, vector<8x128xf32> -> vector<8x128xf32>
    %c0_17 = arith.constant 0 : index
    %c0_18 = arith.constant 0 : index
    %51 = vector.load %arg7[%c0_17, %c0_18] : memref<8x1xf32, #tpu.memory_space<vmem>>, vector<8x1xf32>
    %52 = vector.broadcast %51 : vector<8x1xf32> to vector<8x128xf32>
    %53 = arith.addf %50, %52 : vector<8x128xf32>
    %54 = vector.extract_strided_slice %4 {offsets = [0, 4], sizes = [8, 128], strides = [1, 1]} : vector<8x256xbf16> to vector<8x128xbf16>
    %55 = arith.extf %54 : vector<8x128xbf16> to vector<8x128xf32>
    %56 = arith.addf %53, %55 : vector<8x128xf32>
    %57 = arith.truncf %56 : vector<8x128xf32> to vector<8x128xbf16>
    %c0_19 = arith.constant 0 : index
    %c0_20 = arith.constant 0 : index
    %c0_21 = arith.constant 0 : index
    %58 = vector.load %arg8[%c0_19, %c0_20, %c0_21] : memref<1x8x128xbf16, #tpu.memory_space<vmem>>, vector<1x8x128xbf16>
    %59 = vector.shape_cast %58 : vector<1x8x128xbf16> to vector<8x128xbf16>
    %60 = vector.shape_cast %57 : vector<8x128xbf16> to vector<1x8x128xbf16>
    tpu.vector_store %arg8[%c0_19, %c0_20, %c0_21], %60 {strides = array<i32>} : memref<1x8x128xbf16, #tpu.memory_space<vmem>>, vector<1x8x128xbf16>,
    return
  }
  func.func @transform_0(%arg0: i32, %arg1: i32) -> (i32, i32, i32) {
    %c0_i32 = arith.constant 0 : i32
    %c0_i32_0 = arith.constant 0 : i32
    return %arg0, %c0_i32, %arg1 : i32, i32, i32
  }
  func.func @transform_1(%arg0: i32, %arg1: i32) -> (i32, i32, i32) {
    %c1_i32 = arith.constant 1 : i32
    %0 = arith.addi %arg1, %c1_i32 : i32
    %c1_i32_0 = arith.constant 1 : i32
    %1 = arith.muli %0, %c1_i32_0 : i32
    %c0_i32 = arith.constant 0 : i32
    %c0_i32_1 = arith.constant 0 : i32
    return %arg0, %c0_i32, %1 : i32, i32, i32
  }
  func.func @transform_2(%arg0: i32, %arg1: i32) -> (i32, i32) {
    %c0_i32 = arith.constant 0 : i32
    %c0_i32_0 = arith.constant 0 : i32
    %c0_i32_1 = arith.constant 0 : i32
    return %c0_i32, %c0_i32_0 : i32, i32
  }
  func.func @transform_3(%arg0: i32, %arg1: i32) -> (i32, i32) {
    %c0_i32 = arith.constant 0 : i32
    %c0_i32_0 = arith.constant 0 : i32
    %c0_i32_1 = arith.constant 0 : i32
    return %c0_i32, %c0_i32_0 : i32, i32
  }
  func.func @transform_4(%arg0: i32, %arg1: i32) -> (i32, i32) {
    %c0_i32 = arith.constant 0 : i32
    %c0_i32_0 = arith.constant 0 : i32
    %c0_i32_1 = arith.constant 0 : i32
    return %c0_i32, %c0_i32_0 : i32, i32
  }
  func.func @transform_5(%arg0: i32, %arg1: i32) -> (i32, i32) {
    %c0_i32 = arith.constant 0 : i32
    %c0_i32_0 = arith.constant 0 : i32
    %c0_i32_1 = arith.constant 0 : i32
    return %c0_i32, %c0_i32_0 : i32, i32
  }
  func.func @transform_6(%arg0: i32, %arg1: i32) -> (i32, i32, i32) {
    %c0_i32 = arith.constant 0 : i32
    %c0_i32_0 = arith.constant 0 : i32
    return %arg0, %c0_i32, %arg1 : i32, i32, i32
  }
}

module attributes {stable_mosaic.version = 11 : i64} {
  func.func @kernel(%arg0: i32, %arg1: i32, %arg2: memref<1x8x128xbf16, #tpu.memory_space<vmem>>, %arg3: memref<1x8x128xbf16, #tpu.memory_space<vmem>>, %arg4: memref<8x24xbf16, #tpu.memory_space<vmem>>, %arg5: memref<8x1xf32, #tpu.memory_space<vmem>>, %arg6: memref<8x24xbf16, #tpu.memory_space<vmem>>, %arg7: memref<8x1xf32, #tpu.memory_space<vmem>>, %arg8: memref<1x8x128xbf16, #tpu.memory_space<vmem>>) attributes {dimension_semantics = [#tpu.dimension_semantics<parallel>, #tpu.dimension_semantics<parallel>], iteration_bounds = array<i64: 2, 1>, scalar_prefetch = 0 : i64, scratch_operands = 0 : i64, tpu.core_type = #tpu.core_type<tc>, window_params = [{transform_indices = @transform_0, window_bounds = array<i64: 1, 8, 128>}, {transform_indices = @transform_1, window_bounds = array<i64: 1, 8, 128>}, {pipeline_mode = #tpu.pipeline_mode<synchronous>, transform_indices = @transform_2, window_bounds = array<i64: 8, 24>}, {pipeline_mode = #tpu.pipeline_mode<synchronous>, transform_indices = @transform_3, window_bounds = array<i64: 8, 1>}, {pipeline_mode = #tpu.pipeline_mode<synchronous>, transform_indices = @transform_4, window_bounds = array<i64: 8, 24>}, {pipeline_mode = #tpu.pipeline_mode<synchronous>, transform_indices = @transform_5, window_bounds = array<i64: 8, 1>}, {transform_indices = @transform_6, window_bounds = array<i64: 1, 8, 128>}]} {
    %c0 = arith.constant 0 : index
    %c0_0 = arith.constant 0 : index
    %c0_1 = arith.constant 0 : index
    %0 = vector.load %arg2[%c0, %c0_0, %c0_1] : memref<1x8x128xbf16, #tpu.memory_space<vmem>>, vector<1x8x128xbf16>
    %1 = vector.shape_cast %0 : vector<1x8x128xbf16> to vector<8x128xbf16>
    %c0_2 = arith.constant 0 : index
    %c0_3 = arith.constant 0 : index
    %c0_4 = arith.constant 0 : index
    %2 = vector.load %arg3[%c0_2, %c0_3, %c0_4] : memref<1x8x128xbf16, #tpu.memory_space<vmem>>, vector<1x8x128xbf16>
    %3 = vector.shape_cast %2 : vector<1x8x128xbf16> to vector<8x128xbf16>
    %4 = tpu.concatenate %1, %3 in 1 : vector<8x128xbf16>, vector<8x128xbf16> -> vector<8x256xbf16>
    %5 = arith.extf %4 : vector<8x256xbf16> to vector<8x256xf32>
    %cst = arith.constant 0.000000e+00 : f32
    %6 = vector.broadcast %cst : f32 to vector<8x256xf32>
    %7 = arith.cmpf oge, %5, %6 : vector<8x256xf32>
    %cst_5 = arith.constant 1.000000e-01 : f32
    %8 = vector.broadcast %cst_5 : f32 to vector<8x256xf32>
    %9 = arith.mulf %8, %5 : vector<8x256xf32>
    %10 = arith.select %7, %5, %9 : vector<8x256xi1>, vector<8x256xf32>
    %11 = arith.truncf %10 : vector<8x256xf32> to vector<8x256xbf16>
    %12 = vector.extract_strided_slice %11 {offsets = [0, 0], sizes = [8, 130], strides = [1, 1]} : vector<8x256xbf16> to vector<8x130xbf16>
    %13 = vector.extract_strided_slice %11 {offsets = [0, 3], sizes = [8, 130], strides = [1, 1]} : vector<8x256xbf16> to vector<8x130xbf16>
    %14 = vector.extract_strided_slice %11 {offsets = [0, 6], sizes = [8, 130], strides = [1, 1]} : vector<8x256xbf16> to vector<8x130xbf16>
    %15 = tpu.concatenate %12, %13, %14 in 0 : vector<8x130xbf16>, vector<8x130xbf16>, vector<8x130xbf16> -> vector<24x130xbf16>
    %c0_6 = arith.constant 0 : index
    %c0_7 = arith.constant 0 : index
    %16 = vector.load %arg4[%c0_6, %c0_7] : memref<8x24xbf16, #tpu.memory_space<vmem>>, vector<8x24xbf16>
    %cst_8 = arith.constant dense<0.000000e+00> : vector<8x130xf32>
    %17 = tpu.matmul %16, %15, %cst_8 {dimension_numbers = #tpu.dot_dimension_numbers<[1], [0], [0], [1], [0, 0, 1, 1], [], []>} : vector<8x24xbf16>, vector<24x130xbf16>, vector<8x130xf32> -> vector<8x130xf32>
    %c0_9 = arith.constant 0 : index
    %c0_10 = arith.constant 0 : index
    %18 = vector.load %arg5[%c0_9, %c0_10] : memref<8x1xf32, #tpu.memory_space<vmem>>, vector<8x1xf32>
    %19 = vector.broadcast %18 : vector<8x1xf32> to vector<8x130xf32>
    %20 = arith.addf %17, %19 : vector<8x130xf32>
    %cst_11 = arith.constant 0.000000e+00 : f32
    %21 = vector.broadcast %cst_11 : f32 to vector<8x130xf32>
    %22 = arith.cmpf oge, %20, %21 : vector<8x130xf32>
    %cst_12 = arith.constant 1.000000e-01 : f32
    %23 = vector.broadcast %cst_12 : f32 to vector<8x130xf32>
    %24 = arith.mulf %23, %20 : vector<8x130xf32>
    %25 = arith.select %22, %20, %24 : vector<8x130xi1>, vector<8x130xf32>
    %c128_i32 = arith.constant 128 : i32
    %26 = arith.muli %arg1, %c128_i32 : i32
    %c1_i32 = arith.constant 1 : i32
    %27 = arith.subi %26, %c1_i32 : i32
    %28 = tpu.iota {dimensions = array<i32: 1>} : vector<1x130xi32>
    %29 = vector.broadcast %27 : i32 to vector<1x130xi32>
    %30 = arith.addi %29, %28 : vector<1x130xi32>
    %c0_i32 = arith.constant 0 : i32
    %31 = vector.broadcast %c0_i32 : i32 to vector<1x130xi32>
    %32 = arith.cmpi sge, %30, %31 : vector<1x130xi32>
    %c32_i32 = arith.constant 32 : i32
    %33 = vector.broadcast %c32_i32 : i32 to vector<1x130xi32>
    %34 = arith.cmpi slt, %30, %33 : vector<1x130xi32>
    %35 = arith.andi %32, %34 : vector<1x130xi1>
    %cst_13 = arith.constant 0.000000e+00 : f32
    %36 = vector.shape_cast %35 : vector<1x130xi1> to vector<1x130xi1>
    %37 = vector.broadcast %36 : vector<1x130xi1> to vector<8x130xi1>
    %38 = vector.broadcast %cst_13 : f32 to vector<8x130xf32>
    %39 = arith.select %37, %25, %38 : vector<8x130xi1>, vector<8x130xf32>
    %40 = arith.truncf %39 : vector<8x130xf32> to vector<8x130xbf16>
    %41 = vector.extract_strided_slice %40 {offsets = [0, 0], sizes = [8, 128], strides = [1, 1]} : vector<8x130xbf16> to vector<8x128xbf16>
    %42 = vector.extract_strided_slice %40 {offsets = [0, 1], sizes = [8, 128], strides = [1, 1]} : vector<8x130xbf16> to vector<8x128xbf16>
    %43 = vector.extract_strided_slice %40 {offsets = [0, 2], sizes = [8, 128], strides = [1, 1]} : vector<8x130xbf16> to vector<8x128xbf16>
    %44 = tpu.concatenate %41, %42, %43 in 0 : vector<8x128xbf16>, vector<8x128xbf16>, vector<8x128xbf16> -> vector<24x128xbf16>
    %c0_14 = arith.constant 0 : index
    %c0_15 = arith.constant 0 : index
    %45 = vector.load %arg6[%c0_14, %c0_15] : memref<8x24xbf16, #tpu.memory_space<vmem>>, vector<8x24xbf16>
    %cst_16 = arith.constant dense<0.000000e+00> : vector<8x128xf32>
    %46 = tpu.matmul %45, %44, %cst_16 {dimension_numbers = #tpu.dot_dimension_numbers<[1], [0], [0], [1], [0, 0, 1, 1], [], []>} : vector<8x24xbf16>, vector<24x128xbf16>, vector<8x128xf32> -> vector<8x128xf32>
    %c0_17 = arith.constant 0 : index
    %c0_18 = arith.constant 0 : index
    %47 = vector.load %arg7[%c0_17, %c0_18] : memref<8x1xf32, #tpu.memory_space<vmem>>, vector<8x1xf32>
    %48 = vector.broadcast %47 : vector<8x1xf32> to vector<8x128xf32>
    %49 = arith.addf %46, %48 : vector<8x128xf32>
    %50 = vector.extract_strided_slice %4 {offsets = [0, 4], sizes = [8, 128], strides = [1, 1]} : vector<8x256xbf16> to vector<8x128xbf16>
    %51 = arith.extf %50 : vector<8x128xbf16> to vector<8x128xf32>
    %52 = arith.addf %49, %51 : vector<8x128xf32>
    %53 = arith.truncf %52 : vector<8x128xf32> to vector<8x128xbf16>
    %c0_19 = arith.constant 0 : index
    %c0_20 = arith.constant 0 : index
    %c0_21 = arith.constant 0 : index
    %54 = vector.load %arg8[%c0_19, %c0_20, %c0_21] : memref<1x8x128xbf16, #tpu.memory_space<vmem>>, vector<1x8x128xbf16>
    %55 = vector.shape_cast %54 : vector<1x8x128xbf16> to vector<8x128xbf16>
    %56 = vector.shape_cast %53 : vector<8x128xbf16> to vector<1x8x128xbf16>
    tpu.vector_store %arg8[%c0_19, %c0_20, %c0_21], %56 {strides = array<i32>} : memref<1x8x128xbf16, #tpu.memory_space<vmem>>, vector<1x8x128xbf16>,
    return
  }
  func.func @transform_0(%arg0: i32, %arg1: i32) -> (i32, i32, i32) {
    %c0_i32 = arith.constant 0 : i32
    %c0_i32_0 = arith.constant 0 : i32
    return %arg0, %c0_i32, %arg1 : i32, i32, i32
  }
  func.func @transform_1(%arg0: i32, %arg1: i32) -> (i32, i32, i32) {
    %c1_i32 = arith.constant 1 : i32
    %0 = arith.addi %arg1, %c1_i32 : i32
    %c1_i32_0 = arith.constant 1 : i32
    %1 = arith.muli %0, %c1_i32_0 : i32
    %c0_i32 = arith.constant 0 : i32
    %c0_i32_1 = arith.constant 0 : i32
    return %arg0, %c0_i32, %1 : i32, i32, i32
  }
  func.func @transform_2(%arg0: i32, %arg1: i32) -> (i32, i32) {
    %c0_i32 = arith.constant 0 : i32
    %c0_i32_0 = arith.constant 0 : i32
    %c0_i32_1 = arith.constant 0 : i32
    return %c0_i32, %c0_i32_0 : i32, i32
  }
  func.func @transform_3(%arg0: i32, %arg1: i32) -> (i32, i32) {
    %c0_i32 = arith.constant 0 : i32
    %c0_i32_0 = arith.constant 0 : i32
    %c0_i32_1 = arith.constant 0 : i32
    return %c0_i32, %c0_i32_0 : i32, i32
  }
  func.func @transform_4(%arg0: i32, %arg1: i32) -> (i32, i32) {
    %c0_i32 = arith.constant 0 : i32
    %c0_i32_0 = arith.constant 0 : i32
    %c0_i32_1 = arith.constant 0 : i32
    return %c0_i32, %c0_i32_0 : i32, i32
  }
  func.func @transform_5(%arg0: i32, %arg1: i32) -> (i32, i32) {
    %c0_i32 = arith.constant 0 : i32
    %c0_i32_0 = arith.constant 0 : i32
    %c0_i32_1 = arith.constant 0 : i32
    return %c0_i32, %c0_i32_0 : i32, i32
  }
  func.func @transform_6(%arg0: i32, %arg1: i32) -> (i32, i32, i32) {
    %c0_i32 = arith.constant 0 : i32
    %c0_i32_0 = arith.constant 0 : i32
    return %arg0, %c0_i32, %arg1 : i32, i32, i32
  }
}

module attributes {stable_mosaic.version = 11 : i64} {
  func.func @kernel(%arg0: i32, %arg1: i32, %arg2: memref<1x8x128xbf16, #tpu.memory_space<vmem>>, %arg3: memref<1x8x128xbf16, #tpu.memory_space<vmem>>, %arg4: memref<8x40xbf16, #tpu.memory_space<vmem>>, %arg5: memref<8x1xf32, #tpu.memory_space<vmem>>, %arg6: memref<8x40xbf16, #tpu.memory_space<vmem>>, %arg7: memref<8x1xf32, #tpu.memory_space<vmem>>, %arg8: memref<1x8x128xbf16, #tpu.memory_space<vmem>>) attributes {dimension_semantics = [#tpu.dimension_semantics<parallel>, #tpu.dimension_semantics<parallel>], iteration_bounds = array<i64: 2, 1>, scalar_prefetch = 0 : i64, scratch_operands = 0 : i64, tpu.core_type = #tpu.core_type<tc>, window_params = [{transform_indices = @transform_0, window_bounds = array<i64: 1, 8, 128>}, {transform_indices = @transform_1, window_bounds = array<i64: 1, 8, 128>}, {pipeline_mode = #tpu.pipeline_mode<synchronous>, transform_indices = @transform_2, window_bounds = array<i64: 8, 40>}, {pipeline_mode = #tpu.pipeline_mode<synchronous>, transform_indices = @transform_3, window_bounds = array<i64: 8, 1>}, {pipeline_mode = #tpu.pipeline_mode<synchronous>, transform_indices = @transform_4, window_bounds = array<i64: 8, 40>}, {pipeline_mode = #tpu.pipeline_mode<synchronous>, transform_indices = @transform_5, window_bounds = array<i64: 8, 1>}, {transform_indices = @transform_6, window_bounds = array<i64: 1, 8, 128>}]} {
    %c0 = arith.constant 0 : index
    %c0_0 = arith.constant 0 : index
    %c0_1 = arith.constant 0 : index
    %0 = vector.load %arg2[%c0, %c0_0, %c0_1] : memref<1x8x128xbf16, #tpu.memory_space<vmem>>, vector<1x8x128xbf16>
    %1 = vector.shape_cast %0 : vector<1x8x128xbf16> to vector<8x128xbf16>
    %c0_2 = arith.constant 0 : index
    %c0_3 = arith.constant 0 : index
    %c0_4 = arith.constant 0 : index
    %2 = vector.load %arg3[%c0_2, %c0_3, %c0_4] : memref<1x8x128xbf16, #tpu.memory_space<vmem>>, vector<1x8x128xbf16>
    %3 = vector.shape_cast %2 : vector<1x8x128xbf16> to vector<8x128xbf16>
    %4 = tpu.concatenate %1, %3 in 1 : vector<8x128xbf16>, vector<8x128xbf16> -> vector<8x256xbf16>
    %5 = arith.extf %4 : vector<8x256xbf16> to vector<8x256xf32>
    %cst = arith.constant 0.000000e+00 : f32
    %6 = vector.broadcast %cst : f32 to vector<8x256xf32>
    %7 = arith.cmpf oge, %5, %6 : vector<8x256xf32>
    %cst_5 = arith.constant 1.000000e-01 : f32
    %8 = vector.broadcast %cst_5 : f32 to vector<8x256xf32>
    %9 = arith.mulf %8, %5 : vector<8x256xf32>
    %10 = arith.select %7, %5, %9 : vector<8x256xi1>, vector<8x256xf32>
    %11 = arith.truncf %10 : vector<8x256xf32> to vector<8x256xbf16>
    %12 = vector.extract_strided_slice %11 {offsets = [0, 0], sizes = [8, 132], strides = [1, 1]} : vector<8x256xbf16> to vector<8x132xbf16>
    %13 = vector.extract_strided_slice %11 {offsets = [0, 3], sizes = [8, 132], strides = [1, 1]} : vector<8x256xbf16> to vector<8x132xbf16>
    %14 = vector.extract_strided_slice %11 {offsets = [0, 6], sizes = [8, 132], strides = [1, 1]} : vector<8x256xbf16> to vector<8x132xbf16>
    %15 = vector.extract_strided_slice %11 {offsets = [0, 9], sizes = [8, 132], strides = [1, 1]} : vector<8x256xbf16> to vector<8x132xbf16>
    %16 = vector.extract_strided_slice %11 {offsets = [0, 12], sizes = [8, 132], strides = [1, 1]} : vector<8x256xbf16> to vector<8x132xbf16>
    %17 = tpu.concatenate %12, %13, %14, %15, %16 in 0 : vector<8x132xbf16>, vector<8x132xbf16>, vector<8x132xbf16>, vector<8x132xbf16>, vector<8x132xbf16> -> vector<40x132xbf16>
    %c0_6 = arith.constant 0 : index
    %c0_7 = arith.constant 0 : index
    %18 = vector.load %arg4[%c0_6, %c0_7] : memref<8x40xbf16, #tpu.memory_space<vmem>>, vector<8x40xbf16>
    %cst_8 = arith.constant dense<0.000000e+00> : vector<8x132xf32>
    %19 = tpu.matmul %18, %17, %cst_8 {dimension_numbers = #tpu.dot_dimension_numbers<[1], [0], [0], [1], [0, 0, 1, 1], [], []>} : vector<8x40xbf16>, vector<40x132xbf16>, vector<8x132xf32> -> vector<8x132xf32>
    %c0_9 = arith.constant 0 : index
    %c0_10 = arith.constant 0 : index
    %20 = vector.load %arg5[%c0_9, %c0_10] : memref<8x1xf32, #tpu.memory_space<vmem>>, vector<8x1xf32>
    %21 = vector.broadcast %20 : vector<8x1xf32> to vector<8x132xf32>
    %22 = arith.addf %19, %21 : vector<8x132xf32>
    %cst_11 = arith.constant 0.000000e+00 : f32
    %23 = vector.broadcast %cst_11 : f32 to vector<8x132xf32>
    %24 = arith.cmpf oge, %22, %23 : vector<8x132xf32>
    %cst_12 = arith.constant 1.000000e-01 : f32
    %25 = vector.broadcast %cst_12 : f32 to vector<8x132xf32>
    %26 = arith.mulf %25, %22 : vector<8x132xf32>
    %27 = arith.select %24, %22, %26 : vector<8x132xi1>, vector<8x132xf32>
    %c128_i32 = arith.constant 128 : i32
    %28 = arith.muli %arg1, %c128_i32 : i32
    %c2_i32 = arith.constant 2 : i32
    %29 = arith.subi %28, %c2_i32 : i32
    %30 = tpu.iota {dimensions = array<i32: 1>} : vector<1x132xi32>
    %31 = vector.broadcast %29 : i32 to vector<1x132xi32>
    %32 = arith.addi %31, %30 : vector<1x132xi32>
    %c0_i32 = arith.constant 0 : i32
    %33 = vector.broadcast %c0_i32 : i32 to vector<1x132xi32>
    %34 = arith.cmpi sge, %32, %33 : vector<1x132xi32>
    %c32_i32 = arith.constant 32 : i32
    %35 = vector.broadcast %c32_i32 : i32 to vector<1x132xi32>
    %36 = arith.cmpi slt, %32, %35 : vector<1x132xi32>
    %37 = arith.andi %34, %36 : vector<1x132xi1>
    %cst_13 = arith.constant 0.000000e+00 : f32
    %38 = vector.shape_cast %37 : vector<1x132xi1> to vector<1x132xi1>
    %39 = vector.broadcast %38 : vector<1x132xi1> to vector<8x132xi1>
    %40 = vector.broadcast %cst_13 : f32 to vector<8x132xf32>
    %41 = arith.select %39, %27, %40 : vector<8x132xi1>, vector<8x132xf32>
    %42 = arith.truncf %41 : vector<8x132xf32> to vector<8x132xbf16>
    %43 = vector.extract_strided_slice %42 {offsets = [0, 0], sizes = [8, 128], strides = [1, 1]} : vector<8x132xbf16> to vector<8x128xbf16>
    %44 = vector.extract_strided_slice %42 {offsets = [0, 1], sizes = [8, 128], strides = [1, 1]} : vector<8x132xbf16> to vector<8x128xbf16>
    %45 = vector.extract_strided_slice %42 {offsets = [0, 2], sizes = [8, 128], strides = [1, 1]} : vector<8x132xbf16> to vector<8x128xbf16>
    %46 = vector.extract_strided_slice %42 {offsets = [0, 3], sizes = [8, 128], strides = [1, 1]} : vector<8x132xbf16> to vector<8x128xbf16>
    %47 = vector.extract_strided_slice %42 {offsets = [0, 4], sizes = [8, 128], strides = [1, 1]} : vector<8x132xbf16> to vector<8x128xbf16>
    %48 = tpu.concatenate %43, %44, %45, %46, %47 in 0 : vector<8x128xbf16>, vector<8x128xbf16>, vector<8x128xbf16>, vector<8x128xbf16>, vector<8x128xbf16> -> vector<40x128xbf16>
    %c0_14 = arith.constant 0 : index
    %c0_15 = arith.constant 0 : index
    %49 = vector.load %arg6[%c0_14, %c0_15] : memref<8x40xbf16, #tpu.memory_space<vmem>>, vector<8x40xbf16>
    %cst_16 = arith.constant dense<0.000000e+00> : vector<8x128xf32>
    %50 = tpu.matmul %49, %48, %cst_16 {dimension_numbers = #tpu.dot_dimension_numbers<[1], [0], [0], [1], [0, 0, 1, 1], [], []>} : vector<8x40xbf16>, vector<40x128xbf16>, vector<8x128xf32> -> vector<8x128xf32>
    %c0_17 = arith.constant 0 : index
    %c0_18 = arith.constant 0 : index
    %51 = vector.load %arg7[%c0_17, %c0_18] : memref<8x1xf32, #tpu.memory_space<vmem>>, vector<8x1xf32>
    %52 = vector.broadcast %51 : vector<8x1xf32> to vector<8x128xf32>
    %53 = arith.addf %50, %52 : vector<8x128xf32>
    %54 = vector.extract_strided_slice %4 {offsets = [0, 8], sizes = [8, 128], strides = [1, 1]} : vector<8x256xbf16> to vector<8x128xbf16>
    %55 = arith.extf %54 : vector<8x128xbf16> to vector<8x128xf32>
    %56 = arith.addf %53, %55 : vector<8x128xf32>
    %57 = arith.truncf %56 : vector<8x128xf32> to vector<8x128xbf16>
    %c0_19 = arith.constant 0 : index
    %c0_20 = arith.constant 0 : index
    %c0_21 = arith.constant 0 : index
    %58 = vector.load %arg8[%c0_19, %c0_20, %c0_21] : memref<1x8x128xbf16, #tpu.memory_space<vmem>>, vector<1x8x128xbf16>
    %59 = vector.shape_cast %58 : vector<1x8x128xbf16> to vector<8x128xbf16>
    %60 = vector.shape_cast %57 : vector<8x128xbf16> to vector<1x8x128xbf16>
    tpu.vector_store %arg8[%c0_19, %c0_20, %c0_21], %60 {strides = array<i32>} : memref<1x8x128xbf16, #tpu.memory_space<vmem>>, vector<1x8x128xbf16>,
    return
  }
  func.func @transform_0(%arg0: i32, %arg1: i32) -> (i32, i32, i32) {
    %c0_i32 = arith.constant 0 : i32
    %c0_i32_0 = arith.constant 0 : i32
    return %arg0, %c0_i32, %arg1 : i32, i32, i32
  }
  func.func @transform_1(%arg0: i32, %arg1: i32) -> (i32, i32, i32) {
    %c1_i32 = arith.constant 1 : i32
    %0 = arith.addi %arg1, %c1_i32 : i32
    %c1_i32_0 = arith.constant 1 : i32
    %1 = arith.muli %0, %c1_i32_0 : i32
    %c0_i32 = arith.constant 0 : i32
    %c0_i32_1 = arith.constant 0 : i32
    return %arg0, %c0_i32, %1 : i32, i32, i32
  }
  func.func @transform_2(%arg0: i32, %arg1: i32) -> (i32, i32) {
    %c0_i32 = arith.constant 0 : i32
    %c0_i32_0 = arith.constant 0 : i32
    %c0_i32_1 = arith.constant 0 : i32
    return %c0_i32, %c0_i32_0 : i32, i32
  }
  func.func @transform_3(%arg0: i32, %arg1: i32) -> (i32, i32) {
    %c0_i32 = arith.constant 0 : i32
    %c0_i32_0 = arith.constant 0 : i32
    %c0_i32_1 = arith.constant 0 : i32
    return %c0_i32, %c0_i32_0 : i32, i32
  }
  func.func @transform_4(%arg0: i32, %arg1: i32) -> (i32, i32) {
    %c0_i32 = arith.constant 0 : i32
    %c0_i32_0 = arith.constant 0 : i32
    %c0_i32_1 = arith.constant 0 : i32
    return %c0_i32, %c0_i32_0 : i32, i32
  }
  func.func @transform_5(%arg0: i32, %arg1: i32) -> (i32, i32) {
    %c0_i32 = arith.constant 0 : i32
    %c0_i32_0 = arith.constant 0 : i32
    %c0_i32_1 = arith.constant 0 : i32
    return %c0_i32, %c0_i32_0 : i32, i32
  }
  func.func @transform_6(%arg0: i32, %arg1: i32) -> (i32, i32, i32) {
    %c0_i32 = arith.constant 0 : i32
    %c0_i32_0 = arith.constant 0 : i32
    return %arg0, %c0_i32, %arg1 : i32, i32, i32
  }
}

module attributes {stable_mosaic.version = 11 : i64} {
  func.func @kernel(%arg0: i32, %arg1: i32, %arg2: memref<1x8x128xbf16, #tpu.memory_space<vmem>>, %arg3: memref<1x8x128xbf16, #tpu.memory_space<vmem>>, %arg4: memref<1x56xbf16, #tpu.memory_space<vmem>>, %arg5: memref<1x1xf32, #tpu.memory_space<vmem>>, %arg6: memref<1x1x128xf32, #tpu.memory_space<vmem>>) attributes {dimension_semantics = [#tpu.dimension_semantics<parallel>, #tpu.dimension_semantics<parallel>], iteration_bounds = array<i64: 2, 1>, scalar_prefetch = 0 : i64, scratch_operands = 0 : i64, tpu.core_type = #tpu.core_type<tc>, window_params = [{transform_indices = @transform_0, window_bounds = array<i64: 1, 8, 128>}, {transform_indices = @transform_1, window_bounds = array<i64: 1, 8, 128>}, {pipeline_mode = #tpu.pipeline_mode<synchronous>, transform_indices = @transform_2, window_bounds = array<i64: 1, 56>}, {pipeline_mode = #tpu.pipeline_mode<synchronous>, transform_indices = @transform_3, window_bounds = array<i64: 1, 1>}, {transform_indices = @transform_4, window_bounds = array<i64: 1, 1, 128>}]} {
    %c0 = arith.constant 0 : index
    %c0_0 = arith.constant 0 : index
    %c0_1 = arith.constant 0 : index
    %0 = vector.load %arg2[%c0, %c0_0, %c0_1] : memref<1x8x128xbf16, #tpu.memory_space<vmem>>, vector<1x8x128xbf16>
    %1 = vector.shape_cast %0 : vector<1x8x128xbf16> to vector<8x128xbf16>
    %c0_2 = arith.constant 0 : index
    %c0_3 = arith.constant 0 : index
    %c0_4 = arith.constant 0 : index
    %2 = vector.load %arg3[%c0_2, %c0_3, %c0_4] : memref<1x8x128xbf16, #tpu.memory_space<vmem>>, vector<1x8x128xbf16>
    %3 = vector.shape_cast %2 : vector<1x8x128xbf16> to vector<8x128xbf16>
    %4 = tpu.concatenate %1, %3 in 1 : vector<8x128xbf16>, vector<8x128xbf16> -> vector<8x256xbf16>
    %5 = arith.extf %4 : vector<8x256xbf16> to vector<8x256xf32>
    %cst = arith.constant 0.000000e+00 : f32
    %6 = vector.broadcast %cst : f32 to vector<8x256xf32>
    %7 = arith.cmpf oge, %5, %6 : vector<8x256xf32>
    %cst_5 = arith.constant 0.00999999977 : f32
    %8 = vector.broadcast %cst_5 : f32 to vector<8x256xf32>
    %9 = arith.mulf %8, %5 : vector<8x256xf32>
    %10 = arith.select %7, %5, %9 : vector<8x256xi1>, vector<8x256xf32>
    %11 = arith.truncf %10 : vector<8x256xf32> to vector<8x256xbf16>
    %12 = vector.extract_strided_slice %11 {offsets = [0, 0], sizes = [8, 128], strides = [1, 1]} : vector<8x256xbf16> to vector<8x128xbf16>
    %13 = vector.extract_strided_slice %11 {offsets = [0, 1], sizes = [8, 128], strides = [1, 1]} : vector<8x256xbf16> to vector<8x128xbf16>
    %14 = vector.extract_strided_slice %11 {offsets = [0, 2], sizes = [8, 128], strides = [1, 1]} : vector<8x256xbf16> to vector<8x128xbf16>
    %15 = vector.extract_strided_slice %11 {offsets = [0, 3], sizes = [8, 128], strides = [1, 1]} : vector<8x256xbf16> to vector<8x128xbf16>
    %16 = vector.extract_strided_slice %11 {offsets = [0, 4], sizes = [8, 128], strides = [1, 1]} : vector<8x256xbf16> to vector<8x128xbf16>
    %17 = vector.extract_strided_slice %11 {offsets = [0, 5], sizes = [8, 128], strides = [1, 1]} : vector<8x256xbf16> to vector<8x128xbf16>
    %18 = vector.extract_strided_slice %11 {offsets = [0, 6], sizes = [8, 128], strides = [1, 1]} : vector<8x256xbf16> to vector<8x128xbf16>
    %19 = tpu.concatenate %12, %13, %14, %15, %16, %17, %18 in 0 : vector<8x128xbf16>, vector<8x128xbf16>, vector<8x128xbf16>, vector<8x128xbf16>, vector<8x128xbf16>, vector<8x128xbf16>, vector<8x128xbf16> -> vector<56x128xbf16>
    %c0_6 = arith.constant 0 : index
    %c0_7 = arith.constant 0 : index
    %20 = vector.load %arg4[%c0_6, %c0_7] : memref<1x56xbf16, #tpu.memory_space<vmem>>, vector<1x56xbf16>
    %cst_8 = arith.constant dense<0.000000e+00> : vector<1x128xf32>
    %21 = tpu.matmul %20, %19, %cst_8 {dimension_numbers = #tpu.dot_dimension_numbers<[1], [0], [0], [1], [0, 0, 1, 1], [], []>} : vector<1x56xbf16>, vector<56x128xbf16>, vector<1x128xf32> -> vector<1x128xf32>
    %c0_9 = arith.constant 0 : index
    %c0_10 = arith.constant 0 : index
    %22 = vector.load %arg5[%c0_9, %c0_10] : memref<1x1xf32, #tpu.memory_space<vmem>>, vector<1x1xf32>
    %23 = vector.broadcast %22 : vector<1x1xf32> to vector<1x128xf32>
    %24 = arith.addf %21, %23 : vector<1x128xf32>
    %25 = math.tanh %24 : vector<1x128xf32>
    %c0_11 = arith.constant 0 : index
    %c0_12 = arith.constant 0 : index
    %c0_13 = arith.constant 0 : index
    %26 = vector.load %arg6[%c0_11, %c0_12, %c0_13] : memref<1x1x128xf32, #tpu.memory_space<vmem>>, vector<1x1x128xf32>
    %27 = vector.shape_cast %26 : vector<1x1x128xf32> to vector<1x128xf32>
    %28 = vector.shape_cast %25 : vector<1x128xf32> to vector<1x1x128xf32>
    tpu.vector_store %arg6[%c0_11, %c0_12, %c0_13], %28 {strides = array<i32>} : memref<1x1x128xf32, #tpu.memory_space<vmem>>, vector<1x1x128xf32>,
    return
  }
  func.func @transform_0(%arg0: i32, %arg1: i32) -> (i32, i32, i32) {
    %c0_i32 = arith.constant 0 : i32
    %c0_i32_0 = arith.constant 0 : i32
    return %arg0, %c0_i32, %arg1 : i32, i32, i32
  }
  func.func @transform_1(%arg0: i32, %arg1: i32) -> (i32, i32, i32) {
    %c1_i32 = arith.constant 1 : i32
    %0 = arith.addi %arg1, %c1_i32 : i32
    %c1_i32_0 = arith.constant 1 : i32
    %1 = arith.muli %0, %c1_i32_0 : i32
    %c0_i32 = arith.constant 0 : i32
    %c0_i32_1 = arith.constant 0 : i32
    return %arg0, %c0_i32, %1 : i32, i32, i32
  }
  func.func @transform_2(%arg0: i32, %arg1: i32) -> (i32, i32) {
    %c0_i32 = arith.constant 0 : i32
    %c0_i32_0 = arith.constant 0 : i32
    %c0_i32_1 = arith.constant 0 : i32
    return %c0_i32, %c0_i32_0 : i32, i32
  }
  func.func @transform_3(%arg0: i32, %arg1: i32) -> (i32, i32) {
    %c0_i32 = arith.constant 0 : i32
    %c0_i32_0 = arith.constant 0 : i32
    %c0_i32_1 = arith.constant 0 : i32
    return %c0_i32, %c0_i32_0 : i32, i32
  }
  func.func @transform_4(%arg0: i32, %arg1: i32) -> (i32, i32, i32) {
    %c0_i32 = arith.constant 0 : i32
    %c0_i32_0 = arith.constant 0 : i32
    return %arg0, %c0_i32, %arg1 : i32, i32, i32
  }
}

</mosaic_0001>

<llo_original>
// kernel: _lambda_.13
$region0: #{_lambda_.13}
  #allocation0 [shape = 'u32[]', space=smem, size = 0x4, offset = 0x4, fixed_abs, tag = 'smem constant byte address 0x4 - core index']
  #allocation1 [shape = 'u32[72,128]{1,0:T(1,128)}', space=vmem, size = 0x9000, scoped, tag = 'internal scratch']
  %s0 = inlined_call_operand.vmem [shape: bf16[2,32,256], index: 0, kind: input, shape index: {}, may-alias: {0,1}]
  %s1 = inlined_call_operand.vmem [shape: bf16[2,32,256], index: 1, kind: input, shape index: {}, may-alias: {0,1}]
  %s2 = inlined_call_operand.vmem [shape: bf16[32,64], index: 2, kind: input, shape index: {}]
  %s3 = inlined_call_operand.vmem [shape: f32[32,1], index: 3, kind: input, shape index: {}]
  %s4 = inlined_call_operand.vmem [shape: bf16[2,32,128], index: 4, kind: output, shape index: {}]
  %s5 = sld [smem:[#allocation0]]
  $region131: #{_lambda_.13} parent=0
    _
  %s7 = ssub.s32 1, %s5
  %s8 = scalar_select 0, %s7, %s5
  $region1: #{_lambda_.13} parent=0
    #allocation2 [shape = 'u8[16384]{0}', space=vmem, size = 0x4000, scoped, tag = 'input window, operand 0']
    #allocation3 [shape = 'u8[16384]{0}', space=vmem, size = 0x4000, scoped, tag = 'input window, operand 1']
    loop: start=0, step=1, limit=4
    $region2: #{_lambda_.13} parent=1 // loop_pre_header
      _
    $region3: #{_lambda_.13} parent=1 // loop_header
      %s10 = sphi 0, %s14
      %p11 = scmp.ge.s32.totalorder %s10, 4
      %s17 = sphi 0, %s29
      %s18 = sphi 0, %s25
      %s19 = sphi 0, %s17
      %s20 = sphi 0, %s18
      %s21 = sphi 0, %s19
      %s22 = sphi 0, %s20
      %s34 = sphi 0, %s36
      %s37 = sphi 0, %s34
      %s38 = sphi 0, %s37
      %s54 = sphi 0, %s38
      %s64 = sphi 0, %s66
      %s67 = sphi 0, %s64
      %s68 = sphi 0, %s67
      %s84 = sphi 0, %s68
      %s88 = sphi 0, %s88
      %s90 = sphi 0, %s88
      %s91 = sphi 0, %s90
      %s105 = sphi 0, %s91
      %s109 = sphi 0, %s109
      %s111 = sphi 0, %s109
      %s112 = sphi 0, %s111
      %s126 = sphi 0, %s112
      %s134 = sphi 0, %s136
      %s137 = sphi 0, %s134
      %s138 = sphi 0, %s137
      %s154 = sphi 0, %s138
    $region4: #{_lambda_.13} parent=1 // loop_header_branch
      %13 = sbr.rel (%p11) target = $region8
    $region5: #{_lambda_.13} parent=1 // loop_body
      %s15 = ssub.s32 %s10, 1
      %s16 = ssub.s32 %s10, 2
      %s23 = sadd.s32 1, %s18
      %p24 = scmp.ge.s32.totalorder %s23, 1
      %s25 = scalar_select %p24, 0, %s23
      %s26 = sadd.s32 1, %s17
      %s27 = scalar_select %p24, %s26, %s17
      %p28 = scmp.ge.s32.totalorder %s27, 2
      %s29 = scalar_select %p28, 0, %s27
      %s30 = ssub.s32 %s17, %s29
      %s31 = ssub.s32 %s18, %s25
      %s32 = sor.u32 %s30, %s31
      %p33 = scmp.eq.s32.totalorder %s32, 0
      %s35 = sadd.s32 %s34, 1
      %s36 = scalar_select %p33, %s34, %s35
      %p39 = pneg %p33
      %p40 = scmp.eq.s32.totalorder %s10, 1
      %p41 = por %p39, %p40
      %p42 = scmp.ne.s32.totalorder %s34, %s37
      %p43 = scmp.eq.s32.totalorder %s10, 0
      %p44 = por %p42, %p43
      %p45 = scmp.ne.s32.totalorder %s34, %s37
      %p46 = scmp.eq.s32.totalorder %s15, 1
      %p47 = por %p45, %p46
      %p48 = scmp.ne.s32.totalorder %s37, %s38
      %p49 = scmp.eq.s32.totalorder %s15, 0
      %p50 = por %p48, %p49
      %p51 = scmp.ne.s32.totalorder %s37, %s38
      %p52 = scmp.eq.s32.totalorder %s16, 1
      %p53 = por %p51, %p52
      %p55 = scmp.ne.s32.totalorder %s38, %s54
      %p56 = scmp.eq.s32.totalorder %s16, 0
      %p57 = por %p55, %p56
      %s58 = sadd.s32 %s18, 1
      %s59 = sadd.s32 %s25, 1
      %s60 = ssub.s32 %s17, %s29
      %s61 = ssub.s32 %s58, %s59
      %s62 = sor.u32 %s60, %s61
      %p63 = scmp.eq.s32.totalorder %s62, 0
      %s65 = sadd.s32 %s64, 1
      %s66 = scalar_select %p63, %s64, %s65
      %p69 = pneg %p63
      %p70 = scmp.eq.s32.totalorder %s10, 1
      %p71 = por %p69, %p70
      %p72 = scmp.ne.s32.totalorder %s64, %s67
      %p73 = scmp.eq.s32.totalorder %s10, 0
      %p74 = por %p72, %p73
      %p75 = scmp.ne.s32.totalorder %s64, %s67
      %p76 = scmp.eq.s32.totalorder %s15, 1
      %p77 = por %p75, %p76
      %p78 = scmp.ne.s32.totalorder %s67, %s68
      %p79 = scmp.eq.s32.totalorder %s15, 0
      %p80 = por %p78, %p79
      %p81 = scmp.ne.s32.totalorder %s67, %s68
      %p82 = scmp.eq.s32.totalorder %s16, 1
      %p83 = por %p81, %p82
      %p85 = scmp.ne.s32.totalorder %s68, %s84
      %p86 = scmp.eq.s32.totalorder %s16, 0
      %p87 = por %p85, %p86
      %s89 = sadd.s32 %s88, 1
      %p92 = scmp.eq.s32.totalorder %s10, 1
      %p93 = scmp.ne.s32.totalorder %s88, %s90
      %p94 = scmp.eq.s32.totalorder %s10, 0
      %p95 = por %p93, %p94
      %p96 = scmp.ne.s32.totalorder %s88, %s90
      %p97 = scmp.eq.s32.totalorder %s15, 1
      %p98 = por %p96, %p97
      %p99 = scmp.ne.s32.totalorder %s90, %s91
      %p100 = scmp.eq.s32.totalorder %s15, 0
      %p101 = por %p99, %p100
      %p102 = scmp.ne.s32.totalorder %s90, %s91
      %p103 = scmp.eq.s32.totalorder %s16, 1
      %p104 = por %p102, %p103
      %p106 = scmp.ne.s32.totalorder %s91, %s105
      %p107 = scmp.eq.s32.totalorder %s16, 0
      %p108 = por %p106, %p107
      %s110 = sadd.s32 %s109, 1
      %p113 = scmp.eq.s32.totalorder %s10, 1
      %p114 = scmp.ne.s32.totalorder %s109, %s111
      %p115 = scmp.eq.s32.totalorder %s10, 0
      %p116 = por %p114, %p115
      %p117 = scmp.ne.s32.totalorder %s109, %s111
      %p118 = scmp.eq.s32.totalorder %s15, 1
      %p119 = por %p117, %p118
      %p120 = scmp.ne.s32.totalorder %s111, %s112
      %p121 = scmp.eq.s32.totalorder %s15, 0
      %p122 = por %p120, %p121
      %p123 = scmp.ne.s32.totalorder %s111, %s112
      %p124 = scmp.eq.s32.totalorder %s16, 1
      %p125 = por %p123, %p124
      %p127 = scmp.ne.s32.totalorder %s112, %s126
      %p128 = scmp.eq.s32.totalorder %s16, 0
      %p129 = por %p127, %p128
      %s130 = ssub.s32 %s17, %s29
      %s131 = ssub.s32 %s18, %s25
      %s132 = sor.u32 %s130, %s131
      %p133 = scmp.eq.s32.totalorder %s132, 0
      %s135 = sadd.s32 %s134, 1
      %s136 = scalar_select %p133, %s134, %s135
      %p139 = pneg %p133
      %p140 = scmp.eq.s32.totalorder %s10, 1
      %p141 = por %p139, %p140
      %p142 = scmp.ne.s32.totalorder %s134, %s137
      %p143 = scmp.eq.s32.totalorder %s10, 0
      %p144 = por %p142, %p143
      %p145 = scmp.ne.s32.totalorder %s134, %s137
      %p146 = scmp.eq.s32.totalorder %s15, 1
      %p147 = por %p145, %p146
      %p148 = scmp.ne.s32.totalorder %s137, %s138
      %p149 = scmp.eq.s32.totalorder %s15, 0
      %p150 = por %p148, %p149
      %p151 = scmp.ne.s32.totalorder %s137, %s138
      %p152 = scmp.eq.s32.totalorder %s16, 1
      %p153 = por %p151, %p152
      %p155 = scmp.ne.s32.totalorder %s138, %s154
      %p156 = scmp.eq.s32.totalorder %s16, 0
      %p157 = por %p155, %p156
      %p158 = scmp.le.s32.totalorder 1, %s10
      %p159 = scmp.lt.s32.totalorder %s10, 3
      %p160 = pnand %p158, %p159
      %p161 = pneg %p160
      // Predicated region
      $region9: #{_lambda_.13} parent=5 // pred_check
        _
      $region10: #{_lambda_.13} parent=5 // pred_check_branch
        %163 = sbr.rel (%p160) target = $region12
      $region11: #{_lambda_.13} parent=5 // pred_region
        %s164 = ssub.s32 %s10, 1
        // Predicated region
        $region13: #{_lambda_.13} parent=11 // pred_check
          %p165 = pneg %p101
        $region14: #{_lambda_.13} parent=11 // pred_check_branch
          %167 = sbr.rel (%p165) target = $region16
        $region15: #{_lambda_.13} parent=11 // pred_region
          _
        $region16: #{_lambda_.13} parent=11 // pred_fallthru
          _
        // Predicated region
        $region17: #{_lambda_.13} parent=11 // pred_check
          %p168 = pneg %p122
        $region18: #{_lambda_.13} parent=11 // pred_check_branch
          %170 = sbr.rel (%p168) target = $region20
        $region19: #{_lambda_.13} parent=11 // pred_region
          _
        $region20: #{_lambda_.13} parent=11 // pred_fallthru
          _
      $region12: #{_lambda_.13} parent=5 // pred_fallthru
        _
      %p171 = scmp.lt.s32.totalorder %s10, 2
      // Predicated region
      $region21: #{_lambda_.13} parent=5 // pred_check
        %p172 = pneg %p171
      $region22: #{_lambda_.13} parent=5 // pred_check_branch
        %174 = sbr.rel (%p172) target = $region24
      $region23: #{_lambda_.13} parent=5 // pred_region
        // Predicated region
        $region25: #{_lambda_.13} parent=23 // pred_check
          %p175 = pneg %p44
        $region26: #{_lambda_.13} parent=23 // pred_check_branch
          %177 = sbr.rel (%p175) target = $region28
        $region27: #{_lambda_.13} parent=23 // pred_region
          %s178 = sand.u32 %s34, 1
          %s179 = sand.u32 %s34, 1
          %s180 = smul.addr %s179, 16
          %s181 = scalar_lea.vmem [#allocation2], %s180
          %s182 = smul.addr %s17, 8
          %s183 = sadd.s32 %s18, %s182
          %s184 = smul.addr %s183, 4
          %s185 = scalar_lea.vmem %s0, %s184
          // Predicated region
          $region29: #{_lambda_.13} parent=27 // pred_check
            _
          $region30: #{_lambda_.13} parent=27 // pred_check_branch
            %187 = sbr.rel (0) target = $region32
          $region31: #{_lambda_.13} parent=27 // pred_region
            // Predicated region
            $region33: #{_lambda_.13} parent=31 // pred_check
              _
            $region34: #{_lambda_.13} parent=31 // pred_check_branch
              %189 = sbr.rel target = $region36
            $region35: #{_lambda_.13} parent=31 // pred_region
              // Predicated region
              $region48: #{_lambda_.13} parent=35 // pred_check
                _
              $region49: #{_lambda_.13} parent=35 // pred_check_branch
                %211 = sbr.rel (0) target = $region51
              $region50: #{_lambda_.13} parent=35 // pred_region
                loop: start=0, step=1, limit=1
                $region52: #{_lambda_.13} parent=50 // loop_pre_header
                  _
                $region53: #{_lambda_.13} parent=50 // loop_header
                  %s213 = sphi 0, %s217
                  %p214 = scmp.ge.s32.totalorder %s213, 1
                  %s218 = sphi %s185, %s185
                  %s219 = sphi %s181, %s181
                $region54: #{_lambda_.13} parent=50 // loop_header_branch
                  %216 = sbr.rel (%p214) target = $region58
                $region55: #{_lambda_.13} parent=50 // loop_body
                  _
                $region56: #{_lambda_.13} parent=50 // loop_footer
                  %s217 = sadd.s32 1, %s213
                $region57: #{_lambda_.13} parent=50 // loop_footer_branch
                  %212 = sbr.rel target = $region53
                $region58: #{_lambda_.13} parent=50 // loop_exit
                  _
                %s221 = ssub.s32 16, 1
                loop: start=0, step=1, limit=1
                $region59: #{_lambda_.13} parent=50 // loop_pre_header
                  _
                $region60: #{_lambda_.13} parent=50 // loop_header
                  %s223 = sphi 0, %s227
                  %p224 = scmp.ge.s32.totalorder %s223, 1
                  %s228 = sphi %s185, %s185
                  %s229 = sphi %s181, %s181
                $region61: #{_lambda_.13} parent=50 // loop_header_branch
                  %226 = sbr.rel (%p224) target = $region65
                $region62: #{_lambda_.13} parent=50 // loop_body
                  %v230 = vld [vmem:[%s228] sm:%s221]
                  %231 = vst [vmem:[%s229] sm:%s221] %v230
                  %v232 = vld [vmem:[%s228 + $0x8] sm:%s221]
                  %233 = vst [vmem:[%s229 + $0x4] sm:%s221] %v232
                  %v234 = vld [vmem:[%s228 + $0x10] sm:%s221]
                  %235 = vst [vmem:[%s229 + $0x8] sm:%s221] %v234
                  %v236 = vld [vmem:[%s228 + $0x18] sm:%s221]
                  %237 = vst [vmem:[%s229 + $0xc] sm:%s221] %v236
                $region63: #{_lambda_.13} parent=50 // loop_footer
                  %s227 = sadd.s32 1, %s223
                $region64: #{_lambda_.13} parent=50 // loop_footer_branch
                  %222 = sbr.rel target = $region60
                $region65: #{_lambda_.13} parent=50 // loop_exit
                  _
              $region51: #{_lambda_.13} parent=35 // pred_fallthru
                _
            $region36: #{_lambda_.13} parent=31 // pred_fallthru
              _
            // Predicated region
            $region37: #{_lambda_.13} parent=31 // pred_check
              _
            $region38: #{_lambda_.13} parent=31 // pred_check_branch
              %191 = sbr.rel (0) target = $region40
            $region39: #{_lambda_.13} parent=31 // pred_region
              %s193 = ssub.s32 16, 1
              loop: start=0, step=1, limit=1
              $region41: #{_lambda_.13} parent=39 // loop_pre_header
                _
              $region42: #{_lambda_.13} parent=39 // loop_header
                %s195 = sphi 0, %s199
                %p196 = scmp.ge.s32.totalorder %s195, 1
                %s200 = sphi %s185, %s185
                %s201 = sphi %s181, %s181
              $region43: #{_lambda_.13} parent=39 // loop_header_branch
                %198 = sbr.rel (%p196) target = $region47
              $region44: #{_lambda_.13} parent=39 // loop_body
                %v202 = vld [vmem:[%s200] sm:%s193]
                %203 = vst [vmem:[%s201] sm:%s193] %v202
                %v204 = vld [vmem:[%s200 + $0x8] sm:%s193]
                %205 = vst [vmem:[%s201 + $0x4] sm:%s193] %v204
                %v206 = vld [vmem:[%s200 + $0x10] sm:%s193]
                %207 = vst [vmem:[%s201 + $0x8] sm:%s193] %v206
                %v208 = vld [vmem:[%s200 + $0x18] sm:%s193]
                %209 = vst [vmem:[%s201 + $0xc] sm:%s193] %v208
              $region45: #{_lambda_.13} parent=39 // loop_footer
                %s199 = sadd.s32 1, %s195
              $region46: #{_lambda_.13} parent=39 // loop_footer_branch
                %194 = sbr.rel target = $region42
              $region47: #{_lambda_.13} parent=39 // loop_exit
                _
            $region40: #{_lambda_.13} parent=31 // pred_fallthru
              _
          $region32: #{_lambda_.13} parent=27 // pred_fallthru
            _
          %238 = vnop
        $region28: #{_lambda_.13} parent=23 // pred_fallthru
          _
        // Predicated region
        $region66: #{_lambda_.13} parent=23 // pred_check
          %p239 = pneg %p74
        $region67: #{_lambda_.13} parent=23 // pred_check_branch
          %241 = sbr.rel (%p239) target = $region69
        $region68: #{_lambda_.13} parent=23 // pred_region
          %s242 = sand.u32 %s64, 1
          %s243 = sand.u32 %s64, 1
          %s244 = smul.addr %s243, 16
          %s245 = scalar_lea.vmem [#allocation3], %s244
          %s246 = sadd.s32 %s18, 1
          %s247 = smul.addr %s17, 8
          %s248 = sadd.s32 %s246, %s247
          %s249 = smul.addr %s248, 4
          %s250 = scalar_lea.vmem %s1, %s249
          // Predicated region
          $region70: #{_lambda_.13} parent=68 // pred_check
            _
          $region71: #{_lambda_.13} parent=68 // pred_check_branch
            %252 = sbr.rel (0) target = $region73
          $region72: #{_lambda_.13} parent=68 // pred_region
            // Predicated region
            $region74: #{_lambda_.13} parent=72 // pred_check
              _
            $region75: #{_lambda_.13} parent=72 // pred_check_branch
              %254 = sbr.rel target = $region77
            $region76: #{_lambda_.13} parent=72 // pred_region
              // Predicated region
              $region89: #{_lambda_.13} parent=76 // pred_check
                _
              $region90: #{_lambda_.13} parent=76 // pred_check_branch
                %276 = sbr.rel (0) target = $region92
              $region91: #{_lambda_.13} parent=76 // pred_region
                loop: start=0, step=1, limit=1
                $region93: #{_lambda_.13} parent=91 // loop_pre_header
                  _
                $region94: #{_lambda_.13} parent=91 // loop_header
                  %s278 = sphi 0, %s282
                  %p279 = scmp.ge.s32.totalorder %s278, 1
                  %s283 = sphi %s250, %s250
                  %s284 = sphi %s245, %s245
                $region95: #{_lambda_.13} parent=91 // loop_header_branch
                  %281 = sbr.rel (%p279) target = $region99
                $region96: #{_lambda_.13} parent=91 // loop_body
                  _
                $region97: #{_lambda_.13} parent=91 // loop_footer
                  %s282 = sadd.s32 1, %s278
                $region98: #{_lambda_.13} parent=91 // loop_footer_branch
                  %277 = sbr.rel target = $region94
                $region99: #{_lambda_.13} parent=91 // loop_exit
                  _
                %s286 = ssub.s32 16, 1
                loop: start=0, step=1, limit=1
                $region100: #{_lambda_.13} parent=91 // loop_pre_header
                  _
                $region101: #{_lambda_.13} parent=91 // loop_header
                  %s288 = sphi 0, %s292
                  %p289 = scmp.ge.s32.totalorder %s288, 1
                  %s293 = sphi %s250, %s250
                  %s294 = sphi %s245, %s245
                $region102: #{_lambda_.13} parent=91 // loop_header_branch
                  %291 = sbr.rel (%p289) target = $region106
                $region103: #{_lambda_.13} parent=91 // loop_body
                  %v295 = vld [vmem:[%s293] sm:%s286]
                  %296 = vst [vmem:[%s294] sm:%s286] %v295
                  %v297 = vld [vmem:[%s293 + $0x8] sm:%s286]
                  %298 = vst [vmem:[%s294 + $0x4] sm:%s286] %v297
                  %v299 = vld [vmem:[%s293 + $0x10] sm:%s286]
                  %300 = vst [vmem:[%s294 + $0x8] sm:%s286] %v299
                  %v301 = vld [vmem:[%s293 + $0x18] sm:%s286]
                  %302 = vst [vmem:[%s294 + $0xc] sm:%s286] %v301
                $region104: #{_lambda_.13} parent=91 // loop_footer
                  %s292 = sadd.s32 1, %s288
                $region105: #{_lambda_.13} parent=91 // loop_footer_branch
                  %287 = sbr.rel target = $region101
                $region106: #{_lambda_.13} parent=91 // loop_exit
                  _
              $region92: #{_lambda_.13} parent=76 // pred_fallthru
                _
            $region77: #{_lambda_.13} parent=72 // pred_fallthru
              _
            // Predicated region
            $region78: #{_lambda_.13} parent=72 // pred_check
              _
            $region79: #{_lambda_.13} parent=72 // pred_check_branch
              %256 = sbr.rel (0) target = $region81
            $region80: #{_lambda_.13} parent=72 // pred_region
              %s258 = ssub.s32 16, 1
              loop: start=0, step=1, limit=1
              $region82: #{_lambda_.13} parent=80 // loop_pre_header
                _
              $region83: #{_lambda_.13} parent=80 // loop_header
                %s260 = sphi 0, %s264
                %p261 = scmp.ge.s32.totalorder %s260, 1
                %s265 = sphi %s250, %s250
                %s266 = sphi %s245, %s245
              $region84: #{_lambda_.13} parent=80 // loop_header_branch
                %263 = sbr.rel (%p261) target = $region88
              $region85: #{_lambda_.13} parent=80 // loop_body
                %v267 = vld [vmem:[%s265] sm:%s258]
                %268 = vst [vmem:[%s266] sm:%s258] %v267
                %v269 = vld [vmem:[%s265 + $0x8] sm:%s258]
                %270 = vst [vmem:[%s266 + $0x4] sm:%s258] %v269
                %v271 = vld [vmem:[%s265 + $0x10] sm:%s258]
                %272 = vst [vmem:[%s266 + $0x8] sm:%s258] %v271
                %v273 = vld [vmem:[%s265 + $0x18] sm:%s258]
                %274 = vst [vmem:[%s266 + $0xc] sm:%s258] %v273
              $region86: #{_lambda_.13} parent=80 // loop_footer
                %s264 = sadd.s32 1, %s260
              $region87: #{_lambda_.13} parent=80 // loop_footer_branch
                %259 = sbr.rel target = $region83
              $region88: #{_lambda_.13} parent=80 // loop_exit
                _
            $region81: #{_lambda_.13} parent=72 // pred_fallthru
              _
          $region73: #{_lambda_.13} parent=68 // pred_fallthru
            _
          %303 = vnop
        $region69: #{_lambda_.13} parent=23 // pred_fallthru
          _
      $region24: #{_lambda_.13} parent=5 // pred_fallthru
        _
      %p304 = scmp.le.s32.totalorder 1, %s10
      %p305 = scmp.lt.s32.totalorder %s10, 3
      %p306 = pnand %p304, %p305
      %p307 = pneg %p306
      // Predicated region
      $region107: #{_lambda_.13} parent=5 // pred_check
        _
      $region108: #{_lambda_.13} parent=5 // pred_check_branch
        %309 = sbr.rel (%p306) target = $region110
      $region109: #{_lambda_.13} parent=5 // pred_region
        %s310 = ssub.s32 %s10, 1
        %s311 = sand.u32 %s37, 1
        %s312 = sand.u32 %s37, 1
        %s313 = smul.addr %s312, 16
        %s314 = scalar_lea.vmem [#allocation2], %s313
        // Predicated region
        $region111: #{_lambda_.13} parent=109 // pred_check
          %p315 = pneg %p50
        $region112: #{_lambda_.13} parent=109 // pred_check_branch
          %317 = sbr.rel (%p315) target = $region114
        $region113: #{_lambda_.13} parent=109 // pred_region
          _
        $region114: #{_lambda_.13} parent=109 // pred_fallthru
          _
        %s318 = sand.u32 %s67, 1
        %s319 = sand.u32 %s67, 1
        %s320 = smul.addr %s319, 16
        %s321 = scalar_lea.vmem [#allocation3], %s320
        // Predicated region
        $region115: #{_lambda_.13} parent=109 // pred_check
          %p322 = pneg %p80
        $region116: #{_lambda_.13} parent=109 // pred_check_branch
          %324 = sbr.rel (%p322) target = $region118
        $region117: #{_lambda_.13} parent=109 // pred_region
          _
        $region118: #{_lambda_.13} parent=109 // pred_fallthru
          _
        %s325 = sand.u32 %s37, 1
        %s326 = sand.u32 %s37, 1
        %s327 = smul.addr %s326, 16
        %s328 = scalar_lea.vmem [#allocation2], %s327
        %p329 = pneg %p50
        %p330 = pneg %p47
        %s331 = sand.u32 %s67, 1
        %s332 = sand.u32 %s67, 1
        %s333 = smul.addr %s332, 16
        %s334 = scalar_lea.vmem [#allocation3], %s333
        %p335 = pneg %p80
        %p336 = pneg %p77
        %p337 = pneg %p101
        %p338 = pneg %p98
        %p339 = pneg %p122
        %p340 = pneg %p119
        %p341 = pneg %p150
        %p342 = pneg %p147
        %p343 = scmp.lt.s32.totalorder %s19, 1
        %s344 = scalar_select %p343, %s19, 1
        %p345 = scmp.lt.s32.totalorder %s20, 0
        %s346 = scalar_select %p345, %s20, 0
        %s347 = smul.addr %s344, 4
        %s348 = sadd.s32 %s346, %s347
        %s349 = smul.addr %s348, 4
        %s350 = scalar_lea.vmem %s4, %s349
        %s351 = sadd.s32 %s20, 1
        %p352 = scmp.lt.s32.totalorder %s19, 1
        %s353 = scalar_select %p352, %s19, 1
        %p354 = scmp.lt.s32.totalorder %s20, 0
        %s355 = scalar_select %p354, %s20, 0
        %s356 = smul.addr %s353, 4
        %s357 = sadd.s32 %s355, %s356
        %s358 = smul.addr %s357, 4
        %s359 = scalar_lea.vmem %s4, %s358
        %v361 = vld [vmem:[%s314] sm:$0xf]
        %v362 = vld [vmem:[%s314 + $0x4] sm:$0xf]
        %v363 = vld [vmem:[%s314 + $0x8] sm:$0xf]
        %v364 = vld [vmem:[%s314 + $0xc] sm:$0xf]
        %v365 = vld [vmem:[%s321] sm:$0xf]
        %v366 = vld [vmem:[%s321 + $0x4] sm:$0xf]
        %v367 = vld [vmem:[%s321 + $0x8] sm:$0xf]
        %v368 = vld [vmem:[%s321 + $0xc] sm:$0xf]
        %v373 = vunpack.c.l.b16 %v361
        %v374 = vunpack.c.l.b16 %v362
        %v375 = vunpack.c.l.b16 %v363
        %v376 = vunpack.c.l.b16 %v364
        %v377 = vpack.c.b16 %v374, %v373
        %v378 = vpack.c.b16 %v376, %v375
        %v385 = vunpack.c.l.b16 %v365
        %v386 = vunpack.c.l.b16 %v366
        %v387 = vunpack.c.l.b16 %v367
        %v388 = vunpack.c.l.b16 %v368
        %v389 = vpack.c.b16 %v386, %v385
        %v390 = vpack.c.b16 %v388, %v387
        %v393 = vunpack.c.l.bf16 %v377
        %v394 = vunpack.c.l.bf16 %v389
        %v395 = vunpack.c.h.bf16 %v377
        %v396 = vunpack.c.h.bf16 %v389
        %v397 = vunpack.c.l.bf16 %v378
        %v398 = vunpack.c.l.bf16 %v390
        %v399 = vunpack.c.h.bf16 %v378
        %v400 = vunpack.c.h.bf16 %v390
        %vm401 = vcmp.ge.f32.partialorder %v393, 0.0
        %vm402 = vcmp.ge.f32.partialorder %v394, 0.0
        %vm403 = vcmp.ge.f32.partialorder %v395, 0.0
        %vm404 = vcmp.ge.f32.partialorder %v396, 0.0
        %vm405 = vcmp.ge.f32.partialorder %v397, 0.0
        %vm406 = vcmp.ge.f32.partialorder %v398, 0.0
        %vm407 = vcmp.ge.f32.partialorder %v399, 0.0
        %vm408 = vcmp.ge.f32.partialorder %v400, 0.0
        %v409 = vmul.f32 %v393, 0.1
        %v410 = vmul.f32 %v394, 0.1
        %v411 = vmul.f32 %v395, 0.1
        %v412 = vmul.f32 %v396, 0.1
        %v413 = vmul.f32 %v397, 0.1
        %v414 = vmul.f32 %v398, 0.1
        %v415 = vmul.f32 %v399, 0.1
        %v416 = vmul.f32 %v400, 0.1
        %v417 = vsel %vm401, %v393, %v409
        %v418 = vsel %vm402, %v394, %v410
        %v419 = vsel %vm403, %v395, %v411
        %v420 = vsel %vm404, %v396, %v412
        %v421 = vsel %vm405, %v397, %v413
        %v422 = vsel %vm406, %v398, %v414
        %v423 = vsel %vm407, %v399, %v415
        %v424 = vsel %vm408, %v400, %v416
        %v425 = vpack.c.bf16 %v418, %v417
        %v426 = vpack.c.bf16 %v420, %v419
        %v427 = vpack.c.bf16 %v422, %v421
        %v428 = vpack.c.bf16 %v424, %v423
        %v433 = vunpack.c.l.b16 %v425
        %v434 = vunpack.c.l.b16 %v426
        %v435 = vunpack.c.l.b16 %v427
        %v436 = vunpack.c.l.b16 %v428
        %v437 = vpack.c.b16 %v434, %v433
        %v438 = vpack.c.b16 %v436, %v435
        %v441 = vunpack.c.h.b16 %v425
        %v442 = vunpack.c.h.b16 %v426
        %v443 = vunpack.c.h.b16 %v427
        %v444 = vunpack.c.h.b16 %v428
        %v445 = vpack.c.b16 %v442, %v441
        %v446 = vpack.c.b16 %v444, %v443
        %447 = vrot.lane.b32.xlu0 %v437, 127
        %v448 = vpop.permute.xlu0 %447
        %449 = vrot.lane.b32.xlu0 %v445, 127
        %v450 = vpop.permute.xlu0 %449
        %451 = vrot.lane.b32.xlu0 %v438, 127
        %v452 = vpop.permute.xlu0 %451
        %453 = vrot.lane.b32.xlu0 %v446, 127
        %v454 = vpop.permute.xlu0 %453
        %vm455 = vcmask 1039360
        %v456 = vsel %vm455, %v448, %v450
        %v457 = vsel %vm455, %v452, %v454
        %v460 = vld [vmem:[%s2] sm:$0xf]
        %v461 = vld [vmem:[%s2 + $0x4] sm:$0xf]
        %v462 = vld [vmem:[%s2 + $0x8] sm:$0xf]
        %v463 = vld [vmem:[%s2 + $0xc] sm:$0xf]
        %v464 = vld [vmem:[%s3] sm:$0xff]
        %v465 = vld [vmem:[%s3 + $0x8] sm:$0xff]
        %v466 = vld [vmem:[%s3 + $0x10] sm:$0xff]
        %v467 = vld [vmem:[%s3 + $0x18] sm:$0xff]
        %469 = vset.pattern.permute.xlu0 0
        %470 = vperm.xlu0 %469, %v464
        %v471 = vpop.permute.xlu0 %470
        %474 = vset.pattern.permute.xlu0 0
        %475 = vperm.xlu0 %474, %v465
        %v476 = vpop.permute.xlu0 %475
        %479 = vset.pattern.permute.xlu0 0
        %480 = vperm.xlu0 %479, %v466
        %v481 = vpop.permute.xlu0 %480
        %484 = vset.pattern.permute.xlu0 0
        %485 = vperm.xlu0 %484, %v467
        %v486 = vpop.permute.xlu0 %485
        %v492 = vunpack.c.l.b16 %v460
        %v493 = vunpack.c.l.b16 %v461
        %v494 = vunpack.c.l.b16 %v462
        %v495 = vunpack.c.l.b16 %v463
        %v496 = vpack.c.b16 %v493, %v492
        %v497 = vpack.c.b16 %v495, %v494
        %vm498 = vcmask 523264
        %v500 = vsel %vm498, %v496, 0
        %v503 = vsel %vm498, %v497, 0
        %505 = vmatpush.bf16.msra.mxu0 0
        %506 = vmatpush.bf16.msra.mxu0 0
        %507 = vmatpush.bf16.msra.mxu0 0
        %508 = vmatpush.bf16.msra.mxu0 0
        %509 = vmatpush.bf16.msra.mxu0 %v457
        %510 = vmatpush.bf16.msra.mxu0 %v456
        %511 = vmatpush.bf16.msra.mxu0 %v438
        %512 = vmatpush.bf16.msra.mxu0 %v437
        %513 = vmatmul.bf16.gmra.mxu0 %v500
        %v514 = vpop.f32.mrf.mxu0
        %v515 = vadd.f32 %v471, %v514
        %v516 = vpop.f32.mrf.mxu0
        %v517 = vadd.f32 %v476, %v516
        %518 = vmatmul.bf16.gmra.mxu0 %v503
        %v519 = vpop.f32.mrf.mxu0
        %v520 = vadd.f32 %v481, %v519
        %v521 = vpop.f32.mrf.mxu0
        %v522 = vadd.f32 %v486, %v521
        %523 = vdwg.mxu0
        %v524 = vpack.c.bf16 %v515, %v515
        %v525 = vpack.c.bf16 %v517, %v517
        %v526 = vpack.c.bf16 %v520, %v520
        %v527 = vpack.c.bf16 %v522, %v522
        %528 = vst [vmem:[%s359] sm:$0xf] %v524
        %529 = vst [vmem:[%s359 + $0x4] sm:$0xf] %v525
        %530 = vst [vmem:[%s359 + $0x8] sm:$0xf] %v526
        %531 = vst [vmem:[%s359 + $0xc] sm:$0xf] %v527
        %p532 = scmp.lt.s32.totalorder %s19, 1
        %s533 = scalar_select %p532, %s19, 1
        %p534 = scmp.lt.s32.totalorder %s20, 0
        %s535 = scalar_select %p534, %s20, 0
        %s536 = smul.addr %s533, 4
        %s537 = sadd.s32 %s535, %s536
        %s538 = smul.addr %s537, 4
        %s539 = scalar_lea.vmem %s4, %s538
        // Predicated region
        $region119: #{_lambda_.13} parent=109 // pred_check
          %p540 = pneg %p147
        $region120: #{_lambda_.13} parent=109 // pred_check_branch
          %542 = sbr.rel (%p540) target = $region122
        $region121: #{_lambda_.13} parent=109 // pred_region
          _
        $region122: #{_lambda_.13} parent=109 // pred_fallthru
          _
      $region110: #{_lambda_.13} parent=5 // pred_fallthru
        _
      %p543 = scmp.le.s32.totalorder 2, %s10
      // Predicated region
      $region123: #{_lambda_.13} parent=5 // pred_check
        %p544 = pneg %p543
      $region124: #{_lambda_.13} parent=5 // pred_check_branch
        %546 = sbr.rel (%p544) target = $region126
      $region125: #{_lambda_.13} parent=5 // pred_region
        %s547 = ssub.s32 %s10, 2
        // Predicated region
        $region127: #{_lambda_.13} parent=125 // pred_check
          %p548 = pneg %p153
        $region128: #{_lambda_.13} parent=125 // pred_check_branch
          %550 = sbr.rel (%p548) target = $region130
        $region129: #{_lambda_.13} parent=125 // pred_region
          %p551 = scmp.lt.s32.totalorder %s21, 1
          %s552 = scalar_select %p551, %s21, 1
          %p553 = scmp.lt.s32.totalorder %s22, 0
          %s554 = scalar_select %p553, %s22, 0
          %s555 = smul.addr %s552, 4
          %s556 = sadd.s32 %s554, %s555
          %s557 = smul.addr %s556, 4
          %s558 = scalar_lea.vmem %s4, %s557
        $region130: #{_lambda_.13} parent=125 // pred_fallthru
          _
      $region126: #{_lambda_.13} parent=5 // pred_fallthru
        _
    $region6: #{_lambda_.13} parent=1 // loop_footer
      %s14 = sadd.s32 1, %s10
    $region7: #{_lambda_.13} parent=1 // loop_footer_branch
      %9 = sbr.rel target = $region3
    $region8: #{_lambda_.13} parent=1 // loop_exit
      _

// kernel: _lambda_.12
$region0: #{_lambda_.12}
  #allocation0 [shape = 'u32[]', space=smem, size = 0x4, offset = 0x4, fixed_abs, tag = 'smem constant byte address 0x4 - core index']
  #allocation1 [shape = 'u32[72,128]{1,0:T(1,128)}', space=vmem, size = 0x9000, scoped, tag = 'internal scratch']
  %s0 = inlined_call_operand.vmem [shape: bf16[2,32,256], index: 0, kind: input, shape index: {}, may-alias: {0,1}]
  %s1 = inlined_call_operand.vmem [shape: bf16[2,32,256], index: 1, kind: input, shape index: {}, may-alias: {0,1}]
  %s2 = inlined_call_operand.vmem [shape: bf16[32,224], index: 2, kind: input, shape index: {}]
  %s3 = inlined_call_operand.vmem [shape: f32[32,1], index: 3, kind: input, shape index: {}]
  %s4 = inlined_call_operand.vmem [shape: bf16[2,32,128], index: 4, kind: output, shape index: {}]
  %s5 = sld [smem:[#allocation0]]
  $region131: #{_lambda_.12} parent=0
    _
  %s7 = ssub.s32 1, %s5
  %s8 = scalar_select 0, %s7, %s5
  $region1: #{_lambda_.12} parent=0
    #allocation2 [shape = 'u8[16384]{0}', space=vmem, size = 0x4000, scoped, tag = 'input window, operand 0']
    #allocation3 [shape = 'u8[16384]{0}', space=vmem, size = 0x4000, scoped, tag = 'input window, operand 1']
    loop: start=0, step=1, limit=4
    $region2: #{_lambda_.12} parent=1 // loop_pre_header
      _
    $region3: #{_lambda_.12} parent=1 // loop_header
      %s10 = sphi 0, %s14
      %p11 = scmp.ge.s32.totalorder %s10, 4
      %s17 = sphi 0, %s29
      %s18 = sphi 0, %s25
      %s19 = sphi 0, %s17
      %s20 = sphi 0, %s18
      %s21 = sphi 0, %s19
      %s22 = sphi 0, %s20
      %s34 = sphi 0, %s36
      %s37 = sphi 0, %s34
      %s38 = sphi 0, %s37
      %s54 = sphi 0, %s38
      %s64 = sphi 0, %s66
      %s67 = sphi 0, %s64
      %s68 = sphi 0, %s67
      %s84 = sphi 0, %s68
      %s88 = sphi 0, %s88
      %s90 = sphi 0, %s88
      %s91 = sphi 0, %s90
      %s105 = sphi 0, %s91
      %s109 = sphi 0, %s109
      %s111 = sphi 0, %s109
      %s112 = sphi 0, %s111
      %s126 = sphi 0, %s112
      %s134 = sphi 0, %s136
      %s137 = sphi 0, %s134
      %s138 = sphi 0, %s137
      %s154 = sphi 0, %s138
    $region4: #{_lambda_.12} parent=1 // loop_header_branch
      %13 = sbr.rel (%p11) target = $region8
    $region5: #{_lambda_.12} parent=1 // loop_body
      %s15 = ssub.s32 %s10, 1
      %s16 = ssub.s32 %s10, 2
      %s23 = sadd.s32 1, %s18
      %p24 = scmp.ge.s32.totalorder %s23, 1
      %s25 = scalar_select %p24, 0, %s23
      %s26 = sadd.s32 1, %s17
      %s27 = scalar_select %p24, %s26, %s17
      %p28 = scmp.ge.s32.totalorder %s27, 2
      %s29 = scalar_select %p28, 0, %s27
      %s30 = ssub.s32 %s17, %s29
      %s31 = ssub.s32 %s18, %s25
      %s32 = sor.u32 %s30, %s31
      %p33 = scmp.eq.s32.totalorder %s32, 0
      %s35 = sadd.s32 %s34, 1
      %s36 = scalar_select %p33, %s34, %s35
      %p39 = pneg %p33
      %p40 = scmp.eq.s32.totalorder %s10, 1
      %p41 = por %p39, %p40
      %p42 = scmp.ne.s32.totalorder %s34, %s37
      %p43 = scmp.eq.s32.totalorder %s10, 0
      %p44 = por %p42, %p43
      %p45 = scmp.ne.s32.totalorder %s34, %s37
      %p46 = scmp.eq.s32.totalorder %s15, 1
      %p47 = por %p45, %p46
      %p48 = scmp.ne.s32.totalorder %s37, %s38
      %p49 = scmp.eq.s32.totalorder %s15, 0
      %p50 = por %p48, %p49
      %p51 = scmp.ne.s32.totalorder %s37, %s38
      %p52 = scmp.eq.s32.totalorder %s16, 1
      %p53 = por %p51, %p52
      %p55 = scmp.ne.s32.totalorder %s38, %s54
      %p56 = scmp.eq.s32.totalorder %s16, 0
      %p57 = por %p55, %p56
      %s58 = sadd.s32 %s18, 1
      %s59 = sadd.s32 %s25, 1
      %s60 = ssub.s32 %s17, %s29
      %s61 = ssub.s32 %s58, %s59
      %s62 = sor.u32 %s60, %s61
      %p63 = scmp.eq.s32.totalorder %s62, 0
      %s65 = sadd.s32 %s64, 1
      %s66 = scalar_select %p63, %s64, %s65
      %p69 = pneg %p63
      %p70 = scmp.eq.s32.totalorder %s10, 1
      %p71 = por %p69, %p70
      %p72 = scmp.ne.s32.totalorder %s64, %s67
      %p73 = scmp.eq.s32.totalorder %s10, 0
      %p74 = por %p72, %p73
      %p75 = scmp.ne.s32.totalorder %s64, %s67
      %p76 = scmp.eq.s32.totalorder %s15, 1
      %p77 = por %p75, %p76
      %p78 = scmp.ne.s32.totalorder %s67, %s68
      %p79 = scmp.eq.s32.totalorder %s15, 0
      %p80 = por %p78, %p79
      %p81 = scmp.ne.s32.totalorder %s67, %s68
      %p82 = scmp.eq.s32.totalorder %s16, 1
      %p83 = por %p81, %p82
      %p85 = scmp.ne.s32.totalorder %s68, %s84
      %p86 = scmp.eq.s32.totalorder %s16, 0
      %p87 = por %p85, %p86
      %s89 = sadd.s32 %s88, 1
      %p92 = scmp.eq.s32.totalorder %s10, 1
      %p93 = scmp.ne.s32.totalorder %s88, %s90
      %p94 = scmp.eq.s32.totalorder %s10, 0
      %p95 = por %p93, %p94
      %p96 = scmp.ne.s32.totalorder %s88, %s90
      %p97 = scmp.eq.s32.totalorder %s15, 1
      %p98 = por %p96, %p97
      %p99 = scmp.ne.s32.totalorder %s90, %s91
      %p100 = scmp.eq.s32.totalorder %s15, 0
      %p101 = por %p99, %p100
      %p102 = scmp.ne.s32.totalorder %s90, %s91
      %p103 = scmp.eq.s32.totalorder %s16, 1
      %p104 = por %p102, %p103
      %p106 = scmp.ne.s32.totalorder %s91, %s105
      %p107 = scmp.eq.s32.totalorder %s16, 0
      %p108 = por %p106, %p107
      %s110 = sadd.s32 %s109, 1
      %p113 = scmp.eq.s32.totalorder %s10, 1
      %p114 = scmp.ne.s32.totalorder %s109, %s111
      %p115 = scmp.eq.s32.totalorder %s10, 0
      %p116 = por %p114, %p115
      %p117 = scmp.ne.s32.totalorder %s109, %s111
      %p118 = scmp.eq.s32.totalorder %s15, 1
      %p119 = por %p117, %p118
      %p120 = scmp.ne.s32.totalorder %s111, %s112
      %p121 = scmp.eq.s32.totalorder %s15, 0
      %p122 = por %p120, %p121
      %p123 = scmp.ne.s32.totalorder %s111, %s112
      %p124 = scmp.eq.s32.totalorder %s16, 1
      %p125 = por %p123, %p124
      %p127 = scmp.ne.s32.totalorder %s112, %s126
      %p128 = scmp.eq.s32.totalorder %s16, 0
      %p129 = por %p127, %p128
      %s130 = ssub.s32 %s17, %s29
      %s131 = ssub.s32 %s18, %s25
      %s132 = sor.u32 %s130, %s131
      %p133 = scmp.eq.s32.totalorder %s132, 0
      %s135 = sadd.s32 %s134, 1
      %s136 = scalar_select %p133, %s134, %s135
      %p139 = pneg %p133
      %p140 = scmp.eq.s32.totalorder %s10, 1
      %p141 = por %p139, %p140
      %p142 = scmp.ne.s32.totalorder %s134, %s137
      %p143 = scmp.eq.s32.totalorder %s10, 0
      %p144 = por %p142, %p143
      %p145 = scmp.ne.s32.totalorder %s134, %s137
      %p146 = scmp.eq.s32.totalorder %s15, 1
      %p147 = por %p145, %p146
      %p148 = scmp.ne.s32.totalorder %s137, %s138
      %p149 = scmp.eq.s32.totalorder %s15, 0
      %p150 = por %p148, %p149
      %p151 = scmp.ne.s32.totalorder %s137, %s138
      %p152 = scmp.eq.s32.totalorder %s16, 1
      %p153 = por %p151, %p152
      %p155 = scmp.ne.s32.totalorder %s138, %s154
      %p156 = scmp.eq.s32.totalorder %s16, 0
      %p157 = por %p155, %p156
      %p158 = scmp.le.s32.totalorder 1, %s10
      %p159 = scmp.lt.s32.totalorder %s10, 3
      %p160 = pnand %p158, %p159
      %p161 = pneg %p160
      // Predicated region
      $region9: #{_lambda_.12} parent=5 // pred_check
        _
      $region10: #{_lambda_.12} parent=5 // pred_check_branch
        %163 = sbr.rel (%p160) target = $region12
      $region11: #{_lambda_.12} parent=5 // pred_region
        %s164 = ssub.s32 %s10, 1
        // Predicated region
        $region13: #{_lambda_.12} parent=11 // pred_check
          %p165 = pneg %p101
        $region14: #{_lambda_.12} parent=11 // pred_check_branch
          %167 = sbr.rel (%p165) target = $region16
        $region15: #{_lambda_.12} parent=11 // pred_region
          _
        $region16: #{_lambda_.12} parent=11 // pred_fallthru
          _
        // Predicated region
        $region17: #{_lambda_.12} parent=11 // pred_check
          %p168 = pneg %p122
        $region18: #{_lambda_.12} parent=11 // pred_check_branch
          %170 = sbr.rel (%p168) target = $region20
        $region19: #{_lambda_.12} parent=11 // pred_region
          _
        $region20: #{_lambda_.12} parent=11 // pred_fallthru
          _
      $region12: #{_lambda_.12} parent=5 // pred_fallthru
        _
      %p171 = scmp.lt.s32.totalorder %s10, 2
      // Predicated region
      $region21: #{_lambda_.12} parent=5 // pred_check
        %p172 = pneg %p171
      $region22: #{_lambda_.12} parent=5 // pred_check_branch
        %174 = sbr.rel (%p172) target = $region24
      $region23: #{_lambda_.12} parent=5 // pred_region
        // Predicated region
        $region25: #{_lambda_.12} parent=23 // pred_check
          %p175 = pneg %p44
        $region26: #{_lambda_.12} parent=23 // pred_check_branch
          %177 = sbr.rel (%p175) target = $region28
        $region27: #{_lambda_.12} parent=23 // pred_region
          %s178 = sand.u32 %s34, 1
          %s179 = sand.u32 %s34, 1
          %s180 = smul.addr %s179, 16
          %s181 = scalar_lea.vmem [#allocation2], %s180
          %s182 = smul.addr %s17, 8
          %s183 = sadd.s32 %s18, %s182
          %s184 = smul.addr %s183, 4
          %s185 = scalar_lea.vmem %s0, %s184
          // Predicated region
          $region29: #{_lambda_.12} parent=27 // pred_check
            _
          $region30: #{_lambda_.12} parent=27 // pred_check_branch
            %187 = sbr.rel (0) target = $region32
          $region31: #{_lambda_.12} parent=27 // pred_region
            // Predicated region
            $region33: #{_lambda_.12} parent=31 // pred_check
              _
            $region34: #{_lambda_.12} parent=31 // pred_check_branch
              %189 = sbr.rel target = $region36
            $region35: #{_lambda_.12} parent=31 // pred_region
              // Predicated region
              $region48: #{_lambda_.12} parent=35 // pred_check
                _
              $region49: #{_lambda_.12} parent=35 // pred_check_branch
                %211 = sbr.rel (0) target = $region51
              $region50: #{_lambda_.12} parent=35 // pred_region
                loop: start=0, step=1, limit=1
                $region52: #{_lambda_.12} parent=50 // loop_pre_header
                  _
                $region53: #{_lambda_.12} parent=50 // loop_header
                  %s213 = sphi 0, %s217
                  %p214 = scmp.ge.s32.totalorder %s213, 1
                  %s218 = sphi %s185, %s185
                  %s219 = sphi %s181, %s181
                $region54: #{_lambda_.12} parent=50 // loop_header_branch
                  %216 = sbr.rel (%p214) target = $region58
                $region55: #{_lambda_.12} parent=50 // loop_body
                  _
                $region56: #{_lambda_.12} parent=50 // loop_footer
                  %s217 = sadd.s32 1, %s213
                $region57: #{_lambda_.12} parent=50 // loop_footer_branch
                  %212 = sbr.rel target = $region53
                $region58: #{_lambda_.12} parent=50 // loop_exit
                  _
                %s221 = ssub.s32 16, 1
                loop: start=0, step=1, limit=1
                $region59: #{_lambda_.12} parent=50 // loop_pre_header
                  _
                $region60: #{_lambda_.12} parent=50 // loop_header
                  %s223 = sphi 0, %s227
                  %p224 = scmp.ge.s32.totalorder %s223, 1
                  %s228 = sphi %s185, %s185
                  %s229 = sphi %s181, %s181
                $region61: #{_lambda_.12} parent=50 // loop_header_branch
                  %226 = sbr.rel (%p224) target = $region65
                $region62: #{_lambda_.12} parent=50 // loop_body
                  %v230 = vld [vmem:[%s228] sm:%s221]
                  %231 = vst [vmem:[%s229] sm:%s221] %v230
                  %v232 = vld [vmem:[%s228 + $0x8] sm:%s221]
                  %233 = vst [vmem:[%s229 + $0x4] sm:%s221] %v232
                  %v234 = vld [vmem:[%s228 + $0x10] sm:%s221]
                  %235 = vst [vmem:[%s229 + $0x8] sm:%s221] %v234
                  %v236 = vld [vmem:[%s228 + $0x18] sm:%s221]
                  %237 = vst [vmem:[%s229 + $0xc] sm:%s221] %v236
                $region63: #{_lambda_.12} parent=50 // loop_footer
                  %s227 = sadd.s32 1, %s223
                $region64: #{_lambda_.12} parent=50 // loop_footer_branch
                  %222 = sbr.rel target = $region60
                $region65: #{_lambda_.12} parent=50 // loop_exit
                  _
              $region51: #{_lambda_.12} parent=35 // pred_fallthru
                _
            $region36: #{_lambda_.12} parent=31 // pred_fallthru
              _
            // Predicated region
            $region37: #{_lambda_.12} parent=31 // pred_check
              _
            $region38: #{_lambda_.12} parent=31 // pred_check_branch
              %191 = sbr.rel (0) target = $region40
            $region39: #{_lambda_.12} parent=31 // pred_region
              %s193 = ssub.s32 16, 1
              loop: start=0, step=1, limit=1
              $region41: #{_lambda_.12} parent=39 // loop_pre_header
                _
              $region42: #{_lambda_.12} parent=39 // loop_header
                %s195 = sphi 0, %s199
                %p196 = scmp.ge.s32.totalorder %s195, 1
                %s200 = sphi %s185, %s185
                %s201 = sphi %s181, %s181
              $region43: #{_lambda_.12} parent=39 // loop_header_branch
                %198 = sbr.rel (%p196) target = $region47
              $region44: #{_lambda_.12} parent=39 // loop_body
                %v202 = vld [vmem:[%s200] sm:%s193]
                %203 = vst [vmem:[%s201] sm:%s193] %v202
                %v204 = vld [vmem:[%s200 + $0x8] sm:%s193]
                %205 = vst [vmem:[%s201 + $0x4] sm:%s193] %v204
                %v206 = vld [vmem:[%s200 + $0x10] sm:%s193]
                %207 = vst [vmem:[%s201 + $0x8] sm:%s193] %v206
                %v208 = vld [vmem:[%s200 + $0x18] sm:%s193]
                %209 = vst [vmem:[%s201 + $0xc] sm:%s193] %v208
              $region45: #{_lambda_.12} parent=39 // loop_footer
                %s199 = sadd.s32 1, %s195
              $region46: #{_lambda_.12} parent=39 // loop_footer_branch
                %194 = sbr.rel target = $region42
              $region47: #{_lambda_.12} parent=39 // loop_exit
                _
            $region40: #{_lambda_.12} parent=31 // pred_fallthru
              _
          $region32: #{_lambda_.12} parent=27 // pred_fallthru
            _
          %238 = vnop
        $region28: #{_lambda_.12} parent=23 // pred_fallthru
          _
        // Predicated region
        $region66: #{_lambda_.12} parent=23 // pred_check
          %p239 = pneg %p74
        $region67: #{_lambda_.12} parent=23 // pred_check_branch
          %241 = sbr.rel (%p239) target = $region69
        $region68: #{_lambda_.12} parent=23 // pred_region
          %s242 = sand.u32 %s64, 1
          %s243 = sand.u32 %s64, 1
          %s244 = smul.addr %s243, 16
          %s245 = scalar_lea.vmem [#allocation3], %s244
          %s246 = sadd.s32 %s18, 1
          %s247 = smul.addr %s17, 8
          %s248 = sadd.s32 %s246, %s247
          %s249 = smul.addr %s248, 4
          %s250 = scalar_lea.vmem %s1, %s249
          // Predicated region
          $region70: #{_lambda_.12} parent=68 // pred_check
            _
          $region71: #{_lambda_.12} parent=68 // pred_check_branch
            %252 = sbr.rel (0) target = $region73
          $region72: #{_lambda_.12} parent=68 // pred_region
            // Predicated region
            $region74: #{_lambda_.12} parent=72 // pred_check
              _
            $region75: #{_lambda_.12} parent=72 // pred_check_branch
              %254 = sbr.rel target = $region77
            $region76: #{_lambda_.12} parent=72 // pred_region
              // Predicated region
              $region89: #{_lambda_.12} parent=76 // pred_check
                _
              $region90: #{_lambda_.12} parent=76 // pred_check_branch
                %276 = sbr.rel (0) target = $region92
              $region91: #{_lambda_.12} parent=76 // pred_region
                loop: start=0, step=1, limit=1
                $region93: #{_lambda_.12} parent=91 // loop_pre_header
                  _
                $region94: #{_lambda_.12} parent=91 // loop_header
                  %s278 = sphi 0, %s282
                  %p279 = scmp.ge.s32.totalorder %s278, 1
                  %s283 = sphi %s250, %s250
                  %s284 = sphi %s245, %s245
                $region95: #{_lambda_.12} parent=91 // loop_header_branch
                  %281 = sbr.rel (%p279) target = $region99
                $region96: #{_lambda_.12} parent=91 // loop_body
                  _
                $region97: #{_lambda_.12} parent=91 // loop_footer
                  %s282 = sadd.s32 1, %s278
                $region98: #{_lambda_.12} parent=91 // loop_footer_branch
                  %277 = sbr.rel target = $region94
                $region99: #{_lambda_.12} parent=91 // loop_exit
                  _
                %s286 = ssub.s32 16, 1
                loop: start=0, step=1, limit=1
                $region100: #{_lambda_.12} parent=91 // loop_pre_header
                  _
                $region101: #{_lambda_.12} parent=91 // loop_header
                  %s288 = sphi 0, %s292
                  %p289 = scmp.ge.s32.totalorder %s288, 1
                  %s293 = sphi %s250, %s250
                  %s294 = sphi %s245, %s245
                $region102: #{_lambda_.12} parent=91 // loop_header_branch
                  %291 = sbr.rel (%p289) target = $region106
                $region103: #{_lambda_.12} parent=91 // loop_body
                  %v295 = vld [vmem:[%s293] sm:%s286]
                  %296 = vst [vmem:[%s294] sm:%s286] %v295
                  %v297 = vld [vmem:[%s293 + $0x8] sm:%s286]
                  %298 = vst [vmem:[%s294 + $0x4] sm:%s286] %v297
                  %v299 = vld [vmem:[%s293 + $0x10] sm:%s286]
                  %300 = vst [vmem:[%s294 + $0x8] sm:%s286] %v299
                  %v301 = vld [vmem:[%s293 + $0x18] sm:%s286]
                  %302 = vst [vmem:[%s294 + $0xc] sm:%s286] %v301
                $region104: #{_lambda_.12} parent=91 // loop_footer
                  %s292 = sadd.s32 1, %s288
                $region105: #{_lambda_.12} parent=91 // loop_footer_branch
                  %287 = sbr.rel target = $region101
                $region106: #{_lambda_.12} parent=91 // loop_exit
                  _
              $region92: #{_lambda_.12} parent=76 // pred_fallthru
                _
            $region77: #{_lambda_.12} parent=72 // pred_fallthru
              _
            // Predicated region
            $region78: #{_lambda_.12} parent=72 // pred_check
              _
            $region79: #{_lambda_.12} parent=72 // pred_check_branch
              %256 = sbr.rel (0) target = $region81
            $region80: #{_lambda_.12} parent=72 // pred_region
              %s258 = ssub.s32 16, 1
              loop: start=0, step=1, limit=1
              $region82: #{_lambda_.12} parent=80 // loop_pre_header
                _
              $region83: #{_lambda_.12} parent=80 // loop_header
                %s260 = sphi 0, %s264
                %p261 = scmp.ge.s32.totalorder %s260, 1
                %s265 = sphi %s250, %s250
                %s266 = sphi %s245, %s245
              $region84: #{_lambda_.12} parent=80 // loop_header_branch
                %263 = sbr.rel (%p261) target = $region88
              $region85: #{_lambda_.12} parent=80 // loop_body
                %v267 = vld [vmem:[%s265] sm:%s258]
                %268 = vst [vmem:[%s266] sm:%s258] %v267
                %v269 = vld [vmem:[%s265 + $0x8] sm:%s258]
                %270 = vst [vmem:[%s266 + $0x4] sm:%s258] %v269
                %v271 = vld [vmem:[%s265 + $0x10] sm:%s258]
                %272 = vst [vmem:[%s266 + $0x8] sm:%s258] %v271
                %v273 = vld [vmem:[%s265 + $0x18] sm:%s258]
                %274 = vst [vmem:[%s266 + $0xc] sm:%s258] %v273
              $region86: #{_lambda_.12} parent=80 // loop_footer
                %s264 = sadd.s32 1, %s260
              $region87: #{_lambda_.12} parent=80 // loop_footer_branch
                %259 = sbr.rel target = $region83
              $region88: #{_lambda_.12} parent=80 // loop_exit
                _
            $region81: #{_lambda_.12} parent=72 // pred_fallthru
              _
          $region73: #{_lambda_.12} parent=68 // pred_fallthru
            _
          %303 = vnop
        $region69: #{_lambda_.12} parent=23 // pred_fallthru
          _
      $region24: #{_lambda_.12} parent=5 // pred_fallthru
        _
      %p304 = scmp.le.s32.totalorder 1, %s10
      %p305 = scmp.lt.s32.totalorder %s10, 3
      %p306 = pnand %p304, %p305
      %p307 = pneg %p306
      // Predicated region
      $region107: #{_lambda_.12} parent=5 // pred_check
        _
      $region108: #{_lambda_.12} parent=5 // pred_check_branch
        %309 = sbr.rel (%p306) target = $region110
      $region109: #{_lambda_.12} parent=5 // pred_region
        %s310 = ssub.s32 %s10, 1
        %s311 = sand.u32 %s37, 1
        %s312 = sand.u32 %s37, 1
        %s313 = smul.addr %s312, 16
        %s314 = scalar_lea.vmem [#allocation2], %s313
        // Predicated region
        $region111: #{_lambda_.12} parent=109 // pred_check
          %p315 = pneg %p50
        $region112: #{_lambda_.12} parent=109 // pred_check_branch
          %317 = sbr.rel (%p315) target = $region114
        $region113: #{_lambda_.12} parent=109 // pred_region
          _
        $region114: #{_lambda_.12} parent=109 // pred_fallthru
          _
        %s318 = sand.u32 %s67, 1
        %s319 = sand.u32 %s67, 1
        %s320 = smul.addr %s319, 16
        %s321 = scalar_lea.vmem [#allocation3], %s320
        // Predicated region
        $region115: #{_lambda_.12} parent=109 // pred_check
          %p322 = pneg %p80
        $region116: #{_lambda_.12} parent=109 // pred_check_branch
          %324 = sbr.rel (%p322) target = $region118
        $region117: #{_lambda_.12} parent=109 // pred_region
          _
        $region118: #{_lambda_.12} parent=109 // pred_fallthru
          _
        %s325 = sand.u32 %s37, 1
        %s326 = sand.u32 %s37, 1
        %s327 = smul.addr %s326, 16
        %s328 = scalar_lea.vmem [#allocation2], %s327
        %p329 = pneg %p50
        %p330 = pneg %p47
        %s331 = sand.u32 %s67, 1
        %s332 = sand.u32 %s67, 1
        %s333 = smul.addr %s332, 16
        %s334 = scalar_lea.vmem [#allocation3], %s333
        %p335 = pneg %p80
        %p336 = pneg %p77
        %p337 = pneg %p101
        %p338 = pneg %p98
        %p339 = pneg %p122
        %p340 = pneg %p119
        %p341 = pneg %p150
        %p342 = pneg %p147
        %p343 = scmp.lt.s32.totalorder %s19, 1
        %s344 = scalar_select %p343, %s19, 1
        %p345 = scmp.lt.s32.totalorder %s20, 0
        %s346 = scalar_select %p345, %s20, 0
        %s347 = smul.addr %s344, 4
        %s348 = sadd.s32 %s346, %s347
        %s349 = smul.addr %s348, 4
        %s350 = scalar_lea.vmem %s4, %s349
        %s351 = sadd.s32 %s20, 1
        %p352 = scmp.lt.s32.totalorder %s19, 1
        %s353 = scalar_select %p352, %s19, 1
        %p354 = scmp.lt.s32.totalorder %s20, 0
        %s355 = scalar_select %p354, %s20, 0
        %s356 = smul.addr %s353, 4
        %s357 = sadd.s32 %s355, %s356
        %s358 = smul.addr %s357, 4
        %s359 = scalar_lea.vmem %s4, %s358
        %v361 = vld [vmem:[%s314] sm:$0xf]
        %v362 = vld [vmem:[%s314 + $0x4] sm:$0xf]
        %v363 = vld [vmem:[%s314 + $0x8] sm:$0xf]
        %v364 = vld [vmem:[%s314 + $0xc] sm:$0xf]
        %v365 = vld [vmem:[%s321] sm:$0xf]
        %v366 = vld [vmem:[%s321 + $0x4] sm:$0xf]
        %v367 = vld [vmem:[%s321 + $0x8] sm:$0xf]
        %v368 = vld [vmem:[%s321 + $0xc] sm:$0xf]
        %v373 = vunpack.c.l.b16 %v361
        %v374 = vunpack.c.l.b16 %v362
        %v375 = vunpack.c.l.b16 %v363
        %v376 = vunpack.c.l.b16 %v364
        %v377 = vpack.c.b16 %v374, %v373
        %v378 = vpack.c.b16 %v376, %v375
        %v385 = vunpack.c.l.b16 %v365
        %v386 = vunpack.c.l.b16 %v366
        %v387 = vunpack.c.l.b16 %v367
        %v388 = vunpack.c.l.b16 %v368
        %v389 = vpack.c.b16 %v386, %v385
        %v390 = vpack.c.b16 %v388, %v387
        %391 = vrot.lane.b32.xlu0 %v377, 127
        %v392 = vpop.permute.xlu0 %391
        %393 = vrot.lane.b32.xlu0 %v389, 127
        %v394 = vpop.permute.xlu0 %393
        %395 = vrot.lane.b32.xlu0 %v378, 127
        %v396 = vpop.permute.xlu0 %395
        %397 = vrot.lane.b32.xlu0 %v390, 127
        %v398 = vpop.permute.xlu0 %397
        %vm399 = vcmask 1039360
        %v400 = vsel %vm399, %v392, %v394
        %v401 = vsel %vm399, %v396, %v398
        %404 = vrot.lane.b32.xlu0 %v377, 126
        %v405 = vpop.permute.xlu0 %404
        %406 = vrot.lane.b32.xlu0 %v389, 126
        %v407 = vpop.permute.xlu0 %406
        %408 = vrot.lane.b32.xlu0 %v378, 126
        %v409 = vpop.permute.xlu0 %408
        %410 = vrot.lane.b32.xlu0 %v390, 126
        %v411 = vpop.permute.xlu0 %410
        %vm412 = vcmask 1031168
        %v413 = vsel %vm412, %v405, %v407
        %v414 = vsel %vm412, %v409, %v411
        %417 = vrot.lane.b32.xlu0 %v377, 125
        %v418 = vpop.permute.xlu0 %417
        %419 = vrot.lane.b32.xlu0 %v389, 125
        %v420 = vpop.permute.xlu0 %419
        %421 = vrot.lane.b32.xlu0 %v378, 125
        %v422 = vpop.permute.xlu0 %421
        %423 = vrot.lane.b32.xlu0 %v390, 125
        %v424 = vpop.permute.xlu0 %423
        %vm425 = vcmask 1022976
        %v426 = vsel %vm425, %v418, %v420
        %v427 = vsel %vm425, %v422, %v424
        %430 = vrot.lane.b32.xlu0 %v377, 124
        %v431 = vpop.permute.xlu0 %430
        %432 = vrot.lane.b32.xlu0 %v389, 124
        %v433 = vpop.permute.xlu0 %432
        %434 = vrot.lane.b32.xlu0 %v378, 124
        %v435 = vpop.permute.xlu0 %434
        %436 = vrot.lane.b32.xlu0 %v390, 124
        %v437 = vpop.permute.xlu0 %436
        %vm438 = vcmask 1014784
        %v439 = vsel %vm438, %v431, %v433
        %v440 = vsel %vm438, %v435, %v437
        %443 = vrot.lane.b32.xlu0 %v377, 123
        %v444 = vpop.permute.xlu0 %443
        %445 = vrot.lane.b32.xlu0 %v389, 123
        %v446 = vpop.permute.xlu0 %445
        %447 = vrot.lane.b32.xlu0 %v378, 123
        %v448 = vpop.permute.xlu0 %447
        %449 = vrot.lane.b32.xlu0 %v390, 123
        %v450 = vpop.permute.xlu0 %449
        %vm451 = vcmask 1006592
        %v452 = vsel %vm451, %v444, %v446
        %v453 = vsel %vm451, %v448, %v450
        %456 = vrot.lane.b32.xlu0 %v377, 122
        %v457 = vpop.permute.xlu0 %456
        %458 = vrot.lane.b32.xlu0 %v389, 122
        %v459 = vpop.permute.xlu0 %458
        %460 = vrot.lane.b32.xlu0 %v378, 122
        %v461 = vpop.permute.xlu0 %460
        %462 = vrot.lane.b32.xlu0 %v390, 122
        %v463 = vpop.permute.xlu0 %462
        %vm464 = vcmask 998400
        %v465 = vsel %vm464, %v457, %v459
        %v466 = vsel %vm464, %v461, %v463
        %v469 = vld [vmem:[%s2] sm:$0xff]
        %v470 = vld [vmem:[%s2 + $0x8] sm:$0xff]
        %v471 = vld [vmem:[%s2 + $0x10] sm:$0xff]
        %v472 = vld [vmem:[%s2 + $0x18] sm:$0xff]
        %v473 = vld [vmem:[%s3] sm:$0xff]
        %v474 = vld [vmem:[%s3 + $0x8] sm:$0xff]
        %v475 = vld [vmem:[%s3 + $0x10] sm:$0xff]
        %v476 = vld [vmem:[%s3 + $0x18] sm:$0xff]
        %478 = vset.pattern.permute.xlu0 0
        %479 = vperm.xlu0 %478, %v473
        %v480 = vpop.permute.xlu0 %479
        %483 = vset.pattern.permute.xlu0 0
        %484 = vperm.xlu0 %483, %v474
        %v485 = vpop.permute.xlu0 %484
        %488 = vset.pattern.permute.xlu0 0
        %489 = vperm.xlu0 %488, %v475
        %v490 = vpop.permute.xlu0 %489
        %493 = vset.pattern.permute.xlu0 0
        %494 = vperm.xlu0 %493, %v476
        %v495 = vpop.permute.xlu0 %494
        %v501 = vunpack.c.l.b16 %v469
        %v502 = vunpack.c.h.b16 %v469
        %v503 = vunpack.c.l.b16 %v470
        %v504 = vunpack.c.h.b16 %v470
        %v505 = vunpack.c.l.b16 %v471
        %v506 = vunpack.c.h.b16 %v471
        %v507 = vunpack.c.l.b16 %v472
        %v508 = vunpack.c.h.b16 %v472
        %v509 = vpack.c.b16 %v503, %v501
        %v510 = vpack.c.b16 %v504, %v502
        %v511 = vpack.c.b16 %v507, %v505
        %v512 = vpack.c.b16 %v508, %v506
        %vm515 = vcmask 785408
        %v517 = vsel %vm515, %v510, 0
        %v520 = vsel %vm515, %v512, 0
        %522 = vmatpush.bf16.msra.mxu0 %v427
        %523 = vmatpush.bf16.msra.mxu0 %v426
        %524 = vmatpush.bf16.msra.mxu0 %v414
        %525 = vmatpush.bf16.msra.mxu0 %v413
        %526 = vmatpush.bf16.msra.mxu0 %v401
        %527 = vmatpush.bf16.msra.mxu0 %v400
        %528 = vmatpush.bf16.msra.mxu0 %v378
        %529 = vmatpush.bf16.msra.mxu0 %v377
        %530 = vmatmul.bf16.gmra.mxu0 %v509
        %v531 = vpop.f32.mrf.mxu0
        %v532 = vadd.f32 %v480, %v531
        %v533 = vpop.f32.mrf.mxu0
        %v534 = vadd.f32 %v485, %v533
        %535 = vmatmul.bf16.gmra.mxu0 %v511
        %v536 = vpop.f32.mrf.mxu0
        %v537 = vadd.f32 %v490, %v536
        %v538 = vpop.f32.mrf.mxu0
        %v539 = vadd.f32 %v495, %v538
        %540 = vdwg.mxu0
        %541 = vmatpush.bf16.msra.mxu0 0
        %542 = vmatpush.bf16.msra.mxu0 0
        %543 = vmatpush.bf16.msra.mxu0 %v466
        %544 = vmatpush.bf16.msra.mxu0 %v465
        %545 = vmatpush.bf16.msra.mxu0 %v453
        %546 = vmatpush.bf16.msra.mxu0 %v452
        %547 = vmatpush.bf16.msra.mxu0 %v440
        %548 = vmatpush.bf16.msra.mxu0 %v439
        %549 = vmatmul.bf16.gmra.mxu0 %v517
        %v550 = vpop.f32.mrf.mxu0
        %v551 = vadd.f32 %v532, %v550
        %v552 = vpop.f32.mrf.mxu0
        %v553 = vadd.f32 %v534, %v552
        %554 = vmatmul.bf16.gmra.mxu0 %v520
        %v555 = vpop.f32.mrf.mxu0
        %v556 = vadd.f32 %v537, %v555
        %v557 = vpop.f32.mrf.mxu0
        %v558 = vadd.f32 %v539, %v557
        %559 = vdwg.mxu0
        %v560 = vpack.c.bf16 %v551, %v551
        %v561 = vpack.c.bf16 %v553, %v553
        %v562 = vpack.c.bf16 %v556, %v556
        %v563 = vpack.c.bf16 %v558, %v558
        %564 = vst [vmem:[%s359] sm:$0xf] %v560
        %565 = vst [vmem:[%s359 + $0x4] sm:$0xf] %v561
        %566 = vst [vmem:[%s359 + $0x8] sm:$0xf] %v562
        %567 = vst [vmem:[%s359 + $0xc] sm:$0xf] %v563
        %p568 = scmp.lt.s32.totalorder %s19, 1
        %s569 = scalar_select %p568, %s19, 1
        %p570 = scmp.lt.s32.totalorder %s20, 0
        %s571 = scalar_select %p570, %s20, 0
        %s572 = smul.addr %s569, 4
        %s573 = sadd.s32 %s571, %s572
        %s574 = smul.addr %s573, 4
        %s575 = scalar_lea.vmem %s4, %s574
        // Predicated region
        $region119: #{_lambda_.12} parent=109 // pred_check
          %p576 = pneg %p147
        $region120: #{_lambda_.12} parent=109 // pred_check_branch
          %578 = sbr.rel (%p576) target = $region122
        $region121: #{_lambda_.12} parent=109 // pred_region
          _
        $region122: #{_lambda_.12} parent=109 // pred_fallthru
          _
      $region110: #{_lambda_.12} parent=5 // pred_fallthru
        _
      %p579 = scmp.le.s32.totalorder 2, %s10
      // Predicated region
      $region123: #{_lambda_.12} parent=5 // pred_check
        %p580 = pneg %p579
      $region124: #{_lambda_.12} parent=5 // pred_check_branch
        %582 = sbr.rel (%p580) target = $region126
      $region125: #{_lambda_.12} parent=5 // pred_region
        %s583 = ssub.s32 %s10, 2
        // Predicated region
        $region127: #{_lambda_.12} parent=125 // pred_check
          %p584 = pneg %p153
        $region128: #{_lambda_.12} parent=125 // pred_check_branch
          %586 = sbr.rel (%p584) target = $region130
        $region129: #{_lambda_.12} parent=125 // pred_region
          %p587 = scmp.lt.s32.totalorder %s21, 1
          %s588 = scalar_select %p587, %s21, 1
          %p589 = scmp.lt.s32.totalorder %s22, 0
          %s590 = scalar_select %p589, %s22, 0
          %s591 = smul.addr %s588, 4
          %s592 = sadd.s32 %s590, %s591
          %s593 = smul.addr %s592, 4
          %s594 = scalar_lea.vmem %s4, %s593
        $region130: #{_lambda_.12} parent=125 // pred_fallthru
          _
      $region126: #{_lambda_.12} parent=5 // pred_fallthru
        _
    $region6: #{_lambda_.12} parent=1 // loop_footer
      %s14 = sadd.s32 1, %s10
    $region7: #{_lambda_.12} parent=1 // loop_footer_branch
      %9 = sbr.rel target = $region3
    $region8: #{_lambda_.12} parent=1 // loop_exit
      _

// kernel: _lambda_.14
$region0: #{_lambda_.14}
  #allocation0 [shape = 'u32[]', space=smem, size = 0x4, offset = 0x4, fixed_abs, tag = 'smem constant byte address 0x4 - core index']
  #allocation1 [shape = 'u32[72,128]{1,0:T(1,128)}', space=vmem, size = 0x9000, scoped, tag = 'internal scratch']
  %s0 = inlined_call_operand.vmem [shape: bf16[2,16,256], index: 0, kind: input, shape index: {}, may-alias: {0,1}]
  %s1 = inlined_call_operand.vmem [shape: bf16[2,16,256], index: 1, kind: input, shape index: {}, may-alias: {0,1}]
  %s2 = inlined_call_operand.vmem [shape: bf16[16,48], index: 2, kind: input, shape index: {}]
  %s3 = inlined_call_operand.vmem [shape: f32[16,1], index: 3, kind: input, shape index: {}]
  %s4 = inlined_call_operand.vmem [shape: bf16[16,48], index: 4, kind: input, shape index: {}]
  %s5 = inlined_call_operand.vmem [shape: f32[16,1], index: 5, kind: input, shape index: {}]
  %s6 = inlined_call_operand.vmem [shape: bf16[2,16,128], index: 6, kind: output, shape index: {}]
  %s7 = sld [smem:[#allocation0]]
  $region139: #{_lambda_.14} parent=0
    _
  %s9 = ssub.s32 1, %s7
  %s10 = scalar_select 0, %s9, %s7
  $region1: #{_lambda_.14} parent=0
    #allocation2 [shape = 'u8[8192]{0}', space=vmem, size = 0x2000, scoped, tag = 'input window, operand 0']
    #allocation3 [shape = 'u8[8192]{0}', space=vmem, size = 0x2000, scoped, tag = 'input window, operand 1']
    loop: start=0, step=1, limit=4
    $region2: #{_lambda_.14} parent=1 // loop_pre_header
      _
    $region3: #{_lambda_.14} parent=1 // loop_header
      %s12 = sphi 0, %s16
      %p13 = scmp.ge.s32.totalorder %s12, 4
      %s19 = sphi 0, %s31
      %s20 = sphi 0, %s27
      %s21 = sphi 0, %s19
      %s22 = sphi 0, %s20
      %s23 = sphi 0, %s21
      %s24 = sphi 0, %s22
      %s36 = sphi 0, %s38
      %s39 = sphi 0, %s36
      %s40 = sphi 0, %s39
      %s56 = sphi 0, %s40
      %s66 = sphi 0, %s68
      %s69 = sphi 0, %s66
      %s70 = sphi 0, %s69
      %s86 = sphi 0, %s70
      %s90 = sphi 0, %s90
      %s92 = sphi 0, %s90
      %s93 = sphi 0, %s92
      %s107 = sphi 0, %s93
      %s111 = sphi 0, %s111
      %s113 = sphi 0, %s111
      %s114 = sphi 0, %s113
      %s128 = sphi 0, %s114
      %s132 = sphi 0, %s132
      %s134 = sphi 0, %s132
      %s135 = sphi 0, %s134
      %s149 = sphi 0, %s135
      %s153 = sphi 0, %s153
      %s155 = sphi 0, %s153
      %s156 = sphi 0, %s155
      %s170 = sphi 0, %s156
      %s178 = sphi 0, %s180
      %s181 = sphi 0, %s178
      %s182 = sphi 0, %s181
      %s198 = sphi 0, %s182
    $region4: #{_lambda_.14} parent=1 // loop_header_branch
      %15 = sbr.rel (%p13) target = $region8
    $region5: #{_lambda_.14} parent=1 // loop_body
      %s17 = ssub.s32 %s12, 1
      %s18 = ssub.s32 %s12, 2
      %s25 = sadd.s32 1, %s20
      %p26 = scmp.ge.s32.totalorder %s25, 1
      %s27 = scalar_select %p26, 0, %s25
      %s28 = sadd.s32 1, %s19
      %s29 = scalar_select %p26, %s28, %s19
      %p30 = scmp.ge.s32.totalorder %s29, 2
      %s31 = scalar_select %p30, 0, %s29
      %s32 = ssub.s32 %s19, %s31
      %s33 = ssub.s32 %s20, %s27
      %s34 = sor.u32 %s32, %s33
      %p35 = scmp.eq.s32.totalorder %s34, 0
      %s37 = sadd.s32 %s36, 1
      %s38 = scalar_select %p35, %s36, %s37
      %p41 = pneg %p35
      %p42 = scmp.eq.s32.totalorder %s12, 1
      %p43 = por %p41, %p42
      %p44 = scmp.ne.s32.totalorder %s36, %s39
      %p45 = scmp.eq.s32.totalorder %s12, 0
      %p46 = por %p44, %p45
      %p47 = scmp.ne.s32.totalorder %s36, %s39
      %p48 = scmp.eq.s32.totalorder %s17, 1
      %p49 = por %p47, %p48
      %p50 = scmp.ne.s32.totalorder %s39, %s40
      %p51 = scmp.eq.s32.totalorder %s17, 0
      %p52 = por %p50, %p51
      %p53 = scmp.ne.s32.totalorder %s39, %s40
      %p54 = scmp.eq.s32.totalorder %s18, 1
      %p55 = por %p53, %p54
      %p57 = scmp.ne.s32.totalorder %s40, %s56
      %p58 = scmp.eq.s32.totalorder %s18, 0
      %p59 = por %p57, %p58
      %s60 = sadd.s32 %s20, 1
      %s61 = sadd.s32 %s27, 1
      %s62 = ssub.s32 %s19, %s31
      %s63 = ssub.s32 %s60, %s61
      %s64 = sor.u32 %s62, %s63
      %p65 = scmp.eq.s32.totalorder %s64, 0
      %s67 = sadd.s32 %s66, 1
      %s68 = scalar_select %p65, %s66, %s67
      %p71 = pneg %p65
      %p72 = scmp.eq.s32.totalorder %s12, 1
      %p73 = por %p71, %p72
      %p74 = scmp.ne.s32.totalorder %s66, %s69
      %p75 = scmp.eq.s32.totalorder %s12, 0
      %p76 = por %p74, %p75
      %p77 = scmp.ne.s32.totalorder %s66, %s69
      %p78 = scmp.eq.s32.totalorder %s17, 1
      %p79 = por %p77, %p78
      %p80 = scmp.ne.s32.totalorder %s69, %s70
      %p81 = scmp.eq.s32.totalorder %s17, 0
      %p82 = por %p80, %p81
      %p83 = scmp.ne.s32.totalorder %s69, %s70
      %p84 = scmp.eq.s32.totalorder %s18, 1
      %p85 = por %p83, %p84
      %p87 = scmp.ne.s32.totalorder %s70, %s86
      %p88 = scmp.eq.s32.totalorder %s18, 0
      %p89 = por %p87, %p88
      %s91 = sadd.s32 %s90, 1
      %p94 = scmp.eq.s32.totalorder %s12, 1
      %p95 = scmp.ne.s32.totalorder %s90, %s92
      %p96 = scmp.eq.s32.totalorder %s12, 0
      %p97 = por %p95, %p96
      %p98 = scmp.ne.s32.totalorder %s90, %s92
      %p99 = scmp.eq.s32.totalorder %s17, 1
      %p100 = por %p98, %p99
      %p101 = scmp.ne.s32.totalorder %s92, %s93
      %p102 = scmp.eq.s32.totalorder %s17, 0
      %p103 = por %p101, %p102
      %p104 = scmp.ne.s32.totalorder %s92, %s93
      %p105 = scmp.eq.s32.totalorder %s18, 1
      %p106 = por %p104, %p105
      %p108 = scmp.ne.s32.totalorder %s93, %s107
      %p109 = scmp.eq.s32.totalorder %s18, 0
      %p110 = por %p108, %p109
      %s112 = sadd.s32 %s111, 1
      %p115 = scmp.eq.s32.totalorder %s12, 1
      %p116 = scmp.ne.s32.totalorder %s111, %s113
      %p117 = scmp.eq.s32.totalorder %s12, 0
      %p118 = por %p116, %p117
      %p119 = scmp.ne.s32.totalorder %s111, %s113
      %p120 = scmp.eq.s32.totalorder %s17, 1
      %p121 = por %p119, %p120
      %p122 = scmp.ne.s32.totalorder %s113, %s114
      %p123 = scmp.eq.s32.totalorder %s17, 0
      %p124 = por %p122, %p123
      %p125 = scmp.ne.s32.totalorder %s113, %s114
      %p126 = scmp.eq.s32.totalorder %s18, 1
      %p127 = por %p125, %p126
      %p129 = scmp.ne.s32.totalorder %s114, %s128
      %p130 = scmp.eq.s32.totalorder %s18, 0
      %p131 = por %p129, %p130
      %s133 = sadd.s32 %s132, 1
      %p136 = scmp.eq.s32.totalorder %s12, 1
      %p137 = scmp.ne.s32.totalorder %s132, %s134
      %p138 = scmp.eq.s32.totalorder %s12, 0
      %p139 = por %p137, %p138
      %p140 = scmp.ne.s32.totalorder %s132, %s134
      %p141 = scmp.eq.s32.totalorder %s17, 1
      %p142 = por %p140, %p141
      %p143 = scmp.ne.s32.totalorder %s134, %s135
      %p144 = scmp.eq.s32.totalorder %s17, 0
      %p145 = por %p143, %p144
      %p146 = scmp.ne.s32.totalorder %s134, %s135
      %p147 = scmp.eq.s32.totalorder %s18, 1
      %p148 = por %p146, %p147
      %p150 = scmp.ne.s32.totalorder %s135, %s149
      %p151 = scmp.eq.s32.totalorder %s18, 0
      %p152 = por %p150, %p151
      %s154 = sadd.s32 %s153, 1
      %p157 = scmp.eq.s32.totalorder %s12, 1
      %p158 = scmp.ne.s32.totalorder %s153, %s155
      %p159 = scmp.eq.s32.totalorder %s12, 0
      %p160 = por %p158, %p159
      %p161 = scmp.ne.s32.totalorder %s153, %s155
      %p162 = scmp.eq.s32.totalorder %s17, 1
      %p163 = por %p161, %p162
      %p164 = scmp.ne.s32.totalorder %s155, %s156
      %p165 = scmp.eq.s32.totalorder %s17, 0
      %p166 = por %p164, %p165
      %p167 = scmp.ne.s32.totalorder %s155, %s156
      %p168 = scmp.eq.s32.totalorder %s18, 1
      %p169 = por %p167, %p168
      %p171 = scmp.ne.s32.totalorder %s156, %s170
      %p172 = scmp.eq.s32.totalorder %s18, 0
      %p173 = por %p171, %p172
      %s174 = ssub.s32 %s19, %s31
      %s175 = ssub.s32 %s20, %s27
      %s176 = sor.u32 %s174, %s175
      %p177 = scmp.eq.s32.totalorder %s176, 0
      %s179 = sadd.s32 %s178, 1
      %s180 = scalar_select %p177, %s178, %s179
      %p183 = pneg %p177
      %p184 = scmp.eq.s32.totalorder %s12, 1
      %p185 = por %p183, %p184
      %p186 = scmp.ne.s32.totalorder %s178, %s181
      %p187 = scmp.eq.s32.totalorder %s12, 0
      %p188 = por %p186, %p187
      %p189 = scmp.ne.s32.totalorder %s178, %s181
      %p190 = scmp.eq.s32.totalorder %s17, 1
      %p191 = por %p189, %p190
      %p192 = scmp.ne.s32.totalorder %s181, %s182
      %p193 = scmp.eq.s32.totalorder %s17, 0
      %p194 = por %p192, %p193
      %p195 = scmp.ne.s32.totalorder %s181, %s182
      %p196 = scmp.eq.s32.totalorder %s18, 1
      %p197 = por %p195, %p196
      %p199 = scmp.ne.s32.totalorder %s182, %s198
      %p200 = scmp.eq.s32.totalorder %s18, 0
      %p201 = por %p199, %p200
      %p202 = scmp.le.s32.totalorder 1, %s12
      %p203 = scmp.lt.s32.totalorder %s12, 3
      %p204 = pnand %p202, %p203
      %p205 = pneg %p204
      // Predicated region
      $region9: #{_lambda_.14} parent=5 // pred_check
        _
      $region10: #{_lambda_.14} parent=5 // pred_check_branch
        %207 = sbr.rel (%p204) target = $region12
      $region11: #{_lambda_.14} parent=5 // pred_region
        %s208 = ssub.s32 %s12, 1
        // Predicated region
        $region13: #{_lambda_.14} parent=11 // pred_check
          %p209 = pneg %p103
        $region14: #{_lambda_.14} parent=11 // pred_check_branch
          %211 = sbr.rel (%p209) target = $region16
        $region15: #{_lambda_.14} parent=11 // pred_region
          _
        $region16: #{_lambda_.14} parent=11 // pred_fallthru
          _
        // Predicated region
        $region17: #{_lambda_.14} parent=11 // pred_check
          %p212 = pneg %p124
        $region18: #{_lambda_.14} parent=11 // pred_check_branch
          %214 = sbr.rel (%p212) target = $region20
        $region19: #{_lambda_.14} parent=11 // pred_region
          _
        $region20: #{_lambda_.14} parent=11 // pred_fallthru
          _
        // Predicated region
        $region21: #{_lambda_.14} parent=11 // pred_check
          %p215 = pneg %p145
        $region22: #{_lambda_.14} parent=11 // pred_check_branch
          %217 = sbr.rel (%p215) target = $region24
        $region23: #{_lambda_.14} parent=11 // pred_region
          _
        $region24: #{_lambda_.14} parent=11 // pred_fallthru
          _
        // Predicated region
        $region25: #{_lambda_.14} parent=11 // pred_check
          %p218 = pneg %p166
        $region26: #{_lambda_.14} parent=11 // pred_check_branch
          %220 = sbr.rel (%p218) target = $region28
        $region27: #{_lambda_.14} parent=11 // pred_region
          _
        $region28: #{_lambda_.14} parent=11 // pred_fallthru
          _
      $region12: #{_lambda_.14} parent=5 // pred_fallthru
        _
      %p221 = scmp.lt.s32.totalorder %s12, 2
      // Predicated region
      $region29: #{_lambda_.14} parent=5 // pred_check
        %p222 = pneg %p221
      $region30: #{_lambda_.14} parent=5 // pred_check_branch
        %224 = sbr.rel (%p222) target = $region32
      $region31: #{_lambda_.14} parent=5 // pred_region
        // Predicated region
        $region33: #{_lambda_.14} parent=31 // pred_check
          %p225 = pneg %p46
        $region34: #{_lambda_.14} parent=31 // pred_check_branch
          %227 = sbr.rel (%p225) target = $region36
        $region35: #{_lambda_.14} parent=31 // pred_region
          %s228 = sand.u32 %s36, 1
          %s229 = sand.u32 %s36, 1
          %s230 = smul.addr %s229, 8
          %s231 = scalar_lea.vmem [#allocation2], %s230
          %s232 = smul.addr %s19, 4
          %s233 = sadd.s32 %s20, %s232
          %s234 = smul.addr %s233, 4
          %s235 = scalar_lea.vmem %s0, %s234
          // Predicated region
          $region37: #{_lambda_.14} parent=35 // pred_check
            _
          $region38: #{_lambda_.14} parent=35 // pred_check_branch
            %237 = sbr.rel (0) target = $region40
          $region39: #{_lambda_.14} parent=35 // pred_region
            // Predicated region
            $region41: #{_lambda_.14} parent=39 // pred_check
              _
            $region42: #{_lambda_.14} parent=39 // pred_check_branch
              %239 = sbr.rel target = $region44
            $region43: #{_lambda_.14} parent=39 // pred_region
              // Predicated region
              $region56: #{_lambda_.14} parent=43 // pred_check
                _
              $region57: #{_lambda_.14} parent=43 // pred_check_branch
                %257 = sbr.rel (0) target = $region59
              $region58: #{_lambda_.14} parent=43 // pred_region
                loop: start=0, step=1, limit=1
                $region60: #{_lambda_.14} parent=58 // loop_pre_header
                  _
                $region61: #{_lambda_.14} parent=58 // loop_header
                  %s259 = sphi 0, %s263
                  %p260 = scmp.ge.s32.totalorder %s259, 1
                  %s264 = sphi %s235, %s235
                  %s265 = sphi %s231, %s231
                $region62: #{_lambda_.14} parent=58 // loop_header_branch
                  %262 = sbr.rel (%p260) target = $region66
                $region63: #{_lambda_.14} parent=58 // loop_body
                  _
                $region64: #{_lambda_.14} parent=58 // loop_footer
                  %s263 = sadd.s32 1, %s259
                $region65: #{_lambda_.14} parent=58 // loop_footer_branch
                  %258 = sbr.rel target = $region61
                $region66: #{_lambda_.14} parent=58 // loop_exit
                  _
                %s267 = ssub.s32 16, 1
                loop: start=0, step=1, limit=1
                $region67: #{_lambda_.14} parent=58 // loop_pre_header
                  _
                $region68: #{_lambda_.14} parent=58 // loop_header
                  %s269 = sphi 0, %s273
                  %p270 = scmp.ge.s32.totalorder %s269, 1
                  %s274 = sphi %s235, %s235
                  %s275 = sphi %s231, %s231
                $region69: #{_lambda_.14} parent=58 // loop_header_branch
                  %272 = sbr.rel (%p270) target = $region73
                $region70: #{_lambda_.14} parent=58 // loop_body
                  %v276 = vld [vmem:[%s274] sm:%s267]
                  %277 = vst [vmem:[%s275] sm:%s267] %v276
                  %v278 = vld [vmem:[%s274 + $0x8] sm:%s267]
                  %279 = vst [vmem:[%s275 + $0x4] sm:%s267] %v278
                $region71: #{_lambda_.14} parent=58 // loop_footer
                  %s273 = sadd.s32 1, %s269
                $region72: #{_lambda_.14} parent=58 // loop_footer_branch
                  %268 = sbr.rel target = $region68
                $region73: #{_lambda_.14} parent=58 // loop_exit
                  _
              $region59: #{_lambda_.14} parent=43 // pred_fallthru
                _
            $region44: #{_lambda_.14} parent=39 // pred_fallthru
              _
            // Predicated region
            $region45: #{_lambda_.14} parent=39 // pred_check
              _
            $region46: #{_lambda_.14} parent=39 // pred_check_branch
              %241 = sbr.rel (0) target = $region48
            $region47: #{_lambda_.14} parent=39 // pred_region
              %s243 = ssub.s32 16, 1
              loop: start=0, step=1, limit=1
              $region49: #{_lambda_.14} parent=47 // loop_pre_header
                _
              $region50: #{_lambda_.14} parent=47 // loop_header
                %s245 = sphi 0, %s249
                %p246 = scmp.ge.s32.totalorder %s245, 1
                %s250 = sphi %s235, %s235
                %s251 = sphi %s231, %s231
              $region51: #{_lambda_.14} parent=47 // loop_header_branch
                %248 = sbr.rel (%p246) target = $region55
              $region52: #{_lambda_.14} parent=47 // loop_body
                %v252 = vld [vmem:[%s250] sm:%s243]
                %253 = vst [vmem:[%s251] sm:%s243] %v252
                %v254 = vld [vmem:[%s250 + $0x8] sm:%s243]
                %255 = vst [vmem:[%s251 + $0x4] sm:%s243] %v254
              $region53: #{_lambda_.14} parent=47 // loop_footer
                %s249 = sadd.s32 1, %s245
              $region54: #{_lambda_.14} parent=47 // loop_footer_branch
                %244 = sbr.rel target = $region50
              $region55: #{_lambda_.14} parent=47 // loop_exit
                _
            $region48: #{_lambda_.14} parent=39 // pred_fallthru
              _
          $region40: #{_lambda_.14} parent=35 // pred_fallthru
            _
          %280 = vnop
        $region36: #{_lambda_.14} parent=31 // pred_fallthru
          _
        // Predicated region
        $region74: #{_lambda_.14} parent=31 // pred_check
          %p281 = pneg %p76
        $region75: #{_lambda_.14} parent=31 // pred_check_branch
          %283 = sbr.rel (%p281) target = $region77
        $region76: #{_lambda_.14} parent=31 // pred_region
          %s284 = sand.u32 %s66, 1
          %s285 = sand.u32 %s66, 1
          %s286 = smul.addr %s285, 8
          %s287 = scalar_lea.vmem [#allocation3], %s286
          %s288 = sadd.s32 %s20, 1
          %s289 = smul.addr %s19, 4
          %s290 = sadd.s32 %s288, %s289
          %s291 = smul.addr %s290, 4
          %s292 = scalar_lea.vmem %s1, %s291
          // Predicated region
          $region78: #{_lambda_.14} parent=76 // pred_check
            _
          $region79: #{_lambda_.14} parent=76 // pred_check_branch
            %294 = sbr.rel (0) target = $region81
          $region80: #{_lambda_.14} parent=76 // pred_region
            // Predicated region
            $region82: #{_lambda_.14} parent=80 // pred_check
              _
            $region83: #{_lambda_.14} parent=80 // pred_check_branch
              %296 = sbr.rel target = $region85
            $region84: #{_lambda_.14} parent=80 // pred_region
              // Predicated region
              $region97: #{_lambda_.14} parent=84 // pred_check
                _
              $region98: #{_lambda_.14} parent=84 // pred_check_branch
                %314 = sbr.rel (0) target = $region100
              $region99: #{_lambda_.14} parent=84 // pred_region
                loop: start=0, step=1, limit=1
                $region101: #{_lambda_.14} parent=99 // loop_pre_header
                  _
                $region102: #{_lambda_.14} parent=99 // loop_header
                  %s316 = sphi 0, %s320
                  %p317 = scmp.ge.s32.totalorder %s316, 1
                  %s321 = sphi %s292, %s292
                  %s322 = sphi %s287, %s287
                $region103: #{_lambda_.14} parent=99 // loop_header_branch
                  %319 = sbr.rel (%p317) target = $region107
                $region104: #{_lambda_.14} parent=99 // loop_body
                  _
                $region105: #{_lambda_.14} parent=99 // loop_footer
                  %s320 = sadd.s32 1, %s316
                $region106: #{_lambda_.14} parent=99 // loop_footer_branch
                  %315 = sbr.rel target = $region102
                $region107: #{_lambda_.14} parent=99 // loop_exit
                  _
                %s324 = ssub.s32 16, 1
                loop: start=0, step=1, limit=1
                $region108: #{_lambda_.14} parent=99 // loop_pre_header
                  _
                $region109: #{_lambda_.14} parent=99 // loop_header
                  %s326 = sphi 0, %s330
                  %p327 = scmp.ge.s32.totalorder %s326, 1
                  %s331 = sphi %s292, %s292
                  %s332 = sphi %s287, %s287
                $region110: #{_lambda_.14} parent=99 // loop_header_branch
                  %329 = sbr.rel (%p327) target = $region114
                $region111: #{_lambda_.14} parent=99 // loop_body
                  %v333 = vld [vmem:[%s331] sm:%s324]
                  %334 = vst [vmem:[%s332] sm:%s324] %v333
                  %v335 = vld [vmem:[%s331 + $0x8] sm:%s324]
                  %336 = vst [vmem:[%s332 + $0x4] sm:%s324] %v335
                $region112: #{_lambda_.14} parent=99 // loop_footer
                  %s330 = sadd.s32 1, %s326
                $region113: #{_lambda_.14} parent=99 // loop_footer_branch
                  %325 = sbr.rel target = $region109
                $region114: #{_lambda_.14} parent=99 // loop_exit
                  _
              $region100: #{_lambda_.14} parent=84 // pred_fallthru
                _
            $region85: #{_lambda_.14} parent=80 // pred_fallthru
              _
            // Predicated region
            $region86: #{_lambda_.14} parent=80 // pred_check
              _
            $region87: #{_lambda_.14} parent=80 // pred_check_branch
              %298 = sbr.rel (0) target = $region89
            $region88: #{_lambda_.14} parent=80 // pred_region
              %s300 = ssub.s32 16, 1
              loop: start=0, step=1, limit=1
              $region90: #{_lambda_.14} parent=88 // loop_pre_header
                _
              $region91: #{_lambda_.14} parent=88 // loop_header
                %s302 = sphi 0, %s306
                %p303 = scmp.ge.s32.totalorder %s302, 1
                %s307 = sphi %s292, %s292
                %s308 = sphi %s287, %s287
              $region92: #{_lambda_.14} parent=88 // loop_header_branch
                %305 = sbr.rel (%p303) target = $region96
              $region93: #{_lambda_.14} parent=88 // loop_body
                %v309 = vld [vmem:[%s307] sm:%s300]
                %310 = vst [vmem:[%s308] sm:%s300] %v309
                %v311 = vld [vmem:[%s307 + $0x8] sm:%s300]
                %312 = vst [vmem:[%s308 + $0x4] sm:%s300] %v311
              $region94: #{_lambda_.14} parent=88 // loop_footer
                %s306 = sadd.s32 1, %s302
              $region95: #{_lambda_.14} parent=88 // loop_footer_branch
                %301 = sbr.rel target = $region91
              $region96: #{_lambda_.14} parent=88 // loop_exit
                _
            $region89: #{_lambda_.14} parent=80 // pred_fallthru
              _
          $region81: #{_lambda_.14} parent=76 // pred_fallthru
            _
          %337 = vnop
        $region77: #{_lambda_.14} parent=31 // pred_fallthru
          _
      $region32: #{_lambda_.14} parent=5 // pred_fallthru
        _
      %p338 = scmp.le.s32.totalorder 1, %s12
      %p339 = scmp.lt.s32.totalorder %s12, 3
      %p340 = pnand %p338, %p339
      %p341 = pneg %p340
      // Predicated region
      $region115: #{_lambda_.14} parent=5 // pred_check
        _
      $region116: #{_lambda_.14} parent=5 // pred_check_branch
        %343 = sbr.rel (%p340) target = $region118
      $region117: #{_lambda_.14} parent=5 // pred_region
        %s344 = ssub.s32 %s12, 1
        %s345 = sand.u32 %s39, 1
        %s346 = sand.u32 %s39, 1
        %s347 = smul.addr %s346, 8
        %s348 = scalar_lea.vmem [#allocation2], %s347
        // Predicated region
        $region119: #{_lambda_.14} parent=117 // pred_check
          %p349 = pneg %p52
        $region120: #{_lambda_.14} parent=117 // pred_check_branch
          %351 = sbr.rel (%p349) target = $region122
        $region121: #{_lambda_.14} parent=117 // pred_region
          _
        $region122: #{_lambda_.14} parent=117 // pred_fallthru
          _
        %s352 = sand.u32 %s69, 1
        %s353 = sand.u32 %s69, 1
        %s354 = smul.addr %s353, 8
        %s355 = scalar_lea.vmem [#allocation3], %s354
        // Predicated region
        $region123: #{_lambda_.14} parent=117 // pred_check
          %p356 = pneg %p82
        $region124: #{_lambda_.14} parent=117 // pred_check_branch
          %358 = sbr.rel (%p356) target = $region126
        $region125: #{_lambda_.14} parent=117 // pred_region
          _
        $region126: #{_lambda_.14} parent=117 // pred_fallthru
          _
        %s359 = sand.u32 %s39, 1
        %s360 = sand.u32 %s39, 1
        %s361 = smul.addr %s360, 8
        %s362 = scalar_lea.vmem [#allocation2], %s361
        %p363 = pneg %p52
        %p364 = pneg %p49
        %s365 = sand.u32 %s69, 1
        %s366 = sand.u32 %s69, 1
        %s367 = smul.addr %s366, 8
        %s368 = scalar_lea.vmem [#allocation3], %s367
        %p369 = pneg %p82
        %p370 = pneg %p79
        %p371 = pneg %p103
        %p372 = pneg %p100
        %p373 = pneg %p124
        %p374 = pneg %p121
        %p375 = pneg %p145
        %p376 = pneg %p142
        %p377 = pneg %p166
        %p378 = pneg %p163
        %p379 = pneg %p194
        %p380 = pneg %p191
        %p381 = scmp.lt.s32.totalorder %s21, 1
        %s382 = scalar_select %p381, %s21, 1
        %p383 = scmp.lt.s32.totalorder %s22, 0
        %s384 = scalar_select %p383, %s22, 0
        %s385 = smul.addr %s382, 2
        %s386 = sadd.s32 %s384, %s385
        %s387 = smul.addr %s386, 4
        %s388 = scalar_lea.vmem %s6, %s387
        %s389 = sadd.s32 %s22, 1
        %p390 = scmp.lt.s32.totalorder %s21, 1
        %s391 = scalar_select %p390, %s21, 1
        %p392 = scmp.lt.s32.totalorder %s22, 0
        %s393 = scalar_select %p392, %s22, 0
        %s394 = smul.addr %s391, 2
        %s395 = sadd.s32 %s393, %s394
        %s396 = smul.addr %s395, 4
        %s397 = scalar_lea.vmem %s6, %s396
        %v399 = vld [vmem:[%s348] sm:$0xf]
        %v400 = vld [vmem:[%s348 + $0x4] sm:$0xf]
        %v401 = vld [vmem:[%s355] sm:$0xf]
        %v402 = vld [vmem:[%s355 + $0x4] sm:$0xf]
        %v405 = vunpack.c.l.b16 %v399
        %v406 = vunpack.c.l.b16 %v400
        %v407 = vpack.c.b16 %v406, %v405
        %v411 = vunpack.c.l.b16 %v401
        %v412 = vunpack.c.l.b16 %v402
        %v413 = vpack.c.b16 %v412, %v411
        %v415 = vunpack.c.l.bf16 %v407
        %v416 = vunpack.c.l.bf16 %v413
        %v417 = vunpack.c.h.bf16 %v407
        %v418 = vunpack.c.h.bf16 %v413
        %vm419 = vcmp.ge.f32.partialorder %v415, 0.0
        %vm420 = vcmp.ge.f32.partialorder %v416, 0.0
        %vm421 = vcmp.ge.f32.partialorder %v417, 0.0
        %vm422 = vcmp.ge.f32.partialorder %v418, 0.0
        %v423 = vmul.f32 %v415, 0.1
        %v424 = vmul.f32 %v416, 0.1
        %v425 = vmul.f32 %v417, 0.1
        %v426 = vmul.f32 %v418, 0.1
        %v427 = vsel %vm419, %v415, %v423
        %v428 = vsel %vm420, %v416, %v424
        %v429 = vsel %vm421, %v417, %v425
        %v430 = vsel %vm422, %v418, %v426
        %v431 = vpack.c.bf16 %v428, %v427
        %v432 = vpack.c.bf16 %v430, %v429
        %v435 = vunpack.c.l.b16 %v431
        %v436 = vunpack.c.h.b16 %v431
        %v437 = vunpack.c.l.b16 %v432
        %v438 = vunpack.c.h.b16 %v432
        %v439 = vpack.c.b16 %v437, %v435
        %v440 = vpack.c.b16 %v438, %v436
        %443 = vrot.lane.b32.xlu0 %v439, 127
        %v444 = vpop.permute.xlu0 %443
        %445 = vrot.lane.b32.xlu0 %v440, 127
        %v446 = vpop.permute.xlu0 %445
        %vm447 = vcmask 1039360
        %v448 = vsel %vm447, %v444, %v446
        %451 = vrot.lane.b32.xlu0 %v439, 126
        %v452 = vpop.permute.xlu0 %451
        %453 = vrot.lane.b32.xlu0 %v440, 126
        %v454 = vpop.permute.xlu0 %453
        %vm455 = vcmask 1031168
        %v456 = vsel %vm455, %v452, %v454
        %v459 = vld [vmem:[%s2] sm:$0xf]
        %v460 = vld [vmem:[%s2 + $0x4] sm:$0xf]
        %v461 = vld [vmem:[%s3] sm:$0xff]
        %v462 = vld [vmem:[%s3 + $0x8] sm:$0xff]
        %464 = vset.pattern.permute.xlu0 0
        %465 = vperm.xlu0 %464, %v461
        %v466 = vpop.permute.xlu0 %465
        %469 = vset.pattern.permute.xlu0 0
        %470 = vperm.xlu0 %469, %v462
        %v471 = vpop.permute.xlu0 %470
        %v475 = vunpack.c.l.b16 %v459
        %v476 = vunpack.c.l.b16 %v460
        %v477 = vpack.c.b16 %v476, %v475
        %vm478 = vcmask 392192
        %v480 = vsel %vm478, %v477, 0
        %482 = vmatpush.bf16.msra.mxu0 0
        %483 = vmatpush.bf16.msra.mxu0 0
        %484 = vmatpush.bf16.msra.mxu0 0
        %485 = vmatpush.bf16.msra.mxu0 0
        %486 = vmatpush.bf16.msra.mxu0 0
        %487 = vmatpush.bf16.msra.mxu0 %v456
        %488 = vmatpush.bf16.msra.mxu0 %v448
        %489 = vmatpush.bf16.msra.mxu0 %v439
        %490 = vmatmul.bf16.gmra.mxu0 %v480
        %v491 = vpop.f32.mrf.mxu0
        %v492 = vadd.f32 %v466, %v491
        %v493 = vpop.f32.mrf.mxu0
        %v494 = vadd.f32 %v471, %v493
        %495 = vdwg.mxu0
        %496 = vmatpush.bf16.msra.mxu0 0
        %497 = vmatpush.bf16.msra.mxu0 0
        %498 = vmatpush.bf16.msra.mxu0 0
        %499 = vmatpush.bf16.msra.mxu0 0
        %500 = vmatpush.bf16.msra.mxu0 0
        %501 = vmatpush.bf16.msra.mxu0 %v454
        %502 = vmatpush.bf16.msra.mxu0 %v446
        %503 = vmatpush.bf16.msra.mxu0 %v440
        %504 = vmatmul.bf16.gmra.mxu0 %v480
        %v505 = vpop.f32.mrf.mxu0
        %v506 = vadd.f32 %v466, %v505
        %v507 = vpop.f32.mrf.mxu0
        %v508 = vadd.f32 %v471, %v507
        %509 = vdwg.mxu0
        %vm510 = vcmp.ge.f32.partialorder %v492, 0.0
        %vm511 = vcmp.ge.f32.partialorder %v506, 0.0
        %vm512 = vcmp.ge.f32.partialorder %v494, 0.0
        %vm513 = vcmp.ge.f32.partialorder %v508, 0.0
        %v514 = vmul.f32 %v492, 0.1
        %v515 = vmul.f32 %v506, 0.1
        %v516 = vmul.f32 %v494, 0.1
        %v517 = vmul.f32 %v508, 0.1
        %v518 = vsel %vm510, %v492, %v514
        %v519 = vsel %vm511, %v506, %v515
        %v520 = vsel %vm512, %v494, %v516
        %v521 = vsel %vm513, %v508, %v517
        %s522 = smul.u32 %s22, 128
        %s523 = ssub.s32 %s522, 1
        %v524 = vlaneseq
        %v525 = vand.u32 %v524, 127
        %v526 = vadd.s32 %v525, 128
        %v527 = vstv %s523
        %v528 = vadd.s32 %v527, %v525
        %v529 = vadd.s32 %v527, %v526
        %vm530 = vcmp.ge.s32.totalorder %v528, 0
        %vm531 = vcmp.ge.s32.totalorder %v529, 0
        %vm532 = vcmp.lt.s32.totalorder %v528, 16
        %vm533 = vcmp.lt.s32.totalorder %v529, 16
        %vm534 = vmand %vm530, %vm532
        %vm535 = vmand %vm531, %vm533
        %v536 = vsel %vm534, 1, 0
        %v537 = vsel %vm535, 1, 0
        %vm538 = vcmp.eq.s32.totalorder %v536, 1
        %vm539 = vcmp.eq.s32.totalorder %v537, 1
        %v540 = vsel %vm538, %v518, 0.0
        %v541 = vsel %vm539, %v519, 0.0
        %v542 = vsel %vm538, %v520, 0.0
        %v543 = vsel %vm539, %v521, 0.0
        %v544 = vpack.c.bf16 %v541, %v540
        %v545 = vpack.c.bf16 %v543, %v542
        %v548 = vunpack.c.l.b16 %v544
        %v549 = vunpack.c.l.b16 %v545
        %v550 = vpack.c.b16 %v549, %v548
        %v552 = vunpack.c.h.b16 %v544
        %v553 = vunpack.c.h.b16 %v545
        %v554 = vpack.c.b16 %v553, %v552
        %555 = vrot.lane.b32.xlu0 %v550, 127
        %v556 = vpop.permute.xlu0 %555
        %557 = vrot.lane.b32.xlu0 %v554, 127
        %v558 = vpop.permute.xlu0 %557
        %v559 = vsel %vm447, %v556, %v558
        %561 = vrot.lane.b32.xlu0 %v550, 126
        %v562 = vpop.permute.xlu0 %561
        %563 = vrot.lane.b32.xlu0 %v554, 126
        %v564 = vpop.permute.xlu0 %563
        %v565 = vsel %vm455, %v562, %v564
        %v567 = vld [vmem:[%s4] sm:$0xf]
        %v568 = vld [vmem:[%s4 + $0x4] sm:$0xf]
        %v569 = vld [vmem:[%s5] sm:$0xff]
        %v570 = vld [vmem:[%s5 + $0x8] sm:$0xff]
        %572 = vset.pattern.permute.xlu0 0
        %573 = vperm.xlu0 %572, %v569
        %v574 = vpop.permute.xlu0 %573
        %577 = vset.pattern.permute.xlu0 0
        %578 = vperm.xlu0 %577, %v570
        %v579 = vpop.permute.xlu0 %578
        %v583 = vunpack.c.l.b16 %v567
        %v584 = vunpack.c.l.b16 %v568
        %v585 = vpack.c.b16 %v584, %v583
        %v587 = vsel %vm478, %v585, 0
        %589 = vmatpush.bf16.msra.mxu0 0
        %590 = vmatpush.bf16.msra.mxu0 0
        %591 = vmatpush.bf16.msra.mxu0 0
        %592 = vmatpush.bf16.msra.mxu0 0
        %593 = vmatpush.bf16.msra.mxu0 0
        %594 = vmatpush.bf16.msra.mxu0 %v565
        %595 = vmatpush.bf16.msra.mxu0 %v559
        %596 = vmatpush.bf16.msra.mxu0 %v550
        %597 = vmatmul.bf16.gmra.mxu0 %v587
        %v598 = vpop.f32.mrf.mxu0
        %v599 = vadd.f32 %v574, %v598
        %v600 = vpop.f32.mrf.mxu0
        %v601 = vadd.f32 %v579, %v600
        %602 = vdwg.mxu0
        %607 = vrot.lane.b32.xlu0 %v415, 126
        %v608 = vpop.permute.xlu0 %607
        %609 = vrot.lane.b32.xlu0 %v416, 126
        %v610 = vpop.permute.xlu0 %609
        %611 = vrot.lane.b32.xlu0 %v417, 126
        %v612 = vpop.permute.xlu0 %611
        %613 = vrot.lane.b32.xlu0 %v418, 126
        %v614 = vpop.permute.xlu0 %613
        %vm615 = vcmask 1031168
        %v616 = vsel %vm615, %v608, %v610
        %v617 = vsel %vm615, %v612, %v614
        %v620 = vadd.f32 %v599, %v616
        %v621 = vadd.f32 %v601, %v617
        %v622 = vpack.c.bf16 %v620, %v620
        %v623 = vpack.c.bf16 %v621, %v621
        %624 = vst [vmem:[%s397] sm:$0xf] %v622
        %625 = vst [vmem:[%s397 + $0x4] sm:$0xf] %v623
        %p626 = scmp.lt.s32.totalorder %s21, 1
        %s627 = scalar_select %p626, %s21, 1
        %p628 = scmp.lt.s32.totalorder %s22, 0
        %s629 = scalar_select %p628, %s22, 0
        %s630 = smul.addr %s627, 2
        %s631 = sadd.s32 %s629, %s630
        %s632 = smul.addr %s631, 4
        %s633 = scalar_lea.vmem %s6, %s632
        // Predicated region
        $region127: #{_lambda_.14} parent=117 // pred_check
          %p634 = pneg %p191
        $region128: #{_lambda_.14} parent=117 // pred_check_branch
          %636 = sbr.rel (%p634) target = $region130
        $region129: #{_lambda_.14} parent=117 // pred_region
          _
        $region130: #{_lambda_.14} parent=117 // pred_fallthru
          _
      $region118: #{_lambda_.14} parent=5 // pred_fallthru
        _
      %p637 = scmp.le.s32.totalorder 2, %s12
      // Predicated region
      $region131: #{_lambda_.14} parent=5 // pred_check
        %p638 = pneg %p637
      $region132: #{_lambda_.14} parent=5 // pred_check_branch
        %640 = sbr.rel (%p638) target = $region134
      $region133: #{_lambda_.14} parent=5 // pred_region
        %s641 = ssub.s32 %s12, 2
        // Predicated region
        $region135: #{_lambda_.14} parent=133 // pred_check
          %p642 = pneg %p197
        $region136: #{_lambda_.14} parent=133 // pred_check_branch
          %644 = sbr.rel (%p642) target = $region138
        $region137: #{_lambda_.14} parent=133 // pred_region
          %p645 = scmp.lt.s32.totalorder %s23, 1
          %s646 = scalar_select %p645, %s23, 1
          %p647 = scmp.lt.s32.totalorder %s24, 0
          %s648 = scalar_select %p647, %s24, 0
          %s649 = smul.addr %s646, 2
          %s650 = sadd.s32 %s648, %s649
          %s651 = smul.addr %s650, 4
          %s652 = scalar_lea.vmem %s6, %s651
        $region138: #{_lambda_.14} parent=133 // pred_fallthru
          _
      $region134: #{_lambda_.14} parent=5 // pred_fallthru
        _
    $region6: #{_lambda_.14} parent=1 // loop_footer
      %s16 = sadd.s32 1, %s12
    $region7: #{_lambda_.14} parent=1 // loop_footer_branch
      %11 = sbr.rel target = $region3
    $region8: #{_lambda_.14} parent=1 // loop_exit
      _

// kernel: _lambda_.15
$region0: #{_lambda_.15}
  #allocation0 [shape = 'u32[]', space=smem, size = 0x4, offset = 0x4, fixed_abs, tag = 'smem constant byte address 0x4 - core index']
  #allocation1 [shape = 'u32[72,128]{1,0:T(1,128)}', space=vmem, size = 0x9000, scoped, tag = 'internal scratch']
  %s0 = inlined_call_operand.vmem [shape: bf16[2,16,256], index: 0, kind: input, shape index: {}, may-alias: {0,1}]
  %s1 = inlined_call_operand.vmem [shape: bf16[2,16,256], index: 1, kind: input, shape index: {}, may-alias: {0,1}]
  %s2 = inlined_call_operand.vmem [shape: bf16[16,48], index: 2, kind: input, shape index: {}]
  %s3 = inlined_call_operand.vmem [shape: f32[16,1], index: 3, kind: input, shape index: {}]
  %s4 = inlined_call_operand.vmem [shape: bf16[16,48], index: 4, kind: input, shape index: {}]
  %s5 = inlined_call_operand.vmem [shape: f32[16,1], index: 5, kind: input, shape index: {}]
  %s6 = inlined_call_operand.vmem [shape: bf16[2,16,128], index: 6, kind: output, shape index: {}]
  %s7 = sld [smem:[#allocation0]]
  $region139: #{_lambda_.15} parent=0
    _
  %s9 = ssub.s32 1, %s7
  %s10 = scalar_select 0, %s9, %s7
  $region1: #{_lambda_.15} parent=0
    #allocation2 [shape = 'u8[8192]{0}', space=vmem, size = 0x2000, scoped, tag = 'input window, operand 0']
    #allocation3 [shape = 'u8[8192]{0}', space=vmem, size = 0x2000, scoped, tag = 'input window, operand 1']
    loop: start=0, step=1, limit=4
    $region2: #{_lambda_.15} parent=1 // loop_pre_header
      _
    $region3: #{_lambda_.15} parent=1 // loop_header
      %s12 = sphi 0, %s16
      %p13 = scmp.ge.s32.totalorder %s12, 4
      %s19 = sphi 0, %s31
      %s20 = sphi 0, %s27
      %s21 = sphi 0, %s19
      %s22 = sphi 0, %s20
      %s23 = sphi 0, %s21
      %s24 = sphi 0, %s22
      %s36 = sphi 0, %s38
      %s39 = sphi 0, %s36
      %s40 = sphi 0, %s39
      %s56 = sphi 0, %s40
      %s66 = sphi 0, %s68
      %s69 = sphi 0, %s66
      %s70 = sphi 0, %s69
      %s86 = sphi 0, %s70
      %s90 = sphi 0, %s90
      %s92 = sphi 0, %s90
      %s93 = sphi 0, %s92
      %s107 = sphi 0, %s93
      %s111 = sphi 0, %s111
      %s113 = sphi 0, %s111
      %s114 = sphi 0, %s113
      %s128 = sphi 0, %s114
      %s132 = sphi 0, %s132
      %s134 = sphi 0, %s132
      %s135 = sphi 0, %s134
      %s149 = sphi 0, %s135
      %s153 = sphi 0, %s153
      %s155 = sphi 0, %s153
      %s156 = sphi 0, %s155
      %s170 = sphi 0, %s156
      %s178 = sphi 0, %s180
      %s181 = sphi 0, %s178
      %s182 = sphi 0, %s181
      %s198 = sphi 0, %s182
    $region4: #{_lambda_.15} parent=1 // loop_header_branch
      %15 = sbr.rel (%p13) target = $region8
    $region5: #{_lambda_.15} parent=1 // loop_body
      %s17 = ssub.s32 %s12, 1
      %s18 = ssub.s32 %s12, 2
      %s25 = sadd.s32 1, %s20
      %p26 = scmp.ge.s32.totalorder %s25, 1
      %s27 = scalar_select %p26, 0, %s25
      %s28 = sadd.s32 1, %s19
      %s29 = scalar_select %p26, %s28, %s19
      %p30 = scmp.ge.s32.totalorder %s29, 2
      %s31 = scalar_select %p30, 0, %s29
      %s32 = ssub.s32 %s19, %s31
      %s33 = ssub.s32 %s20, %s27
      %s34 = sor.u32 %s32, %s33
      %p35 = scmp.eq.s32.totalorder %s34, 0
      %s37 = sadd.s32 %s36, 1
      %s38 = scalar_select %p35, %s36, %s37
      %p41 = pneg %p35
      %p42 = scmp.eq.s32.totalorder %s12, 1
      %p43 = por %p41, %p42
      %p44 = scmp.ne.s32.totalorder %s36, %s39
      %p45 = scmp.eq.s32.totalorder %s12, 0
      %p46 = por %p44, %p45
      %p47 = scmp.ne.s32.totalorder %s36, %s39
      %p48 = scmp.eq.s32.totalorder %s17, 1
      %p49 = por %p47, %p48
      %p50 = scmp.ne.s32.totalorder %s39, %s40
      %p51 = scmp.eq.s32.totalorder %s17, 0
      %p52 = por %p50, %p51
      %p53 = scmp.ne.s32.totalorder %s39, %s40
      %p54 = scmp.eq.s32.totalorder %s18, 1
      %p55 = por %p53, %p54
      %p57 = scmp.ne.s32.totalorder %s40, %s56
      %p58 = scmp.eq.s32.totalorder %s18, 0
      %p59 = por %p57, %p58
      %s60 = sadd.s32 %s20, 1
      %s61 = sadd.s32 %s27, 1
      %s62 = ssub.s32 %s19, %s31
      %s63 = ssub.s32 %s60, %s61
      %s64 = sor.u32 %s62, %s63
      %p65 = scmp.eq.s32.totalorder %s64, 0
      %s67 = sadd.s32 %s66, 1
      %s68 = scalar_select %p65, %s66, %s67
      %p71 = pneg %p65
      %p72 = scmp.eq.s32.totalorder %s12, 1
      %p73 = por %p71, %p72
      %p74 = scmp.ne.s32.totalorder %s66, %s69
      %p75 = scmp.eq.s32.totalorder %s12, 0
      %p76 = por %p74, %p75
      %p77 = scmp.ne.s32.totalorder %s66, %s69
      %p78 = scmp.eq.s32.totalorder %s17, 1
      %p79 = por %p77, %p78
      %p80 = scmp.ne.s32.totalorder %s69, %s70
      %p81 = scmp.eq.s32.totalorder %s17, 0
      %p82 = por %p80, %p81
      %p83 = scmp.ne.s32.totalorder %s69, %s70
      %p84 = scmp.eq.s32.totalorder %s18, 1
      %p85 = por %p83, %p84
      %p87 = scmp.ne.s32.totalorder %s70, %s86
      %p88 = scmp.eq.s32.totalorder %s18, 0
      %p89 = por %p87, %p88
      %s91 = sadd.s32 %s90, 1
      %p94 = scmp.eq.s32.totalorder %s12, 1
      %p95 = scmp.ne.s32.totalorder %s90, %s92
      %p96 = scmp.eq.s32.totalorder %s12, 0
      %p97 = por %p95, %p96
      %p98 = scmp.ne.s32.totalorder %s90, %s92
      %p99 = scmp.eq.s32.totalorder %s17, 1
      %p100 = por %p98, %p99
      %p101 = scmp.ne.s32.totalorder %s92, %s93
      %p102 = scmp.eq.s32.totalorder %s17, 0
      %p103 = por %p101, %p102
      %p104 = scmp.ne.s32.totalorder %s92, %s93
      %p105 = scmp.eq.s32.totalorder %s18, 1
      %p106 = por %p104, %p105
      %p108 = scmp.ne.s32.totalorder %s93, %s107
      %p109 = scmp.eq.s32.totalorder %s18, 0
      %p110 = por %p108, %p109
      %s112 = sadd.s32 %s111, 1
      %p115 = scmp.eq.s32.totalorder %s12, 1
      %p116 = scmp.ne.s32.totalorder %s111, %s113
      %p117 = scmp.eq.s32.totalorder %s12, 0
      %p118 = por %p116, %p117
      %p119 = scmp.ne.s32.totalorder %s111, %s113
      %p120 = scmp.eq.s32.totalorder %s17, 1
      %p121 = por %p119, %p120
      %p122 = scmp.ne.s32.totalorder %s113, %s114
      %p123 = scmp.eq.s32.totalorder %s17, 0
      %p124 = por %p122, %p123
      %p125 = scmp.ne.s32.totalorder %s113, %s114
      %p126 = scmp.eq.s32.totalorder %s18, 1
      %p127 = por %p125, %p126
      %p129 = scmp.ne.s32.totalorder %s114, %s128
      %p130 = scmp.eq.s32.totalorder %s18, 0
      %p131 = por %p129, %p130
      %s133 = sadd.s32 %s132, 1
      %p136 = scmp.eq.s32.totalorder %s12, 1
      %p137 = scmp.ne.s32.totalorder %s132, %s134
      %p138 = scmp.eq.s32.totalorder %s12, 0
      %p139 = por %p137, %p138
      %p140 = scmp.ne.s32.totalorder %s132, %s134
      %p141 = scmp.eq.s32.totalorder %s17, 1
      %p142 = por %p140, %p141
      %p143 = scmp.ne.s32.totalorder %s134, %s135
      %p144 = scmp.eq.s32.totalorder %s17, 0
      %p145 = por %p143, %p144
      %p146 = scmp.ne.s32.totalorder %s134, %s135
      %p147 = scmp.eq.s32.totalorder %s18, 1
      %p148 = por %p146, %p147
      %p150 = scmp.ne.s32.totalorder %s135, %s149
      %p151 = scmp.eq.s32.totalorder %s18, 0
      %p152 = por %p150, %p151
      %s154 = sadd.s32 %s153, 1
      %p157 = scmp.eq.s32.totalorder %s12, 1
      %p158 = scmp.ne.s32.totalorder %s153, %s155
      %p159 = scmp.eq.s32.totalorder %s12, 0
      %p160 = por %p158, %p159
      %p161 = scmp.ne.s32.totalorder %s153, %s155
      %p162 = scmp.eq.s32.totalorder %s17, 1
      %p163 = por %p161, %p162
      %p164 = scmp.ne.s32.totalorder %s155, %s156
      %p165 = scmp.eq.s32.totalorder %s17, 0
      %p166 = por %p164, %p165
      %p167 = scmp.ne.s32.totalorder %s155, %s156
      %p168 = scmp.eq.s32.totalorder %s18, 1
      %p169 = por %p167, %p168
      %p171 = scmp.ne.s32.totalorder %s156, %s170
      %p172 = scmp.eq.s32.totalorder %s18, 0
      %p173 = por %p171, %p172
      %s174 = ssub.s32 %s19, %s31
      %s175 = ssub.s32 %s20, %s27
      %s176 = sor.u32 %s174, %s175
      %p177 = scmp.eq.s32.totalorder %s176, 0
      %s179 = sadd.s32 %s178, 1
      %s180 = scalar_select %p177, %s178, %s179
      %p183 = pneg %p177
      %p184 = scmp.eq.s32.totalorder %s12, 1
      %p185 = por %p183, %p184
      %p186 = scmp.ne.s32.totalorder %s178, %s181
      %p187 = scmp.eq.s32.totalorder %s12, 0
      %p188 = por %p186, %p187
      %p189 = scmp.ne.s32.totalorder %s178, %s181
      %p190 = scmp.eq.s32.totalorder %s17, 1
      %p191 = por %p189, %p190
      %p192 = scmp.ne.s32.totalorder %s181, %s182
      %p193 = scmp.eq.s32.totalorder %s17, 0
      %p194 = por %p192, %p193
      %p195 = scmp.ne.s32.totalorder %s181, %s182
      %p196 = scmp.eq.s32.totalorder %s18, 1
      %p197 = por %p195, %p196
      %p199 = scmp.ne.s32.totalorder %s182, %s198
      %p200 = scmp.eq.s32.totalorder %s18, 0
      %p201 = por %p199, %p200
      %p202 = scmp.le.s32.totalorder 1, %s12
      %p203 = scmp.lt.s32.totalorder %s12, 3
      %p204 = pnand %p202, %p203
      %p205 = pneg %p204
      // Predicated region
      $region9: #{_lambda_.15} parent=5 // pred_check
        _
      $region10: #{_lambda_.15} parent=5 // pred_check_branch
        %207 = sbr.rel (%p204) target = $region12
      $region11: #{_lambda_.15} parent=5 // pred_region
        %s208 = ssub.s32 %s12, 1
        // Predicated region
        $region13: #{_lambda_.15} parent=11 // pred_check
          %p209 = pneg %p103
        $region14: #{_lambda_.15} parent=11 // pred_check_branch
          %211 = sbr.rel (%p209) target = $region16
        $region15: #{_lambda_.15} parent=11 // pred_region
          _
        $region16: #{_lambda_.15} parent=11 // pred_fallthru
          _
        // Predicated region
        $region17: #{_lambda_.15} parent=11 // pred_check
          %p212 = pneg %p124
        $region18: #{_lambda_.15} parent=11 // pred_check_branch
          %214 = sbr.rel (%p212) target = $region20
        $region19: #{_lambda_.15} parent=11 // pred_region
          _
        $region20: #{_lambda_.15} parent=11 // pred_fallthru
          _
        // Predicated region
        $region21: #{_lambda_.15} parent=11 // pred_check
          %p215 = pneg %p145
        $region22: #{_lambda_.15} parent=11 // pred_check_branch
          %217 = sbr.rel (%p215) target = $region24
        $region23: #{_lambda_.15} parent=11 // pred_region
          _
        $region24: #{_lambda_.15} parent=11 // pred_fallthru
          _
        // Predicated region
        $region25: #{_lambda_.15} parent=11 // pred_check
          %p218 = pneg %p166
        $region26: #{_lambda_.15} parent=11 // pred_check_branch
          %220 = sbr.rel (%p218) target = $region28
        $region27: #{_lambda_.15} parent=11 // pred_region
          _
        $region28: #{_lambda_.15} parent=11 // pred_fallthru
          _
      $region12: #{_lambda_.15} parent=5 // pred_fallthru
        _
      %p221 = scmp.lt.s32.totalorder %s12, 2
      // Predicated region
      $region29: #{_lambda_.15} parent=5 // pred_check
        %p222 = pneg %p221
      $region30: #{_lambda_.15} parent=5 // pred_check_branch
        %224 = sbr.rel (%p222) target = $region32
      $region31: #{_lambda_.15} parent=5 // pred_region
        // Predicated region
        $region33: #{_lambda_.15} parent=31 // pred_check
          %p225 = pneg %p46
        $region34: #{_lambda_.15} parent=31 // pred_check_branch
          %227 = sbr.rel (%p225) target = $region36
        $region35: #{_lambda_.15} parent=31 // pred_region
          %s228 = sand.u32 %s36, 1
          %s229 = sand.u32 %s36, 1
          %s230 = smul.addr %s229, 8
          %s231 = scalar_lea.vmem [#allocation2], %s230
          %s232 = smul.addr %s19, 4
          %s233 = sadd.s32 %s20, %s232
          %s234 = smul.addr %s233, 4
          %s235 = scalar_lea.vmem %s0, %s234
          // Predicated region
          $region37: #{_lambda_.15} parent=35 // pred_check
            _
          $region38: #{_lambda_.15} parent=35 // pred_check_branch
            %237 = sbr.rel (0) target = $region40
          $region39: #{_lambda_.15} parent=35 // pred_region
            // Predicated region
            $region41: #{_lambda_.15} parent=39 // pred_check
              _
            $region42: #{_lambda_.15} parent=39 // pred_check_branch
              %239 = sbr.rel target = $region44
            $region43: #{_lambda_.15} parent=39 // pred_region
              // Predicated region
              $region56: #{_lambda_.15} parent=43 // pred_check
                _
              $region57: #{_lambda_.15} parent=43 // pred_check_branch
                %257 = sbr.rel (0) target = $region59
              $region58: #{_lambda_.15} parent=43 // pred_region
                loop: start=0, step=1, limit=1
                $region60: #{_lambda_.15} parent=58 // loop_pre_header
                  _
                $region61: #{_lambda_.15} parent=58 // loop_header
                  %s259 = sphi 0, %s263
                  %p260 = scmp.ge.s32.totalorder %s259, 1
                  %s264 = sphi %s235, %s235
                  %s265 = sphi %s231, %s231
                $region62: #{_lambda_.15} parent=58 // loop_header_branch
                  %262 = sbr.rel (%p260) target = $region66
                $region63: #{_lambda_.15} parent=58 // loop_body
                  _
                $region64: #{_lambda_.15} parent=58 // loop_footer
                  %s263 = sadd.s32 1, %s259
                $region65: #{_lambda_.15} parent=58 // loop_footer_branch
                  %258 = sbr.rel target = $region61
                $region66: #{_lambda_.15} parent=58 // loop_exit
                  _
                %s267 = ssub.s32 16, 1
                loop: start=0, step=1, limit=1
                $region67: #{_lambda_.15} parent=58 // loop_pre_header
                  _
                $region68: #{_lambda_.15} parent=58 // loop_header
                  %s269 = sphi 0, %s273
                  %p270 = scmp.ge.s32.totalorder %s269, 1
                  %s274 = sphi %s235, %s235
                  %s275 = sphi %s231, %s231
                $region69: #{_lambda_.15} parent=58 // loop_header_branch
                  %272 = sbr.rel (%p270) target = $region73
                $region70: #{_lambda_.15} parent=58 // loop_body
                  %v276 = vld [vmem:[%s274] sm:%s267]
                  %277 = vst [vmem:[%s275] sm:%s267] %v276
                  %v278 = vld [vmem:[%s274 + $0x8] sm:%s267]
                  %279 = vst [vmem:[%s275 + $0x4] sm:%s267] %v278
                $region71: #{_lambda_.15} parent=58 // loop_footer
                  %s273 = sadd.s32 1, %s269
                $region72: #{_lambda_.15} parent=58 // loop_footer_branch
                  %268 = sbr.rel target = $region68
                $region73: #{_lambda_.15} parent=58 // loop_exit
                  _
              $region59: #{_lambda_.15} parent=43 // pred_fallthru
                _
            $region44: #{_lambda_.15} parent=39 // pred_fallthru
              _
            // Predicated region
            $region45: #{_lambda_.15} parent=39 // pred_check
              _
            $region46: #{_lambda_.15} parent=39 // pred_check_branch
              %241 = sbr.rel (0) target = $region48
            $region47: #{_lambda_.15} parent=39 // pred_region
              %s243 = ssub.s32 16, 1
              loop: start=0, step=1, limit=1
              $region49: #{_lambda_.15} parent=47 // loop_pre_header
                _
              $region50: #{_lambda_.15} parent=47 // loop_header
                %s245 = sphi 0, %s249
                %p246 = scmp.ge.s32.totalorder %s245, 1
                %s250 = sphi %s235, %s235
                %s251 = sphi %s231, %s231
              $region51: #{_lambda_.15} parent=47 // loop_header_branch
                %248 = sbr.rel (%p246) target = $region55
              $region52: #{_lambda_.15} parent=47 // loop_body
                %v252 = vld [vmem:[%s250] sm:%s243]
                %253 = vst [vmem:[%s251] sm:%s243] %v252
                %v254 = vld [vmem:[%s250 + $0x8] sm:%s243]
                %255 = vst [vmem:[%s251 + $0x4] sm:%s243] %v254
              $region53: #{_lambda_.15} parent=47 // loop_footer
                %s249 = sadd.s32 1, %s245
              $region54: #{_lambda_.15} parent=47 // loop_footer_branch
                %244 = sbr.rel target = $region50
              $region55: #{_lambda_.15} parent=47 // loop_exit
                _
            $region48: #{_lambda_.15} parent=39 // pred_fallthru
              _
          $region40: #{_lambda_.15} parent=35 // pred_fallthru
            _
          %280 = vnop
        $region36: #{_lambda_.15} parent=31 // pred_fallthru
          _
        // Predicated region
        $region74: #{_lambda_.15} parent=31 // pred_check
          %p281 = pneg %p76
        $region75: #{_lambda_.15} parent=31 // pred_check_branch
          %283 = sbr.rel (%p281) target = $region77
        $region76: #{_lambda_.15} parent=31 // pred_region
          %s284 = sand.u32 %s66, 1
          %s285 = sand.u32 %s66, 1
          %s286 = smul.addr %s285, 8
          %s287 = scalar_lea.vmem [#allocation3], %s286
          %s288 = sadd.s32 %s20, 1
          %s289 = smul.addr %s19, 4
          %s290 = sadd.s32 %s288, %s289
          %s291 = smul.addr %s290, 4
          %s292 = scalar_lea.vmem %s1, %s291
          // Predicated region
          $region78: #{_lambda_.15} parent=76 // pred_check
            _
          $region79: #{_lambda_.15} parent=76 // pred_check_branch
            %294 = sbr.rel (0) target = $region81
          $region80: #{_lambda_.15} parent=76 // pred_region
            // Predicated region
            $region82: #{_lambda_.15} parent=80 // pred_check
              _
            $region83: #{_lambda_.15} parent=80 // pred_check_branch
              %296 = sbr.rel target = $region85
            $region84: #{_lambda_.15} parent=80 // pred_region
              // Predicated region
              $region97: #{_lambda_.15} parent=84 // pred_check
                _
              $region98: #{_lambda_.15} parent=84 // pred_check_branch
                %314 = sbr.rel (0) target = $region100
              $region99: #{_lambda_.15} parent=84 // pred_region
                loop: start=0, step=1, limit=1
                $region101: #{_lambda_.15} parent=99 // loop_pre_header
                  _
                $region102: #{_lambda_.15} parent=99 // loop_header
                  %s316 = sphi 0, %s320
                  %p317 = scmp.ge.s32.totalorder %s316, 1
                  %s321 = sphi %s292, %s292
                  %s322 = sphi %s287, %s287
                $region103: #{_lambda_.15} parent=99 // loop_header_branch
                  %319 = sbr.rel (%p317) target = $region107
                $region104: #{_lambda_.15} parent=99 // loop_body
                  _
                $region105: #{_lambda_.15} parent=99 // loop_footer
                  %s320 = sadd.s32 1, %s316
                $region106: #{_lambda_.15} parent=99 // loop_footer_branch
                  %315 = sbr.rel target = $region102
                $region107: #{_lambda_.15} parent=99 // loop_exit
                  _
                %s324 = ssub.s32 16, 1
                loop: start=0, step=1, limit=1
                $region108: #{_lambda_.15} parent=99 // loop_pre_header
                  _
                $region109: #{_lambda_.15} parent=99 // loop_header
                  %s326 = sphi 0, %s330
                  %p327 = scmp.ge.s32.totalorder %s326, 1
                  %s331 = sphi %s292, %s292
                  %s332 = sphi %s287, %s287
                $region110: #{_lambda_.15} parent=99 // loop_header_branch
                  %329 = sbr.rel (%p327) target = $region114
                $region111: #{_lambda_.15} parent=99 // loop_body
                  %v333 = vld [vmem:[%s331] sm:%s324]
                  %334 = vst [vmem:[%s332] sm:%s324] %v333
                  %v335 = vld [vmem:[%s331 + $0x8] sm:%s324]
                  %336 = vst [vmem:[%s332 + $0x4] sm:%s324] %v335
                $region112: #{_lambda_.15} parent=99 // loop_footer
                  %s330 = sadd.s32 1, %s326
                $region113: #{_lambda_.15} parent=99 // loop_footer_branch
                  %325 = sbr.rel target = $region109
                $region114: #{_lambda_.15} parent=99 // loop_exit
                  _
              $region100: #{_lambda_.15} parent=84 // pred_fallthru
                _
            $region85: #{_lambda_.15} parent=80 // pred_fallthru
              _
            // Predicated region
            $region86: #{_lambda_.15} parent=80 // pred_check
              _
            $region87: #{_lambda_.15} parent=80 // pred_check_branch
              %298 = sbr.rel (0) target = $region89
            $region88: #{_lambda_.15} parent=80 // pred_region
              %s300 = ssub.s32 16, 1
              loop: start=0, step=1, limit=1
              $region90: #{_lambda_.15} parent=88 // loop_pre_header
                _
              $region91: #{_lambda_.15} parent=88 // loop_header
                %s302 = sphi 0, %s306
                %p303 = scmp.ge.s32.totalorder %s302, 1
                %s307 = sphi %s292, %s292
                %s308 = sphi %s287, %s287
              $region92: #{_lambda_.15} parent=88 // loop_header_branch
                %305 = sbr.rel (%p303) target = $region96
              $region93: #{_lambda_.15} parent=88 // loop_body
                %v309 = vld [vmem:[%s307] sm:%s300]
                %310 = vst [vmem:[%s308] sm:%s300] %v309
                %v311 = vld [vmem:[%s307 + $0x8] sm:%s300]
                %312 = vst [vmem:[%s308 + $0x4] sm:%s300] %v311
              $region94: #{_lambda_.15} parent=88 // loop_footer
                %s306 = sadd.s32 1, %s302
              $region95: #{_lambda_.15} parent=88 // loop_footer_branch
                %301 = sbr.rel target = $region91
              $region96: #{_lambda_.15} parent=88 // loop_exit
                _
            $region89: #{_lambda_.15} parent=80 // pred_fallthru
              _
          $region81: #{_lambda_.15} parent=76 // pred_fallthru
            _
          %337 = vnop
        $region77: #{_lambda_.15} parent=31 // pred_fallthru
          _
      $region32: #{_lambda_.15} parent=5 // pred_fallthru
        _
      %p338 = scmp.le.s32.totalorder 1, %s12
      %p339 = scmp.lt.s32.totalorder %s12, 3
      %p340 = pnand %p338, %p339
      %p341 = pneg %p340
      // Predicated region
      $region115: #{_lambda_.15} parent=5 // pred_check
        _
      $region116: #{_lambda_.15} parent=5 // pred_check_branch
        %343 = sbr.rel (%p340) target = $region118
      $region117: #{_lambda_.15} parent=5 // pred_region
        %s344 = ssub.s32 %s12, 1
        %s345 = sand.u32 %s39, 1
        %s346 = sand.u32 %s39, 1
        %s347 = smul.addr %s346, 8
        %s348 = scalar_lea.vmem [#allocation2], %s347
        // Predicated region
        $region119: #{_lambda_.15} parent=117 // pred_check
          %p349 = pneg %p52
        $region120: #{_lambda_.15} parent=117 // pred_check_branch
          %351 = sbr.rel (%p349) target = $region122
        $region121: #{_lambda_.15} parent=117 // pred_region
          _
        $region122: #{_lambda_.15} parent=117 // pred_fallthru
          _
        %s352 = sand.u32 %s69, 1
        %s353 = sand.u32 %s69, 1
        %s354 = smul.addr %s353, 8
        %s355 = scalar_lea.vmem [#allocation3], %s354
        // Predicated region
        $region123: #{_lambda_.15} parent=117 // pred_check
          %p356 = pneg %p82
        $region124: #{_lambda_.15} parent=117 // pred_check_branch
          %358 = sbr.rel (%p356) target = $region126
        $region125: #{_lambda_.15} parent=117 // pred_region
          _
        $region126: #{_lambda_.15} parent=117 // pred_fallthru
          _
        %s359 = sand.u32 %s39, 1
        %s360 = sand.u32 %s39, 1
        %s361 = smul.addr %s360, 8
        %s362 = scalar_lea.vmem [#allocation2], %s361
        %p363 = pneg %p52
        %p364 = pneg %p49
        %s365 = sand.u32 %s69, 1
        %s366 = sand.u32 %s69, 1
        %s367 = smul.addr %s366, 8
        %s368 = scalar_lea.vmem [#allocation3], %s367
        %p369 = pneg %p82
        %p370 = pneg %p79
        %p371 = pneg %p103
        %p372 = pneg %p100
        %p373 = pneg %p124
        %p374 = pneg %p121
        %p375 = pneg %p145
        %p376 = pneg %p142
        %p377 = pneg %p166
        %p378 = pneg %p163
        %p379 = pneg %p194
        %p380 = pneg %p191
        %p381 = scmp.lt.s32.totalorder %s21, 1
        %s382 = scalar_select %p381, %s21, 1
        %p383 = scmp.lt.s32.totalorder %s22, 0
        %s384 = scalar_select %p383, %s22, 0
        %s385 = smul.addr %s382, 2
        %s386 = sadd.s32 %s384, %s385
        %s387 = smul.addr %s386, 4
        %s388 = scalar_lea.vmem %s6, %s387
        %s389 = sadd.s32 %s22, 1
        %p390 = scmp.lt.s32.totalorder %s21, 1
        %s391 = scalar_select %p390, %s21, 1
        %p392 = scmp.lt.s32.totalorder %s22, 0
        %s393 = scalar_select %p392, %s22, 0
        %s394 = smul.addr %s391, 2
        %s395 = sadd.s32 %s393, %s394
        %s396 = smul.addr %s395, 4
        %s397 = scalar_lea.vmem %s6, %s396
        %v399 = vld [vmem:[%s348] sm:$0xf]
        %v400 = vld [vmem:[%s348 + $0x4] sm:$0xf]
        %v401 = vld [vmem:[%s355] sm:$0xf]
        %v402 = vld [vmem:[%s355 + $0x4] sm:$0xf]
        %v405 = vunpack.c.l.b16 %v399
        %v406 = vunpack.c.l.b16 %v400
        %v407 = vpack.c.b16 %v406, %v405
        %v411 = vunpack.c.l.b16 %v401
        %v412 = vunpack.c.l.b16 %v402
        %v413 = vpack.c.b16 %v412, %v411
        %v415 = vunpack.c.l.bf16 %v407
        %v416 = vunpack.c.l.bf16 %v413
        %v417 = vunpack.c.h.bf16 %v407
        %v418 = vunpack.c.h.bf16 %v413
        %vm419 = vcmp.ge.f32.partialorder %v415, 0.0
        %vm420 = vcmp.ge.f32.partialorder %v416, 0.0
        %vm421 = vcmp.ge.f32.partialorder %v417, 0.0
        %vm422 = vcmp.ge.f32.partialorder %v418, 0.0
        %v423 = vmul.f32 %v415, 0.1
        %v424 = vmul.f32 %v416, 0.1
        %v425 = vmul.f32 %v417, 0.1
        %v426 = vmul.f32 %v418, 0.1
        %v427 = vsel %vm419, %v415, %v423
        %v428 = vsel %vm420, %v416, %v424
        %v429 = vsel %vm421, %v417, %v425
        %v430 = vsel %vm422, %v418, %v426
        %v431 = vpack.c.bf16 %v428, %v427
        %v432 = vpack.c.bf16 %v430, %v429
        %v435 = vunpack.c.l.b16 %v431
        %v436 = vunpack.c.h.b16 %v431
        %v437 = vunpack.c.l.b16 %v432
        %v438 = vunpack.c.h.b16 %v432
        %v439 = vpack.c.b16 %v437, %v435
        %v440 = vpack.c.b16 %v438, %v436
        %443 = vrot.lane.b32.xlu0 %v439, 125
        %v444 = vpop.permute.xlu0 %443
        %445 = vrot.lane.b32.xlu0 %v440, 125
        %v446 = vpop.permute.xlu0 %445
        %vm447 = vcmask 1022976
        %v448 = vsel %vm447, %v444, %v446
        %451 = vrot.lane.b32.xlu0 %v439, 122
        %v452 = vpop.permute.xlu0 %451
        %453 = vrot.lane.b32.xlu0 %v440, 122
        %v454 = vpop.permute.xlu0 %453
        %vm455 = vcmask 998400
        %v456 = vsel %vm455, %v452, %v454
        %v459 = vld [vmem:[%s2] sm:$0xf]
        %v460 = vld [vmem:[%s2 + $0x4] sm:$0xf]
        %v461 = vld [vmem:[%s3] sm:$0xff]
        %v462 = vld [vmem:[%s3 + $0x8] sm:$0xff]
        %464 = vset.pattern.permute.xlu0 0
        %465 = vperm.xlu0 %464, %v461
        %v466 = vpop.permute.xlu0 %465
        %469 = vset.pattern.permute.xlu0 0
        %470 = vperm.xlu0 %469, %v462
        %v471 = vpop.permute.xlu0 %470
        %v475 = vunpack.c.l.b16 %v459
        %v476 = vunpack.c.l.b16 %v460
        %v477 = vpack.c.b16 %v476, %v475
        %vm478 = vcmask 392192
        %v480 = vsel %vm478, %v477, 0
        %482 = vmatpush.bf16.msra.mxu0 0
        %483 = vmatpush.bf16.msra.mxu0 0
        %484 = vmatpush.bf16.msra.mxu0 0
        %485 = vmatpush.bf16.msra.mxu0 0
        %486 = vmatpush.bf16.msra.mxu0 0
        %487 = vmatpush.bf16.msra.mxu0 %v456
        %488 = vmatpush.bf16.msra.mxu0 %v448
        %489 = vmatpush.bf16.msra.mxu0 %v439
        %490 = vmatmul.bf16.gmra.mxu0 %v480
        %v491 = vpop.f32.mrf.mxu0
        %v492 = vadd.f32 %v466, %v491
        %v493 = vpop.f32.mrf.mxu0
        %v494 = vadd.f32 %v471, %v493
        %495 = vdwg.mxu0
        %496 = vmatpush.bf16.msra.mxu0 0
        %497 = vmatpush.bf16.msra.mxu0 0
        %498 = vmatpush.bf16.msra.mxu0 0
        %499 = vmatpush.bf16.msra.mxu0 0
        %500 = vmatpush.bf16.msra.mxu0 0
        %501 = vmatpush.bf16.msra.mxu0 %v454
        %502 = vmatpush.bf16.msra.mxu0 %v446
        %503 = vmatpush.bf16.msra.mxu0 %v440
        %504 = vmatmul.bf16.gmra.mxu0 %v480
        %v505 = vpop.f32.mrf.mxu0
        %v506 = vadd.f32 %v466, %v505
        %v507 = vpop.f32.mrf.mxu0
        %v508 = vadd.f32 %v471, %v507
        %509 = vdwg.mxu0
        %vm510 = vcmp.ge.f32.partialorder %v492, 0.0
        %vm511 = vcmp.ge.f32.partialorder %v506, 0.0
        %vm512 = vcmp.ge.f32.partialorder %v494, 0.0
        %vm513 = vcmp.ge.f32.partialorder %v508, 0.0
        %v514 = vmul.f32 %v492, 0.1
        %v515 = vmul.f32 %v506, 0.1
        %v516 = vmul.f32 %v494, 0.1
        %v517 = vmul.f32 %v508, 0.1
        %v518 = vsel %vm510, %v492, %v514
        %v519 = vsel %vm511, %v506, %v515
        %v520 = vsel %vm512, %v494, %v516
        %v521 = vsel %vm513, %v508, %v517
        %s522 = smul.u32 %s22, 128
        %s523 = ssub.s32 %s522, 1
        %v524 = vlaneseq
        %v525 = vand.u32 %v524, 127
        %v526 = vadd.s32 %v525, 128
        %v527 = vstv %s523
        %v528 = vadd.s32 %v527, %v525
        %v529 = vadd.s32 %v527, %v526
        %vm530 = vcmp.ge.s32.totalorder %v528, 0
        %vm531 = vcmp.ge.s32.totalorder %v529, 0
        %vm532 = vcmp.lt.s32.totalorder %v528, 16
        %vm533 = vcmp.lt.s32.totalorder %v529, 16
        %vm534 = vmand %vm530, %vm532
        %vm535 = vmand %vm531, %vm533
        %v536 = vsel %vm534, 1, 0
        %v537 = vsel %vm535, 1, 0
        %vm538 = vcmp.eq.s32.totalorder %v536, 1
        %vm539 = vcmp.eq.s32.totalorder %v537, 1
        %v540 = vsel %vm538, %v518, 0.0
        %v541 = vsel %vm539, %v519, 0.0
        %v542 = vsel %vm538, %v520, 0.0
        %v543 = vsel %vm539, %v521, 0.0
        %v544 = vpack.c.bf16 %v541, %v540
        %v545 = vpack.c.bf16 %v543, %v542
        %v548 = vunpack.c.l.b16 %v544
        %v549 = vunpack.c.l.b16 %v545
        %v550 = vpack.c.b16 %v549, %v548
        %v552 = vunpack.c.h.b16 %v544
        %v553 = vunpack.c.h.b16 %v545
        %v554 = vpack.c.b16 %v553, %v552
        %555 = vrot.lane.b32.xlu0 %v550, 127
        %v556 = vpop.permute.xlu0 %555
        %557 = vrot.lane.b32.xlu0 %v554, 127
        %v558 = vpop.permute.xlu0 %557
        %vm559 = vcmask 1039360
        %v560 = vsel %vm559, %v556, %v558
        %562 = vrot.lane.b32.xlu0 %v550, 126
        %v563 = vpop.permute.xlu0 %562
        %564 = vrot.lane.b32.xlu0 %v554, 126
        %v565 = vpop.permute.xlu0 %564
        %vm566 = vcmask 1031168
        %v567 = vsel %vm566, %v563, %v565
        %v569 = vld [vmem:[%s4] sm:$0xf]
        %v570 = vld [vmem:[%s4 + $0x4] sm:$0xf]
        %v571 = vld [vmem:[%s5] sm:$0xff]
        %v572 = vld [vmem:[%s5 + $0x8] sm:$0xff]
        %574 = vset.pattern.permute.xlu0 0
        %575 = vperm.xlu0 %574, %v571
        %v576 = vpop.permute.xlu0 %575
        %579 = vset.pattern.permute.xlu0 0
        %580 = vperm.xlu0 %579, %v572
        %v581 = vpop.permute.xlu0 %580
        %v585 = vunpack.c.l.b16 %v569
        %v586 = vunpack.c.l.b16 %v570
        %v587 = vpack.c.b16 %v586, %v585
        %v589 = vsel %vm478, %v587, 0
        %591 = vmatpush.bf16.msra.mxu0 0
        %592 = vmatpush.bf16.msra.mxu0 0
        %593 = vmatpush.bf16.msra.mxu0 0
        %594 = vmatpush.bf16.msra.mxu0 0
        %595 = vmatpush.bf16.msra.mxu0 0
        %596 = vmatpush.bf16.msra.mxu0 %v567
        %597 = vmatpush.bf16.msra.mxu0 %v560
        %598 = vmatpush.bf16.msra.mxu0 %v550
        %599 = vmatmul.bf16.gmra.mxu0 %v589
        %v600 = vpop.f32.mrf.mxu0
        %v601 = vadd.f32 %v576, %v600
        %v602 = vpop.f32.mrf.mxu0
        %v603 = vadd.f32 %v581, %v602
        %604 = vdwg.mxu0
        %609 = vrot.lane.b32.xlu0 %v415, 124
        %v610 = vpop.permute.xlu0 %609
        %611 = vrot.lane.b32.xlu0 %v416, 124
        %v612 = vpop.permute.xlu0 %611
        %613 = vrot.lane.b32.xlu0 %v417, 124
        %v614 = vpop.permute.xlu0 %613
        %615 = vrot.lane.b32.xlu0 %v418, 124
        %v616 = vpop.permute.xlu0 %615
        %vm617 = vcmask 1014784
        %v618 = vsel %vm617, %v610, %v612
        %v619 = vsel %vm617, %v614, %v616
        %v622 = vadd.f32 %v601, %v618
        %v623 = vadd.f32 %v603, %v619
        %v624 = vpack.c.bf16 %v622, %v622
        %v625 = vpack.c.bf16 %v623, %v623
        %626 = vst [vmem:[%s397] sm:$0xf] %v624
        %627 = vst [vmem:[%s397 + $0x4] sm:$0xf] %v625
        %p628 = scmp.lt.s32.totalorder %s21, 1
        %s629 = scalar_select %p628, %s21, 1
        %p630 = scmp.lt.s32.totalorder %s22, 0
        %s631 = scalar_select %p630, %s22, 0
        %s632 = smul.addr %s629, 2
        %s633 = sadd.s32 %s631, %s632
        %s634 = smul.addr %s633, 4
        %s635 = scalar_lea.vmem %s6, %s634
        // Predicated region
        $region127: #{_lambda_.15} parent=117 // pred_check
          %p636 = pneg %p191
        $region128: #{_lambda_.15} parent=117 // pred_check_branch
          %638 = sbr.rel (%p636) target = $region130
        $region129: #{_lambda_.15} parent=117 // pred_region
          _
        $region130: #{_lambda_.15} parent=117 // pred_fallthru
          _
      $region118: #{_lambda_.15} parent=5 // pred_fallthru
        _
      %p639 = scmp.le.s32.totalorder 2, %s12
      // Predicated region
      $region131: #{_lambda_.15} parent=5 // pred_check
        %p640 = pneg %p639
      $region132: #{_lambda_.15} parent=5 // pred_check_branch
        %642 = sbr.rel (%p640) target = $region134
      $region133: #{_lambda_.15} parent=5 // pred_region
        %s643 = ssub.s32 %s12, 2
        // Predicated region
        $region135: #{_lambda_.15} parent=133 // pred_check
          %p644 = pneg %p197
        $region136: #{_lambda_.15} parent=133 // pred_check_branch
          %646 = sbr.rel (%p644) target = $region138
        $region137: #{_lambda_.15} parent=133 // pred_region
          %p647 = scmp.lt.s32.totalorder %s23, 1
          %s648 = scalar_select %p647, %s23, 1
          %p649 = scmp.lt.s32.totalorder %s24, 0
          %s650 = scalar_select %p649, %s24, 0
          %s651 = smul.addr %s648, 2
          %s652 = sadd.s32 %s650, %s651
          %s653 = smul.addr %s652, 4
          %s654 = scalar_lea.vmem %s6, %s653
        $region138: #{_lambda_.15} parent=133 // pred_fallthru
          _
      $region134: #{_lambda_.15} parent=5 // pred_fallthru
        _
    $region6: #{_lambda_.15} parent=1 // loop_footer
      %s16 = sadd.s32 1, %s12
    $region7: #{_lambda_.15} parent=1 // loop_footer_branch
      %11 = sbr.rel target = $region3
    $region8: #{_lambda_.15} parent=1 // loop_exit
      _

// kernel: _lambda_.16
$region0: #{_lambda_.16}
  #allocation0 [shape = 'u32[]', space=smem, size = 0x4, offset = 0x4, fixed_abs, tag = 'smem constant byte address 0x4 - core index']
  #allocation1 [shape = 'u32[72,128]{1,0:T(1,128)}', space=vmem, size = 0x9000, scoped, tag = 'internal scratch']
  %s0 = inlined_call_operand.vmem [shape: bf16[2,16,256], index: 0, kind: input, shape index: {}, may-alias: {0,1}]
  %s1 = inlined_call_operand.vmem [shape: bf16[2,16,256], index: 1, kind: input, shape index: {}, may-alias: {0,1}]
  %s2 = inlined_call_operand.vmem [shape: bf16[16,80], index: 2, kind: input, shape index: {}]
  %s3 = inlined_call_operand.vmem [shape: f32[16,1], index: 3, kind: input, shape index: {}]
  %s4 = inlined_call_operand.vmem [shape: bf16[16,80], index: 4, kind: input, shape index: {}]
  %s5 = inlined_call_operand.vmem [shape: f32[16,1], index: 5, kind: input, shape index: {}]
  %s6 = inlined_call_operand.vmem [shape: bf16[2,16,128], index: 6, kind: output, shape index: {}]
  %s7 = sld [smem:[#allocation0]]
  $region139: #{_lambda_.16} parent=0
    _
  %s9 = ssub.s32 1, %s7
  %s10 = scalar_select 0, %s9, %s7
  $region1: #{_lambda_.16} parent=0
    #allocation2 [shape = 'u8[8192]{0}', space=vmem, size = 0x2000, scoped, tag = 'input window, operand 0']
    #allocation3 [shape = 'u8[8192]{0}', space=vmem, size = 0x2000, scoped, tag = 'input window, operand 1']
    loop: start=0, step=1, limit=4
    $region2: #{_lambda_.16} parent=1 // loop_pre_header
      _
    $region3: #{_lambda_.16} parent=1 // loop_header
      %s12 = sphi 0, %s16
      %p13 = scmp.ge.s32.totalorder %s12, 4
      %s19 = sphi 0, %s31
      %s20 = sphi 0, %s27
      %s21 = sphi 0, %s19
      %s22 = sphi 0, %s20
      %s23 = sphi 0, %s21
      %s24 = sphi 0, %s22
      %s36 = sphi 0, %s38
      %s39 = sphi 0, %s36
      %s40 = sphi 0, %s39
      %s56 = sphi 0, %s40
      %s66 = sphi 0, %s68
      %s69 = sphi 0, %s66
      %s70 = sphi 0, %s69
      %s86 = sphi 0, %s70
      %s90 = sphi 0, %s90
      %s92 = sphi 0, %s90
      %s93 = sphi 0, %s92
      %s107 = sphi 0, %s93
      %s111 = sphi 0, %s111
      %s113 = sphi 0, %s111
      %s114 = sphi 0, %s113
      %s128 = sphi 0, %s114
      %s132 = sphi 0, %s132
      %s134 = sphi 0, %s132
      %s135 = sphi 0, %s134
      %s149 = sphi 0, %s135
      %s153 = sphi 0, %s153
      %s155 = sphi 0, %s153
      %s156 = sphi 0, %s155
      %s170 = sphi 0, %s156
      %s178 = sphi 0, %s180
      %s181 = sphi 0, %s178
      %s182 = sphi 0, %s181
      %s198 = sphi 0, %s182
    $region4: #{_lambda_.16} parent=1 // loop_header_branch
      %15 = sbr.rel (%p13) target = $region8
    $region5: #{_lambda_.16} parent=1 // loop_body
      %s17 = ssub.s32 %s12, 1
      %s18 = ssub.s32 %s12, 2
      %s25 = sadd.s32 1, %s20
      %p26 = scmp.ge.s32.totalorder %s25, 1
      %s27 = scalar_select %p26, 0, %s25
      %s28 = sadd.s32 1, %s19
      %s29 = scalar_select %p26, %s28, %s19
      %p30 = scmp.ge.s32.totalorder %s29, 2
      %s31 = scalar_select %p30, 0, %s29
      %s32 = ssub.s32 %s19, %s31
      %s33 = ssub.s32 %s20, %s27
      %s34 = sor.u32 %s32, %s33
      %p35 = scmp.eq.s32.totalorder %s34, 0
      %s37 = sadd.s32 %s36, 1
      %s38 = scalar_select %p35, %s36, %s37
      %p41 = pneg %p35
      %p42 = scmp.eq.s32.totalorder %s12, 1
      %p43 = por %p41, %p42
      %p44 = scmp.ne.s32.totalorder %s36, %s39
      %p45 = scmp.eq.s32.totalorder %s12, 0
      %p46 = por %p44, %p45
      %p47 = scmp.ne.s32.totalorder %s36, %s39
      %p48 = scmp.eq.s32.totalorder %s17, 1
      %p49 = por %p47, %p48
      %p50 = scmp.ne.s32.totalorder %s39, %s40
      %p51 = scmp.eq.s32.totalorder %s17, 0
      %p52 = por %p50, %p51
      %p53 = scmp.ne.s32.totalorder %s39, %s40
      %p54 = scmp.eq.s32.totalorder %s18, 1
      %p55 = por %p53, %p54
      %p57 = scmp.ne.s32.totalorder %s40, %s56
      %p58 = scmp.eq.s32.totalorder %s18, 0
      %p59 = por %p57, %p58
      %s60 = sadd.s32 %s20, 1
      %s61 = sadd.s32 %s27, 1
      %s62 = ssub.s32 %s19, %s31
      %s63 = ssub.s32 %s60, %s61
      %s64 = sor.u32 %s62, %s63
      %p65 = scmp.eq.s32.totalorder %s64, 0
      %s67 = sadd.s32 %s66, 1
      %s68 = scalar_select %p65, %s66, %s67
      %p71 = pneg %p65
      %p72 = scmp.eq.s32.totalorder %s12, 1
      %p73 = por %p71, %p72
      %p74 = scmp.ne.s32.totalorder %s66, %s69
      %p75 = scmp.eq.s32.totalorder %s12, 0
      %p76 = por %p74, %p75
      %p77 = scmp.ne.s32.totalorder %s66, %s69
      %p78 = scmp.eq.s32.totalorder %s17, 1
      %p79 = por %p77, %p78
      %p80 = scmp.ne.s32.totalorder %s69, %s70
      %p81 = scmp.eq.s32.totalorder %s17, 0
      %p82 = por %p80, %p81
      %p83 = scmp.ne.s32.totalorder %s69, %s70
      %p84 = scmp.eq.s32.totalorder %s18, 1
      %p85 = por %p83, %p84
      %p87 = scmp.ne.s32.totalorder %s70, %s86
      %p88 = scmp.eq.s32.totalorder %s18, 0
      %p89 = por %p87, %p88
      %s91 = sadd.s32 %s90, 1
      %p94 = scmp.eq.s32.totalorder %s12, 1
      %p95 = scmp.ne.s32.totalorder %s90, %s92
      %p96 = scmp.eq.s32.totalorder %s12, 0
      %p97 = por %p95, %p96
      %p98 = scmp.ne.s32.totalorder %s90, %s92
      %p99 = scmp.eq.s32.totalorder %s17, 1
      %p100 = por %p98, %p99
      %p101 = scmp.ne.s32.totalorder %s92, %s93
      %p102 = scmp.eq.s32.totalorder %s17, 0
      %p103 = por %p101, %p102
      %p104 = scmp.ne.s32.totalorder %s92, %s93
      %p105 = scmp.eq.s32.totalorder %s18, 1
      %p106 = por %p104, %p105
      %p108 = scmp.ne.s32.totalorder %s93, %s107
      %p109 = scmp.eq.s32.totalorder %s18, 0
      %p110 = por %p108, %p109
      %s112 = sadd.s32 %s111, 1
      %p115 = scmp.eq.s32.totalorder %s12, 1
      %p116 = scmp.ne.s32.totalorder %s111, %s113
      %p117 = scmp.eq.s32.totalorder %s12, 0
      %p118 = por %p116, %p117
      %p119 = scmp.ne.s32.totalorder %s111, %s113
      %p120 = scmp.eq.s32.totalorder %s17, 1
      %p121 = por %p119, %p120
      %p122 = scmp.ne.s32.totalorder %s113, %s114
      %p123 = scmp.eq.s32.totalorder %s17, 0
      %p124 = por %p122, %p123
      %p125 = scmp.ne.s32.totalorder %s113, %s114
      %p126 = scmp.eq.s32.totalorder %s18, 1
      %p127 = por %p125, %p126
      %p129 = scmp.ne.s32.totalorder %s114, %s128
      %p130 = scmp.eq.s32.totalorder %s18, 0
      %p131 = por %p129, %p130
      %s133 = sadd.s32 %s132, 1
      %p136 = scmp.eq.s32.totalorder %s12, 1
      %p137 = scmp.ne.s32.totalorder %s132, %s134
      %p138 = scmp.eq.s32.totalorder %s12, 0
      %p139 = por %p137, %p138
      %p140 = scmp.ne.s32.totalorder %s132, %s134
      %p141 = scmp.eq.s32.totalorder %s17, 1
      %p142 = por %p140, %p141
      %p143 = scmp.ne.s32.totalorder %s134, %s135
      %p144 = scmp.eq.s32.totalorder %s17, 0
      %p145 = por %p143, %p144
      %p146 = scmp.ne.s32.totalorder %s134, %s135
      %p147 = scmp.eq.s32.totalorder %s18, 1
      %p148 = por %p146, %p147
      %p150 = scmp.ne.s32.totalorder %s135, %s149
      %p151 = scmp.eq.s32.totalorder %s18, 0
      %p152 = por %p150, %p151
      %s154 = sadd.s32 %s153, 1
      %p157 = scmp.eq.s32.totalorder %s12, 1
      %p158 = scmp.ne.s32.totalorder %s153, %s155
      %p159 = scmp.eq.s32.totalorder %s12, 0
      %p160 = por %p158, %p159
      %p161 = scmp.ne.s32.totalorder %s153, %s155
      %p162 = scmp.eq.s32.totalorder %s17, 1
      %p163 = por %p161, %p162
      %p164 = scmp.ne.s32.totalorder %s155, %s156
      %p165 = scmp.eq.s32.totalorder %s17, 0
      %p166 = por %p164, %p165
      %p167 = scmp.ne.s32.totalorder %s155, %s156
      %p168 = scmp.eq.s32.totalorder %s18, 1
      %p169 = por %p167, %p168
      %p171 = scmp.ne.s32.totalorder %s156, %s170
      %p172 = scmp.eq.s32.totalorder %s18, 0
      %p173 = por %p171, %p172
      %s174 = ssub.s32 %s19, %s31
      %s175 = ssub.s32 %s20, %s27
      %s176 = sor.u32 %s174, %s175
      %p177 = scmp.eq.s32.totalorder %s176, 0
      %s179 = sadd.s32 %s178, 1
      %s180 = scalar_select %p177, %s178, %s179
      %p183 = pneg %p177
      %p184 = scmp.eq.s32.totalorder %s12, 1
      %p185 = por %p183, %p184
      %p186 = scmp.ne.s32.totalorder %s178, %s181
      %p187 = scmp.eq.s32.totalorder %s12, 0
      %p188 = por %p186, %p187
      %p189 = scmp.ne.s32.totalorder %s178, %s181
      %p190 = scmp.eq.s32.totalorder %s17, 1
      %p191 = por %p189, %p190
      %p192 = scmp.ne.s32.totalorder %s181, %s182
      %p193 = scmp.eq.s32.totalorder %s17, 0
      %p194 = por %p192, %p193
      %p195 = scmp.ne.s32.totalorder %s181, %s182
      %p196 = scmp.eq.s32.totalorder %s18, 1
      %p197 = por %p195, %p196
      %p199 = scmp.ne.s32.totalorder %s182, %s198
      %p200 = scmp.eq.s32.totalorder %s18, 0
      %p201 = por %p199, %p200
      %p202 = scmp.le.s32.totalorder 1, %s12
      %p203 = scmp.lt.s32.totalorder %s12, 3
      %p204 = pnand %p202, %p203
      %p205 = pneg %p204
      // Predicated region
      $region9: #{_lambda_.16} parent=5 // pred_check
        _
      $region10: #{_lambda_.16} parent=5 // pred_check_branch
        %207 = sbr.rel (%p204) target = $region12
      $region11: #{_lambda_.16} parent=5 // pred_region
        %s208 = ssub.s32 %s12, 1
        // Predicated region
        $region13: #{_lambda_.16} parent=11 // pred_check
          %p209 = pneg %p103
        $region14: #{_lambda_.16} parent=11 // pred_check_branch
          %211 = sbr.rel (%p209) target = $region16
        $region15: #{_lambda_.16} parent=11 // pred_region
          _
        $region16: #{_lambda_.16} parent=11 // pred_fallthru
          _
        // Predicated region
        $region17: #{_lambda_.16} parent=11 // pred_check
          %p212 = pneg %p124
        $region18: #{_lambda_.16} parent=11 // pred_check_branch
          %214 = sbr.rel (%p212) target = $region20
        $region19: #{_lambda_.16} parent=11 // pred_region
          _
        $region20: #{_lambda_.16} parent=11 // pred_fallthru
          _
        // Predicated region
        $region21: #{_lambda_.16} parent=11 // pred_check
          %p215 = pneg %p145
        $region22: #{_lambda_.16} parent=11 // pred_check_branch
          %217 = sbr.rel (%p215) target = $region24
        $region23: #{_lambda_.16} parent=11 // pred_region
          _
        $region24: #{_lambda_.16} parent=11 // pred_fallthru
          _
        // Predicated region
        $region25: #{_lambda_.16} parent=11 // pred_check
          %p218 = pneg %p166
        $region26: #{_lambda_.16} parent=11 // pred_check_branch
          %220 = sbr.rel (%p218) target = $region28
        $region27: #{_lambda_.16} parent=11 // pred_region
          _
        $region28: #{_lambda_.16} parent=11 // pred_fallthru
          _
      $region12: #{_lambda_.16} parent=5 // pred_fallthru
        _
      %p221 = scmp.lt.s32.totalorder %s12, 2
      // Predicated region
      $region29: #{_lambda_.16} parent=5 // pred_check
        %p222 = pneg %p221
      $region30: #{_lambda_.16} parent=5 // pred_check_branch
        %224 = sbr.rel (%p222) target = $region32
      $region31: #{_lambda_.16} parent=5 // pred_region
        // Predicated region
        $region33: #{_lambda_.16} parent=31 // pred_check
          %p225 = pneg %p46
        $region34: #{_lambda_.16} parent=31 // pred_check_branch
          %227 = sbr.rel (%p225) target = $region36
        $region35: #{_lambda_.16} parent=31 // pred_region
          %s228 = sand.u32 %s36, 1
          %s229 = sand.u32 %s36, 1
          %s230 = smul.addr %s229, 8
          %s231 = scalar_lea.vmem [#allocation2], %s230
          %s232 = smul.addr %s19, 4
          %s233 = sadd.s32 %s20, %s232
          %s234 = smul.addr %s233, 4
          %s235 = scalar_lea.vmem %s0, %s234
          // Predicated region
          $region37: #{_lambda_.16} parent=35 // pred_check
            _
          $region38: #{_lambda_.16} parent=35 // pred_check_branch
            %237 = sbr.rel (0) target = $region40
          $region39: #{_lambda_.16} parent=35 // pred_region
            // Predicated region
            $region41: #{_lambda_.16} parent=39 // pred_check
              _
            $region42: #{_lambda_.16} parent=39 // pred_check_branch
              %239 = sbr.rel target = $region44
            $region43: #{_lambda_.16} parent=39 // pred_region
              // Predicated region
              $region56: #{_lambda_.16} parent=43 // pred_check
                _
              $region57: #{_lambda_.16} parent=43 // pred_check_branch
                %257 = sbr.rel (0) target = $region59
              $region58: #{_lambda_.16} parent=43 // pred_region
                loop: start=0, step=1, limit=1
                $region60: #{_lambda_.16} parent=58 // loop_pre_header
                  _
                $region61: #{_lambda_.16} parent=58 // loop_header
                  %s259 = sphi 0, %s263
                  %p260 = scmp.ge.s32.totalorder %s259, 1
                  %s264 = sphi %s235, %s235
                  %s265 = sphi %s231, %s231
                $region62: #{_lambda_.16} parent=58 // loop_header_branch
                  %262 = sbr.rel (%p260) target = $region66
                $region63: #{_lambda_.16} parent=58 // loop_body
                  _
                $region64: #{_lambda_.16} parent=58 // loop_footer
                  %s263 = sadd.s32 1, %s259
                $region65: #{_lambda_.16} parent=58 // loop_footer_branch
                  %258 = sbr.rel target = $region61
                $region66: #{_lambda_.16} parent=58 // loop_exit
                  _
                %s267 = ssub.s32 16, 1
                loop: start=0, step=1, limit=1
                $region67: #{_lambda_.16} parent=58 // loop_pre_header
                  _
                $region68: #{_lambda_.16} parent=58 // loop_header
                  %s269 = sphi 0, %s273
                  %p270 = scmp.ge.s32.totalorder %s269, 1
                  %s274 = sphi %s235, %s235
                  %s275 = sphi %s231, %s231
                $region69: #{_lambda_.16} parent=58 // loop_header_branch
                  %272 = sbr.rel (%p270) target = $region73
                $region70: #{_lambda_.16} parent=58 // loop_body
                  %v276 = vld [vmem:[%s274] sm:%s267]
                  %277 = vst [vmem:[%s275] sm:%s267] %v276
                  %v278 = vld [vmem:[%s274 + $0x8] sm:%s267]
                  %279 = vst [vmem:[%s275 + $0x4] sm:%s267] %v278
                $region71: #{_lambda_.16} parent=58 // loop_footer
                  %s273 = sadd.s32 1, %s269
                $region72: #{_lambda_.16} parent=58 // loop_footer_branch
                  %268 = sbr.rel target = $region68
                $region73: #{_lambda_.16} parent=58 // loop_exit
                  _
              $region59: #{_lambda_.16} parent=43 // pred_fallthru
                _
            $region44: #{_lambda_.16} parent=39 // pred_fallthru
              _
            // Predicated region
            $region45: #{_lambda_.16} parent=39 // pred_check
              _
            $region46: #{_lambda_.16} parent=39 // pred_check_branch
              %241 = sbr.rel (0) target = $region48
            $region47: #{_lambda_.16} parent=39 // pred_region
              %s243 = ssub.s32 16, 1
              loop: start=0, step=1, limit=1
              $region49: #{_lambda_.16} parent=47 // loop_pre_header
                _
              $region50: #{_lambda_.16} parent=47 // loop_header
                %s245 = sphi 0, %s249
                %p246 = scmp.ge.s32.totalorder %s245, 1
                %s250 = sphi %s235, %s235
                %s251 = sphi %s231, %s231
              $region51: #{_lambda_.16} parent=47 // loop_header_branch
                %248 = sbr.rel (%p246) target = $region55
              $region52: #{_lambda_.16} parent=47 // loop_body
                %v252 = vld [vmem:[%s250] sm:%s243]
                %253 = vst [vmem:[%s251] sm:%s243] %v252
                %v254 = vld [vmem:[%s250 + $0x8] sm:%s243]
                %255 = vst [vmem:[%s251 + $0x4] sm:%s243] %v254
              $region53: #{_lambda_.16} parent=47 // loop_footer
                %s249 = sadd.s32 1, %s245
              $region54: #{_lambda_.16} parent=47 // loop_footer_branch
                %244 = sbr.rel target = $region50
              $region55: #{_lambda_.16} parent=47 // loop_exit
                _
            $region48: #{_lambda_.16} parent=39 // pred_fallthru
              _
          $region40: #{_lambda_.16} parent=35 // pred_fallthru
            _
          %280 = vnop
        $region36: #{_lambda_.16} parent=31 // pred_fallthru
          _
        // Predicated region
        $region74: #{_lambda_.16} parent=31 // pred_check
          %p281 = pneg %p76
        $region75: #{_lambda_.16} parent=31 // pred_check_branch
          %283 = sbr.rel (%p281) target = $region77
        $region76: #{_lambda_.16} parent=31 // pred_region
          %s284 = sand.u32 %s66, 1
          %s285 = sand.u32 %s66, 1
          %s286 = smul.addr %s285, 8
          %s287 = scalar_lea.vmem [#allocation3], %s286
          %s288 = sadd.s32 %s20, 1
          %s289 = smul.addr %s19, 4
          %s290 = sadd.s32 %s288, %s289
          %s291 = smul.addr %s290, 4
          %s292 = scalar_lea.vmem %s1, %s291
          // Predicated region
          $region78: #{_lambda_.16} parent=76 // pred_check
            _
          $region79: #{_lambda_.16} parent=76 // pred_check_branch
            %294 = sbr.rel (0) target = $region81
          $region80: #{_lambda_.16} parent=76 // pred_region
            // Predicated region
            $region82: #{_lambda_.16} parent=80 // pred_check
              _
            $region83: #{_lambda_.16} parent=80 // pred_check_branch
              %296 = sbr.rel target = $region85
            $region84: #{_lambda_.16} parent=80 // pred_region
              // Predicated region
              $region97: #{_lambda_.16} parent=84 // pred_check
                _
              $region98: #{_lambda_.16} parent=84 // pred_check_branch
                %314 = sbr.rel (0) target = $region100
              $region99: #{_lambda_.16} parent=84 // pred_region
                loop: start=0, step=1, limit=1
                $region101: #{_lambda_.16} parent=99 // loop_pre_header
                  _
                $region102: #{_lambda_.16} parent=99 // loop_header
                  %s316 = sphi 0, %s320
                  %p317 = scmp.ge.s32.totalorder %s316, 1
                  %s321 = sphi %s292, %s292
                  %s322 = sphi %s287, %s287
                $region103: #{_lambda_.16} parent=99 // loop_header_branch
                  %319 = sbr.rel (%p317) target = $region107
                $region104: #{_lambda_.16} parent=99 // loop_body
                  _
                $region105: #{_lambda_.16} parent=99 // loop_footer
                  %s320 = sadd.s32 1, %s316
                $region106: #{_lambda_.16} parent=99 // loop_footer_branch
                  %315 = sbr.rel target = $region102
                $region107: #{_lambda_.16} parent=99 // loop_exit
                  _
                %s324 = ssub.s32 16, 1
                loop: start=0, step=1, limit=1
                $region108: #{_lambda_.16} parent=99 // loop_pre_header
                  _
                $region109: #{_lambda_.16} parent=99 // loop_header
                  %s326 = sphi 0, %s330
                  %p327 = scmp.ge.s32.totalorder %s326, 1
                  %s331 = sphi %s292, %s292
                  %s332 = sphi %s287, %s287
                $region110: #{_lambda_.16} parent=99 // loop_header_branch
                  %329 = sbr.rel (%p327) target = $region114
                $region111: #{_lambda_.16} parent=99 // loop_body
                  %v333 = vld [vmem:[%s331] sm:%s324]
                  %334 = vst [vmem:[%s332] sm:%s324] %v333
                  %v335 = vld [vmem:[%s331 + $0x8] sm:%s324]
                  %336 = vst [vmem:[%s332 + $0x4] sm:%s324] %v335
                $region112: #{_lambda_.16} parent=99 // loop_footer
                  %s330 = sadd.s32 1, %s326
                $region113: #{_lambda_.16} parent=99 // loop_footer_branch
                  %325 = sbr.rel target = $region109
                $region114: #{_lambda_.16} parent=99 // loop_exit
                  _
              $region100: #{_lambda_.16} parent=84 // pred_fallthru
                _
            $region85: #{_lambda_.16} parent=80 // pred_fallthru
              _
            // Predicated region
            $region86: #{_lambda_.16} parent=80 // pred_check
              _
            $region87: #{_lambda_.16} parent=80 // pred_check_branch
              %298 = sbr.rel (0) target = $region89
            $region88: #{_lambda_.16} parent=80 // pred_region
              %s300 = ssub.s32 16, 1
              loop: start=0, step=1, limit=1
              $region90: #{_lambda_.16} parent=88 // loop_pre_header
                _
              $region91: #{_lambda_.16} parent=88 // loop_header
                %s302 = sphi 0, %s306
                %p303 = scmp.ge.s32.totalorder %s302, 1
                %s307 = sphi %s292, %s292
                %s308 = sphi %s287, %s287
              $region92: #{_lambda_.16} parent=88 // loop_header_branch
                %305 = sbr.rel (%p303) target = $region96
              $region93: #{_lambda_.16} parent=88 // loop_body
                %v309 = vld [vmem:[%s307] sm:%s300]
                %310 = vst [vmem:[%s308] sm:%s300] %v309
                %v311 = vld [vmem:[%s307 + $0x8] sm:%s300]
                %312 = vst [vmem:[%s308 + $0x4] sm:%s300] %v311
              $region94: #{_lambda_.16} parent=88 // loop_footer
                %s306 = sadd.s32 1, %s302
              $region95: #{_lambda_.16} parent=88 // loop_footer_branch
                %301 = sbr.rel target = $region91
              $region96: #{_lambda_.16} parent=88 // loop_exit
                _
            $region89: #{_lambda_.16} parent=80 // pred_fallthru
              _
          $region81: #{_lambda_.16} parent=76 // pred_fallthru
            _
          %337 = vnop
        $region77: #{_lambda_.16} parent=31 // pred_fallthru
          _
      $region32: #{_lambda_.16} parent=5 // pred_fallthru
        _
      %p338 = scmp.le.s32.totalorder 1, %s12
      %p339 = scmp.lt.s32.totalorder %s12, 3
      %p340 = pnand %p338, %p339
      %p341 = pneg %p340
      // Predicated region
      $region115: #{_lambda_.16} parent=5 // pred_check
        _
      $region116: #{_lambda_.16} parent=5 // pred_check_branch
        %343 = sbr.rel (%p340) target = $region118
      $region117: #{_lambda_.16} parent=5 // pred_region
        %s344 = ssub.s32 %s12, 1
        %s345 = sand.u32 %s39, 1
        %s346 = sand.u32 %s39, 1
        %s347 = smul.addr %s346, 8
        %s348 = scalar_lea.vmem [#allocation2], %s347
        // Predicated region
        $region119: #{_lambda_.16} parent=117 // pred_check
          %p349 = pneg %p52
        $region120: #{_lambda_.16} parent=117 // pred_check_branch
          %351 = sbr.rel (%p349) target = $region122
        $region121: #{_lambda_.16} parent=117 // pred_region
          _
        $region122: #{_lambda_.16} parent=117 // pred_fallthru
          _
        %s352 = sand.u32 %s69, 1
        %s353 = sand.u32 %s69, 1
        %s354 = smul.addr %s353, 8
        %s355 = scalar_lea.vmem [#allocation3], %s354
        // Predicated region
        $region123: #{_lambda_.16} parent=117 // pred_check
          %p356 = pneg %p82
        $region124: #{_lambda_.16} parent=117 // pred_check_branch
          %358 = sbr.rel (%p356) target = $region126
        $region125: #{_lambda_.16} parent=117 // pred_region
          _
        $region126: #{_lambda_.16} parent=117 // pred_fallthru
          _
        %s359 = sand.u32 %s39, 1
        %s360 = sand.u32 %s39, 1
        %s361 = smul.addr %s360, 8
        %s362 = scalar_lea.vmem [#allocation2], %s361
        %p363 = pneg %p52
        %p364 = pneg %p49
        %s365 = sand.u32 %s69, 1
        %s366 = sand.u32 %s69, 1
        %s367 = smul.addr %s366, 8
        %s368 = scalar_lea.vmem [#allocation3], %s367
        %p369 = pneg %p82
        %p370 = pneg %p79
        %p371 = pneg %p103
        %p372 = pneg %p100
        %p373 = pneg %p124
        %p374 = pneg %p121
        %p375 = pneg %p145
        %p376 = pneg %p142
        %p377 = pneg %p166
        %p378 = pneg %p163
        %p379 = pneg %p194
        %p380 = pneg %p191
        %p381 = scmp.lt.s32.totalorder %s21, 1
        %s382 = scalar_select %p381, %s21, 1
        %p383 = scmp.lt.s32.totalorder %s22, 0
        %s384 = scalar_select %p383, %s22, 0
        %s385 = smul.addr %s382, 2
        %s386 = sadd.s32 %s384, %s385
        %s387 = smul.addr %s386, 4
        %s388 = scalar_lea.vmem %s6, %s387
        %s389 = sadd.s32 %s22, 1
        %p390 = scmp.lt.s32.totalorder %s21, 1
        %s391 = scalar_select %p390, %s21, 1
        %p392 = scmp.lt.s32.totalorder %s22, 0
        %s393 = scalar_select %p392, %s22, 0
        %s394 = smul.addr %s391, 2
        %s395 = sadd.s32 %s393, %s394
        %s396 = smul.addr %s395, 4
        %s397 = scalar_lea.vmem %s6, %s396
        %v399 = vld [vmem:[%s348] sm:$0xf]
        %v400 = vld [vmem:[%s348 + $0x4] sm:$0xf]
        %v401 = vld [vmem:[%s355] sm:$0xf]
        %v402 = vld [vmem:[%s355 + $0x4] sm:$0xf]
        %v405 = vunpack.c.l.b16 %v399
        %v406 = vunpack.c.l.b16 %v400
        %v407 = vpack.c.b16 %v406, %v405
        %v411 = vunpack.c.l.b16 %v401
        %v412 = vunpack.c.l.b16 %v402
        %v413 = vpack.c.b16 %v412, %v411
        %v415 = vunpack.c.l.bf16 %v407
        %v416 = vunpack.c.l.bf16 %v413
        %v417 = vunpack.c.h.bf16 %v407
        %v418 = vunpack.c.h.bf16 %v413
        %vm419 = vcmp.ge.f32.partialorder %v415, 0.0
        %vm420 = vcmp.ge.f32.partialorder %v416, 0.0
        %vm421 = vcmp.ge.f32.partialorder %v417, 0.0
        %vm422 = vcmp.ge.f32.partialorder %v418, 0.0
        %v423 = vmul.f32 %v415, 0.1
        %v424 = vmul.f32 %v416, 0.1
        %v425 = vmul.f32 %v417, 0.1
        %v426 = vmul.f32 %v418, 0.1
        %v427 = vsel %vm419, %v415, %v423
        %v428 = vsel %vm420, %v416, %v424
        %v429 = vsel %vm421, %v417, %v425
        %v430 = vsel %vm422, %v418, %v426
        %v431 = vpack.c.bf16 %v428, %v427
        %v432 = vpack.c.bf16 %v430, %v429
        %v435 = vunpack.c.l.b16 %v431
        %v436 = vunpack.c.h.b16 %v431
        %v437 = vunpack.c.l.b16 %v432
        %v438 = vunpack.c.h.b16 %v432
        %v439 = vpack.c.b16 %v437, %v435
        %v440 = vpack.c.b16 %v438, %v436
        %443 = vrot.lane.b32.xlu0 %v439, 127
        %v444 = vpop.permute.xlu0 %443
        %445 = vrot.lane.b32.xlu0 %v440, 127
        %v446 = vpop.permute.xlu0 %445
        %vm447 = vcmask 1039360
        %v448 = vsel %vm447, %v444, %v446
        %451 = vrot.lane.b32.xlu0 %v439, 126
        %v452 = vpop.permute.xlu0 %451
        %453 = vrot.lane.b32.xlu0 %v440, 126
        %v454 = vpop.permute.xlu0 %453
        %vm455 = vcmask 1031168
        %v456 = vsel %vm455, %v452, %v454
        %459 = vrot.lane.b32.xlu0 %v439, 125
        %v460 = vpop.permute.xlu0 %459
        %461 = vrot.lane.b32.xlu0 %v440, 125
        %v462 = vpop.permute.xlu0 %461
        %vm463 = vcmask 1022976
        %v464 = vsel %vm463, %v460, %v462
        %467 = vrot.lane.b32.xlu0 %v439, 124
        %v468 = vpop.permute.xlu0 %467
        %469 = vrot.lane.b32.xlu0 %v440, 124
        %v470 = vpop.permute.xlu0 %469
        %vm471 = vcmask 1014784
        %v472 = vsel %vm471, %v468, %v470
        %v475 = vld [vmem:[%s2] sm:$0xf]
        %v476 = vld [vmem:[%s2 + $0x4] sm:$0xf]
        %v477 = vld [vmem:[%s3] sm:$0xff]
        %v478 = vld [vmem:[%s3 + $0x8] sm:$0xff]
        %480 = vset.pattern.permute.xlu0 0
        %481 = vperm.xlu0 %480, %v477
        %v482 = vpop.permute.xlu0 %481
        %485 = vset.pattern.permute.xlu0 0
        %486 = vperm.xlu0 %485, %v478
        %v487 = vpop.permute.xlu0 %486
        %v491 = vunpack.c.l.b16 %v475
        %v492 = vunpack.c.l.b16 %v476
        %v493 = vpack.c.b16 %v492, %v491
        %vm494 = vcmask 654336
        %v496 = vsel %vm494, %v493, 0
        %498 = vmatpush.bf16.msra.mxu0 0
        %499 = vmatpush.bf16.msra.mxu0 0
        %500 = vmatpush.bf16.msra.mxu0 0
        %501 = vmatpush.bf16.msra.mxu0 %v472
        %502 = vmatpush.bf16.msra.mxu0 %v464
        %503 = vmatpush.bf16.msra.mxu0 %v456
        %504 = vmatpush.bf16.msra.mxu0 %v448
        %505 = vmatpush.bf16.msra.mxu0 %v439
        %506 = vmatmul.bf16.gmra.mxu0 %v496
        %v507 = vpop.f32.mrf.mxu0
        %v508 = vadd.f32 %v482, %v507
        %v509 = vpop.f32.mrf.mxu0
        %v510 = vadd.f32 %v487, %v509
        %511 = vdwg.mxu0
        %512 = vmatpush.bf16.msra.mxu0 0
        %513 = vmatpush.bf16.msra.mxu0 0
        %514 = vmatpush.bf16.msra.mxu0 0
        %515 = vmatpush.bf16.msra.mxu0 %v470
        %516 = vmatpush.bf16.msra.mxu0 %v462
        %517 = vmatpush.bf16.msra.mxu0 %v454
        %518 = vmatpush.bf16.msra.mxu0 %v446
        %519 = vmatpush.bf16.msra.mxu0 %v440
        %520 = vmatmul.bf16.gmra.mxu0 %v496
        %v521 = vpop.f32.mrf.mxu0
        %v522 = vadd.f32 %v482, %v521
        %v523 = vpop.f32.mrf.mxu0
        %v524 = vadd.f32 %v487, %v523
        %525 = vdwg.mxu0
        %vm526 = vcmp.ge.f32.partialorder %v508, 0.0
        %vm527 = vcmp.ge.f32.partialorder %v522, 0.0
        %vm528 = vcmp.ge.f32.partialorder %v510, 0.0
        %vm529 = vcmp.ge.f32.partialorder %v524, 0.0
        %v530 = vmul.f32 %v508, 0.1
        %v531 = vmul.f32 %v522, 0.1
        %v532 = vmul.f32 %v510, 0.1
        %v533 = vmul.f32 %v524, 0.1
        %v534 = vsel %vm526, %v508, %v530
        %v535 = vsel %vm527, %v522, %v531
        %v536 = vsel %vm528, %v510, %v532
        %v537 = vsel %vm529, %v524, %v533
        %s538 = smul.u32 %s22, 128
        %s539 = ssub.s32 %s538, 2
        %v540 = vlaneseq
        %v541 = vand.u32 %v540, 127
        %v542 = vadd.s32 %v541, 128
        %v543 = vstv %s539
        %v544 = vadd.s32 %v543, %v541
        %v545 = vadd.s32 %v543, %v542
        %vm546 = vcmp.ge.s32.totalorder %v544, 0
        %vm547 = vcmp.ge.s32.totalorder %v545, 0
        %vm548 = vcmp.lt.s32.totalorder %v544, 16
        %vm549 = vcmp.lt.s32.totalorder %v545, 16
        %vm550 = vmand %vm546, %vm548
        %vm551 = vmand %vm547, %vm549
        %v552 = vsel %vm550, 1, 0
        %v553 = vsel %vm551, 1, 0
        %vm554 = vcmp.eq.s32.totalorder %v552, 1
        %vm555 = vcmp.eq.s32.totalorder %v553, 1
        %v556 = vsel %vm554, %v534, 0.0
        %v557 = vsel %vm555, %v535, 0.0
        %v558 = vsel %vm554, %v536, 0.0
        %v559 = vsel %vm555, %v537, 0.0
        %v560 = vpack.c.bf16 %v557, %v556
        %v561 = vpack.c.bf16 %v559, %v558
        %v564 = vunpack.c.l.b16 %v560
        %v565 = vunpack.c.l.b16 %v561
        %v566 = vpack.c.b16 %v565, %v564
        %v568 = vunpack.c.h.b16 %v560
        %v569 = vunpack.c.h.b16 %v561
        %v570 = vpack.c.b16 %v569, %v568
        %571 = vrot.lane.b32.xlu0 %v566, 127
        %v572 = vpop.permute.xlu0 %571
        %573 = vrot.lane.b32.xlu0 %v570, 127
        %v574 = vpop.permute.xlu0 %573
        %v575 = vsel %vm447, %v572, %v574
        %577 = vrot.lane.b32.xlu0 %v566, 126
        %v578 = vpop.permute.xlu0 %577
        %579 = vrot.lane.b32.xlu0 %v570, 126
        %v580 = vpop.permute.xlu0 %579
        %v581 = vsel %vm455, %v578, %v580
        %583 = vrot.lane.b32.xlu0 %v566, 125
        %v584 = vpop.permute.xlu0 %583
        %585 = vrot.lane.b32.xlu0 %v570, 125
        %v586 = vpop.permute.xlu0 %585
        %v587 = vsel %vm463, %v584, %v586
        %589 = vrot.lane.b32.xlu0 %v566, 124
        %v590 = vpop.permute.xlu0 %589
        %591 = vrot.lane.b32.xlu0 %v570, 124
        %v592 = vpop.permute.xlu0 %591
        %v593 = vsel %vm471, %v590, %v592
        %v595 = vld [vmem:[%s4] sm:$0xf]
        %v596 = vld [vmem:[%s4 + $0x4] sm:$0xf]
        %v597 = vld [vmem:[%s5] sm:$0xff]
        %v598 = vld [vmem:[%s5 + $0x8] sm:$0xff]
        %600 = vset.pattern.permute.xlu0 0
        %601 = vperm.xlu0 %600, %v597
        %v602 = vpop.permute.xlu0 %601
        %605 = vset.pattern.permute.xlu0 0
        %606 = vperm.xlu0 %605, %v598
        %v607 = vpop.permute.xlu0 %606
        %v611 = vunpack.c.l.b16 %v595
        %v612 = vunpack.c.l.b16 %v596
        %v613 = vpack.c.b16 %v612, %v611
        %v615 = vsel %vm494, %v613, 0
        %617 = vmatpush.bf16.msra.mxu0 0
        %618 = vmatpush.bf16.msra.mxu0 0
        %619 = vmatpush.bf16.msra.mxu0 0
        %620 = vmatpush.bf16.msra.mxu0 %v593
        %621 = vmatpush.bf16.msra.mxu0 %v587
        %622 = vmatpush.bf16.msra.mxu0 %v581
        %623 = vmatpush.bf16.msra.mxu0 %v575
        %624 = vmatpush.bf16.msra.mxu0 %v566
        %625 = vmatmul.bf16.gmra.mxu0 %v615
        %v626 = vpop.f32.mrf.mxu0
        %v627 = vadd.f32 %v602, %v626
        %v628 = vpop.f32.mrf.mxu0
        %v629 = vadd.f32 %v607, %v628
        %630 = vdwg.mxu0
        %635 = vrot.lane.b32.xlu0 %v415, 124
        %v636 = vpop.permute.xlu0 %635
        %637 = vrot.lane.b32.xlu0 %v416, 124
        %v638 = vpop.permute.xlu0 %637
        %639 = vrot.lane.b32.xlu0 %v417, 124
        %v640 = vpop.permute.xlu0 %639
        %641 = vrot.lane.b32.xlu0 %v418, 124
        %v642 = vpop.permute.xlu0 %641
        %vm643 = vcmask 1014784
        %v644 = vsel %vm643, %v636, %v638
        %v645 = vsel %vm643, %v640, %v642
        %v648 = vadd.f32 %v627, %v644
        %v649 = vadd.f32 %v629, %v645
        %v650 = vpack.c.bf16 %v648, %v648
        %v651 = vpack.c.bf16 %v649, %v649
        %652 = vst [vmem:[%s397] sm:$0xf] %v650
        %653 = vst [vmem:[%s397 + $0x4] sm:$0xf] %v651
        %p654 = scmp.lt.s32.totalorder %s21, 1
        %s655 = scalar_select %p654, %s21, 1
        %p656 = scmp.lt.s32.totalorder %s22, 0
        %s657 = scalar_select %p656, %s22, 0
        %s658 = smul.addr %s655, 2
        %s659 = sadd.s32 %s657, %s658
        %s660 = smul.addr %s659, 4
        %s661 = scalar_lea.vmem %s6, %s660
        // Predicated region
        $region127: #{_lambda_.16} parent=117 // pred_check
          %p662 = pneg %p191
        $region128: #{_lambda_.16} parent=117 // pred_check_branch
          %664 = sbr.rel (%p662) target = $region130
        $region129: #{_lambda_.16} parent=117 // pred_region
          _
        $region130: #{_lambda_.16} parent=117 // pred_fallthru
          _
      $region118: #{_lambda_.16} parent=5 // pred_fallthru
        _
      %p665 = scmp.le.s32.totalorder 2, %s12
      // Predicated region
      $region131: #{_lambda_.16} parent=5 // pred_check
        %p666 = pneg %p665
      $region132: #{_lambda_.16} parent=5 // pred_check_branch
        %668 = sbr.rel (%p666) target = $region134
      $region133: #{_lambda_.16} parent=5 // pred_region
        %s669 = ssub.s32 %s12, 2
        // Predicated region
        $region135: #{_lambda_.16} parent=133 // pred_check
          %p670 = pneg %p197
        $region136: #{_lambda_.16} parent=133 // pred_check_branch
          %672 = sbr.rel (%p670) target = $region138
        $region137: #{_lambda_.16} parent=133 // pred_region
          %p673 = scmp.lt.s32.totalorder %s23, 1
          %s674 = scalar_select %p673, %s23, 1
          %p675 = scmp.lt.s32.totalorder %s24, 0
          %s676 = scalar_select %p675, %s24, 0
          %s677 = smul.addr %s674, 2
          %s678 = sadd.s32 %s676, %s677
          %s679 = smul.addr %s678, 4
          %s680 = scalar_lea.vmem %s6, %s679
        $region138: #{_lambda_.16} parent=133 // pred_fallthru
          _
      $region134: #{_lambda_.16} parent=5 // pred_fallthru
        _
    $region6: #{_lambda_.16} parent=1 // loop_footer
      %s16 = sadd.s32 1, %s12
    $region7: #{_lambda_.16} parent=1 // loop_footer_branch
      %11 = sbr.rel target = $region3
    $region8: #{_lambda_.16} parent=1 // loop_exit
      _

// kernel: _lambda_.17
$region0: #{_lambda_.17}
  #allocation0 [shape = 'u32[]', space=smem, size = 0x4, offset = 0x4, fixed_abs, tag = 'smem constant byte address 0x4 - core index']
  #allocation1 [shape = 'u32[72,128]{1,0:T(1,128)}', space=vmem, size = 0x9000, scoped, tag = 'internal scratch']
  %s0 = inlined_call_operand.vmem [shape: bf16[2,16,256], index: 0, kind: input, shape index: {}, may-alias: {0,1}]
  %s1 = inlined_call_operand.vmem [shape: bf16[2,16,256], index: 1, kind: input, shape index: {}, may-alias: {0,1}]
  %s2 = inlined_call_operand.vmem [shape: bf16[16,80], index: 2, kind: input, shape index: {}]
  %s3 = inlined_call_operand.vmem [shape: f32[16,1], index: 3, kind: input, shape index: {}]
  %s4 = inlined_call_operand.vmem [shape: bf16[16,80], index: 4, kind: input, shape index: {}]
  %s5 = inlined_call_operand.vmem [shape: f32[16,1], index: 5, kind: input, shape index: {}]
  %s6 = inlined_call_operand.vmem [shape: bf16[2,16,128], index: 6, kind: output, shape index: {}]
  %s7 = sld [smem:[#allocation0]]
  $region139: #{_lambda_.17} parent=0
    _
  %s9 = ssub.s32 1, %s7
  %s10 = scalar_select 0, %s9, %s7
  $region1: #{_lambda_.17} parent=0
    #allocation2 [shape = 'u8[8192]{0}', space=vmem, size = 0x2000, scoped, tag = 'input window, operand 0']
    #allocation3 [shape = 'u8[8192]{0}', space=vmem, size = 0x2000, scoped, tag = 'input window, operand 1']
    loop: start=0, step=1, limit=4
    $region2: #{_lambda_.17} parent=1 // loop_pre_header
      _
    $region3: #{_lambda_.17} parent=1 // loop_header
      %s12 = sphi 0, %s16
      %p13 = scmp.ge.s32.totalorder %s12, 4
      %s19 = sphi 0, %s31
      %s20 = sphi 0, %s27
      %s21 = sphi 0, %s19
      %s22 = sphi 0, %s20
      %s23 = sphi 0, %s21
      %s24 = sphi 0, %s22
      %s36 = sphi 0, %s38
      %s39 = sphi 0, %s36
      %s40 = sphi 0, %s39
      %s56 = sphi 0, %s40
      %s66 = sphi 0, %s68
      %s69 = sphi 0, %s66
      %s70 = sphi 0, %s69
      %s86 = sphi 0, %s70
      %s90 = sphi 0, %s90
      %s92 = sphi 0, %s90
      %s93 = sphi 0, %s92
      %s107 = sphi 0, %s93
      %s111 = sphi 0, %s111
      %s113 = sphi 0, %s111
      %s114 = sphi 0, %s113
      %s128 = sphi 0, %s114
      %s132 = sphi 0, %s132
      %s134 = sphi 0, %s132
      %s135 = sphi 0, %s134
      %s149 = sphi 0, %s135
      %s153 = sphi 0, %s153
      %s155 = sphi 0, %s153
      %s156 = sphi 0, %s155
      %s170 = sphi 0, %s156
      %s178 = sphi 0, %s180
      %s181 = sphi 0, %s178
      %s182 = sphi 0, %s181
      %s198 = sphi 0, %s182
    $region4: #{_lambda_.17} parent=1 // loop_header_branch
      %15 = sbr.rel (%p13) target = $region8
    $region5: #{_lambda_.17} parent=1 // loop_body
      %s17 = ssub.s32 %s12, 1
      %s18 = ssub.s32 %s12, 2
      %s25 = sadd.s32 1, %s20
      %p26 = scmp.ge.s32.totalorder %s25, 1
      %s27 = scalar_select %p26, 0, %s25
      %s28 = sadd.s32 1, %s19
      %s29 = scalar_select %p26, %s28, %s19
      %p30 = scmp.ge.s32.totalorder %s29, 2
      %s31 = scalar_select %p30, 0, %s29
      %s32 = ssub.s32 %s19, %s31
      %s33 = ssub.s32 %s20, %s27
      %s34 = sor.u32 %s32, %s33
      %p35 = scmp.eq.s32.totalorder %s34, 0
      %s37 = sadd.s32 %s36, 1
      %s38 = scalar_select %p35, %s36, %s37
      %p41 = pneg %p35
      %p42 = scmp.eq.s32.totalorder %s12, 1
      %p43 = por %p41, %p42
      %p44 = scmp.ne.s32.totalorder %s36, %s39
      %p45 = scmp.eq.s32.totalorder %s12, 0
      %p46 = por %p44, %p45
      %p47 = scmp.ne.s32.totalorder %s36, %s39
      %p48 = scmp.eq.s32.totalorder %s17, 1
      %p49 = por %p47, %p48
      %p50 = scmp.ne.s32.totalorder %s39, %s40
      %p51 = scmp.eq.s32.totalorder %s17, 0
      %p52 = por %p50, %p51
      %p53 = scmp.ne.s32.totalorder %s39, %s40
      %p54 = scmp.eq.s32.totalorder %s18, 1
      %p55 = por %p53, %p54
      %p57 = scmp.ne.s32.totalorder %s40, %s56
      %p58 = scmp.eq.s32.totalorder %s18, 0
      %p59 = por %p57, %p58
      %s60 = sadd.s32 %s20, 1
      %s61 = sadd.s32 %s27, 1
      %s62 = ssub.s32 %s19, %s31
      %s63 = ssub.s32 %s60, %s61
      %s64 = sor.u32 %s62, %s63
      %p65 = scmp.eq.s32.totalorder %s64, 0
      %s67 = sadd.s32 %s66, 1
      %s68 = scalar_select %p65, %s66, %s67
      %p71 = pneg %p65
      %p72 = scmp.eq.s32.totalorder %s12, 1
      %p73 = por %p71, %p72
      %p74 = scmp.ne.s32.totalorder %s66, %s69
      %p75 = scmp.eq.s32.totalorder %s12, 0
      %p76 = por %p74, %p75
      %p77 = scmp.ne.s32.totalorder %s66, %s69
      %p78 = scmp.eq.s32.totalorder %s17, 1
      %p79 = por %p77, %p78
      %p80 = scmp.ne.s32.totalorder %s69, %s70
      %p81 = scmp.eq.s32.totalorder %s17, 0
      %p82 = por %p80, %p81
      %p83 = scmp.ne.s32.totalorder %s69, %s70
      %p84 = scmp.eq.s32.totalorder %s18, 1
      %p85 = por %p83, %p84
      %p87 = scmp.ne.s32.totalorder %s70, %s86
      %p88 = scmp.eq.s32.totalorder %s18, 0
      %p89 = por %p87, %p88
      %s91 = sadd.s32 %s90, 1
      %p94 = scmp.eq.s32.totalorder %s12, 1
      %p95 = scmp.ne.s32.totalorder %s90, %s92
      %p96 = scmp.eq.s32.totalorder %s12, 0
      %p97 = por %p95, %p96
      %p98 = scmp.ne.s32.totalorder %s90, %s92
      %p99 = scmp.eq.s32.totalorder %s17, 1
      %p100 = por %p98, %p99
      %p101 = scmp.ne.s32.totalorder %s92, %s93
      %p102 = scmp.eq.s32.totalorder %s17, 0
      %p103 = por %p101, %p102
      %p104 = scmp.ne.s32.totalorder %s92, %s93
      %p105 = scmp.eq.s32.totalorder %s18, 1
      %p106 = por %p104, %p105
      %p108 = scmp.ne.s32.totalorder %s93, %s107
      %p109 = scmp.eq.s32.totalorder %s18, 0
      %p110 = por %p108, %p109
      %s112 = sadd.s32 %s111, 1
      %p115 = scmp.eq.s32.totalorder %s12, 1
      %p116 = scmp.ne.s32.totalorder %s111, %s113
      %p117 = scmp.eq.s32.totalorder %s12, 0
      %p118 = por %p116, %p117
      %p119 = scmp.ne.s32.totalorder %s111, %s113
      %p120 = scmp.eq.s32.totalorder %s17, 1
      %p121 = por %p119, %p120
      %p122 = scmp.ne.s32.totalorder %s113, %s114
      %p123 = scmp.eq.s32.totalorder %s17, 0
      %p124 = por %p122, %p123
      %p125 = scmp.ne.s32.totalorder %s113, %s114
      %p126 = scmp.eq.s32.totalorder %s18, 1
      %p127 = por %p125, %p126
      %p129 = scmp.ne.s32.totalorder %s114, %s128
      %p130 = scmp.eq.s32.totalorder %s18, 0
      %p131 = por %p129, %p130
      %s133 = sadd.s32 %s132, 1
      %p136 = scmp.eq.s32.totalorder %s12, 1
      %p137 = scmp.ne.s32.totalorder %s132, %s134
      %p138 = scmp.eq.s32.totalorder %s12, 0
      %p139 = por %p137, %p138
      %p140 = scmp.ne.s32.totalorder %s132, %s134
      %p141 = scmp.eq.s32.totalorder %s17, 1
      %p142 = por %p140, %p141
      %p143 = scmp.ne.s32.totalorder %s134, %s135
      %p144 = scmp.eq.s32.totalorder %s17, 0
      %p145 = por %p143, %p144
      %p146 = scmp.ne.s32.totalorder %s134, %s135
      %p147 = scmp.eq.s32.totalorder %s18, 1
      %p148 = por %p146, %p147
      %p150 = scmp.ne.s32.totalorder %s135, %s149
      %p151 = scmp.eq.s32.totalorder %s18, 0
      %p152 = por %p150, %p151
      %s154 = sadd.s32 %s153, 1
      %p157 = scmp.eq.s32.totalorder %s12, 1
      %p158 = scmp.ne.s32.totalorder %s153, %s155
      %p159 = scmp.eq.s32.totalorder %s12, 0
      %p160 = por %p158, %p159
      %p161 = scmp.ne.s32.totalorder %s153, %s155
      %p162 = scmp.eq.s32.totalorder %s17, 1
      %p163 = por %p161, %p162
      %p164 = scmp.ne.s32.totalorder %s155, %s156
      %p165 = scmp.eq.s32.totalorder %s17, 0
      %p166 = por %p164, %p165
      %p167 = scmp.ne.s32.totalorder %s155, %s156
      %p168 = scmp.eq.s32.totalorder %s18, 1
      %p169 = por %p167, %p168
      %p171 = scmp.ne.s32.totalorder %s156, %s170
      %p172 = scmp.eq.s32.totalorder %s18, 0
      %p173 = por %p171, %p172
      %s174 = ssub.s32 %s19, %s31
      %s175 = ssub.s32 %s20, %s27
      %s176 = sor.u32 %s174, %s175
      %p177 = scmp.eq.s32.totalorder %s176, 0
      %s179 = sadd.s32 %s178, 1
      %s180 = scalar_select %p177, %s178, %s179
      %p183 = pneg %p177
      %p184 = scmp.eq.s32.totalorder %s12, 1
      %p185 = por %p183, %p184
      %p186 = scmp.ne.s32.totalorder %s178, %s181
      %p187 = scmp.eq.s32.totalorder %s12, 0
      %p188 = por %p186, %p187
      %p189 = scmp.ne.s32.totalorder %s178, %s181
      %p190 = scmp.eq.s32.totalorder %s17, 1
      %p191 = por %p189, %p190
      %p192 = scmp.ne.s32.totalorder %s181, %s182
      %p193 = scmp.eq.s32.totalorder %s17, 0
      %p194 = por %p192, %p193
      %p195 = scmp.ne.s32.totalorder %s181, %s182
      %p196 = scmp.eq.s32.totalorder %s18, 1
      %p197 = por %p195, %p196
      %p199 = scmp.ne.s32.totalorder %s182, %s198
      %p200 = scmp.eq.s32.totalorder %s18, 0
      %p201 = por %p199, %p200
      %p202 = scmp.le.s32.totalorder 1, %s12
      %p203 = scmp.lt.s32.totalorder %s12, 3
      %p204 = pnand %p202, %p203
      %p205 = pneg %p204
      // Predicated region
      $region9: #{_lambda_.17} parent=5 // pred_check
        _
      $region10: #{_lambda_.17} parent=5 // pred_check_branch
        %207 = sbr.rel (%p204) target = $region12
      $region11: #{_lambda_.17} parent=5 // pred_region
        %s208 = ssub.s32 %s12, 1
        // Predicated region
        $region13: #{_lambda_.17} parent=11 // pred_check
          %p209 = pneg %p103
        $region14: #{_lambda_.17} parent=11 // pred_check_branch
          %211 = sbr.rel (%p209) target = $region16
        $region15: #{_lambda_.17} parent=11 // pred_region
          _
        $region16: #{_lambda_.17} parent=11 // pred_fallthru
          _
        // Predicated region
        $region17: #{_lambda_.17} parent=11 // pred_check
          %p212 = pneg %p124
        $region18: #{_lambda_.17} parent=11 // pred_check_branch
          %214 = sbr.rel (%p212) target = $region20
        $region19: #{_lambda_.17} parent=11 // pred_region
          _
        $region20: #{_lambda_.17} parent=11 // pred_fallthru
          _
        // Predicated region
        $region21: #{_lambda_.17} parent=11 // pred_check
          %p215 = pneg %p145
        $region22: #{_lambda_.17} parent=11 // pred_check_branch
          %217 = sbr.rel (%p215) target = $region24
        $region23: #{_lambda_.17} parent=11 // pred_region
          _
        $region24: #{_lambda_.17} parent=11 // pred_fallthru
          _
        // Predicated region
        $region25: #{_lambda_.17} parent=11 // pred_check
          %p218 = pneg %p166
        $region26: #{_lambda_.17} parent=11 // pred_check_branch
          %220 = sbr.rel (%p218) target = $region28
        $region27: #{_lambda_.17} parent=11 // pred_region
          _
        $region28: #{_lambda_.17} parent=11 // pred_fallthru
          _
      $region12: #{_lambda_.17} parent=5 // pred_fallthru
        _
      %p221 = scmp.lt.s32.totalorder %s12, 2
      // Predicated region
      $region29: #{_lambda_.17} parent=5 // pred_check
        %p222 = pneg %p221
      $region30: #{_lambda_.17} parent=5 // pred_check_branch
        %224 = sbr.rel (%p222) target = $region32
      $region31: #{_lambda_.17} parent=5 // pred_region
        // Predicated region
        $region33: #{_lambda_.17} parent=31 // pred_check
          %p225 = pneg %p46
        $region34: #{_lambda_.17} parent=31 // pred_check_branch
          %227 = sbr.rel (%p225) target = $region36
        $region35: #{_lambda_.17} parent=31 // pred_region
          %s228 = sand.u32 %s36, 1
          %s229 = sand.u32 %s36, 1
          %s230 = smul.addr %s229, 8
          %s231 = scalar_lea.vmem [#allocation2], %s230
          %s232 = smul.addr %s19, 4
          %s233 = sadd.s32 %s20, %s232
          %s234 = smul.addr %s233, 4
          %s235 = scalar_lea.vmem %s0, %s234
          // Predicated region
          $region37: #{_lambda_.17} parent=35 // pred_check
            _
          $region38: #{_lambda_.17} parent=35 // pred_check_branch
            %237 = sbr.rel (0) target = $region40
          $region39: #{_lambda_.17} parent=35 // pred_region
            // Predicated region
            $region41: #{_lambda_.17} parent=39 // pred_check
              _
            $region42: #{_lambda_.17} parent=39 // pred_check_branch
              %239 = sbr.rel target = $region44
            $region43: #{_lambda_.17} parent=39 // pred_region
              // Predicated region
              $region56: #{_lambda_.17} parent=43 // pred_check
                _
              $region57: #{_lambda_.17} parent=43 // pred_check_branch
                %257 = sbr.rel (0) target = $region59
              $region58: #{_lambda_.17} parent=43 // pred_region
                loop: start=0, step=1, limit=1
                $region60: #{_lambda_.17} parent=58 // loop_pre_header
                  _
                $region61: #{_lambda_.17} parent=58 // loop_header
                  %s259 = sphi 0, %s263
                  %p260 = scmp.ge.s32.totalorder %s259, 1
                  %s264 = sphi %s235, %s235
                  %s265 = sphi %s231, %s231
                $region62: #{_lambda_.17} parent=58 // loop_header_branch
                  %262 = sbr.rel (%p260) target = $region66
                $region63: #{_lambda_.17} parent=58 // loop_body
                  _
                $region64: #{_lambda_.17} parent=58 // loop_footer
                  %s263 = sadd.s32 1, %s259
                $region65: #{_lambda_.17} parent=58 // loop_footer_branch
                  %258 = sbr.rel target = $region61
                $region66: #{_lambda_.17} parent=58 // loop_exit
                  _
                %s267 = ssub.s32 16, 1
                loop: start=0, step=1, limit=1
                $region67: #{_lambda_.17} parent=58 // loop_pre_header
                  _
                $region68: #{_lambda_.17} parent=58 // loop_header
                  %s269 = sphi 0, %s273
                  %p270 = scmp.ge.s32.totalorder %s269, 1
                  %s274 = sphi %s235, %s235
                  %s275 = sphi %s231, %s231
                $region69: #{_lambda_.17} parent=58 // loop_header_branch
                  %272 = sbr.rel (%p270) target = $region73
                $region70: #{_lambda_.17} parent=58 // loop_body
                  %v276 = vld [vmem:[%s274] sm:%s267]
                  %277 = vst [vmem:[%s275] sm:%s267] %v276
                  %v278 = vld [vmem:[%s274 + $0x8] sm:%s267]
                  %279 = vst [vmem:[%s275 + $0x4] sm:%s267] %v278
                $region71: #{_lambda_.17} parent=58 // loop_footer
                  %s273 = sadd.s32 1, %s269
                $region72: #{_lambda_.17} parent=58 // loop_footer_branch
                  %268 = sbr.rel target = $region68
                $region73: #{_lambda_.17} parent=58 // loop_exit
                  _
              $region59: #{_lambda_.17} parent=43 // pred_fallthru
                _
            $region44: #{_lambda_.17} parent=39 // pred_fallthru
              _
            // Predicated region
            $region45: #{_lambda_.17} parent=39 // pred_check
              _
            $region46: #{_lambda_.17} parent=39 // pred_check_branch
              %241 = sbr.rel (0) target = $region48
            $region47: #{_lambda_.17} parent=39 // pred_region
              %s243 = ssub.s32 16, 1
              loop: start=0, step=1, limit=1
              $region49: #{_lambda_.17} parent=47 // loop_pre_header
                _
              $region50: #{_lambda_.17} parent=47 // loop_header
                %s245 = sphi 0, %s249
                %p246 = scmp.ge.s32.totalorder %s245, 1
                %s250 = sphi %s235, %s235
                %s251 = sphi %s231, %s231
              $region51: #{_lambda_.17} parent=47 // loop_header_branch
                %248 = sbr.rel (%p246) target = $region55
              $region52: #{_lambda_.17} parent=47 // loop_body
                %v252 = vld [vmem:[%s250] sm:%s243]
                %253 = vst [vmem:[%s251] sm:%s243] %v252
                %v254 = vld [vmem:[%s250 + $0x8] sm:%s243]
                %255 = vst [vmem:[%s251 + $0x4] sm:%s243] %v254
              $region53: #{_lambda_.17} parent=47 // loop_footer
                %s249 = sadd.s32 1, %s245
              $region54: #{_lambda_.17} parent=47 // loop_footer_branch
                %244 = sbr.rel target = $region50
              $region55: #{_lambda_.17} parent=47 // loop_exit
                _
            $region48: #{_lambda_.17} parent=39 // pred_fallthru
              _
          $region40: #{_lambda_.17} parent=35 // pred_fallthru
            _
          %280 = vnop
        $region36: #{_lambda_.17} parent=31 // pred_fallthru
          _
        // Predicated region
        $region74: #{_lambda_.17} parent=31 // pred_check
          %p281 = pneg %p76
        $region75: #{_lambda_.17} parent=31 // pred_check_branch
          %283 = sbr.rel (%p281) target = $region77
        $region76: #{_lambda_.17} parent=31 // pred_region
          %s284 = sand.u32 %s66, 1
          %s285 = sand.u32 %s66, 1
          %s286 = smul.addr %s285, 8
          %s287 = scalar_lea.vmem [#allocation3], %s286
          %s288 = sadd.s32 %s20, 1
          %s289 = smul.addr %s19, 4
          %s290 = sadd.s32 %s288, %s289
          %s291 = smul.addr %s290, 4
          %s292 = scalar_lea.vmem %s1, %s291
          // Predicated region
          $region78: #{_lambda_.17} parent=76 // pred_check
            _
          $region79: #{_lambda_.17} parent=76 // pred_check_branch
            %294 = sbr.rel (0) target = $region81
          $region80: #{_lambda_.17} parent=76 // pred_region
            // Predicated region
            $region82: #{_lambda_.17} parent=80 // pred_check
              _
            $region83: #{_lambda_.17} parent=80 // pred_check_branch
              %296 = sbr.rel target = $region85
            $region84: #{_lambda_.17} parent=80 // pred_region
              // Predicated region
              $region97: #{_lambda_.17} parent=84 // pred_check
                _
              $region98: #{_lambda_.17} parent=84 // pred_check_branch
                %314 = sbr.rel (0) target = $region100
              $region99: #{_lambda_.17} parent=84 // pred_region
                loop: start=0, step=1, limit=1
                $region101: #{_lambda_.17} parent=99 // loop_pre_header
                  _
                $region102: #{_lambda_.17} parent=99 // loop_header
                  %s316 = sphi 0, %s320
                  %p317 = scmp.ge.s32.totalorder %s316, 1
                  %s321 = sphi %s292, %s292
                  %s322 = sphi %s287, %s287
                $region103: #{_lambda_.17} parent=99 // loop_header_branch
                  %319 = sbr.rel (%p317) target = $region107
                $region104: #{_lambda_.17} parent=99 // loop_body
                  _
                $region105: #{_lambda_.17} parent=99 // loop_footer
                  %s320 = sadd.s32 1, %s316
                $region106: #{_lambda_.17} parent=99 // loop_footer_branch
                  %315 = sbr.rel target = $region102
                $region107: #{_lambda_.17} parent=99 // loop_exit
                  _
                %s324 = ssub.s32 16, 1
                loop: start=0, step=1, limit=1
                $region108: #{_lambda_.17} parent=99 // loop_pre_header
                  _
                $region109: #{_lambda_.17} parent=99 // loop_header
                  %s326 = sphi 0, %s330
                  %p327 = scmp.ge.s32.totalorder %s326, 1
                  %s331 = sphi %s292, %s292
                  %s332 = sphi %s287, %s287
                $region110: #{_lambda_.17} parent=99 // loop_header_branch
                  %329 = sbr.rel (%p327) target = $region114
                $region111: #{_lambda_.17} parent=99 // loop_body
                  %v333 = vld [vmem:[%s331] sm:%s324]
                  %334 = vst [vmem:[%s332] sm:%s324] %v333
                  %v335 = vld [vmem:[%s331 + $0x8] sm:%s324]
                  %336 = vst [vmem:[%s332 + $0x4] sm:%s324] %v335
                $region112: #{_lambda_.17} parent=99 // loop_footer
                  %s330 = sadd.s32 1, %s326
                $region113: #{_lambda_.17} parent=99 // loop_footer_branch
                  %325 = sbr.rel target = $region109
                $region114: #{_lambda_.17} parent=99 // loop_exit
                  _
              $region100: #{_lambda_.17} parent=84 // pred_fallthru
                _
            $region85: #{_lambda_.17} parent=80 // pred_fallthru
              _
            // Predicated region
            $region86: #{_lambda_.17} parent=80 // pred_check
              _
            $region87: #{_lambda_.17} parent=80 // pred_check_branch
              %298 = sbr.rel (0) target = $region89
            $region88: #{_lambda_.17} parent=80 // pred_region
              %s300 = ssub.s32 16, 1
              loop: start=0, step=1, limit=1
              $region90: #{_lambda_.17} parent=88 // loop_pre_header
                _
              $region91: #{_lambda_.17} parent=88 // loop_header
                %s302 = sphi 0, %s306
                %p303 = scmp.ge.s32.totalorder %s302, 1
                %s307 = sphi %s292, %s292
                %s308 = sphi %s287, %s287
              $region92: #{_lambda_.17} parent=88 // loop_header_branch
                %305 = sbr.rel (%p303) target = $region96
              $region93: #{_lambda_.17} parent=88 // loop_body
                %v309 = vld [vmem:[%s307] sm:%s300]
                %310 = vst [vmem:[%s308] sm:%s300] %v309
                %v311 = vld [vmem:[%s307 + $0x8] sm:%s300]
                %312 = vst [vmem:[%s308 + $0x4] sm:%s300] %v311
              $region94: #{_lambda_.17} parent=88 // loop_footer
                %s306 = sadd.s32 1, %s302
              $region95: #{_lambda_.17} parent=88 // loop_footer_branch
                %301 = sbr.rel target = $region91
              $region96: #{_lambda_.17} parent=88 // loop_exit
                _
            $region89: #{_lambda_.17} parent=80 // pred_fallthru
              _
          $region81: #{_lambda_.17} parent=76 // pred_fallthru
            _
          %337 = vnop
        $region77: #{_lambda_.17} parent=31 // pred_fallthru
          _
      $region32: #{_lambda_.17} parent=5 // pred_fallthru
        _
      %p338 = scmp.le.s32.totalorder 1, %s12
      %p339 = scmp.lt.s32.totalorder %s12, 3
      %p340 = pnand %p338, %p339
      %p341 = pneg %p340
      // Predicated region
      $region115: #{_lambda_.17} parent=5 // pred_check
        _
      $region116: #{_lambda_.17} parent=5 // pred_check_branch
        %343 = sbr.rel (%p340) target = $region118
      $region117: #{_lambda_.17} parent=5 // pred_region
        %s344 = ssub.s32 %s12, 1
        %s345 = sand.u32 %s39, 1
        %s346 = sand.u32 %s39, 1
        %s347 = smul.addr %s346, 8
        %s348 = scalar_lea.vmem [#allocation2], %s347
        // Predicated region
        $region119: #{_lambda_.17} parent=117 // pred_check
          %p349 = pneg %p52
        $region120: #{_lambda_.17} parent=117 // pred_check_branch
          %351 = sbr.rel (%p349) target = $region122
        $region121: #{_lambda_.17} parent=117 // pred_region
          _
        $region122: #{_lambda_.17} parent=117 // pred_fallthru
          _
        %s352 = sand.u32 %s69, 1
        %s353 = sand.u32 %s69, 1
        %s354 = smul.addr %s353, 8
        %s355 = scalar_lea.vmem [#allocation3], %s354
        // Predicated region
        $region123: #{_lambda_.17} parent=117 // pred_check
          %p356 = pneg %p82
        $region124: #{_lambda_.17} parent=117 // pred_check_branch
          %358 = sbr.rel (%p356) target = $region126
        $region125: #{_lambda_.17} parent=117 // pred_region
          _
        $region126: #{_lambda_.17} parent=117 // pred_fallthru
          _
        %s359 = sand.u32 %s39, 1
        %s360 = sand.u32 %s39, 1
        %s361 = smul.addr %s360, 8
        %s362 = scalar_lea.vmem [#allocation2], %s361
        %p363 = pneg %p52
        %p364 = pneg %p49
        %s365 = sand.u32 %s69, 1
        %s366 = sand.u32 %s69, 1
        %s367 = smul.addr %s366, 8
        %s368 = scalar_lea.vmem [#allocation3], %s367
        %p369 = pneg %p82
        %p370 = pneg %p79
        %p371 = pneg %p103
        %p372 = pneg %p100
        %p373 = pneg %p124
        %p374 = pneg %p121
        %p375 = pneg %p145
        %p376 = pneg %p142
        %p377 = pneg %p166
        %p378 = pneg %p163
        %p379 = pneg %p194
        %p380 = pneg %p191
        %p381 = scmp.lt.s32.totalorder %s21, 1
        %s382 = scalar_select %p381, %s21, 1
        %p383 = scmp.lt.s32.totalorder %s22, 0
        %s384 = scalar_select %p383, %s22, 0
        %s385 = smul.addr %s382, 2
        %s386 = sadd.s32 %s384, %s385
        %s387 = smul.addr %s386, 4
        %s388 = scalar_lea.vmem %s6, %s387
        %s389 = sadd.s32 %s22, 1
        %p390 = scmp.lt.s32.totalorder %s21, 1
        %s391 = scalar_select %p390, %s21, 1
        %p392 = scmp.lt.s32.totalorder %s22, 0
        %s393 = scalar_select %p392, %s22, 0
        %s394 = smul.addr %s391, 2
        %s395 = sadd.s32 %s393, %s394
        %s396 = smul.addr %s395, 4
        %s397 = scalar_lea.vmem %s6, %s396
        %v399 = vld [vmem:[%s348] sm:$0xf]
        %v400 = vld [vmem:[%s348 + $0x4] sm:$0xf]
        %v401 = vld [vmem:[%s355] sm:$0xf]
        %v402 = vld [vmem:[%s355 + $0x4] sm:$0xf]
        %v405 = vunpack.c.l.b16 %v399
        %v406 = vunpack.c.l.b16 %v400
        %v407 = vpack.c.b16 %v406, %v405
        %v411 = vunpack.c.l.b16 %v401
        %v412 = vunpack.c.l.b16 %v402
        %v413 = vpack.c.b16 %v412, %v411
        %v415 = vunpack.c.l.bf16 %v407
        %v416 = vunpack.c.l.bf16 %v413
        %v417 = vunpack.c.h.bf16 %v407
        %v418 = vunpack.c.h.bf16 %v413
        %vm419 = vcmp.ge.f32.partialorder %v415, 0.0
        %vm420 = vcmp.ge.f32.partialorder %v416, 0.0
        %vm421 = vcmp.ge.f32.partialorder %v417, 0.0
        %vm422 = vcmp.ge.f32.partialorder %v418, 0.0
        %v423 = vmul.f32 %v415, 0.1
        %v424 = vmul.f32 %v416, 0.1
        %v425 = vmul.f32 %v417, 0.1
        %v426 = vmul.f32 %v418, 0.1
        %v427 = vsel %vm419, %v415, %v423
        %v428 = vsel %vm420, %v416, %v424
        %v429 = vsel %vm421, %v417, %v425
        %v430 = vsel %vm422, %v418, %v426
        %v431 = vpack.c.bf16 %v428, %v427
        %v432 = vpack.c.bf16 %v430, %v429
        %v435 = vunpack.c.l.b16 %v431
        %v436 = vunpack.c.h.b16 %v431
        %v437 = vunpack.c.l.b16 %v432
        %v438 = vunpack.c.h.b16 %v432
        %v439 = vpack.c.b16 %v437, %v435
        %v440 = vpack.c.b16 %v438, %v436
        %443 = vrot.lane.b32.xlu0 %v439, 125
        %v444 = vpop.permute.xlu0 %443
        %445 = vrot.lane.b32.xlu0 %v440, 125
        %v446 = vpop.permute.xlu0 %445
        %vm447 = vcmask 1022976
        %v448 = vsel %vm447, %v444, %v446
        %451 = vrot.lane.b32.xlu0 %v439, 122
        %v452 = vpop.permute.xlu0 %451
        %453 = vrot.lane.b32.xlu0 %v440, 122
        %v454 = vpop.permute.xlu0 %453
        %vm455 = vcmask 998400
        %v456 = vsel %vm455, %v452, %v454
        %459 = vrot.lane.b32.xlu0 %v439, 119
        %v460 = vpop.permute.xlu0 %459
        %461 = vrot.lane.b32.xlu0 %v440, 119
        %v462 = vpop.permute.xlu0 %461
        %vm463 = vcmask 973824
        %v464 = vsel %vm463, %v460, %v462
        %467 = vrot.lane.b32.xlu0 %v439, 116
        %v468 = vpop.permute.xlu0 %467
        %469 = vrot.lane.b32.xlu0 %v440, 116
        %v470 = vpop.permute.xlu0 %469
        %vm471 = vcmask 949248
        %v472 = vsel %vm471, %v468, %v470
        %v475 = vld [vmem:[%s2] sm:$0xf]
        %v476 = vld [vmem:[%s2 + $0x4] sm:$0xf]
        %v477 = vld [vmem:[%s3] sm:$0xff]
        %v478 = vld [vmem:[%s3 + $0x8] sm:$0xff]
        %480 = vset.pattern.permute.xlu0 0
        %481 = vperm.xlu0 %480, %v477
        %v482 = vpop.permute.xlu0 %481
        %485 = vset.pattern.permute.xlu0 0
        %486 = vperm.xlu0 %485, %v478
        %v487 = vpop.permute.xlu0 %486
        %v491 = vunpack.c.l.b16 %v475
        %v492 = vunpack.c.l.b16 %v476
        %v493 = vpack.c.b16 %v492, %v491
        %vm494 = vcmask 654336
        %v496 = vsel %vm494, %v493, 0
        %498 = vmatpush.bf16.msra.mxu0 0
        %499 = vmatpush.bf16.msra.mxu0 0
        %500 = vmatpush.bf16.msra.mxu0 0
        %501 = vmatpush.bf16.msra.mxu0 %v472
        %502 = vmatpush.bf16.msra.mxu0 %v464
        %503 = vmatpush.bf16.msra.mxu0 %v456
        %504 = vmatpush.bf16.msra.mxu0 %v448
        %505 = vmatpush.bf16.msra.mxu0 %v439
        %506 = vmatmul.bf16.gmra.mxu0 %v496
        %v507 = vpop.f32.mrf.mxu0
        %v508 = vadd.f32 %v482, %v507
        %v509 = vpop.f32.mrf.mxu0
        %v510 = vadd.f32 %v487, %v509
        %511 = vdwg.mxu0
        %512 = vmatpush.bf16.msra.mxu0 0
        %513 = vmatpush.bf16.msra.mxu0 0
        %514 = vmatpush.bf16.msra.mxu0 0
        %515 = vmatpush.bf16.msra.mxu0 %v470
        %516 = vmatpush.bf16.msra.mxu0 %v462
        %517 = vmatpush.bf16.msra.mxu0 %v454
        %518 = vmatpush.bf16.msra.mxu0 %v446
        %519 = vmatpush.bf16.msra.mxu0 %v440
        %520 = vmatmul.bf16.gmra.mxu0 %v496
        %v521 = vpop.f32.mrf.mxu0
        %v522 = vadd.f32 %v482, %v521
        %v523 = vpop.f32.mrf.mxu0
        %v524 = vadd.f32 %v487, %v523
        %525 = vdwg.mxu0
        %vm526 = vcmp.ge.f32.partialorder %v508, 0.0
        %vm527 = vcmp.ge.f32.partialorder %v522, 0.0
        %vm528 = vcmp.ge.f32.partialorder %v510, 0.0
        %vm529 = vcmp.ge.f32.partialorder %v524, 0.0
        %v530 = vmul.f32 %v508, 0.1
        %v531 = vmul.f32 %v522, 0.1
        %v532 = vmul.f32 %v510, 0.1
        %v533 = vmul.f32 %v524, 0.1
        %v534 = vsel %vm526, %v508, %v530
        %v535 = vsel %vm527, %v522, %v531
        %v536 = vsel %vm528, %v510, %v532
        %v537 = vsel %vm529, %v524, %v533
        %s538 = smul.u32 %s22, 128
        %s539 = ssub.s32 %s538, 2
        %v540 = vlaneseq
        %v541 = vand.u32 %v540, 127
        %v542 = vadd.s32 %v541, 128
        %v543 = vstv %s539
        %v544 = vadd.s32 %v543, %v541
        %v545 = vadd.s32 %v543, %v542
        %vm546 = vcmp.ge.s32.totalorder %v544, 0
        %vm547 = vcmp.ge.s32.totalorder %v545, 0
        %vm548 = vcmp.lt.s32.totalorder %v544, 16
        %vm549 = vcmp.lt.s32.totalorder %v545, 16
        %vm550 = vmand %vm546, %vm548
        %vm551 = vmand %vm547, %vm549
        %v552 = vsel %vm550, 1, 0
        %v553 = vsel %vm551, 1, 0
        %vm554 = vcmp.eq.s32.totalorder %v552, 1
        %vm555 = vcmp.eq.s32.totalorder %v553, 1
        %v556 = vsel %vm554, %v534, 0.0
        %v557 = vsel %vm555, %v535, 0.0
        %v558 = vsel %vm554, %v536, 0.0
        %v559 = vsel %vm555, %v537, 0.0
        %v560 = vpack.c.bf16 %v557, %v556
        %v561 = vpack.c.bf16 %v559, %v558
        %v564 = vunpack.c.l.b16 %v560
        %v565 = vunpack.c.l.b16 %v561
        %v566 = vpack.c.b16 %v565, %v564
        %v568 = vunpack.c.h.b16 %v560
        %v569 = vunpack.c.h.b16 %v561
        %v570 = vpack.c.b16 %v569, %v568
        %571 = vrot.lane.b32.xlu0 %v566, 127
        %v572 = vpop.permute.xlu0 %571
        %573 = vrot.lane.b32.xlu0 %v570, 127
        %v574 = vpop.permute.xlu0 %573
        %vm575 = vcmask 1039360
        %v576 = vsel %vm575, %v572, %v574
        %578 = vrot.lane.b32.xlu0 %v566, 126
        %v579 = vpop.permute.xlu0 %578
        %580 = vrot.lane.b32.xlu0 %v570, 126
        %v581 = vpop.permute.xlu0 %580
        %vm582 = vcmask 1031168
        %v583 = vsel %vm582, %v579, %v581
        %585 = vrot.lane.b32.xlu0 %v566, 125
        %v586 = vpop.permute.xlu0 %585
        %587 = vrot.lane.b32.xlu0 %v570, 125
        %v588 = vpop.permute.xlu0 %587
        %v589 = vsel %vm447, %v586, %v588
        %591 = vrot.lane.b32.xlu0 %v566, 124
        %v592 = vpop.permute.xlu0 %591
        %593 = vrot.lane.b32.xlu0 %v570, 124
        %v594 = vpop.permute.xlu0 %593
        %vm595 = vcmask 1014784
        %v596 = vsel %vm595, %v592, %v594
        %v598 = vld [vmem:[%s4] sm:$0xf]
        %v599 = vld [vmem:[%s4 + $0x4] sm:$0xf]
        %v600 = vld [vmem:[%s5] sm:$0xff]
        %v601 = vld [vmem:[%s5 + $0x8] sm:$0xff]
        %603 = vset.pattern.permute.xlu0 0
        %604 = vperm.xlu0 %603, %v600
        %v605 = vpop.permute.xlu0 %604
        %608 = vset.pattern.permute.xlu0 0
        %609 = vperm.xlu0 %608, %v601
        %v610 = vpop.permute.xlu0 %609
        %v614 = vunpack.c.l.b16 %v598
        %v615 = vunpack.c.l.b16 %v599
        %v616 = vpack.c.b16 %v615, %v614
        %v618 = vsel %vm494, %v616, 0
        %620 = vmatpush.bf16.msra.mxu0 0
        %621 = vmatpush.bf16.msra.mxu0 0
        %622 = vmatpush.bf16.msra.mxu0 0
        %623 = vmatpush.bf16.msra.mxu0 %v596
        %624 = vmatpush.bf16.msra.mxu0 %v589
        %625 = vmatpush.bf16.msra.mxu0 %v583
        %626 = vmatpush.bf16.msra.mxu0 %v576
        %627 = vmatpush.bf16.msra.mxu0 %v566
        %628 = vmatmul.bf16.gmra.mxu0 %v618
        %v629 = vpop.f32.mrf.mxu0
        %v630 = vadd.f32 %v605, %v629
        %v631 = vpop.f32.mrf.mxu0
        %v632 = vadd.f32 %v610, %v631
        %633 = vdwg.mxu0
        %638 = vrot.lane.b32.xlu0 %v415, 120
        %v639 = vpop.permute.xlu0 %638
        %640 = vrot.lane.b32.xlu0 %v416, 120
        %v641 = vpop.permute.xlu0 %640
        %642 = vrot.lane.b32.xlu0 %v417, 120
        %v643 = vpop.permute.xlu0 %642
        %644 = vrot.lane.b32.xlu0 %v418, 120
        %v645 = vpop.permute.xlu0 %644
        %vm646 = vcmask 982016
        %v647 = vsel %vm646, %v639, %v641
        %v648 = vsel %vm646, %v643, %v645
        %v651 = vadd.f32 %v630, %v647
        %v652 = vadd.f32 %v632, %v648
        %v653 = vpack.c.bf16 %v651, %v651
        %v654 = vpack.c.bf16 %v652, %v652
        %655 = vst [vmem:[%s397] sm:$0xf] %v653
        %656 = vst [vmem:[%s397 + $0x4] sm:$0xf] %v654
        %p657 = scmp.lt.s32.totalorder %s21, 1
        %s658 = scalar_select %p657, %s21, 1
        %p659 = scmp.lt.s32.totalorder %s22, 0
        %s660 = scalar_select %p659, %s22, 0
        %s661 = smul.addr %s658, 2
        %s662 = sadd.s32 %s660, %s661
        %s663 = smul.addr %s662, 4
        %s664 = scalar_lea.vmem %s6, %s663
        // Predicated region
        $region127: #{_lambda_.17} parent=117 // pred_check
          %p665 = pneg %p191
        $region128: #{_lambda_.17} parent=117 // pred_check_branch
          %667 = sbr.rel (%p665) target = $region130
        $region129: #{_lambda_.17} parent=117 // pred_region
          _
        $region130: #{_lambda_.17} parent=117 // pred_fallthru
          _
      $region118: #{_lambda_.17} parent=5 // pred_fallthru
        _
      %p668 = scmp.le.s32.totalorder 2, %s12
      // Predicated region
      $region131: #{_lambda_.17} parent=5 // pred_check
        %p669 = pneg %p668
      $region132: #{_lambda_.17} parent=5 // pred_check_branch
        %671 = sbr.rel (%p669) target = $region134
      $region133: #{_lambda_.17} parent=5 // pred_region
        %s672 = ssub.s32 %s12, 2
        // Predicated region
        $region135: #{_lambda_.17} parent=133 // pred_check
          %p673 = pneg %p197
        $region136: #{_lambda_.17} parent=133 // pred_check_branch
          %675 = sbr.rel (%p673) target = $region138
        $region137: #{_lambda_.17} parent=133 // pred_region
          %p676 = scmp.lt.s32.totalorder %s23, 1
          %s677 = scalar_select %p676, %s23, 1
          %p678 = scmp.lt.s32.totalorder %s24, 0
          %s679 = scalar_select %p678, %s24, 0
          %s680 = smul.addr %s677, 2
          %s681 = sadd.s32 %s679, %s680
          %s682 = smul.addr %s681, 4
          %s683 = scalar_lea.vmem %s6, %s682
        $region138: #{_lambda_.17} parent=133 // pred_fallthru
          _
      $region134: #{_lambda_.17} parent=5 // pred_fallthru
        _
    $region6: #{_lambda_.17} parent=1 // loop_footer
      %s16 = sadd.s32 1, %s12
    $region7: #{_lambda_.17} parent=1 // loop_footer_branch
      %11 = sbr.rel target = $region3
    $region8: #{_lambda_.17} parent=1 // loop_exit
      _

// kernel: _lambda_.18
$region0: #{_lambda_.18}
  #allocation0 [shape = 'u32[]', space=smem, size = 0x4, offset = 0x4, fixed_abs, tag = 'smem constant byte address 0x4 - core index']
  #allocation1 [shape = 'u32[72,128]{1,0:T(1,128)}', space=vmem, size = 0x9000, scoped, tag = 'internal scratch']
  %s0 = inlined_call_operand.vmem [shape: bf16[2,16,256], index: 0, kind: input, shape index: {}, may-alias: {0,1}]
  %s1 = inlined_call_operand.vmem [shape: bf16[2,16,256], index: 1, kind: input, shape index: {}, may-alias: {0,1}]
  %s2 = inlined_call_operand.vmem [shape: bf16[16,32], index: 2, kind: input, shape index: {}]
  %s3 = inlined_call_operand.vmem [shape: f32[16,1], index: 3, kind: input, shape index: {}]
  %s4 = inlined_call_operand.vmem [shape: bf16[2,16,128], index: 4, kind: output, shape index: {}]
  %s5 = sld [smem:[#allocation0]]
  $region131: #{_lambda_.18} parent=0
    _
  %s7 = ssub.s32 1, %s5
  %s8 = scalar_select 0, %s7, %s5
  $region1: #{_lambda_.18} parent=0
    #allocation2 [shape = 'u8[8192]{0}', space=vmem, size = 0x2000, scoped, tag = 'input window, operand 0']
    #allocation3 [shape = 'u8[8192]{0}', space=vmem, size = 0x2000, scoped, tag = 'input window, operand 1']
    loop: start=0, step=1, limit=4
    $region2: #{_lambda_.18} parent=1 // loop_pre_header
      _
    $region3: #{_lambda_.18} parent=1 // loop_header
      %s10 = sphi 0, %s14
      %p11 = scmp.ge.s32.totalorder %s10, 4
      %s17 = sphi 0, %s29
      %s18 = sphi 0, %s25
      %s19 = sphi 0, %s17
      %s20 = sphi 0, %s18
      %s21 = sphi 0, %s19
      %s22 = sphi 0, %s20
      %s34 = sphi 0, %s36
      %s37 = sphi 0, %s34
      %s38 = sphi 0, %s37
      %s54 = sphi 0, %s38
      %s64 = sphi 0, %s66
      %s67 = sphi 0, %s64
      %s68 = sphi 0, %s67
      %s84 = sphi 0, %s68
      %s88 = sphi 0, %s88
      %s90 = sphi 0, %s88
      %s91 = sphi 0, %s90
      %s105 = sphi 0, %s91
      %s109 = sphi 0, %s109
      %s111 = sphi 0, %s109
      %s112 = sphi 0, %s111
      %s126 = sphi 0, %s112
      %s134 = sphi 0, %s136
      %s137 = sphi 0, %s134
      %s138 = sphi 0, %s137
      %s154 = sphi 0, %s138
    $region4: #{_lambda_.18} parent=1 // loop_header_branch
      %13 = sbr.rel (%p11) target = $region8
    $region5: #{_lambda_.18} parent=1 // loop_body
      %s15 = ssub.s32 %s10, 1
      %s16 = ssub.s32 %s10, 2
      %s23 = sadd.s32 1, %s18
      %p24 = scmp.ge.s32.totalorder %s23, 1
      %s25 = scalar_select %p24, 0, %s23
      %s26 = sadd.s32 1, %s17
      %s27 = scalar_select %p24, %s26, %s17
      %p28 = scmp.ge.s32.totalorder %s27, 2
      %s29 = scalar_select %p28, 0, %s27
      %s30 = ssub.s32 %s17, %s29
      %s31 = ssub.s32 %s18, %s25
      %s32 = sor.u32 %s30, %s31
      %p33 = scmp.eq.s32.totalorder %s32, 0
      %s35 = sadd.s32 %s34, 1
      %s36 = scalar_select %p33, %s34, %s35
      %p39 = pneg %p33
      %p40 = scmp.eq.s32.totalorder %s10, 1
      %p41 = por %p39, %p40
      %p42 = scmp.ne.s32.totalorder %s34, %s37
      %p43 = scmp.eq.s32.totalorder %s10, 0
      %p44 = por %p42, %p43
      %p45 = scmp.ne.s32.totalorder %s34, %s37
      %p46 = scmp.eq.s32.totalorder %s15, 1
      %p47 = por %p45, %p46
      %p48 = scmp.ne.s32.totalorder %s37, %s38
      %p49 = scmp.eq.s32.totalorder %s15, 0
      %p50 = por %p48, %p49
      %p51 = scmp.ne.s32.totalorder %s37, %s38
      %p52 = scmp.eq.s32.totalorder %s16, 1
      %p53 = por %p51, %p52
      %p55 = scmp.ne.s32.totalorder %s38, %s54
      %p56 = scmp.eq.s32.totalorder %s16, 0
      %p57 = por %p55, %p56
      %s58 = sadd.s32 %s18, 1
      %s59 = sadd.s32 %s25, 1
      %s60 = ssub.s32 %s17, %s29
      %s61 = ssub.s32 %s58, %s59
      %s62 = sor.u32 %s60, %s61
      %p63 = scmp.eq.s32.totalorder %s62, 0
      %s65 = sadd.s32 %s64, 1
      %s66 = scalar_select %p63, %s64, %s65
      %p69 = pneg %p63
      %p70 = scmp.eq.s32.totalorder %s10, 1
      %p71 = por %p69, %p70
      %p72 = scmp.ne.s32.totalorder %s64, %s67
      %p73 = scmp.eq.s32.totalorder %s10, 0
      %p74 = por %p72, %p73
      %p75 = scmp.ne.s32.totalorder %s64, %s67
      %p76 = scmp.eq.s32.totalorder %s15, 1
      %p77 = por %p75, %p76
      %p78 = scmp.ne.s32.totalorder %s67, %s68
      %p79 = scmp.eq.s32.totalorder %s15, 0
      %p80 = por %p78, %p79
      %p81 = scmp.ne.s32.totalorder %s67, %s68
      %p82 = scmp.eq.s32.totalorder %s16, 1
      %p83 = por %p81, %p82
      %p85 = scmp.ne.s32.totalorder %s68, %s84
      %p86 = scmp.eq.s32.totalorder %s16, 0
      %p87 = por %p85, %p86
      %s89 = sadd.s32 %s88, 1
      %p92 = scmp.eq.s32.totalorder %s10, 1
      %p93 = scmp.ne.s32.totalorder %s88, %s90
      %p94 = scmp.eq.s32.totalorder %s10, 0
      %p95 = por %p93, %p94
      %p96 = scmp.ne.s32.totalorder %s88, %s90
      %p97 = scmp.eq.s32.totalorder %s15, 1
      %p98 = por %p96, %p97
      %p99 = scmp.ne.s32.totalorder %s90, %s91
      %p100 = scmp.eq.s32.totalorder %s15, 0
      %p101 = por %p99, %p100
      %p102 = scmp.ne.s32.totalorder %s90, %s91
      %p103 = scmp.eq.s32.totalorder %s16, 1
      %p104 = por %p102, %p103
      %p106 = scmp.ne.s32.totalorder %s91, %s105
      %p107 = scmp.eq.s32.totalorder %s16, 0
      %p108 = por %p106, %p107
      %s110 = sadd.s32 %s109, 1
      %p113 = scmp.eq.s32.totalorder %s10, 1
      %p114 = scmp.ne.s32.totalorder %s109, %s111
      %p115 = scmp.eq.s32.totalorder %s10, 0
      %p116 = por %p114, %p115
      %p117 = scmp.ne.s32.totalorder %s109, %s111
      %p118 = scmp.eq.s32.totalorder %s15, 1
      %p119 = por %p117, %p118
      %p120 = scmp.ne.s32.totalorder %s111, %s112
      %p121 = scmp.eq.s32.totalorder %s15, 0
      %p122 = por %p120, %p121
      %p123 = scmp.ne.s32.totalorder %s111, %s112
      %p124 = scmp.eq.s32.totalorder %s16, 1
      %p125 = por %p123, %p124
      %p127 = scmp.ne.s32.totalorder %s112, %s126
      %p128 = scmp.eq.s32.totalorder %s16, 0
      %p129 = por %p127, %p128
      %s130 = ssub.s32 %s17, %s29
      %s131 = ssub.s32 %s18, %s25
      %s132 = sor.u32 %s130, %s131
      %p133 = scmp.eq.s32.totalorder %s132, 0
      %s135 = sadd.s32 %s134, 1
      %s136 = scalar_select %p133, %s134, %s135
      %p139 = pneg %p133
      %p140 = scmp.eq.s32.totalorder %s10, 1
      %p141 = por %p139, %p140
      %p142 = scmp.ne.s32.totalorder %s134, %s137
      %p143 = scmp.eq.s32.totalorder %s10, 0
      %p144 = por %p142, %p143
      %p145 = scmp.ne.s32.totalorder %s134, %s137
      %p146 = scmp.eq.s32.totalorder %s15, 1
      %p147 = por %p145, %p146
      %p148 = scmp.ne.s32.totalorder %s137, %s138
      %p149 = scmp.eq.s32.totalorder %s15, 0
      %p150 = por %p148, %p149
      %p151 = scmp.ne.s32.totalorder %s137, %s138
      %p152 = scmp.eq.s32.totalorder %s16, 1
      %p153 = por %p151, %p152
      %p155 = scmp.ne.s32.totalorder %s138, %s154
      %p156 = scmp.eq.s32.totalorder %s16, 0
      %p157 = por %p155, %p156
      %p158 = scmp.le.s32.totalorder 1, %s10
      %p159 = scmp.lt.s32.totalorder %s10, 3
      %p160 = pnand %p158, %p159
      %p161 = pneg %p160
      // Predicated region
      $region9: #{_lambda_.18} parent=5 // pred_check
        _
      $region10: #{_lambda_.18} parent=5 // pred_check_branch
        %163 = sbr.rel (%p160) target = $region12
      $region11: #{_lambda_.18} parent=5 // pred_region
        %s164 = ssub.s32 %s10, 1
        // Predicated region
        $region13: #{_lambda_.18} parent=11 // pred_check
          %p165 = pneg %p101
        $region14: #{_lambda_.18} parent=11 // pred_check_branch
          %167 = sbr.rel (%p165) target = $region16
        $region15: #{_lambda_.18} parent=11 // pred_region
          _
        $region16: #{_lambda_.18} parent=11 // pred_fallthru
          _
        // Predicated region
        $region17: #{_lambda_.18} parent=11 // pred_check
          %p168 = pneg %p122
        $region18: #{_lambda_.18} parent=11 // pred_check_branch
          %170 = sbr.rel (%p168) target = $region20
        $region19: #{_lambda_.18} parent=11 // pred_region
          _
        $region20: #{_lambda_.18} parent=11 // pred_fallthru
          _
      $region12: #{_lambda_.18} parent=5 // pred_fallthru
        _
      %p171 = scmp.lt.s32.totalorder %s10, 2
      // Predicated region
      $region21: #{_lambda_.18} parent=5 // pred_check
        %p172 = pneg %p171
      $region22: #{_lambda_.18} parent=5 // pred_check_branch
        %174 = sbr.rel (%p172) target = $region24
      $region23: #{_lambda_.18} parent=5 // pred_region
        // Predicated region
        $region25: #{_lambda_.18} parent=23 // pred_check
          %p175 = pneg %p44
        $region26: #{_lambda_.18} parent=23 // pred_check_branch
          %177 = sbr.rel (%p175) target = $region28
        $region27: #{_lambda_.18} parent=23 // pred_region
          %s178 = sand.u32 %s34, 1
          %s179 = sand.u32 %s34, 1
          %s180 = smul.addr %s179, 8
          %s181 = scalar_lea.vmem [#allocation2], %s180
          %s182 = smul.addr %s17, 4
          %s183 = sadd.s32 %s18, %s182
          %s184 = smul.addr %s183, 4
          %s185 = scalar_lea.vmem %s0, %s184
          // Predicated region
          $region29: #{_lambda_.18} parent=27 // pred_check
            _
          $region30: #{_lambda_.18} parent=27 // pred_check_branch
            %187 = sbr.rel (0) target = $region32
          $region31: #{_lambda_.18} parent=27 // pred_region
            // Predicated region
            $region33: #{_lambda_.18} parent=31 // pred_check
              _
            $region34: #{_lambda_.18} parent=31 // pred_check_branch
              %189 = sbr.rel target = $region36
            $region35: #{_lambda_.18} parent=31 // pred_region
              // Predicated region
              $region48: #{_lambda_.18} parent=35 // pred_check
                _
              $region49: #{_lambda_.18} parent=35 // pred_check_branch
                %207 = sbr.rel (0) target = $region51
              $region50: #{_lambda_.18} parent=35 // pred_region
                loop: start=0, step=1, limit=1
                $region52: #{_lambda_.18} parent=50 // loop_pre_header
                  _
                $region53: #{_lambda_.18} parent=50 // loop_header
                  %s209 = sphi 0, %s213
                  %p210 = scmp.ge.s32.totalorder %s209, 1
                  %s214 = sphi %s185, %s185
                  %s215 = sphi %s181, %s181
                $region54: #{_lambda_.18} parent=50 // loop_header_branch
                  %212 = sbr.rel (%p210) target = $region58
                $region55: #{_lambda_.18} parent=50 // loop_body
                  _
                $region56: #{_lambda_.18} parent=50 // loop_footer
                  %s213 = sadd.s32 1, %s209
                $region57: #{_lambda_.18} parent=50 // loop_footer_branch
                  %208 = sbr.rel target = $region53
                $region58: #{_lambda_.18} parent=50 // loop_exit
                  _
                %s217 = ssub.s32 16, 1
                loop: start=0, step=1, limit=1
                $region59: #{_lambda_.18} parent=50 // loop_pre_header
                  _
                $region60: #{_lambda_.18} parent=50 // loop_header
                  %s219 = sphi 0, %s223
                  %p220 = scmp.ge.s32.totalorder %s219, 1
                  %s224 = sphi %s185, %s185
                  %s225 = sphi %s181, %s181
                $region61: #{_lambda_.18} parent=50 // loop_header_branch
                  %222 = sbr.rel (%p220) target = $region65
                $region62: #{_lambda_.18} parent=50 // loop_body
                  %v226 = vld [vmem:[%s224] sm:%s217]
                  %227 = vst [vmem:[%s225] sm:%s217] %v226
                  %v228 = vld [vmem:[%s224 + $0x8] sm:%s217]
                  %229 = vst [vmem:[%s225 + $0x4] sm:%s217] %v228
                $region63: #{_lambda_.18} parent=50 // loop_footer
                  %s223 = sadd.s32 1, %s219
                $region64: #{_lambda_.18} parent=50 // loop_footer_branch
                  %218 = sbr.rel target = $region60
                $region65: #{_lambda_.18} parent=50 // loop_exit
                  _
              $region51: #{_lambda_.18} parent=35 // pred_fallthru
                _
            $region36: #{_lambda_.18} parent=31 // pred_fallthru
              _
            // Predicated region
            $region37: #{_lambda_.18} parent=31 // pred_check
              _
            $region38: #{_lambda_.18} parent=31 // pred_check_branch
              %191 = sbr.rel (0) target = $region40
            $region39: #{_lambda_.18} parent=31 // pred_region
              %s193 = ssub.s32 16, 1
              loop: start=0, step=1, limit=1
              $region41: #{_lambda_.18} parent=39 // loop_pre_header
                _
              $region42: #{_lambda_.18} parent=39 // loop_header
                %s195 = sphi 0, %s199
                %p196 = scmp.ge.s32.totalorder %s195, 1
                %s200 = sphi %s185, %s185
                %s201 = sphi %s181, %s181
              $region43: #{_lambda_.18} parent=39 // loop_header_branch
                %198 = sbr.rel (%p196) target = $region47
              $region44: #{_lambda_.18} parent=39 // loop_body
                %v202 = vld [vmem:[%s200] sm:%s193]
                %203 = vst [vmem:[%s201] sm:%s193] %v202
                %v204 = vld [vmem:[%s200 + $0x8] sm:%s193]
                %205 = vst [vmem:[%s201 + $0x4] sm:%s193] %v204
              $region45: #{_lambda_.18} parent=39 // loop_footer
                %s199 = sadd.s32 1, %s195
              $region46: #{_lambda_.18} parent=39 // loop_footer_branch
                %194 = sbr.rel target = $region42
              $region47: #{_lambda_.18} parent=39 // loop_exit
                _
            $region40: #{_lambda_.18} parent=31 // pred_fallthru
              _
          $region32: #{_lambda_.18} parent=27 // pred_fallthru
            _
          %230 = vnop
        $region28: #{_lambda_.18} parent=23 // pred_fallthru
          _
        // Predicated region
        $region66: #{_lambda_.18} parent=23 // pred_check
          %p231 = pneg %p74
        $region67: #{_lambda_.18} parent=23 // pred_check_branch
          %233 = sbr.rel (%p231) target = $region69
        $region68: #{_lambda_.18} parent=23 // pred_region
          %s234 = sand.u32 %s64, 1
          %s235 = sand.u32 %s64, 1
          %s236 = smul.addr %s235, 8
          %s237 = scalar_lea.vmem [#allocation3], %s236
          %s238 = sadd.s32 %s18, 1
          %s239 = smul.addr %s17, 4
          %s240 = sadd.s32 %s238, %s239
          %s241 = smul.addr %s240, 4
          %s242 = scalar_lea.vmem %s1, %s241
          // Predicated region
          $region70: #{_lambda_.18} parent=68 // pred_check
            _
          $region71: #{_lambda_.18} parent=68 // pred_check_branch
            %244 = sbr.rel (0) target = $region73
          $region72: #{_lambda_.18} parent=68 // pred_region
            // Predicated region
            $region74: #{_lambda_.18} parent=72 // pred_check
              _
            $region75: #{_lambda_.18} parent=72 // pred_check_branch
              %246 = sbr.rel target = $region77
            $region76: #{_lambda_.18} parent=72 // pred_region
              // Predicated region
              $region89: #{_lambda_.18} parent=76 // pred_check
                _
              $region90: #{_lambda_.18} parent=76 // pred_check_branch
                %264 = sbr.rel (0) target = $region92
              $region91: #{_lambda_.18} parent=76 // pred_region
                loop: start=0, step=1, limit=1
                $region93: #{_lambda_.18} parent=91 // loop_pre_header
                  _
                $region94: #{_lambda_.18} parent=91 // loop_header
                  %s266 = sphi 0, %s270
                  %p267 = scmp.ge.s32.totalorder %s266, 1
                  %s271 = sphi %s242, %s242
                  %s272 = sphi %s237, %s237
                $region95: #{_lambda_.18} parent=91 // loop_header_branch
                  %269 = sbr.rel (%p267) target = $region99
                $region96: #{_lambda_.18} parent=91 // loop_body
                  _
                $region97: #{_lambda_.18} parent=91 // loop_footer
                  %s270 = sadd.s32 1, %s266
                $region98: #{_lambda_.18} parent=91 // loop_footer_branch
                  %265 = sbr.rel target = $region94
                $region99: #{_lambda_.18} parent=91 // loop_exit
                  _
                %s274 = ssub.s32 16, 1
                loop: start=0, step=1, limit=1
                $region100: #{_lambda_.18} parent=91 // loop_pre_header
                  _
                $region101: #{_lambda_.18} parent=91 // loop_header
                  %s276 = sphi 0, %s280
                  %p277 = scmp.ge.s32.totalorder %s276, 1
                  %s281 = sphi %s242, %s242
                  %s282 = sphi %s237, %s237
                $region102: #{_lambda_.18} parent=91 // loop_header_branch
                  %279 = sbr.rel (%p277) target = $region106
                $region103: #{_lambda_.18} parent=91 // loop_body
                  %v283 = vld [vmem:[%s281] sm:%s274]
                  %284 = vst [vmem:[%s282] sm:%s274] %v283
                  %v285 = vld [vmem:[%s281 + $0x8] sm:%s274]
                  %286 = vst [vmem:[%s282 + $0x4] sm:%s274] %v285
                $region104: #{_lambda_.18} parent=91 // loop_footer
                  %s280 = sadd.s32 1, %s276
                $region105: #{_lambda_.18} parent=91 // loop_footer_branch
                  %275 = sbr.rel target = $region101
                $region106: #{_lambda_.18} parent=91 // loop_exit
                  _
              $region92: #{_lambda_.18} parent=76 // pred_fallthru
                _
            $region77: #{_lambda_.18} parent=72 // pred_fallthru
              _
            // Predicated region
            $region78: #{_lambda_.18} parent=72 // pred_check
              _
            $region79: #{_lambda_.18} parent=72 // pred_check_branch
              %248 = sbr.rel (0) target = $region81
            $region80: #{_lambda_.18} parent=72 // pred_region
              %s250 = ssub.s32 16, 1
              loop: start=0, step=1, limit=1
              $region82: #{_lambda_.18} parent=80 // loop_pre_header
                _
              $region83: #{_lambda_.18} parent=80 // loop_header
                %s252 = sphi 0, %s256
                %p253 = scmp.ge.s32.totalorder %s252, 1
                %s257 = sphi %s242, %s242
                %s258 = sphi %s237, %s237
              $region84: #{_lambda_.18} parent=80 // loop_header_branch
                %255 = sbr.rel (%p253) target = $region88
              $region85: #{_lambda_.18} parent=80 // loop_body
                %v259 = vld [vmem:[%s257] sm:%s250]
                %260 = vst [vmem:[%s258] sm:%s250] %v259
                %v261 = vld [vmem:[%s257 + $0x8] sm:%s250]
                %262 = vst [vmem:[%s258 + $0x4] sm:%s250] %v261
              $region86: #{_lambda_.18} parent=80 // loop_footer
                %s256 = sadd.s32 1, %s252
              $region87: #{_lambda_.18} parent=80 // loop_footer_branch
                %251 = sbr.rel target = $region83
              $region88: #{_lambda_.18} parent=80 // loop_exit
                _
            $region81: #{_lambda_.18} parent=72 // pred_fallthru
              _
          $region73: #{_lambda_.18} parent=68 // pred_fallthru
            _
          %287 = vnop
        $region69: #{_lambda_.18} parent=23 // pred_fallthru
          _
      $region24: #{_lambda_.18} parent=5 // pred_fallthru
        _
      %p288 = scmp.le.s32.totalorder 1, %s10
      %p289 = scmp.lt.s32.totalorder %s10, 3
      %p290 = pnand %p288, %p289
      %p291 = pneg %p290
      // Predicated region
      $region107: #{_lambda_.18} parent=5 // pred_check
        _
      $region108: #{_lambda_.18} parent=5 // pred_check_branch
        %293 = sbr.rel (%p290) target = $region110
      $region109: #{_lambda_.18} parent=5 // pred_region
        %s294 = ssub.s32 %s10, 1
        %s295 = sand.u32 %s37, 1
        %s296 = sand.u32 %s37, 1
        %s297 = smul.addr %s296, 8
        %s298 = scalar_lea.vmem [#allocation2], %s297
        // Predicated region
        $region111: #{_lambda_.18} parent=109 // pred_check
          %p299 = pneg %p50
        $region112: #{_lambda_.18} parent=109 // pred_check_branch
          %301 = sbr.rel (%p299) target = $region114
        $region113: #{_lambda_.18} parent=109 // pred_region
          _
        $region114: #{_lambda_.18} parent=109 // pred_fallthru
          _
        %s302 = sand.u32 %s67, 1
        %s303 = sand.u32 %s67, 1
        %s304 = smul.addr %s303, 8
        %s305 = scalar_lea.vmem [#allocation3], %s304
        // Predicated region
        $region115: #{_lambda_.18} parent=109 // pred_check
          %p306 = pneg %p80
        $region116: #{_lambda_.18} parent=109 // pred_check_branch
          %308 = sbr.rel (%p306) target = $region118
        $region117: #{_lambda_.18} parent=109 // pred_region
          _
        $region118: #{_lambda_.18} parent=109 // pred_fallthru
          _
        %s309 = sand.u32 %s37, 1
        %s310 = sand.u32 %s37, 1
        %s311 = smul.addr %s310, 8
        %s312 = scalar_lea.vmem [#allocation2], %s311
        %p313 = pneg %p50
        %p314 = pneg %p47
        %s315 = sand.u32 %s67, 1
        %s316 = sand.u32 %s67, 1
        %s317 = smul.addr %s316, 8
        %s318 = scalar_lea.vmem [#allocation3], %s317
        %p319 = pneg %p80
        %p320 = pneg %p77
        %p321 = pneg %p101
        %p322 = pneg %p98
        %p323 = pneg %p122
        %p324 = pneg %p119
        %p325 = pneg %p150
        %p326 = pneg %p147
        %p327 = scmp.lt.s32.totalorder %s19, 1
        %s328 = scalar_select %p327, %s19, 1
        %p329 = scmp.lt.s32.totalorder %s20, 0
        %s330 = scalar_select %p329, %s20, 0
        %s331 = smul.addr %s328, 2
        %s332 = sadd.s32 %s330, %s331
        %s333 = smul.addr %s332, 4
        %s334 = scalar_lea.vmem %s4, %s333
        %s335 = sadd.s32 %s20, 1
        %p336 = scmp.lt.s32.totalorder %s19, 1
        %s337 = scalar_select %p336, %s19, 1
        %p338 = scmp.lt.s32.totalorder %s20, 0
        %s339 = scalar_select %p338, %s20, 0
        %s340 = smul.addr %s337, 2
        %s341 = sadd.s32 %s339, %s340
        %s342 = smul.addr %s341, 4
        %s343 = scalar_lea.vmem %s4, %s342
        %v345 = vld [vmem:[%s298] sm:$0xf]
        %v346 = vld [vmem:[%s298 + $0x4] sm:$0xf]
        %v347 = vld [vmem:[%s305] sm:$0xf]
        %v348 = vld [vmem:[%s305 + $0x4] sm:$0xf]
        %v351 = vunpack.c.l.b16 %v345
        %v352 = vunpack.c.l.b16 %v346
        %v353 = vpack.c.b16 %v352, %v351
        %v357 = vunpack.c.l.b16 %v347
        %v358 = vunpack.c.l.b16 %v348
        %v359 = vpack.c.b16 %v358, %v357
        %v361 = vunpack.c.l.bf16 %v353
        %v362 = vunpack.c.l.bf16 %v359
        %v363 = vunpack.c.h.bf16 %v353
        %v364 = vunpack.c.h.bf16 %v359
        %vm365 = vcmp.ge.f32.partialorder %v361, 0.0
        %vm366 = vcmp.ge.f32.partialorder %v362, 0.0
        %vm367 = vcmp.ge.f32.partialorder %v363, 0.0
        %vm368 = vcmp.ge.f32.partialorder %v364, 0.0
        %v369 = vmul.f32 %v361, 0.1
        %v370 = vmul.f32 %v362, 0.1
        %v371 = vmul.f32 %v363, 0.1
        %v372 = vmul.f32 %v364, 0.1
        %v373 = vsel %vm365, %v361, %v369
        %v374 = vsel %vm366, %v362, %v370
        %v375 = vsel %vm367, %v363, %v371
        %v376 = vsel %vm368, %v364, %v372
        %v377 = vpack.c.bf16 %v374, %v373
        %v378 = vpack.c.bf16 %v376, %v375
        %v381 = vunpack.c.l.b16 %v377
        %v382 = vunpack.c.l.b16 %v378
        %v383 = vpack.c.b16 %v382, %v381
        %v385 = vunpack.c.h.b16 %v377
        %v386 = vunpack.c.h.b16 %v378
        %v387 = vpack.c.b16 %v386, %v385
        %388 = vrot.lane.b32.xlu0 %v383, 127
        %v389 = vpop.permute.xlu0 %388
        %390 = vrot.lane.b32.xlu0 %v387, 127
        %v391 = vpop.permute.xlu0 %390
        %vm392 = vcmask 1039360
        %v393 = vsel %vm392, %v389, %v391
        %v395 = vld [vmem:[%s2] sm:$0xf]
        %v396 = vld [vmem:[%s2 + $0x4] sm:$0xf]
        %v397 = vld [vmem:[%s3] sm:$0xff]
        %v398 = vld [vmem:[%s3 + $0x8] sm:$0xff]
        %400 = vset.pattern.permute.xlu0 0
        %401 = vperm.xlu0 %400, %v397
        %v402 = vpop.permute.xlu0 %401
        %405 = vset.pattern.permute.xlu0 0
        %406 = vperm.xlu0 %405, %v398
        %v407 = vpop.permute.xlu0 %406
        %v411 = vunpack.c.l.b16 %v395
        %v412 = vunpack.c.l.b16 %v396
        %v413 = vpack.c.b16 %v412, %v411
        %vm414 = vcmask 261120
        %v416 = vsel %vm414, %v413, 0
        %418 = vmatpush.bf16.msra.mxu0 0
        %419 = vmatpush.bf16.msra.mxu0 0
        %420 = vmatpush.bf16.msra.mxu0 0
        %421 = vmatpush.bf16.msra.mxu0 0
        %422 = vmatpush.bf16.msra.mxu0 0
        %423 = vmatpush.bf16.msra.mxu0 0
        %424 = vmatpush.bf16.msra.mxu0 %v393
        %425 = vmatpush.bf16.msra.mxu0 %v383
        %426 = vmatmul.bf16.gmra.mxu0 %v416
        %v427 = vpop.f32.mrf.mxu0
        %v428 = vadd.f32 %v402, %v427
        %v429 = vpop.f32.mrf.mxu0
        %v430 = vadd.f32 %v407, %v429
        %431 = vdwg.mxu0
        %v432 = vpack.c.bf16 %v428, %v428
        %v433 = vpack.c.bf16 %v430, %v430
        %434 = vst [vmem:[%s343] sm:$0xf] %v432
        %435 = vst [vmem:[%s343 + $0x4] sm:$0xf] %v433
        %p436 = scmp.lt.s32.totalorder %s19, 1
        %s437 = scalar_select %p436, %s19, 1
        %p438 = scmp.lt.s32.totalorder %s20, 0
        %s439 = scalar_select %p438, %s20, 0
        %s440 = smul.addr %s437, 2
        %s441 = sadd.s32 %s439, %s440
        %s442 = smul.addr %s441, 4
        %s443 = scalar_lea.vmem %s4, %s442
        // Predicated region
        $region119: #{_lambda_.18} parent=109 // pred_check
          %p444 = pneg %p147
        $region120: #{_lambda_.18} parent=109 // pred_check_branch
          %446 = sbr.rel (%p444) target = $region122
        $region121: #{_lambda_.18} parent=109 // pred_region
          _
        $region122: #{_lambda_.18} parent=109 // pred_fallthru
          _
      $region110: #{_lambda_.18} parent=5 // pred_fallthru
        _
      %p447 = scmp.le.s32.totalorder 2, %s10
      // Predicated region
      $region123: #{_lambda_.18} parent=5 // pred_check
        %p448 = pneg %p447
      $region124: #{_lambda_.18} parent=5 // pred_check_branch
        %450 = sbr.rel (%p448) target = $region126
      $region125: #{_lambda_.18} parent=5 // pred_region
        %s451 = ssub.s32 %s10, 2
        // Predicated region
        $region127: #{_lambda_.18} parent=125 // pred_check
          %p452 = pneg %p153
        $region128: #{_lambda_.18} parent=125 // pred_check_branch
          %454 = sbr.rel (%p452) target = $region130
        $region129: #{_lambda_.18} parent=125 // pred_region
          %p455 = scmp.lt.s32.totalorder %s21, 1
          %s456 = scalar_select %p455, %s21, 1
          %p457 = scmp.lt.s32.totalorder %s22, 0
          %s458 = scalar_select %p457, %s22, 0
          %s459 = smul.addr %s456, 2
          %s460 = sadd.s32 %s458, %s459
          %s461 = smul.addr %s460, 4
          %s462 = scalar_lea.vmem %s4, %s461
        $region130: #{_lambda_.18} parent=125 // pred_fallthru
          _
      $region126: #{_lambda_.18} parent=5 // pred_fallthru
        _
    $region6: #{_lambda_.18} parent=1 // loop_footer
      %s14 = sadd.s32 1, %s10
    $region7: #{_lambda_.18} parent=1 // loop_footer_branch
      %9 = sbr.rel target = $region3
    $region8: #{_lambda_.18} parent=1 // loop_exit
      _

// kernel: _lambda_.19
$region0: #{_lambda_.19}
  #allocation0 [shape = 'u32[]', space=smem, size = 0x4, offset = 0x4, fixed_abs, tag = 'smem constant byte address 0x4 - core index']
  #allocation1 [shape = 'u32[72,128]{1,0:T(1,128)}', space=vmem, size = 0x9000, scoped, tag = 'internal scratch']
  %s0 = inlined_call_operand.vmem [shape: bf16[2,8,256], index: 0, kind: input, shape index: {}, may-alias: {0,1}]
  %s1 = inlined_call_operand.vmem [shape: bf16[2,8,256], index: 1, kind: input, shape index: {}, may-alias: {0,1}]
  %s2 = inlined_call_operand.vmem [shape: bf16[8,24], index: 2, kind: input, shape index: {}]
  %s3 = inlined_call_operand.vmem [shape: f32[8,1], index: 3, kind: input, shape index: {}]
  %s4 = inlined_call_operand.vmem [shape: bf16[8,24], index: 4, kind: input, shape index: {}]
  %s5 = inlined_call_operand.vmem [shape: f32[8,1], index: 5, kind: input, shape index: {}]
  %s6 = inlined_call_operand.vmem [shape: bf16[2,8,128], index: 6, kind: output, shape index: {}]
  %s7 = sld [smem:[#allocation0]]
  $region57: #{_lambda_.19} parent=0
    _
  %s9 = ssub.s32 1, %s7
  %s10 = scalar_select 0, %s9, %s7
  loop: start=0, step=1, limit=4
  $region2: #{_lambda_.19} parent=0 // loop_pre_header
    _
  $region3: #{_lambda_.19} parent=0 // loop_header
    %s12 = sphi 0, %s16
    %p13 = scmp.ge.s32.totalorder %s12, 4
    %s19 = sphi 0, %s31
    %s20 = sphi 0, %s27
    %s21 = sphi 0, %s19
    %s22 = sphi 0, %s20
    %s23 = sphi 0, %s21
    %s24 = sphi 0, %s22
    %s36 = sphi 0, %s38
    %s39 = sphi 0, %s36
    %s40 = sphi 0, %s39
    %s56 = sphi 0, %s40
    %s66 = sphi 0, %s68
    %s69 = sphi 0, %s66
    %s70 = sphi 0, %s69
    %s86 = sphi 0, %s70
    %s90 = sphi 0, %s90
    %s92 = sphi 0, %s90
    %s93 = sphi 0, %s92
    %s107 = sphi 0, %s93
    %s111 = sphi 0, %s111
    %s113 = sphi 0, %s111
    %s114 = sphi 0, %s113
    %s128 = sphi 0, %s114
    %s132 = sphi 0, %s132
    %s134 = sphi 0, %s132
    %s135 = sphi 0, %s134
    %s149 = sphi 0, %s135
    %s153 = sphi 0, %s153
    %s155 = sphi 0, %s153
    %s156 = sphi 0, %s155
    %s170 = sphi 0, %s156
    %s178 = sphi 0, %s180
    %s181 = sphi 0, %s178
    %s182 = sphi 0, %s181
    %s198 = sphi 0, %s182
  $region4: #{_lambda_.19} parent=0 // loop_header_branch
    %15 = sbr.rel (%p13) target = $region8
  $region5: #{_lambda_.19} parent=0 // loop_body
    %s17 = ssub.s32 %s12, 1
    %s18 = ssub.s32 %s12, 2
    %s25 = sadd.s32 1, %s20
    %p26 = scmp.ge.s32.totalorder %s25, 1
    %s27 = scalar_select %p26, 0, %s25
    %s28 = sadd.s32 1, %s19
    %s29 = scalar_select %p26, %s28, %s19
    %p30 = scmp.ge.s32.totalorder %s29, 2
    %s31 = scalar_select %p30, 0, %s29
    %s32 = ssub.s32 %s19, %s31
    %s33 = ssub.s32 %s20, %s27
    %s34 = sor.u32 %s32, %s33
    %p35 = scmp.eq.s32.totalorder %s34, 0
    %s37 = sadd.s32 %s36, 1
    %s38 = scalar_select %p35, %s36, %s37
    %p41 = pneg %p35
    %p42 = scmp.eq.s32.totalorder %s12, 1
    %p43 = por %p41, %p42
    %p44 = scmp.ne.s32.totalorder %s36, %s39
    %p45 = scmp.eq.s32.totalorder %s12, 0
    %p46 = por %p44, %p45
    %p47 = scmp.ne.s32.totalorder %s36, %s39
    %p48 = scmp.eq.s32.totalorder %s17, 1
    %p49 = por %p47, %p48
    %p50 = scmp.ne.s32.totalorder %s39, %s40
    %p51 = scmp.eq.s32.totalorder %s17, 0
    %p52 = por %p50, %p51
    %p53 = scmp.ne.s32.totalorder %s39, %s40
    %p54 = scmp.eq.s32.totalorder %s18, 1
    %p55 = por %p53, %p54
    %p57 = scmp.ne.s32.totalorder %s40, %s56
    %p58 = scmp.eq.s32.totalorder %s18, 0
    %p59 = por %p57, %p58
    %s60 = sadd.s32 %s20, 1
    %s61 = sadd.s32 %s27, 1
    %s62 = ssub.s32 %s19, %s31
    %s63 = ssub.s32 %s60, %s61
    %s64 = sor.u32 %s62, %s63
    %p65 = scmp.eq.s32.totalorder %s64, 0
    %s67 = sadd.s32 %s66, 1
    %s68 = scalar_select %p65, %s66, %s67
    %p71 = pneg %p65
    %p72 = scmp.eq.s32.totalorder %s12, 1
    %p73 = por %p71, %p72
    %p74 = scmp.ne.s32.totalorder %s66, %s69
    %p75 = scmp.eq.s32.totalorder %s12, 0
    %p76 = por %p74, %p75
    %p77 = scmp.ne.s32.totalorder %s66, %s69
    %p78 = scmp.eq.s32.totalorder %s17, 1
    %p79 = por %p77, %p78
    %p80 = scmp.ne.s32.totalorder %s69, %s70
    %p81 = scmp.eq.s32.totalorder %s17, 0
    %p82 = por %p80, %p81
    %p83 = scmp.ne.s32.totalorder %s69, %s70
    %p84 = scmp.eq.s32.totalorder %s18, 1
    %p85 = por %p83, %p84
    %p87 = scmp.ne.s32.totalorder %s70, %s86
    %p88 = scmp.eq.s32.totalorder %s18, 0
    %p89 = por %p87, %p88
    %s91 = sadd.s32 %s90, 1
    %p94 = scmp.eq.s32.totalorder %s12, 1
    %p95 = scmp.ne.s32.totalorder %s90, %s92
    %p96 = scmp.eq.s32.totalorder %s12, 0
    %p97 = por %p95, %p96
    %p98 = scmp.ne.s32.totalorder %s90, %s92
    %p99 = scmp.eq.s32.totalorder %s17, 1
    %p100 = por %p98, %p99
    %p101 = scmp.ne.s32.totalorder %s92, %s93
    %p102 = scmp.eq.s32.totalorder %s17, 0
    %p103 = por %p101, %p102
    %p104 = scmp.ne.s32.totalorder %s92, %s93
    %p105 = scmp.eq.s32.totalorder %s18, 1
    %p106 = por %p104, %p105
    %p108 = scmp.ne.s32.totalorder %s93, %s107
    %p109 = scmp.eq.s32.totalorder %s18, 0
    %p110 = por %p108, %p109
    %s112 = sadd.s32 %s111, 1
    %p115 = scmp.eq.s32.totalorder %s12, 1
    %p116 = scmp.ne.s32.totalorder %s111, %s113
    %p117 = scmp.eq.s32.totalorder %s12, 0
    %p118 = por %p116, %p117
    %p119 = scmp.ne.s32.totalorder %s111, %s113
    %p120 = scmp.eq.s32.totalorder %s17, 1
    %p121 = por %p119, %p120
    %p122 = scmp.ne.s32.totalorder %s113, %s114
    %p123 = scmp.eq.s32.totalorder %s17, 0
    %p124 = por %p122, %p123
    %p125 = scmp.ne.s32.totalorder %s113, %s114
    %p126 = scmp.eq.s32.totalorder %s18, 1
    %p127 = por %p125, %p126
    %p129 = scmp.ne.s32.totalorder %s114, %s128
    %p130 = scmp.eq.s32.totalorder %s18, 0
    %p131 = por %p129, %p130
    %s133 = sadd.s32 %s132, 1
    %p136 = scmp.eq.s32.totalorder %s12, 1
    %p137 = scmp.ne.s32.totalorder %s132, %s134
    %p138 = scmp.eq.s32.totalorder %s12, 0
    %p139 = por %p137, %p138
    %p140 = scmp.ne.s32.totalorder %s132, %s134
    %p141 = scmp.eq.s32.totalorder %s17, 1
    %p142 = por %p140, %p141
    %p143 = scmp.ne.s32.totalorder %s134, %s135
    %p144 = scmp.eq.s32.totalorder %s17, 0
    %p145 = por %p143, %p144
    %p146 = scmp.ne.s32.totalorder %s134, %s135
    %p147 = scmp.eq.s32.totalorder %s18, 1
    %p148 = por %p146, %p147
    %p150 = scmp.ne.s32.totalorder %s135, %s149
    %p151 = scmp.eq.s32.totalorder %s18, 0
    %p152 = por %p150, %p151
    %s154 = sadd.s32 %s153, 1
    %p157 = scmp.eq.s32.totalorder %s12, 1
    %p158 = scmp.ne.s32.totalorder %s153, %s155
    %p159 = scmp.eq.s32.totalorder %s12, 0
    %p160 = por %p158, %p159
    %p161 = scmp.ne.s32.totalorder %s153, %s155
    %p162 = scmp.eq.s32.totalorder %s17, 1
    %p163 = por %p161, %p162
    %p164 = scmp.ne.s32.totalorder %s155, %s156
    %p165 = scmp.eq.s32.totalorder %s17, 0
    %p166 = por %p164, %p165
    %p167 = scmp.ne.s32.totalorder %s155, %s156
    %p168 = scmp.eq.s32.totalorder %s18, 1
    %p169 = por %p167, %p168
    %p171 = scmp.ne.s32.totalorder %s156, %s170
    %p172 = scmp.eq.s32.totalorder %s18, 0
    %p173 = por %p171, %p172
    %s174 = ssub.s32 %s19, %s31
    %s175 = ssub.s32 %s20, %s27
    %s176 = sor.u32 %s174, %s175
    %p177 = scmp.eq.s32.totalorder %s176, 0
    %s179 = sadd.s32 %s178, 1
    %s180 = scalar_select %p177, %s178, %s179
    %p183 = pneg %p177
    %p184 = scmp.eq.s32.totalorder %s12, 1
    %p185 = por %p183, %p184
    %p186 = scmp.ne.s32.totalorder %s178, %s181
    %p187 = scmp.eq.s32.totalorder %s12, 0
    %p188 = por %p186, %p187
    %p189 = scmp.ne.s32.totalorder %s178, %s181
    %p190 = scmp.eq.s32.totalorder %s17, 1
    %p191 = por %p189, %p190
    %p192 = scmp.ne.s32.totalorder %s181, %s182
    %p193 = scmp.eq.s32.totalorder %s17, 0
    %p194 = por %p192, %p193
    %p195 = scmp.ne.s32.totalorder %s181, %s182
    %p196 = scmp.eq.s32.totalorder %s18, 1
    %p197 = por %p195, %p196
    %p199 = scmp.ne.s32.totalorder %s182, %s198
    %p200 = scmp.eq.s32.totalorder %s18, 0
    %p201 = por %p199, %p200
    %p202 = scmp.le.s32.totalorder 1, %s12
    %p203 = scmp.lt.s32.totalorder %s12, 3
    %p204 = pnand %p202, %p203
    %p205 = pneg %p204
    // Predicated region
    $region9: #{_lambda_.19} parent=5 // pred_check
      _
    $region10: #{_lambda_.19} parent=5 // pred_check_branch
      %207 = sbr.rel (%p204) target = $region12
    $region11: #{_lambda_.19} parent=5 // pred_region
      %s208 = ssub.s32 %s12, 1
      // Predicated region
      $region13: #{_lambda_.19} parent=11 // pred_check
        %p209 = pneg %p103
      $region14: #{_lambda_.19} parent=11 // pred_check_branch
        %211 = sbr.rel (%p209) target = $region16
      $region15: #{_lambda_.19} parent=11 // pred_region
        _
      $region16: #{_lambda_.19} parent=11 // pred_fallthru
        _
      // Predicated region
      $region17: #{_lambda_.19} parent=11 // pred_check
        %p212 = pneg %p124
      $region18: #{_lambda_.19} parent=11 // pred_check_branch
        %214 = sbr.rel (%p212) target = $region20
      $region19: #{_lambda_.19} parent=11 // pred_region
        _
      $region20: #{_lambda_.19} parent=11 // pred_fallthru
        _
      // Predicated region
      $region21: #{_lambda_.19} parent=11 // pred_check
        %p215 = pneg %p145
      $region22: #{_lambda_.19} parent=11 // pred_check_branch
        %217 = sbr.rel (%p215) target = $region24
      $region23: #{_lambda_.19} parent=11 // pred_region
        _
      $region24: #{_lambda_.19} parent=11 // pred_fallthru
        _
      // Predicated region
      $region25: #{_lambda_.19} parent=11 // pred_check
        %p218 = pneg %p166
      $region26: #{_lambda_.19} parent=11 // pred_check_branch
        %220 = sbr.rel (%p218) target = $region28
      $region27: #{_lambda_.19} parent=11 // pred_region
        _
      $region28: #{_lambda_.19} parent=11 // pred_fallthru
        _
    $region12: #{_lambda_.19} parent=5 // pred_fallthru
      _
    %p221 = scmp.lt.s32.totalorder %s12, 2
    // Predicated region
    $region29: #{_lambda_.19} parent=5 // pred_check
      %p222 = pneg %p221
    $region30: #{_lambda_.19} parent=5 // pred_check_branch
      %224 = sbr.rel (%p222) target = $region32
    $region31: #{_lambda_.19} parent=5 // pred_region
      // Predicated region
      $region33: #{_lambda_.19} parent=31 // pred_check
        %p225 = pneg %p46
      $region34: #{_lambda_.19} parent=31 // pred_check_branch
        %227 = sbr.rel (%p225) target = $region36
      $region35: #{_lambda_.19} parent=31 // pred_region
        %p228 = scmp.lt.s32.totalorder %s19, 1
        %s229 = scalar_select %p228, %s19, 1
        %p230 = scmp.lt.s32.totalorder %s20, 1
        %s231 = scalar_select %p230, %s20, 1
        %s232 = smul.addr %s229, 2
        %s233 = sadd.s32 %s231, %s232
        %s234 = smul.addr %s233, 4
        %s235 = scalar_lea.vmem %s0, %s234
      $region36: #{_lambda_.19} parent=31 // pred_fallthru
        _
      // Predicated region
      $region37: #{_lambda_.19} parent=31 // pred_check
        %p236 = pneg %p76
      $region38: #{_lambda_.19} parent=31 // pred_check_branch
        %238 = sbr.rel (%p236) target = $region40
      $region39: #{_lambda_.19} parent=31 // pred_region
        %s239 = sadd.s32 %s20, 1
        %p240 = scmp.lt.s32.totalorder %s19, 1
        %s241 = scalar_select %p240, %s19, 1
        %p242 = scmp.lt.s32.totalorder %s239, 1
        %s243 = scalar_select %p242, %s239, 1
        %s244 = smul.addr %s241, 2
        %s245 = sadd.s32 %s243, %s244
        %s246 = smul.addr %s245, 4
        %s247 = scalar_lea.vmem %s1, %s246
        %s248 = sadd.s32 %s20, 1
      $region40: #{_lambda_.19} parent=31 // pred_fallthru
        _
    $region32: #{_lambda_.19} parent=5 // pred_fallthru
      _
    %p249 = scmp.le.s32.totalorder 1, %s12
    %p250 = scmp.lt.s32.totalorder %s12, 3
    %p251 = pnand %p249, %p250
    %p252 = pneg %p251
    // Predicated region
    $region41: #{_lambda_.19} parent=5 // pred_check
      _
    $region42: #{_lambda_.19} parent=5 // pred_check_branch
      %254 = sbr.rel (%p251) target = $region44
    $region43: #{_lambda_.19} parent=5 // pred_region
      %s255 = ssub.s32 %s12, 1
      %p256 = scmp.lt.s32.totalorder %s21, 1
      %s257 = scalar_select %p256, %s21, 1
      %p258 = scmp.lt.s32.totalorder %s22, 1
      %s259 = scalar_select %p258, %s22, 1
      %s260 = smul.addr %s257, 2
      %s261 = sadd.s32 %s259, %s260
      %s262 = smul.addr %s261, 4
      %s263 = scalar_lea.vmem %s0, %s262
      %p264 = pneg %p52
      %p265 = pneg %p49
      %s266 = sadd.s32 %s22, 1
      %p267 = scmp.lt.s32.totalorder %s21, 1
      %s268 = scalar_select %p267, %s21, 1
      %p269 = scmp.lt.s32.totalorder %s266, 1
      %s270 = scalar_select %p269, %s266, 1
      %s271 = smul.addr %s268, 2
      %s272 = sadd.s32 %s270, %s271
      %s273 = smul.addr %s272, 4
      %s274 = scalar_lea.vmem %s1, %s273
      %p275 = pneg %p82
      %p276 = pneg %p79
      %p277 = pneg %p103
      %p278 = pneg %p100
      %p279 = pneg %p124
      %p280 = pneg %p121
      %p281 = pneg %p145
      %p282 = pneg %p142
      %p283 = pneg %p166
      %p284 = pneg %p163
      %p285 = pneg %p194
      %p286 = pneg %p191
      %p287 = scmp.lt.s32.totalorder %s21, 1
      %s288 = scalar_select %p287, %s21, 1
      %p289 = scmp.lt.s32.totalorder %s22, 0
      %s290 = scalar_select %p289, %s22, 0
      %s291 = sadd.s32 %s290, %s288
      %s292 = smul.addr %s291, 4
      %s293 = scalar_lea.vmem %s6, %s292
      %p294 = scmp.lt.s32.totalorder %s21, 1
      %s295 = scalar_select %p294, %s21, 1
      %p296 = scmp.lt.s32.totalorder %s22, 1
      %s297 = scalar_select %p296, %s22, 1
      %s298 = smul.addr %s295, 2
      %s299 = sadd.s32 %s297, %s298
      %s300 = smul.addr %s299, 4
      %s301 = scalar_lea.vmem %s0, %s300
      %s302 = sadd.s32 %s22, 1
      %p303 = scmp.lt.s32.totalorder %s21, 1
      %s304 = scalar_select %p303, %s21, 1
      %p305 = scmp.lt.s32.totalorder %s302, 1
      %s306 = scalar_select %p305, %s302, 1
      %s307 = smul.addr %s304, 2
      %s308 = sadd.s32 %s306, %s307
      %s309 = smul.addr %s308, 4
      %s310 = scalar_lea.vmem %s1, %s309
      %s311 = sadd.s32 %s22, 1
      %p312 = scmp.lt.s32.totalorder %s21, 1
      %s313 = scalar_select %p312, %s21, 1
      %p314 = scmp.lt.s32.totalorder %s22, 0
      %s315 = scalar_select %p314, %s22, 0
      %s316 = sadd.s32 %s315, %s313
      %s317 = smul.addr %s316, 4
      %s318 = scalar_lea.vmem %s6, %s317
      %v320 = vld [vmem:[%s301] sm:$0xf]
      %v321 = vld [vmem:[%s310] sm:$0xf]
      %v322 = vunpack.c.l.bf16 %v320
      %v323 = vunpack.c.l.bf16 %v321
      %vm324 = vcmp.ge.f32.partialorder %v322, 0.0
      %vm325 = vcmp.ge.f32.partialorder %v323, 0.0
      %v326 = vmul.f32 %v322, 0.1
      %v327 = vmul.f32 %v323, 0.1
      %v328 = vsel %vm324, %v322, %v326
      %v329 = vsel %vm325, %v323, %v327
      %v330 = vpack.c.bf16 %v329, %v328
      %v332 = vunpack.c.l.b16 %v330
      %v333 = vunpack.c.h.b16 %v330
      %v334 = vpack.c.b16 %v332, %v332
      %v335 = vpack.c.b16 %v333, %v333
      %336 = vrot.lane.b32.xlu0 %v334, 127
      %v337 = vpop.permute.xlu0 %336
      %338 = vrot.lane.b32.xlu0 %v335, 127
      %v339 = vpop.permute.xlu0 %338
      %vm340 = vcmask 1039360
      %v341 = vsel %vm340, %v337, %v339
      %342 = vrot.lane.b32.xlu0 %v334, 126
      %v343 = vpop.permute.xlu0 %342
      %344 = vrot.lane.b32.xlu0 %v335, 126
      %v345 = vpop.permute.xlu0 %344
      %vm346 = vcmask 1031168
      %v347 = vsel %vm346, %v343, %v345
      %vm348 = vcmask 1043456
      %v351 = vsel %vm348, %v334, %v341
      %v355 = vsel %vm348, %v335, %v339
      %v357 = vld [vmem:[%s2] sm:$0xf]
      %v358 = vld [vmem:[%s3] sm:$0xff]
      %360 = vset.pattern.permute.xlu0 0
      %361 = vperm.xlu0 %360, %v358
      %v362 = vpop.permute.xlu0 %361
      %vm364 = vcmask 195584
      %v366 = vsel %vm364, %v357, 0
      %v369 = vsel %vm348, %v347, 0
      %v372 = vsel %vm348, %v345, 0
      %374 = vmatpush.bf16.msra.mxu0 0
      %375 = vmatpush.bf16.msra.mxu0 0
      %376 = vmatpush.bf16.msra.mxu0 0
      %377 = vmatpush.bf16.msra.mxu0 0
      %378 = vmatpush.bf16.msra.mxu0 0
      %379 = vmatpush.bf16.msra.mxu0 0
      %380 = vmatpush.bf16.msra.mxu0 %v369
      %381 = vmatpush.bf16.msra.mxu0 %v351
      %382 = vmatmul.bf16.gmra.mxu0 %v366
      %v383 = vpop.f32.mrf.mxu0
      %v384 = vadd.f32 %v362, %v383
      %v385 = vpop.f32.mrf.mxu0
      %386 = vdwg.mxu0
      %387 = vmatpush.bf16.msra.mxu0 0
      %388 = vmatpush.bf16.msra.mxu0 0
      %389 = vmatpush.bf16.msra.mxu0 0
      %390 = vmatpush.bf16.msra.mxu0 0
      %391 = vmatpush.bf16.msra.mxu0 0
      %392 = vmatpush.bf16.msra.mxu0 0
      %393 = vmatpush.bf16.msra.mxu0 %v372
      %394 = vmatpush.bf16.msra.mxu0 %v355
      %395 = vmatmul.bf16.gmra.mxu0 %v366
      %v396 = vpop.f32.mrf.mxu0
      %v397 = vadd.f32 %v362, %v396
      %v398 = vpop.f32.mrf.mxu0
      %399 = vdwg.mxu0
      %vm400 = vcmp.ge.f32.partialorder %v384, 0.0
      %vm401 = vcmp.ge.f32.partialorder %v397, 0.0
      %v402 = vmul.f32 %v384, 0.1
      %v403 = vmul.f32 %v397, 0.1
      %v404 = vsel %vm400, %v384, %v402
      %v405 = vsel %vm401, %v397, %v403
      %s406 = smul.u32 %s22, 128
      %s407 = ssub.s32 %s406, 1
      %v408 = vlaneseq
      %v409 = vand.u32 %v408, 127
      %v410 = vadd.s32 %v409, 128
      %v411 = vstv %s407
      %v412 = vadd.s32 %v411, %v409
      %v413 = vadd.s32 %v411, %v410
      %vm414 = vcmp.ge.s32.totalorder %v412, 0
      %vm415 = vcmp.ge.s32.totalorder %v413, 0
      %vm416 = vcmp.lt.s32.totalorder %v412, 32
      %vm417 = vcmp.lt.s32.totalorder %v413, 32
      %vm418 = vmand %vm414, %vm416
      %vm419 = vmand %vm415, %vm417
      %v420 = vsel %vm418, 1, 0
      %v421 = vsel %vm419, 1, 0
      %vm422 = vcmp.eq.s32.totalorder %v420, 1
      %vm423 = vcmp.eq.s32.totalorder %v421, 1
      %v424 = vsel %vm422, %v404, 0.0
      %v425 = vsel %vm423, %v405, 0.0
      %v426 = vpack.c.bf16 %v425, %v424
      %v428 = vunpack.c.l.b16 %v426
      %v429 = vunpack.c.h.b16 %v426
      %v430 = vpack.c.b16 %v428, %v428
      %v431 = vpack.c.b16 %v429, %v429
      %432 = vrot.lane.b32.xlu0 %v430, 127
      %v433 = vpop.permute.xlu0 %432
      %434 = vrot.lane.b32.xlu0 %v431, 127
      %v435 = vpop.permute.xlu0 %434
      %v436 = vsel %vm340, %v433, %v435
      %437 = vrot.lane.b32.xlu0 %v430, 126
      %v438 = vpop.permute.xlu0 %437
      %439 = vrot.lane.b32.xlu0 %v431, 126
      %v440 = vpop.permute.xlu0 %439
      %v441 = vsel %vm346, %v438, %v440
      %v444 = vsel %vm348, %v426, %v436
      %v446 = vld [vmem:[%s4] sm:$0xf]
      %v447 = vld [vmem:[%s5] sm:$0xff]
      %449 = vset.pattern.permute.xlu0 0
      %450 = vperm.xlu0 %449, %v447
      %v451 = vpop.permute.xlu0 %450
      %v454 = vsel %vm364, %v446, 0
      %v457 = vsel %vm348, %v441, 0
      %459 = vmatpush.bf16.msra.mxu0 0
      %460 = vmatpush.bf16.msra.mxu0 0
      %461 = vmatpush.bf16.msra.mxu0 0
      %462 = vmatpush.bf16.msra.mxu0 0
      %463 = vmatpush.bf16.msra.mxu0 0
      %464 = vmatpush.bf16.msra.mxu0 0
      %465 = vmatpush.bf16.msra.mxu0 %v457
      %466 = vmatpush.bf16.msra.mxu0 %v444
      %467 = vmatmul.bf16.gmra.mxu0 %v454
      %v468 = vpop.f32.mrf.mxu0
      %v469 = vadd.f32 %v451, %v468
      %v470 = vpop.f32.mrf.mxu0
      %471 = vdwg.mxu0
      %474 = vrot.lane.b32.xlu0 %v322, 126
      %v475 = vpop.permute.xlu0 %474
      %476 = vrot.lane.b32.xlu0 %v323, 126
      %v477 = vpop.permute.xlu0 %476
      %vm478 = vcmask 1031168
      %v479 = vsel %vm478, %v475, %v477
      %v481 = vadd.f32 %v469, %v479
      %v482 = vpack.c.bf16 %v481, %v481
      %483 = vst [vmem:[%s318] sm:$0xf] %v482
      %p484 = scmp.lt.s32.totalorder %s21, 1
      %s485 = scalar_select %p484, %s21, 1
      %p486 = scmp.lt.s32.totalorder %s22, 0
      %s487 = scalar_select %p486, %s22, 0
      %s488 = sadd.s32 %s487, %s485
      %s489 = smul.addr %s488, 4
      %s490 = scalar_lea.vmem %s6, %s489
      // Predicated region
      $region45: #{_lambda_.19} parent=43 // pred_check
        %p491 = pneg %p191
      $region46: #{_lambda_.19} parent=43 // pred_check_branch
        %493 = sbr.rel (%p491) target = $region48
      $region47: #{_lambda_.19} parent=43 // pred_region
        _
      $region48: #{_lambda_.19} parent=43 // pred_fallthru
        _
    $region44: #{_lambda_.19} parent=5 // pred_fallthru
      _
    %p494 = scmp.le.s32.totalorder 2, %s12
    // Predicated region
    $region49: #{_lambda_.19} parent=5 // pred_check
      %p495 = pneg %p494
    $region50: #{_lambda_.19} parent=5 // pred_check_branch
      %497 = sbr.rel (%p495) target = $region52
    $region51: #{_lambda_.19} parent=5 // pred_region
      %s498 = ssub.s32 %s12, 2
      // Predicated region
      $region53: #{_lambda_.19} parent=51 // pred_check
        %p499 = pneg %p197
      $region54: #{_lambda_.19} parent=51 // pred_check_branch
        %501 = sbr.rel (%p499) target = $region56
      $region55: #{_lambda_.19} parent=51 // pred_region
        %p502 = scmp.lt.s32.totalorder %s23, 1
        %s503 = scalar_select %p502, %s23, 1
        %p504 = scmp.lt.s32.totalorder %s24, 0
        %s505 = scalar_select %p504, %s24, 0
        %s506 = sadd.s32 %s505, %s503
        %s507 = smul.addr %s506, 4
        %s508 = scalar_lea.vmem %s6, %s507
      $region56: #{_lambda_.19} parent=51 // pred_fallthru
        _
    $region52: #{_lambda_.19} parent=5 // pred_fallthru
      _
  $region6: #{_lambda_.19} parent=0 // loop_footer
    %s16 = sadd.s32 1, %s12
  $region7: #{_lambda_.19} parent=0 // loop_footer_branch
    %11 = sbr.rel target = $region3
  $region8: #{_lambda_.19} parent=0 // loop_exit
    _

// kernel: _lambda_.21
$region0: #{_lambda_.21}
  #allocation0 [shape = 'u32[]', space=smem, size = 0x4, offset = 0x4, fixed_abs, tag = 'smem constant byte address 0x4 - core index']
  #allocation1 [shape = 'u32[72,128]{1,0:T(1,128)}', space=vmem, size = 0x9000, scoped, tag = 'internal scratch']
  %s0 = inlined_call_operand.vmem [shape: bf16[2,8,256], index: 0, kind: input, shape index: {}, may-alias: {0,1}]
  %s1 = inlined_call_operand.vmem [shape: bf16[2,8,256], index: 1, kind: input, shape index: {}, may-alias: {0,1}]
  %s2 = inlined_call_operand.vmem [shape: bf16[8,40], index: 2, kind: input, shape index: {}]
  %s3 = inlined_call_operand.vmem [shape: f32[8,1], index: 3, kind: input, shape index: {}]
  %s4 = inlined_call_operand.vmem [shape: bf16[8,40], index: 4, kind: input, shape index: {}]
  %s5 = inlined_call_operand.vmem [shape: f32[8,1], index: 5, kind: input, shape index: {}]
  %s6 = inlined_call_operand.vmem [shape: bf16[2,8,128], index: 6, kind: output, shape index: {}]
  %s7 = sld [smem:[#allocation0]]
  $region57: #{_lambda_.21} parent=0
    _
  %s9 = ssub.s32 1, %s7
  %s10 = scalar_select 0, %s9, %s7
  loop: start=0, step=1, limit=4
  $region2: #{_lambda_.21} parent=0 // loop_pre_header
    _
  $region3: #{_lambda_.21} parent=0 // loop_header
    %s12 = sphi 0, %s16
    %p13 = scmp.ge.s32.totalorder %s12, 4
    %s19 = sphi 0, %s31
    %s20 = sphi 0, %s27
    %s21 = sphi 0, %s19
    %s22 = sphi 0, %s20
    %s23 = sphi 0, %s21
    %s24 = sphi 0, %s22
    %s36 = sphi 0, %s38
    %s39 = sphi 0, %s36
    %s40 = sphi 0, %s39
    %s56 = sphi 0, %s40
    %s66 = sphi 0, %s68
    %s69 = sphi 0, %s66
    %s70 = sphi 0, %s69
    %s86 = sphi 0, %s70
    %s90 = sphi 0, %s90
    %s92 = sphi 0, %s90
    %s93 = sphi 0, %s92
    %s107 = sphi 0, %s93
    %s111 = sphi 0, %s111
    %s113 = sphi 0, %s111
    %s114 = sphi 0, %s113
    %s128 = sphi 0, %s114
    %s132 = sphi 0, %s132
    %s134 = sphi 0, %s132
    %s135 = sphi 0, %s134
    %s149 = sphi 0, %s135
    %s153 = sphi 0, %s153
    %s155 = sphi 0, %s153
    %s156 = sphi 0, %s155
    %s170 = sphi 0, %s156
    %s178 = sphi 0, %s180
    %s181 = sphi 0, %s178
    %s182 = sphi 0, %s181
    %s198 = sphi 0, %s182
  $region4: #{_lambda_.21} parent=0 // loop_header_branch
    %15 = sbr.rel (%p13) target = $region8
  $region5: #{_lambda_.21} parent=0 // loop_body
    %s17 = ssub.s32 %s12, 1
    %s18 = ssub.s32 %s12, 2
    %s25 = sadd.s32 1, %s20
    %p26 = scmp.ge.s32.totalorder %s25, 1
    %s27 = scalar_select %p26, 0, %s25
    %s28 = sadd.s32 1, %s19
    %s29 = scalar_select %p26, %s28, %s19
    %p30 = scmp.ge.s32.totalorder %s29, 2
    %s31 = scalar_select %p30, 0, %s29
    %s32 = ssub.s32 %s19, %s31
    %s33 = ssub.s32 %s20, %s27
    %s34 = sor.u32 %s32, %s33
    %p35 = scmp.eq.s32.totalorder %s34, 0
    %s37 = sadd.s32 %s36, 1
    %s38 = scalar_select %p35, %s36, %s37
    %p41 = pneg %p35
    %p42 = scmp.eq.s32.totalorder %s12, 1
    %p43 = por %p41, %p42
    %p44 = scmp.ne.s32.totalorder %s36, %s39
    %p45 = scmp.eq.s32.totalorder %s12, 0
    %p46 = por %p44, %p45
    %p47 = scmp.ne.s32.totalorder %s36, %s39
    %p48 = scmp.eq.s32.totalorder %s17, 1
    %p49 = por %p47, %p48
    %p50 = scmp.ne.s32.totalorder %s39, %s40
    %p51 = scmp.eq.s32.totalorder %s17, 0
    %p52 = por %p50, %p51
    %p53 = scmp.ne.s32.totalorder %s39, %s40
    %p54 = scmp.eq.s32.totalorder %s18, 1
    %p55 = por %p53, %p54
    %p57 = scmp.ne.s32.totalorder %s40, %s56
    %p58 = scmp.eq.s32.totalorder %s18, 0
    %p59 = por %p57, %p58
    %s60 = sadd.s32 %s20, 1
    %s61 = sadd.s32 %s27, 1
    %s62 = ssub.s32 %s19, %s31
    %s63 = ssub.s32 %s60, %s61
    %s64 = sor.u32 %s62, %s63
    %p65 = scmp.eq.s32.totalorder %s64, 0
    %s67 = sadd.s32 %s66, 1
    %s68 = scalar_select %p65, %s66, %s67
    %p71 = pneg %p65
    %p72 = scmp.eq.s32.totalorder %s12, 1
    %p73 = por %p71, %p72
    %p74 = scmp.ne.s32.totalorder %s66, %s69
    %p75 = scmp.eq.s32.totalorder %s12, 0
    %p76 = por %p74, %p75
    %p77 = scmp.ne.s32.totalorder %s66, %s69
    %p78 = scmp.eq.s32.totalorder %s17, 1
    %p79 = por %p77, %p78
    %p80 = scmp.ne.s32.totalorder %s69, %s70
    %p81 = scmp.eq.s32.totalorder %s17, 0
    %p82 = por %p80, %p81
    %p83 = scmp.ne.s32.totalorder %s69, %s70
    %p84 = scmp.eq.s32.totalorder %s18, 1
    %p85 = por %p83, %p84
    %p87 = scmp.ne.s32.totalorder %s70, %s86
    %p88 = scmp.eq.s32.totalorder %s18, 0
    %p89 = por %p87, %p88
    %s91 = sadd.s32 %s90, 1
    %p94 = scmp.eq.s32.totalorder %s12, 1
    %p95 = scmp.ne.s32.totalorder %s90, %s92
    %p96 = scmp.eq.s32.totalorder %s12, 0
    %p97 = por %p95, %p96
    %p98 = scmp.ne.s32.totalorder %s90, %s92
    %p99 = scmp.eq.s32.totalorder %s17, 1
    %p100 = por %p98, %p99
    %p101 = scmp.ne.s32.totalorder %s92, %s93
    %p102 = scmp.eq.s32.totalorder %s17, 0
    %p103 = por %p101, %p102
    %p104 = scmp.ne.s32.totalorder %s92, %s93
    %p105 = scmp.eq.s32.totalorder %s18, 1
    %p106 = por %p104, %p105
    %p108 = scmp.ne.s32.totalorder %s93, %s107
    %p109 = scmp.eq.s32.totalorder %s18, 0
    %p110 = por %p108, %p109
    %s112 = sadd.s32 %s111, 1
    %p115 = scmp.eq.s32.totalorder %s12, 1
    %p116 = scmp.ne.s32.totalorder %s111, %s113
    %p117 = scmp.eq.s32.totalorder %s12, 0
    %p118 = por %p116, %p117
    %p119 = scmp.ne.s32.totalorder %s111, %s113
    %p120 = scmp.eq.s32.totalorder %s17, 1
    %p121 = por %p119, %p120
    %p122 = scmp.ne.s32.totalorder %s113, %s114
    %p123 = scmp.eq.s32.totalorder %s17, 0
    %p124 = por %p122, %p123
    %p125 = scmp.ne.s32.totalorder %s113, %s114
    %p126 = scmp.eq.s32.totalorder %s18, 1
    %p127 = por %p125, %p126
    %p129 = scmp.ne.s32.totalorder %s114, %s128
    %p130 = scmp.eq.s32.totalorder %s18, 0
    %p131 = por %p129, %p130
    %s133 = sadd.s32 %s132, 1
    %p136 = scmp.eq.s32.totalorder %s12, 1
    %p137 = scmp.ne.s32.totalorder %s132, %s134
    %p138 = scmp.eq.s32.totalorder %s12, 0
    %p139 = por %p137, %p138
    %p140 = scmp.ne.s32.totalorder %s132, %s134
    %p141 = scmp.eq.s32.totalorder %s17, 1
    %p142 = por %p140, %p141
    %p143 = scmp.ne.s32.totalorder %s134, %s135
    %p144 = scmp.eq.s32.totalorder %s17, 0
    %p145 = por %p143, %p144
    %p146 = scmp.ne.s32.totalorder %s134, %s135
    %p147 = scmp.eq.s32.totalorder %s18, 1
    %p148 = por %p146, %p147
    %p150 = scmp.ne.s32.totalorder %s135, %s149
    %p151 = scmp.eq.s32.totalorder %s18, 0
    %p152 = por %p150, %p151
    %s154 = sadd.s32 %s153, 1
    %p157 = scmp.eq.s32.totalorder %s12, 1
    %p158 = scmp.ne.s32.totalorder %s153, %s155
    %p159 = scmp.eq.s32.totalorder %s12, 0
    %p160 = por %p158, %p159
    %p161 = scmp.ne.s32.totalorder %s153, %s155
    %p162 = scmp.eq.s32.totalorder %s17, 1
    %p163 = por %p161, %p162
    %p164 = scmp.ne.s32.totalorder %s155, %s156
    %p165 = scmp.eq.s32.totalorder %s17, 0
    %p166 = por %p164, %p165
    %p167 = scmp.ne.s32.totalorder %s155, %s156
    %p168 = scmp.eq.s32.totalorder %s18, 1
    %p169 = por %p167, %p168
    %p171 = scmp.ne.s32.totalorder %s156, %s170
    %p172 = scmp.eq.s32.totalorder %s18, 0
    %p173 = por %p171, %p172
    %s174 = ssub.s32 %s19, %s31
    %s175 = ssub.s32 %s20, %s27
    %s176 = sor.u32 %s174, %s175
    %p177 = scmp.eq.s32.totalorder %s176, 0
    %s179 = sadd.s32 %s178, 1
    %s180 = scalar_select %p177, %s178, %s179
    %p183 = pneg %p177
    %p184 = scmp.eq.s32.totalorder %s12, 1
    %p185 = por %p183, %p184
    %p186 = scmp.ne.s32.totalorder %s178, %s181
    %p187 = scmp.eq.s32.totalorder %s12, 0
    %p188 = por %p186, %p187
    %p189 = scmp.ne.s32.totalorder %s178, %s181
    %p190 = scmp.eq.s32.totalorder %s17, 1
    %p191 = por %p189, %p190
    %p192 = scmp.ne.s32.totalorder %s181, %s182
    %p193 = scmp.eq.s32.totalorder %s17, 0
    %p194 = por %p192, %p193
    %p195 = scmp.ne.s32.totalorder %s181, %s182
    %p196 = scmp.eq.s32.totalorder %s18, 1
    %p197 = por %p195, %p196
    %p199 = scmp.ne.s32.totalorder %s182, %s198
    %p200 = scmp.eq.s32.totalorder %s18, 0
    %p201 = por %p199, %p200
    %p202 = scmp.le.s32.totalorder 1, %s12
    %p203 = scmp.lt.s32.totalorder %s12, 3
    %p204 = pnand %p202, %p203
    %p205 = pneg %p204
    // Predicated region
    $region9: #{_lambda_.21} parent=5 // pred_check
      _
    $region10: #{_lambda_.21} parent=5 // pred_check_branch
      %207 = sbr.rel (%p204) target = $region12
    $region11: #{_lambda_.21} parent=5 // pred_region
      %s208 = ssub.s32 %s12, 1
      // Predicated region
      $region13: #{_lambda_.21} parent=11 // pred_check
        %p209 = pneg %p103
      $region14: #{_lambda_.21} parent=11 // pred_check_branch
        %211 = sbr.rel (%p209) target = $region16
      $region15: #{_lambda_.21} parent=11 // pred_region
        _
      $region16: #{_lambda_.21} parent=11 // pred_fallthru
        _
      // Predicated region
      $region17: #{_lambda_.21} parent=11 // pred_check
        %p212 = pneg %p124
      $region18: #{_lambda_.21} parent=11 // pred_check_branch
        %214 = sbr.rel (%p212) target = $region20
      $region19: #{_lambda_.21} parent=11 // pred_region
        _
      $region20: #{_lambda_.21} parent=11 // pred_fallthru
        _
      // Predicated region
      $region21: #{_lambda_.21} parent=11 // pred_check
        %p215 = pneg %p145
      $region22: #{_lambda_.21} parent=11 // pred_check_branch
        %217 = sbr.rel (%p215) target = $region24
      $region23: #{_lambda_.21} parent=11 // pred_region
        _
      $region24: #{_lambda_.21} parent=11 // pred_fallthru
        _
      // Predicated region
      $region25: #{_lambda_.21} parent=11 // pred_check
        %p218 = pneg %p166
      $region26: #{_lambda_.21} parent=11 // pred_check_branch
        %220 = sbr.rel (%p218) target = $region28
      $region27: #{_lambda_.21} parent=11 // pred_region
        _
      $region28: #{_lambda_.21} parent=11 // pred_fallthru
        _
    $region12: #{_lambda_.21} parent=5 // pred_fallthru
      _
    %p221 = scmp.lt.s32.totalorder %s12, 2
    // Predicated region
    $region29: #{_lambda_.21} parent=5 // pred_check
      %p222 = pneg %p221
    $region30: #{_lambda_.21} parent=5 // pred_check_branch
      %224 = sbr.rel (%p222) target = $region32
    $region31: #{_lambda_.21} parent=5 // pred_region
      // Predicated region
      $region33: #{_lambda_.21} parent=31 // pred_check
        %p225 = pneg %p46
      $region34: #{_lambda_.21} parent=31 // pred_check_branch
        %227 = sbr.rel (%p225) target = $region36
      $region35: #{_lambda_.21} parent=31 // pred_region
        %p228 = scmp.lt.s32.totalorder %s19, 1
        %s229 = scalar_select %p228, %s19, 1
        %p230 = scmp.lt.s32.totalorder %s20, 1
        %s231 = scalar_select %p230, %s20, 1
        %s232 = smul.addr %s229, 2
        %s233 = sadd.s32 %s231, %s232
        %s234 = smul.addr %s233, 4
        %s235 = scalar_lea.vmem %s0, %s234
      $region36: #{_lambda_.21} parent=31 // pred_fallthru
        _
      // Predicated region
      $region37: #{_lambda_.21} parent=31 // pred_check
        %p236 = pneg %p76
      $region38: #{_lambda_.21} parent=31 // pred_check_branch
        %238 = sbr.rel (%p236) target = $region40
      $region39: #{_lambda_.21} parent=31 // pred_region
        %s239 = sadd.s32 %s20, 1
        %p240 = scmp.lt.s32.totalorder %s19, 1
        %s241 = scalar_select %p240, %s19, 1
        %p242 = scmp.lt.s32.totalorder %s239, 1
        %s243 = scalar_select %p242, %s239, 1
        %s244 = smul.addr %s241, 2
        %s245 = sadd.s32 %s243, %s244
        %s246 = smul.addr %s245, 4
        %s247 = scalar_lea.vmem %s1, %s246
        %s248 = sadd.s32 %s20, 1
      $region40: #{_lambda_.21} parent=31 // pred_fallthru
        _
    $region32: #{_lambda_.21} parent=5 // pred_fallthru
      _
    %p249 = scmp.le.s32.totalorder 1, %s12
    %p250 = scmp.lt.s32.totalorder %s12, 3
    %p251 = pnand %p249, %p250
    %p252 = pneg %p251
    // Predicated region
    $region41: #{_lambda_.21} parent=5 // pred_check
      _
    $region42: #{_lambda_.21} parent=5 // pred_check_branch
      %254 = sbr.rel (%p251) target = $region44
    $region43: #{_lambda_.21} parent=5 // pred_region
      %s255 = ssub.s32 %s12, 1
      %p256 = scmp.lt.s32.totalorder %s21, 1
      %s257 = scalar_select %p256, %s21, 1
      %p258 = scmp.lt.s32.totalorder %s22, 1
      %s259 = scalar_select %p258, %s22, 1
      %s260 = smul.addr %s257, 2
      %s261 = sadd.s32 %s259, %s260
      %s262 = smul.addr %s261, 4
      %s263 = scalar_lea.vmem %s0, %s262
      %p264 = pneg %p52
      %p265 = pneg %p49
      %s266 = sadd.s32 %s22, 1
      %p267 = scmp.lt.s32.totalorder %s21, 1
      %s268 = scalar_select %p267, %s21, 1
      %p269 = scmp.lt.s32.totalorder %s266, 1
      %s270 = scalar_select %p269, %s266, 1
      %s271 = smul.addr %s268, 2
      %s272 = sadd.s32 %s270, %s271
      %s273 = smul.addr %s272, 4
      %s274 = scalar_lea.vmem %s1, %s273
      %p275 = pneg %p82
      %p276 = pneg %p79
      %p277 = pneg %p103
      %p278 = pneg %p100
      %p279 = pneg %p124
      %p280 = pneg %p121
      %p281 = pneg %p145
      %p282 = pneg %p142
      %p283 = pneg %p166
      %p284 = pneg %p163
      %p285 = pneg %p194
      %p286 = pneg %p191
      %p287 = scmp.lt.s32.totalorder %s21, 1
      %s288 = scalar_select %p287, %s21, 1
      %p289 = scmp.lt.s32.totalorder %s22, 0
      %s290 = scalar_select %p289, %s22, 0
      %s291 = sadd.s32 %s290, %s288
      %s292 = smul.addr %s291, 4
      %s293 = scalar_lea.vmem %s6, %s292
      %p294 = scmp.lt.s32.totalorder %s21, 1
      %s295 = scalar_select %p294, %s21, 1
      %p296 = scmp.lt.s32.totalorder %s22, 1
      %s297 = scalar_select %p296, %s22, 1
      %s298 = smul.addr %s295, 2
      %s299 = sadd.s32 %s297, %s298
      %s300 = smul.addr %s299, 4
      %s301 = scalar_lea.vmem %s0, %s300
      %s302 = sadd.s32 %s22, 1
      %p303 = scmp.lt.s32.totalorder %s21, 1
      %s304 = scalar_select %p303, %s21, 1
      %p305 = scmp.lt.s32.totalorder %s302, 1
      %s306 = scalar_select %p305, %s302, 1
      %s307 = smul.addr %s304, 2
      %s308 = sadd.s32 %s306, %s307
      %s309 = smul.addr %s308, 4
      %s310 = scalar_lea.vmem %s1, %s309
      %s311 = sadd.s32 %s22, 1
      %p312 = scmp.lt.s32.totalorder %s21, 1
      %s313 = scalar_select %p312, %s21, 1
      %p314 = scmp.lt.s32.totalorder %s22, 0
      %s315 = scalar_select %p314, %s22, 0
      %s316 = sadd.s32 %s315, %s313
      %s317 = smul.addr %s316, 4
      %s318 = scalar_lea.vmem %s6, %s317
      %v320 = vld [vmem:[%s301] sm:$0xf]
      %v321 = vld [vmem:[%s310] sm:$0xf]
      %v322 = vunpack.c.l.bf16 %v320
      %v323 = vunpack.c.l.bf16 %v321
      %vm324 = vcmp.ge.f32.partialorder %v322, 0.0
      %vm325 = vcmp.ge.f32.partialorder %v323, 0.0
      %v326 = vmul.f32 %v322, 0.1
      %v327 = vmul.f32 %v323, 0.1
      %v328 = vsel %vm324, %v322, %v326
      %v329 = vsel %vm325, %v323, %v327
      %v330 = vpack.c.bf16 %v329, %v328
      %v332 = vunpack.c.l.b16 %v330
      %v333 = vunpack.c.h.b16 %v330
      %v334 = vpack.c.b16 %v332, %v332
      %v335 = vpack.c.b16 %v333, %v333
      %336 = vrot.lane.b32.xlu0 %v334, 127
      %v337 = vpop.permute.xlu0 %336
      %338 = vrot.lane.b32.xlu0 %v335, 127
      %v339 = vpop.permute.xlu0 %338
      %vm340 = vcmask 1039360
      %v341 = vsel %vm340, %v337, %v339
      %342 = vrot.lane.b32.xlu0 %v334, 126
      %v343 = vpop.permute.xlu0 %342
      %344 = vrot.lane.b32.xlu0 %v335, 126
      %v345 = vpop.permute.xlu0 %344
      %vm346 = vcmask 1031168
      %v347 = vsel %vm346, %v343, %v345
      %348 = vrot.lane.b32.xlu0 %v334, 125
      %v349 = vpop.permute.xlu0 %348
      %350 = vrot.lane.b32.xlu0 %v335, 125
      %v351 = vpop.permute.xlu0 %350
      %vm352 = vcmask 1022976
      %v353 = vsel %vm352, %v349, %v351
      %354 = vrot.lane.b32.xlu0 %v334, 124
      %v355 = vpop.permute.xlu0 %354
      %356 = vrot.lane.b32.xlu0 %v335, 124
      %v357 = vpop.permute.xlu0 %356
      %vm358 = vcmask 1014784
      %v359 = vsel %vm358, %v355, %v357
      %vm360 = vcmask 1043456
      %v363 = vsel %vm360, %v334, %v341
      %v367 = vsel %vm360, %v335, %v339
      %v371 = vsel %vm360, %v347, %v353
      %v375 = vsel %vm360, %v345, %v351
      %v377 = vld [vmem:[%s2] sm:$0xf]
      %v378 = vld [vmem:[%s3] sm:$0xff]
      %380 = vset.pattern.permute.xlu0 0
      %381 = vperm.xlu0 %380, %v378
      %v382 = vpop.permute.xlu0 %381
      %vm384 = vcmask 326656
      %v386 = vsel %vm384, %v377, 0
      %v389 = vsel %vm360, %v359, 0
      %v392 = vsel %vm360, %v357, 0
      %394 = vmatpush.bf16.msra.mxu0 0
      %395 = vmatpush.bf16.msra.mxu0 0
      %396 = vmatpush.bf16.msra.mxu0 0
      %397 = vmatpush.bf16.msra.mxu0 0
      %398 = vmatpush.bf16.msra.mxu0 0
      %399 = vmatpush.bf16.msra.mxu0 %v389
      %400 = vmatpush.bf16.msra.mxu0 %v371
      %401 = vmatpush.bf16.msra.mxu0 %v363
      %402 = vmatmul.bf16.gmra.mxu0 %v386
      %v403 = vpop.f32.mrf.mxu0
      %v404 = vadd.f32 %v382, %v403
      %v405 = vpop.f32.mrf.mxu0
      %406 = vdwg.mxu0
      %407 = vmatpush.bf16.msra.mxu0 0
      %408 = vmatpush.bf16.msra.mxu0 0
      %409 = vmatpush.bf16.msra.mxu0 0
      %410 = vmatpush.bf16.msra.mxu0 0
      %411 = vmatpush.bf16.msra.mxu0 0
      %412 = vmatpush.bf16.msra.mxu0 %v392
      %413 = vmatpush.bf16.msra.mxu0 %v375
      %414 = vmatpush.bf16.msra.mxu0 %v367
      %415 = vmatmul.bf16.gmra.mxu0 %v386
      %v416 = vpop.f32.mrf.mxu0
      %v417 = vadd.f32 %v382, %v416
      %v418 = vpop.f32.mrf.mxu0
      %419 = vdwg.mxu0
      %vm420 = vcmp.ge.f32.partialorder %v404, 0.0
      %vm421 = vcmp.ge.f32.partialorder %v417, 0.0
      %v422 = vmul.f32 %v404, 0.1
      %v423 = vmul.f32 %v417, 0.1
      %v424 = vsel %vm420, %v404, %v422
      %v425 = vsel %vm421, %v417, %v423
      %s426 = smul.u32 %s22, 128
      %s427 = ssub.s32 %s426, 2
      %v428 = vlaneseq
      %v429 = vand.u32 %v428, 127
      %v430 = vadd.s32 %v429, 128
      %v431 = vstv %s427
      %v432 = vadd.s32 %v431, %v429
      %v433 = vadd.s32 %v431, %v430
      %vm434 = vcmp.ge.s32.totalorder %v432, 0
      %vm435 = vcmp.ge.s32.totalorder %v433, 0
      %vm436 = vcmp.lt.s32.totalorder %v432, 32
      %vm437 = vcmp.lt.s32.totalorder %v433, 32
      %vm438 = vmand %vm434, %vm436
      %vm439 = vmand %vm435, %vm437
      %v440 = vsel %vm438, 1, 0
      %v441 = vsel %vm439, 1, 0
      %vm442 = vcmp.eq.s32.totalorder %v440, 1
      %vm443 = vcmp.eq.s32.totalorder %v441, 1
      %v444 = vsel %vm442, %v424, 0.0
      %v445 = vsel %vm443, %v425, 0.0
      %v446 = vpack.c.bf16 %v445, %v444
      %v448 = vunpack.c.l.b16 %v446
      %v449 = vunpack.c.h.b16 %v446
      %v450 = vpack.c.b16 %v448, %v448
      %v451 = vpack.c.b16 %v449, %v449
      %452 = vrot.lane.b32.xlu0 %v450, 127
      %v453 = vpop.permute.xlu0 %452
      %454 = vrot.lane.b32.xlu0 %v451, 127
      %v455 = vpop.permute.xlu0 %454
      %v456 = vsel %vm340, %v453, %v455
      %457 = vrot.lane.b32.xlu0 %v450, 126
      %v458 = vpop.permute.xlu0 %457
      %459 = vrot.lane.b32.xlu0 %v451, 126
      %v460 = vpop.permute.xlu0 %459
      %v461 = vsel %vm346, %v458, %v460
      %462 = vrot.lane.b32.xlu0 %v450, 125
      %v463 = vpop.permute.xlu0 %462
      %464 = vrot.lane.b32.xlu0 %v451, 125
      %v465 = vpop.permute.xlu0 %464
      %v466 = vsel %vm352, %v463, %v465
      %467 = vrot.lane.b32.xlu0 %v450, 124
      %v468 = vpop.permute.xlu0 %467
      %469 = vrot.lane.b32.xlu0 %v451, 124
      %v470 = vpop.permute.xlu0 %469
      %v471 = vsel %vm358, %v468, %v470
      %v474 = vsel %vm360, %v446, %v456
      %v478 = vsel %vm360, %v461, %v466
      %v480 = vld [vmem:[%s4] sm:$0xf]
      %v481 = vld [vmem:[%s5] sm:$0xff]
      %483 = vset.pattern.permute.xlu0 0
      %484 = vperm.xlu0 %483, %v481
      %v485 = vpop.permute.xlu0 %484
      %v488 = vsel %vm384, %v480, 0
      %v491 = vsel %vm360, %v471, 0
      %493 = vmatpush.bf16.msra.mxu0 0
      %494 = vmatpush.bf16.msra.mxu0 0
      %495 = vmatpush.bf16.msra.mxu0 0
      %496 = vmatpush.bf16.msra.mxu0 0
      %497 = vmatpush.bf16.msra.mxu0 0
      %498 = vmatpush.bf16.msra.mxu0 %v491
      %499 = vmatpush.bf16.msra.mxu0 %v478
      %500 = vmatpush.bf16.msra.mxu0 %v474
      %501 = vmatmul.bf16.gmra.mxu0 %v488
      %v502 = vpop.f32.mrf.mxu0
      %v503 = vadd.f32 %v485, %v502
      %v504 = vpop.f32.mrf.mxu0
      %505 = vdwg.mxu0
      %508 = vrot.lane.b32.xlu0 %v322, 124
      %v509 = vpop.permute.xlu0 %508
      %510 = vrot.lane.b32.xlu0 %v323, 124
      %v511 = vpop.permute.xlu0 %510
      %vm512 = vcmask 1014784
      %v513 = vsel %vm512, %v509, %v511
      %v515 = vadd.f32 %v503, %v513
      %v516 = vpack.c.bf16 %v515, %v515
      %517 = vst [vmem:[%s318] sm:$0xf] %v516
      %p518 = scmp.lt.s32.totalorder %s21, 1
      %s519 = scalar_select %p518, %s21, 1
      %p520 = scmp.lt.s32.totalorder %s22, 0
      %s521 = scalar_select %p520, %s22, 0
      %s522 = sadd.s32 %s521, %s519
      %s523 = smul.addr %s522, 4
      %s524 = scalar_lea.vmem %s6, %s523
      // Predicated region
      $region45: #{_lambda_.21} parent=43 // pred_check
        %p525 = pneg %p191
      $region46: #{_lambda_.21} parent=43 // pred_check_branch
        %527 = sbr.rel (%p525) target = $region48
      $region47: #{_lambda_.21} parent=43 // pred_region
        _
      $region48: #{_lambda_.21} parent=43 // pred_fallthru
        _
    $region44: #{_lambda_.21} parent=5 // pred_fallthru
      _
    %p528 = scmp.le.s32.totalorder 2, %s12
    // Predicated region
    $region49: #{_lambda_.21} parent=5 // pred_check
      %p529 = pneg %p528
    $region50: #{_lambda_.21} parent=5 // pred_check_branch
      %531 = sbr.rel (%p529) target = $region52
    $region51: #{_lambda_.21} parent=5 // pred_region
      %s532 = ssub.s32 %s12, 2
      // Predicated region
      $region53: #{_lambda_.21} parent=51 // pred_check
        %p533 = pneg %p197
      $region54: #{_lambda_.21} parent=51 // pred_check_branch
        %535 = sbr.rel (%p533) target = $region56
      $region55: #{_lambda_.21} parent=51 // pred_region
        %p536 = scmp.lt.s32.totalorder %s23, 1
        %s537 = scalar_select %p536, %s23, 1
        %p538 = scmp.lt.s32.totalorder %s24, 0
        %s539 = scalar_select %p538, %s24, 0
        %s540 = sadd.s32 %s539, %s537
        %s541 = smul.addr %s540, 4
        %s542 = scalar_lea.vmem %s6, %s541
      $region56: #{_lambda_.21} parent=51 // pred_fallthru
        _
    $region52: #{_lambda_.21} parent=5 // pred_fallthru
      _
  $region6: #{_lambda_.21} parent=0 // loop_footer
    %s16 = sadd.s32 1, %s12
  $region7: #{_lambda_.21} parent=0 // loop_footer_branch
    %11 = sbr.rel target = $region3
  $region8: #{_lambda_.21} parent=0 // loop_exit
    _

// kernel: _lambda_.20
$region0: #{_lambda_.20}
  #allocation0 [shape = 'u32[]', space=smem, size = 0x4, offset = 0x4, fixed_abs, tag = 'smem constant byte address 0x4 - core index']
  #allocation1 [shape = 'u32[72,128]{1,0:T(1,128)}', space=vmem, size = 0x9000, scoped, tag = 'internal scratch']
  %s0 = inlined_call_operand.vmem [shape: bf16[2,8,256], index: 0, kind: input, shape index: {}, may-alias: {0,1}]
  %s1 = inlined_call_operand.vmem [shape: bf16[2,8,256], index: 1, kind: input, shape index: {}, may-alias: {0,1}]
  %s2 = inlined_call_operand.vmem [shape: bf16[8,24], index: 2, kind: input, shape index: {}]
  %s3 = inlined_call_operand.vmem [shape: f32[8,1], index: 3, kind: input, shape index: {}]
  %s4 = inlined_call_operand.vmem [shape: bf16[8,24], index: 4, kind: input, shape index: {}]
  %s5 = inlined_call_operand.vmem [shape: f32[8,1], index: 5, kind: input, shape index: {}]
  %s6 = inlined_call_operand.vmem [shape: bf16[2,8,128], index: 6, kind: output, shape index: {}]
  %s7 = sld [smem:[#allocation0]]
  $region57: #{_lambda_.20} parent=0
    _
  %s9 = ssub.s32 1, %s7
  %s10 = scalar_select 0, %s9, %s7
  loop: start=0, step=1, limit=4
  $region2: #{_lambda_.20} parent=0 // loop_pre_header
    _
  $region3: #{_lambda_.20} parent=0 // loop_header
    %s12 = sphi 0, %s16
    %p13 = scmp.ge.s32.totalorder %s12, 4
    %s19 = sphi 0, %s31
    %s20 = sphi 0, %s27
    %s21 = sphi 0, %s19
    %s22 = sphi 0, %s20
    %s23 = sphi 0, %s21
    %s24 = sphi 0, %s22
    %s36 = sphi 0, %s38
    %s39 = sphi 0, %s36
    %s40 = sphi 0, %s39
    %s56 = sphi 0, %s40
    %s66 = sphi 0, %s68
    %s69 = sphi 0, %s66
    %s70 = sphi 0, %s69
    %s86 = sphi 0, %s70
    %s90 = sphi 0, %s90
    %s92 = sphi 0, %s90
    %s93 = sphi 0, %s92
    %s107 = sphi 0, %s93
    %s111 = sphi 0, %s111
    %s113 = sphi 0, %s111
    %s114 = sphi 0, %s113
    %s128 = sphi 0, %s114
    %s132 = sphi 0, %s132
    %s134 = sphi 0, %s132
    %s135 = sphi 0, %s134
    %s149 = sphi 0, %s135
    %s153 = sphi 0, %s153
    %s155 = sphi 0, %s153
    %s156 = sphi 0, %s155
    %s170 = sphi 0, %s156
    %s178 = sphi 0, %s180
    %s181 = sphi 0, %s178
    %s182 = sphi 0, %s181
    %s198 = sphi 0, %s182
  $region4: #{_lambda_.20} parent=0 // loop_header_branch
    %15 = sbr.rel (%p13) target = $region8
  $region5: #{_lambda_.20} parent=0 // loop_body
    %s17 = ssub.s32 %s12, 1
    %s18 = ssub.s32 %s12, 2
    %s25 = sadd.s32 1, %s20
    %p26 = scmp.ge.s32.totalorder %s25, 1
    %s27 = scalar_select %p26, 0, %s25
    %s28 = sadd.s32 1, %s19
    %s29 = scalar_select %p26, %s28, %s19
    %p30 = scmp.ge.s32.totalorder %s29, 2
    %s31 = scalar_select %p30, 0, %s29
    %s32 = ssub.s32 %s19, %s31
    %s33 = ssub.s32 %s20, %s27
    %s34 = sor.u32 %s32, %s33
    %p35 = scmp.eq.s32.totalorder %s34, 0
    %s37 = sadd.s32 %s36, 1
    %s38 = scalar_select %p35, %s36, %s37
    %p41 = pneg %p35
    %p42 = scmp.eq.s32.totalorder %s12, 1
    %p43 = por %p41, %p42
    %p44 = scmp.ne.s32.totalorder %s36, %s39
    %p45 = scmp.eq.s32.totalorder %s12, 0
    %p46 = por %p44, %p45
    %p47 = scmp.ne.s32.totalorder %s36, %s39
    %p48 = scmp.eq.s32.totalorder %s17, 1
    %p49 = por %p47, %p48
    %p50 = scmp.ne.s32.totalorder %s39, %s40
    %p51 = scmp.eq.s32.totalorder %s17, 0
    %p52 = por %p50, %p51
    %p53 = scmp.ne.s32.totalorder %s39, %s40
    %p54 = scmp.eq.s32.totalorder %s18, 1
    %p55 = por %p53, %p54
    %p57 = scmp.ne.s32.totalorder %s40, %s56
    %p58 = scmp.eq.s32.totalorder %s18, 0
    %p59 = por %p57, %p58
    %s60 = sadd.s32 %s20, 1
    %s61 = sadd.s32 %s27, 1
    %s62 = ssub.s32 %s19, %s31
    %s63 = ssub.s32 %s60, %s61
    %s64 = sor.u32 %s62, %s63
    %p65 = scmp.eq.s32.totalorder %s64, 0
    %s67 = sadd.s32 %s66, 1
    %s68 = scalar_select %p65, %s66, %s67
    %p71 = pneg %p65
    %p72 = scmp.eq.s32.totalorder %s12, 1
    %p73 = por %p71, %p72
    %p74 = scmp.ne.s32.totalorder %s66, %s69
    %p75 = scmp.eq.s32.totalorder %s12, 0
    %p76 = por %p74, %p75
    %p77 = scmp.ne.s32.totalorder %s66, %s69
    %p78 = scmp.eq.s32.totalorder %s17, 1
    %p79 = por %p77, %p78
    %p80 = scmp.ne.s32.totalorder %s69, %s70
    %p81 = scmp.eq.s32.totalorder %s17, 0
    %p82 = por %p80, %p81
    %p83 = scmp.ne.s32.totalorder %s69, %s70
    %p84 = scmp.eq.s32.totalorder %s18, 1
    %p85 = por %p83, %p84
    %p87 = scmp.ne.s32.totalorder %s70, %s86
    %p88 = scmp.eq.s32.totalorder %s18, 0
    %p89 = por %p87, %p88
    %s91 = sadd.s32 %s90, 1
    %p94 = scmp.eq.s32.totalorder %s12, 1
    %p95 = scmp.ne.s32.totalorder %s90, %s92
    %p96 = scmp.eq.s32.totalorder %s12, 0
    %p97 = por %p95, %p96
    %p98 = scmp.ne.s32.totalorder %s90, %s92
    %p99 = scmp.eq.s32.totalorder %s17, 1
    %p100 = por %p98, %p99
    %p101 = scmp.ne.s32.totalorder %s92, %s93
    %p102 = scmp.eq.s32.totalorder %s17, 0
    %p103 = por %p101, %p102
    %p104 = scmp.ne.s32.totalorder %s92, %s93
    %p105 = scmp.eq.s32.totalorder %s18, 1
    %p106 = por %p104, %p105
    %p108 = scmp.ne.s32.totalorder %s93, %s107
    %p109 = scmp.eq.s32.totalorder %s18, 0
    %p110 = por %p108, %p109
    %s112 = sadd.s32 %s111, 1
    %p115 = scmp.eq.s32.totalorder %s12, 1
    %p116 = scmp.ne.s32.totalorder %s111, %s113
    %p117 = scmp.eq.s32.totalorder %s12, 0
    %p118 = por %p116, %p117
    %p119 = scmp.ne.s32.totalorder %s111, %s113
    %p120 = scmp.eq.s32.totalorder %s17, 1
    %p121 = por %p119, %p120
    %p122 = scmp.ne.s32.totalorder %s113, %s114
    %p123 = scmp.eq.s32.totalorder %s17, 0
    %p124 = por %p122, %p123
    %p125 = scmp.ne.s32.totalorder %s113, %s114
    %p126 = scmp.eq.s32.totalorder %s18, 1
    %p127 = por %p125, %p126
    %p129 = scmp.ne.s32.totalorder %s114, %s128
    %p130 = scmp.eq.s32.totalorder %s18, 0
    %p131 = por %p129, %p130
    %s133 = sadd.s32 %s132, 1
    %p136 = scmp.eq.s32.totalorder %s12, 1
    %p137 = scmp.ne.s32.totalorder %s132, %s134
    %p138 = scmp.eq.s32.totalorder %s12, 0
    %p139 = por %p137, %p138
    %p140 = scmp.ne.s32.totalorder %s132, %s134
    %p141 = scmp.eq.s32.totalorder %s17, 1
    %p142 = por %p140, %p141
    %p143 = scmp.ne.s32.totalorder %s134, %s135
    %p144 = scmp.eq.s32.totalorder %s17, 0
    %p145 = por %p143, %p144
    %p146 = scmp.ne.s32.totalorder %s134, %s135
    %p147 = scmp.eq.s32.totalorder %s18, 1
    %p148 = por %p146, %p147
    %p150 = scmp.ne.s32.totalorder %s135, %s149
    %p151 = scmp.eq.s32.totalorder %s18, 0
    %p152 = por %p150, %p151
    %s154 = sadd.s32 %s153, 1
    %p157 = scmp.eq.s32.totalorder %s12, 1
    %p158 = scmp.ne.s32.totalorder %s153, %s155
    %p159 = scmp.eq.s32.totalorder %s12, 0
    %p160 = por %p158, %p159
    %p161 = scmp.ne.s32.totalorder %s153, %s155
    %p162 = scmp.eq.s32.totalorder %s17, 1
    %p163 = por %p161, %p162
    %p164 = scmp.ne.s32.totalorder %s155, %s156
    %p165 = scmp.eq.s32.totalorder %s17, 0
    %p166 = por %p164, %p165
    %p167 = scmp.ne.s32.totalorder %s155, %s156
    %p168 = scmp.eq.s32.totalorder %s18, 1
    %p169 = por %p167, %p168
    %p171 = scmp.ne.s32.totalorder %s156, %s170
    %p172 = scmp.eq.s32.totalorder %s18, 0
    %p173 = por %p171, %p172
    %s174 = ssub.s32 %s19, %s31
    %s175 = ssub.s32 %s20, %s27
    %s176 = sor.u32 %s174, %s175
    %p177 = scmp.eq.s32.totalorder %s176, 0
    %s179 = sadd.s32 %s178, 1
    %s180 = scalar_select %p177, %s178, %s179
    %p183 = pneg %p177
    %p184 = scmp.eq.s32.totalorder %s12, 1
    %p185 = por %p183, %p184
    %p186 = scmp.ne.s32.totalorder %s178, %s181
    %p187 = scmp.eq.s32.totalorder %s12, 0
    %p188 = por %p186, %p187
    %p189 = scmp.ne.s32.totalorder %s178, %s181
    %p190 = scmp.eq.s32.totalorder %s17, 1
    %p191 = por %p189, %p190
    %p192 = scmp.ne.s32.totalorder %s181, %s182
    %p193 = scmp.eq.s32.totalorder %s17, 0
    %p194 = por %p192, %p193
    %p195 = scmp.ne.s32.totalorder %s181, %s182
    %p196 = scmp.eq.s32.totalorder %s18, 1
    %p197 = por %p195, %p196
    %p199 = scmp.ne.s32.totalorder %s182, %s198
    %p200 = scmp.eq.s32.totalorder %s18, 0
    %p201 = por %p199, %p200
    %p202 = scmp.le.s32.totalorder 1, %s12
    %p203 = scmp.lt.s32.totalorder %s12, 3
    %p204 = pnand %p202, %p203
    %p205 = pneg %p204
    // Predicated region
    $region9: #{_lambda_.20} parent=5 // pred_check
      _
    $region10: #{_lambda_.20} parent=5 // pred_check_branch
      %207 = sbr.rel (%p204) target = $region12
    $region11: #{_lambda_.20} parent=5 // pred_region
      %s208 = ssub.s32 %s12, 1
      // Predicated region
      $region13: #{_lambda_.20} parent=11 // pred_check
        %p209 = pneg %p103
      $region14: #{_lambda_.20} parent=11 // pred_check_branch
        %211 = sbr.rel (%p209) target = $region16
      $region15: #{_lambda_.20} parent=11 // pred_region
        _
      $region16: #{_lambda_.20} parent=11 // pred_fallthru
        _
      // Predicated region
      $region17: #{_lambda_.20} parent=11 // pred_check
        %p212 = pneg %p124
      $region18: #{_lambda_.20} parent=11 // pred_check_branch
        %214 = sbr.rel (%p212) target = $region20
      $region19: #{_lambda_.20} parent=11 // pred_region
        _
      $region20: #{_lambda_.20} parent=11 // pred_fallthru
        _
      // Predicated region
      $region21: #{_lambda_.20} parent=11 // pred_check
        %p215 = pneg %p145
      $region22: #{_lambda_.20} parent=11 // pred_check_branch
        %217 = sbr.rel (%p215) target = $region24
      $region23: #{_lambda_.20} parent=11 // pred_region
        _
      $region24: #{_lambda_.20} parent=11 // pred_fallthru
        _
      // Predicated region
      $region25: #{_lambda_.20} parent=11 // pred_check
        %p218 = pneg %p166
      $region26: #{_lambda_.20} parent=11 // pred_check_branch
        %220 = sbr.rel (%p218) target = $region28
      $region27: #{_lambda_.20} parent=11 // pred_region
        _
      $region28: #{_lambda_.20} parent=11 // pred_fallthru
        _
    $region12: #{_lambda_.20} parent=5 // pred_fallthru
      _
    %p221 = scmp.lt.s32.totalorder %s12, 2
    // Predicated region
    $region29: #{_lambda_.20} parent=5 // pred_check
      %p222 = pneg %p221
    $region30: #{_lambda_.20} parent=5 // pred_check_branch
      %224 = sbr.rel (%p222) target = $region32
    $region31: #{_lambda_.20} parent=5 // pred_region
      // Predicated region
      $region33: #{_lambda_.20} parent=31 // pred_check
        %p225 = pneg %p46
      $region34: #{_lambda_.20} parent=31 // pred_check_branch
        %227 = sbr.rel (%p225) target = $region36
      $region35: #{_lambda_.20} parent=31 // pred_region
        %p228 = scmp.lt.s32.totalorder %s19, 1
        %s229 = scalar_select %p228, %s19, 1
        %p230 = scmp.lt.s32.totalorder %s20, 1
        %s231 = scalar_select %p230, %s20, 1
        %s232 = smul.addr %s229, 2
        %s233 = sadd.s32 %s231, %s232
        %s234 = smul.addr %s233, 4
        %s235 = scalar_lea.vmem %s0, %s234
      $region36: #{_lambda_.20} parent=31 // pred_fallthru
        _
      // Predicated region
      $region37: #{_lambda_.20} parent=31 // pred_check
        %p236 = pneg %p76
      $region38: #{_lambda_.20} parent=31 // pred_check_branch
        %238 = sbr.rel (%p236) target = $region40
      $region39: #{_lambda_.20} parent=31 // pred_region
        %s239 = sadd.s32 %s20, 1
        %p240 = scmp.lt.s32.totalorder %s19, 1
        %s241 = scalar_select %p240, %s19, 1
        %p242 = scmp.lt.s32.totalorder %s239, 1
        %s243 = scalar_select %p242, %s239, 1
        %s244 = smul.addr %s241, 2
        %s245 = sadd.s32 %s243, %s244
        %s246 = smul.addr %s245, 4
        %s247 = scalar_lea.vmem %s1, %s246
        %s248 = sadd.s32 %s20, 1
      $region40: #{_lambda_.20} parent=31 // pred_fallthru
        _
    $region32: #{_lambda_.20} parent=5 // pred_fallthru
      _
    %p249 = scmp.le.s32.totalorder 1, %s12
    %p250 = scmp.lt.s32.totalorder %s12, 3
    %p251 = pnand %p249, %p250
    %p252 = pneg %p251
    // Predicated region
    $region41: #{_lambda_.20} parent=5 // pred_check
      _
    $region42: #{_lambda_.20} parent=5 // pred_check_branch
      %254 = sbr.rel (%p251) target = $region44
    $region43: #{_lambda_.20} parent=5 // pred_region
      %s255 = ssub.s32 %s12, 1
      %p256 = scmp.lt.s32.totalorder %s21, 1
      %s257 = scalar_select %p256, %s21, 1
      %p258 = scmp.lt.s32.totalorder %s22, 1
      %s259 = scalar_select %p258, %s22, 1
      %s260 = smul.addr %s257, 2
      %s261 = sadd.s32 %s259, %s260
      %s262 = smul.addr %s261, 4
      %s263 = scalar_lea.vmem %s0, %s262
      %p264 = pneg %p52
      %p265 = pneg %p49
      %s266 = sadd.s32 %s22, 1
      %p267 = scmp.lt.s32.totalorder %s21, 1
      %s268 = scalar_select %p267, %s21, 1
      %p269 = scmp.lt.s32.totalorder %s266, 1
      %s270 = scalar_select %p269, %s266, 1
      %s271 = smul.addr %s268, 2
      %s272 = sadd.s32 %s270, %s271
      %s273 = smul.addr %s272, 4
      %s274 = scalar_lea.vmem %s1, %s273
      %p275 = pneg %p82
      %p276 = pneg %p79
      %p277 = pneg %p103
      %p278 = pneg %p100
      %p279 = pneg %p124
      %p280 = pneg %p121
      %p281 = pneg %p145
      %p282 = pneg %p142
      %p283 = pneg %p166
      %p284 = pneg %p163
      %p285 = pneg %p194
      %p286 = pneg %p191
      %p287 = scmp.lt.s32.totalorder %s21, 1
      %s288 = scalar_select %p287, %s21, 1
      %p289 = scmp.lt.s32.totalorder %s22, 0
      %s290 = scalar_select %p289, %s22, 0
      %s291 = sadd.s32 %s290, %s288
      %s292 = smul.addr %s291, 4
      %s293 = scalar_lea.vmem %s6, %s292
      %p294 = scmp.lt.s32.totalorder %s21, 1
      %s295 = scalar_select %p294, %s21, 1
      %p296 = scmp.lt.s32.totalorder %s22, 1
      %s297 = scalar_select %p296, %s22, 1
      %s298 = smul.addr %s295, 2
      %s299 = sadd.s32 %s297, %s298
      %s300 = smul.addr %s299, 4
      %s301 = scalar_lea.vmem %s0, %s300
      %s302 = sadd.s32 %s22, 1
      %p303 = scmp.lt.s32.totalorder %s21, 1
      %s304 = scalar_select %p303, %s21, 1
      %p305 = scmp.lt.s32.totalorder %s302, 1
      %s306 = scalar_select %p305, %s302, 1
      %s307 = smul.addr %s304, 2
      %s308 = sadd.s32 %s306, %s307
      %s309 = smul.addr %s308, 4
      %s310 = scalar_lea.vmem %s1, %s309
      %s311 = sadd.s32 %s22, 1
      %p312 = scmp.lt.s32.totalorder %s21, 1
      %s313 = scalar_select %p312, %s21, 1
      %p314 = scmp.lt.s32.totalorder %s22, 0
      %s315 = scalar_select %p314, %s22, 0
      %s316 = sadd.s32 %s315, %s313
      %s317 = smul.addr %s316, 4
      %s318 = scalar_lea.vmem %s6, %s317
      %v320 = vld [vmem:[%s301] sm:$0xf]
      %v321 = vld [vmem:[%s310] sm:$0xf]
      %v322 = vunpack.c.l.bf16 %v320
      %v323 = vunpack.c.l.bf16 %v321
      %vm324 = vcmp.ge.f32.partialorder %v322, 0.0
      %vm325 = vcmp.ge.f32.partialorder %v323, 0.0
      %v326 = vmul.f32 %v322, 0.1
      %v327 = vmul.f32 %v323, 0.1
      %v328 = vsel %vm324, %v322, %v326
      %v329 = vsel %vm325, %v323, %v327
      %v330 = vpack.c.bf16 %v329, %v328
      %v332 = vunpack.c.l.b16 %v330
      %v333 = vunpack.c.h.b16 %v330
      %v334 = vpack.c.b16 %v332, %v332
      %v335 = vpack.c.b16 %v333, %v333
      %336 = vrot.lane.b32.xlu0 %v334, 125
      %v337 = vpop.permute.xlu0 %336
      %338 = vrot.lane.b32.xlu0 %v335, 125
      %v339 = vpop.permute.xlu0 %338
      %vm340 = vcmask 1022976
      %v341 = vsel %vm340, %v337, %v339
      %342 = vrot.lane.b32.xlu0 %v334, 122
      %v343 = vpop.permute.xlu0 %342
      %344 = vrot.lane.b32.xlu0 %v335, 122
      %v345 = vpop.permute.xlu0 %344
      %vm346 = vcmask 998400
      %v347 = vsel %vm346, %v343, %v345
      %vm348 = vcmask 1043456
      %v351 = vsel %vm348, %v334, %v341
      %v355 = vsel %vm348, %v335, %v339
      %v357 = vld [vmem:[%s2] sm:$0xf]
      %v358 = vld [vmem:[%s3] sm:$0xff]
      %360 = vset.pattern.permute.xlu0 0
      %361 = vperm.xlu0 %360, %v358
      %v362 = vpop.permute.xlu0 %361
      %vm364 = vcmask 195584
      %v366 = vsel %vm364, %v357, 0
      %v369 = vsel %vm348, %v347, 0
      %v372 = vsel %vm348, %v345, 0
      %374 = vmatpush.bf16.msra.mxu0 0
      %375 = vmatpush.bf16.msra.mxu0 0
      %376 = vmatpush.bf16.msra.mxu0 0
      %377 = vmatpush.bf16.msra.mxu0 0
      %378 = vmatpush.bf16.msra.mxu0 0
      %379 = vmatpush.bf16.msra.mxu0 0
      %380 = vmatpush.bf16.msra.mxu0 %v369
      %381 = vmatpush.bf16.msra.mxu0 %v351
      %382 = vmatmul.bf16.gmra.mxu0 %v366
      %v383 = vpop.f32.mrf.mxu0
      %v384 = vadd.f32 %v362, %v383
      %v385 = vpop.f32.mrf.mxu0
      %386 = vdwg.mxu0
      %387 = vmatpush.bf16.msra.mxu0 0
      %388 = vmatpush.bf16.msra.mxu0 0
      %389 = vmatpush.bf16.msra.mxu0 0
      %390 = vmatpush.bf16.msra.mxu0 0
      %391 = vmatpush.bf16.msra.mxu0 0
      %392 = vmatpush.bf16.msra.mxu0 0
      %393 = vmatpush.bf16.msra.mxu0 %v372
      %394 = vmatpush.bf16.msra.mxu0 %v355
      %395 = vmatmul.bf16.gmra.mxu0 %v366
      %v396 = vpop.f32.mrf.mxu0
      %v397 = vadd.f32 %v362, %v396
      %v398 = vpop.f32.mrf.mxu0
      %399 = vdwg.mxu0
      %vm400 = vcmp.ge.f32.partialorder %v384, 0.0
      %vm401 = vcmp.ge.f32.partialorder %v397, 0.0
      %v402 = vmul.f32 %v384, 0.1
      %v403 = vmul.f32 %v397, 0.1
      %v404 = vsel %vm400, %v384, %v402
      %v405 = vsel %vm401, %v397, %v403
      %s406 = smul.u32 %s22, 128
      %s407 = ssub.s32 %s406, 1
      %v408 = vlaneseq
      %v409 = vand.u32 %v408, 127
      %v410 = vadd.s32 %v409, 128
      %v411 = vstv %s407
      %v412 = vadd.s32 %v411, %v409
      %v413 = vadd.s32 %v411, %v410
      %vm414 = vcmp.ge.s32.totalorder %v412, 0
      %vm415 = vcmp.ge.s32.totalorder %v413, 0
      %vm416 = vcmp.lt.s32.totalorder %v412, 32
      %vm417 = vcmp.lt.s32.totalorder %v413, 32
      %vm418 = vmand %vm414, %vm416
      %vm419 = vmand %vm415, %vm417
      %v420 = vsel %vm418, 1, 0
      %v421 = vsel %vm419, 1, 0
      %vm422 = vcmp.eq.s32.totalorder %v420, 1
      %vm423 = vcmp.eq.s32.totalorder %v421, 1
      %v424 = vsel %vm422, %v404, 0.0
      %v425 = vsel %vm423, %v405, 0.0
      %v426 = vpack.c.bf16 %v425, %v424
      %v428 = vunpack.c.l.b16 %v426
      %v429 = vunpack.c.h.b16 %v426
      %v430 = vpack.c.b16 %v428, %v428
      %v431 = vpack.c.b16 %v429, %v429
      %432 = vrot.lane.b32.xlu0 %v430, 127
      %v433 = vpop.permute.xlu0 %432
      %434 = vrot.lane.b32.xlu0 %v431, 127
      %v435 = vpop.permute.xlu0 %434
      %vm436 = vcmask 1039360
      %v437 = vsel %vm436, %v433, %v435
      %438 = vrot.lane.b32.xlu0 %v430, 126
      %v439 = vpop.permute.xlu0 %438
      %440 = vrot.lane.b32.xlu0 %v431, 126
      %v441 = vpop.permute.xlu0 %440
      %vm442 = vcmask 1031168
      %v443 = vsel %vm442, %v439, %v441
      %v446 = vsel %vm348, %v426, %v437
      %v448 = vld [vmem:[%s4] sm:$0xf]
      %v449 = vld [vmem:[%s5] sm:$0xff]
      %451 = vset.pattern.permute.xlu0 0
      %452 = vperm.xlu0 %451, %v449
      %v453 = vpop.permute.xlu0 %452
      %v456 = vsel %vm364, %v448, 0
      %v459 = vsel %vm348, %v443, 0
      %461 = vmatpush.bf16.msra.mxu0 0
      %462 = vmatpush.bf16.msra.mxu0 0
      %463 = vmatpush.bf16.msra.mxu0 0
      %464 = vmatpush.bf16.msra.mxu0 0
      %465 = vmatpush.bf16.msra.mxu0 0
      %466 = vmatpush.bf16.msra.mxu0 0
      %467 = vmatpush.bf16.msra.mxu0 %v459
      %468 = vmatpush.bf16.msra.mxu0 %v446
      %469 = vmatmul.bf16.gmra.mxu0 %v456
      %v470 = vpop.f32.mrf.mxu0
      %v471 = vadd.f32 %v453, %v470
      %v472 = vpop.f32.mrf.mxu0
      %473 = vdwg.mxu0
      %476 = vrot.lane.b32.xlu0 %v322, 124
      %v477 = vpop.permute.xlu0 %476
      %478 = vrot.lane.b32.xlu0 %v323, 124
      %v479 = vpop.permute.xlu0 %478
      %vm480 = vcmask 1014784
      %v481 = vsel %vm480, %v477, %v479
      %v483 = vadd.f32 %v471, %v481
      %v484 = vpack.c.bf16 %v483, %v483
      %485 = vst [vmem:[%s318] sm:$0xf] %v484
      %p486 = scmp.lt.s32.totalorder %s21, 1
      %s487 = scalar_select %p486, %s21, 1
      %p488 = scmp.lt.s32.totalorder %s22, 0
      %s489 = scalar_select %p488, %s22, 0
      %s490 = sadd.s32 %s489, %s487
      %s491 = smul.addr %s490, 4
      %s492 = scalar_lea.vmem %s6, %s491
      // Predicated region
      $region45: #{_lambda_.20} parent=43 // pred_check
        %p493 = pneg %p191
      $region46: #{_lambda_.20} parent=43 // pred_check_branch
        %495 = sbr.rel (%p493) target = $region48
      $region47: #{_lambda_.20} parent=43 // pred_region
        _
      $region48: #{_lambda_.20} parent=43 // pred_fallthru
        _
    $region44: #{_lambda_.20} parent=5 // pred_fallthru
      _
    %p496 = scmp.le.s32.totalorder 2, %s12
    // Predicated region
    $region49: #{_lambda_.20} parent=5 // pred_check
      %p497 = pneg %p496
    $region50: #{_lambda_.20} parent=5 // pred_check_branch
      %499 = sbr.rel (%p497) target = $region52
    $region51: #{_lambda_.20} parent=5 // pred_region
      %s500 = ssub.s32 %s12, 2
      // Predicated region
      $region53: #{_lambda_.20} parent=51 // pred_check
        %p501 = pneg %p197
      $region54: #{_lambda_.20} parent=51 // pred_check_branch
        %503 = sbr.rel (%p501) target = $region56
      $region55: #{_lambda_.20} parent=51 // pred_region
        %p504 = scmp.lt.s32.totalorder %s23, 1
        %s505 = scalar_select %p504, %s23, 1
        %p506 = scmp.lt.s32.totalorder %s24, 0
        %s507 = scalar_select %p506, %s24, 0
        %s508 = sadd.s32 %s507, %s505
        %s509 = smul.addr %s508, 4
        %s510 = scalar_lea.vmem %s6, %s509
      $region56: #{_lambda_.20} parent=51 // pred_fallthru
        _
    $region52: #{_lambda_.20} parent=5 // pred_fallthru
      _
  $region6: #{_lambda_.20} parent=0 // loop_footer
    %s16 = sadd.s32 1, %s12
  $region7: #{_lambda_.20} parent=0 // loop_footer_branch
    %11 = sbr.rel target = $region3
  $region8: #{_lambda_.20} parent=0 // loop_exit
    _

// kernel: _lambda_.22
$region0: #{_lambda_.22}
  #allocation0 [shape = 'u32[]', space=smem, size = 0x4, offset = 0x4, fixed_abs, tag = 'smem constant byte address 0x4 - core index']
  #allocation1 [shape = 'u32[72,128]{1,0:T(1,128)}', space=vmem, size = 0x9000, scoped, tag = 'internal scratch']
  %s0 = inlined_call_operand.vmem [shape: bf16[2,8,256], index: 0, kind: input, shape index: {}, may-alias: {0,1}]
  %s1 = inlined_call_operand.vmem [shape: bf16[2,8,256], index: 1, kind: input, shape index: {}, may-alias: {0,1}]
  %s2 = inlined_call_operand.vmem [shape: bf16[8,40], index: 2, kind: input, shape index: {}]
  %s3 = inlined_call_operand.vmem [shape: f32[8,1], index: 3, kind: input, shape index: {}]
  %s4 = inlined_call_operand.vmem [shape: bf16[8,40], index: 4, kind: input, shape index: {}]
  %s5 = inlined_call_operand.vmem [shape: f32[8,1], index: 5, kind: input, shape index: {}]
  %s6 = inlined_call_operand.vmem [shape: bf16[2,8,128], index: 6, kind: output, shape index: {}]
  %s7 = sld [smem:[#allocation0]]
  $region57: #{_lambda_.22} parent=0
    _
  %s9 = ssub.s32 1, %s7
  %s10 = scalar_select 0, %s9, %s7
  loop: start=0, step=1, limit=4
  $region2: #{_lambda_.22} parent=0 // loop_pre_header
    _
  $region3: #{_lambda_.22} parent=0 // loop_header
    %s12 = sphi 0, %s16
    %p13 = scmp.ge.s32.totalorder %s12, 4
    %s19 = sphi 0, %s31
    %s20 = sphi 0, %s27
    %s21 = sphi 0, %s19
    %s22 = sphi 0, %s20
    %s23 = sphi 0, %s21
    %s24 = sphi 0, %s22
    %s36 = sphi 0, %s38
    %s39 = sphi 0, %s36
    %s40 = sphi 0, %s39
    %s56 = sphi 0, %s40
    %s66 = sphi 0, %s68
    %s69 = sphi 0, %s66
    %s70 = sphi 0, %s69
    %s86 = sphi 0, %s70
    %s90 = sphi 0, %s90
    %s92 = sphi 0, %s90
    %s93 = sphi 0, %s92
    %s107 = sphi 0, %s93
    %s111 = sphi 0, %s111
    %s113 = sphi 0, %s111
    %s114 = sphi 0, %s113
    %s128 = sphi 0, %s114
    %s132 = sphi 0, %s132
    %s134 = sphi 0, %s132
    %s135 = sphi 0, %s134
    %s149 = sphi 0, %s135
    %s153 = sphi 0, %s153
    %s155 = sphi 0, %s153
    %s156 = sphi 0, %s155
    %s170 = sphi 0, %s156
    %s178 = sphi 0, %s180
    %s181 = sphi 0, %s178
    %s182 = sphi 0, %s181
    %s198 = sphi 0, %s182
  $region4: #{_lambda_.22} parent=0 // loop_header_branch
    %15 = sbr.rel (%p13) target = $region8
  $region5: #{_lambda_.22} parent=0 // loop_body
    %s17 = ssub.s32 %s12, 1
    %s18 = ssub.s32 %s12, 2
    %s25 = sadd.s32 1, %s20
    %p26 = scmp.ge.s32.totalorder %s25, 1
    %s27 = scalar_select %p26, 0, %s25
    %s28 = sadd.s32 1, %s19
    %s29 = scalar_select %p26, %s28, %s19
    %p30 = scmp.ge.s32.totalorder %s29, 2
    %s31 = scalar_select %p30, 0, %s29
    %s32 = ssub.s32 %s19, %s31
    %s33 = ssub.s32 %s20, %s27
    %s34 = sor.u32 %s32, %s33
    %p35 = scmp.eq.s32.totalorder %s34, 0
    %s37 = sadd.s32 %s36, 1
    %s38 = scalar_select %p35, %s36, %s37
    %p41 = pneg %p35
    %p42 = scmp.eq.s32.totalorder %s12, 1
    %p43 = por %p41, %p42
    %p44 = scmp.ne.s32.totalorder %s36, %s39
    %p45 = scmp.eq.s32.totalorder %s12, 0
    %p46 = por %p44, %p45
    %p47 = scmp.ne.s32.totalorder %s36, %s39
    %p48 = scmp.eq.s32.totalorder %s17, 1
    %p49 = por %p47, %p48
    %p50 = scmp.ne.s32.totalorder %s39, %s40
    %p51 = scmp.eq.s32.totalorder %s17, 0
    %p52 = por %p50, %p51
    %p53 = scmp.ne.s32.totalorder %s39, %s40
    %p54 = scmp.eq.s32.totalorder %s18, 1
    %p55 = por %p53, %p54
    %p57 = scmp.ne.s32.totalorder %s40, %s56
    %p58 = scmp.eq.s32.totalorder %s18, 0
    %p59 = por %p57, %p58
    %s60 = sadd.s32 %s20, 1
    %s61 = sadd.s32 %s27, 1
    %s62 = ssub.s32 %s19, %s31
    %s63 = ssub.s32 %s60, %s61
    %s64 = sor.u32 %s62, %s63
    %p65 = scmp.eq.s32.totalorder %s64, 0
    %s67 = sadd.s32 %s66, 1
    %s68 = scalar_select %p65, %s66, %s67
    %p71 = pneg %p65
    %p72 = scmp.eq.s32.totalorder %s12, 1
    %p73 = por %p71, %p72
    %p74 = scmp.ne.s32.totalorder %s66, %s69
    %p75 = scmp.eq.s32.totalorder %s12, 0
    %p76 = por %p74, %p75
    %p77 = scmp.ne.s32.totalorder %s66, %s69
    %p78 = scmp.eq.s32.totalorder %s17, 1
    %p79 = por %p77, %p78
    %p80 = scmp.ne.s32.totalorder %s69, %s70
    %p81 = scmp.eq.s32.totalorder %s17, 0
    %p82 = por %p80, %p81
    %p83 = scmp.ne.s32.totalorder %s69, %s70
    %p84 = scmp.eq.s32.totalorder %s18, 1
    %p85 = por %p83, %p84
    %p87 = scmp.ne.s32.totalorder %s70, %s86
    %p88 = scmp.eq.s32.totalorder %s18, 0
    %p89 = por %p87, %p88
    %s91 = sadd.s32 %s90, 1
    %p94 = scmp.eq.s32.totalorder %s12, 1
    %p95 = scmp.ne.s32.totalorder %s90, %s92
    %p96 = scmp.eq.s32.totalorder %s12, 0
    %p97 = por %p95, %p96
    %p98 = scmp.ne.s32.totalorder %s90, %s92
    %p99 = scmp.eq.s32.totalorder %s17, 1
    %p100 = por %p98, %p99
    %p101 = scmp.ne.s32.totalorder %s92, %s93
    %p102 = scmp.eq.s32.totalorder %s17, 0
    %p103 = por %p101, %p102
    %p104 = scmp.ne.s32.totalorder %s92, %s93
    %p105 = scmp.eq.s32.totalorder %s18, 1
    %p106 = por %p104, %p105
    %p108 = scmp.ne.s32.totalorder %s93, %s107
    %p109 = scmp.eq.s32.totalorder %s18, 0
    %p110 = por %p108, %p109
    %s112 = sadd.s32 %s111, 1
    %p115 = scmp.eq.s32.totalorder %s12, 1
    %p116 = scmp.ne.s32.totalorder %s111, %s113
    %p117 = scmp.eq.s32.totalorder %s12, 0
    %p118 = por %p116, %p117
    %p119 = scmp.ne.s32.totalorder %s111, %s113
    %p120 = scmp.eq.s32.totalorder %s17, 1
    %p121 = por %p119, %p120
    %p122 = scmp.ne.s32.totalorder %s113, %s114
    %p123 = scmp.eq.s32.totalorder %s17, 0
    %p124 = por %p122, %p123
    %p125 = scmp.ne.s32.totalorder %s113, %s114
    %p126 = scmp.eq.s32.totalorder %s18, 1
    %p127 = por %p125, %p126
    %p129 = scmp.ne.s32.totalorder %s114, %s128
    %p130 = scmp.eq.s32.totalorder %s18, 0
    %p131 = por %p129, %p130
    %s133 = sadd.s32 %s132, 1
    %p136 = scmp.eq.s32.totalorder %s12, 1
    %p137 = scmp.ne.s32.totalorder %s132, %s134
    %p138 = scmp.eq.s32.totalorder %s12, 0
    %p139 = por %p137, %p138
    %p140 = scmp.ne.s32.totalorder %s132, %s134
    %p141 = scmp.eq.s32.totalorder %s17, 1
    %p142 = por %p140, %p141
    %p143 = scmp.ne.s32.totalorder %s134, %s135
    %p144 = scmp.eq.s32.totalorder %s17, 0
    %p145 = por %p143, %p144
    %p146 = scmp.ne.s32.totalorder %s134, %s135
    %p147 = scmp.eq.s32.totalorder %s18, 1
    %p148 = por %p146, %p147
    %p150 = scmp.ne.s32.totalorder %s135, %s149
    %p151 = scmp.eq.s32.totalorder %s18, 0
    %p152 = por %p150, %p151
    %s154 = sadd.s32 %s153, 1
    %p157 = scmp.eq.s32.totalorder %s12, 1
    %p158 = scmp.ne.s32.totalorder %s153, %s155
    %p159 = scmp.eq.s32.totalorder %s12, 0
    %p160 = por %p158, %p159
    %p161 = scmp.ne.s32.totalorder %s153, %s155
    %p162 = scmp.eq.s32.totalorder %s17, 1
    %p163 = por %p161, %p162
    %p164 = scmp.ne.s32.totalorder %s155, %s156
    %p165 = scmp.eq.s32.totalorder %s17, 0
    %p166 = por %p164, %p165
    %p167 = scmp.ne.s32.totalorder %s155, %s156
    %p168 = scmp.eq.s32.totalorder %s18, 1
    %p169 = por %p167, %p168
    %p171 = scmp.ne.s32.totalorder %s156, %s170
    %p172 = scmp.eq.s32.totalorder %s18, 0
    %p173 = por %p171, %p172
    %s174 = ssub.s32 %s19, %s31
    %s175 = ssub.s32 %s20, %s27
    %s176 = sor.u32 %s174, %s175
    %p177 = scmp.eq.s32.totalorder %s176, 0
    %s179 = sadd.s32 %s178, 1
    %s180 = scalar_select %p177, %s178, %s179
    %p183 = pneg %p177
    %p184 = scmp.eq.s32.totalorder %s12, 1
    %p185 = por %p183, %p184
    %p186 = scmp.ne.s32.totalorder %s178, %s181
    %p187 = scmp.eq.s32.totalorder %s12, 0
    %p188 = por %p186, %p187
    %p189 = scmp.ne.s32.totalorder %s178, %s181
    %p190 = scmp.eq.s32.totalorder %s17, 1
    %p191 = por %p189, %p190
    %p192 = scmp.ne.s32.totalorder %s181, %s182
    %p193 = scmp.eq.s32.totalorder %s17, 0
    %p194 = por %p192, %p193
    %p195 = scmp.ne.s32.totalorder %s181, %s182
    %p196 = scmp.eq.s32.totalorder %s18, 1
    %p197 = por %p195, %p196
    %p199 = scmp.ne.s32.totalorder %s182, %s198
    %p200 = scmp.eq.s32.totalorder %s18, 0
    %p201 = por %p199, %p200
    %p202 = scmp.le.s32.totalorder 1, %s12
    %p203 = scmp.lt.s32.totalorder %s12, 3
    %p204 = pnand %p202, %p203
    %p205 = pneg %p204
    // Predicated region
    $region9: #{_lambda_.22} parent=5 // pred_check
      _
    $region10: #{_lambda_.22} parent=5 // pred_check_branch
      %207 = sbr.rel (%p204) target = $region12
    $region11: #{_lambda_.22} parent=5 // pred_region
      %s208 = ssub.s32 %s12, 1
      // Predicated region
      $region13: #{_lambda_.22} parent=11 // pred_check
        %p209 = pneg %p103
      $region14: #{_lambda_.22} parent=11 // pred_check_branch
        %211 = sbr.rel (%p209) target = $region16
      $region15: #{_lambda_.22} parent=11 // pred_region
        _
      $region16: #{_lambda_.22} parent=11 // pred_fallthru
        _
      // Predicated region
      $region17: #{_lambda_.22} parent=11 // pred_check
        %p212 = pneg %p124
      $region18: #{_lambda_.22} parent=11 // pred_check_branch
        %214 = sbr.rel (%p212) target = $region20
      $region19: #{_lambda_.22} parent=11 // pred_region
        _
      $region20: #{_lambda_.22} parent=11 // pred_fallthru
        _
      // Predicated region
      $region21: #{_lambda_.22} parent=11 // pred_check
        %p215 = pneg %p145
      $region22: #{_lambda_.22} parent=11 // pred_check_branch
        %217 = sbr.rel (%p215) target = $region24
      $region23: #{_lambda_.22} parent=11 // pred_region
        _
      $region24: #{_lambda_.22} parent=11 // pred_fallthru
        _
      // Predicated region
      $region25: #{_lambda_.22} parent=11 // pred_check
        %p218 = pneg %p166
      $region26: #{_lambda_.22} parent=11 // pred_check_branch
        %220 = sbr.rel (%p218) target = $region28
      $region27: #{_lambda_.22} parent=11 // pred_region
        _
      $region28: #{_lambda_.22} parent=11 // pred_fallthru
        _
    $region12: #{_lambda_.22} parent=5 // pred_fallthru
      _
    %p221 = scmp.lt.s32.totalorder %s12, 2
    // Predicated region
    $region29: #{_lambda_.22} parent=5 // pred_check
      %p222 = pneg %p221
    $region30: #{_lambda_.22} parent=5 // pred_check_branch
      %224 = sbr.rel (%p222) target = $region32
    $region31: #{_lambda_.22} parent=5 // pred_region
      // Predicated region
      $region33: #{_lambda_.22} parent=31 // pred_check
        %p225 = pneg %p46
      $region34: #{_lambda_.22} parent=31 // pred_check_branch
        %227 = sbr.rel (%p225) target = $region36
      $region35: #{_lambda_.22} parent=31 // pred_region
        %p228 = scmp.lt.s32.totalorder %s19, 1
        %s229 = scalar_select %p228, %s19, 1
        %p230 = scmp.lt.s32.totalorder %s20, 1
        %s231 = scalar_select %p230, %s20, 1
        %s232 = smul.addr %s229, 2
        %s233 = sadd.s32 %s231, %s232
        %s234 = smul.addr %s233, 4
        %s235 = scalar_lea.vmem %s0, %s234
      $region36: #{_lambda_.22} parent=31 // pred_fallthru
        _
      // Predicated region
      $region37: #{_lambda_.22} parent=31 // pred_check
        %p236 = pneg %p76
      $region38: #{_lambda_.22} parent=31 // pred_check_branch
        %238 = sbr.rel (%p236) target = $region40
      $region39: #{_lambda_.22} parent=31 // pred_region
        %s239 = sadd.s32 %s20, 1
        %p240 = scmp.lt.s32.totalorder %s19, 1
        %s241 = scalar_select %p240, %s19, 1
        %p242 = scmp.lt.s32.totalorder %s239, 1
        %s243 = scalar_select %p242, %s239, 1
        %s244 = smul.addr %s241, 2
        %s245 = sadd.s32 %s243, %s244
        %s246 = smul.addr %s245, 4
        %s247 = scalar_lea.vmem %s1, %s246
        %s248 = sadd.s32 %s20, 1
      $region40: #{_lambda_.22} parent=31 // pred_fallthru
        _
    $region32: #{_lambda_.22} parent=5 // pred_fallthru
      _
    %p249 = scmp.le.s32.totalorder 1, %s12
    %p250 = scmp.lt.s32.totalorder %s12, 3
    %p251 = pnand %p249, %p250
    %p252 = pneg %p251
    // Predicated region
    $region41: #{_lambda_.22} parent=5 // pred_check
      _
    $region42: #{_lambda_.22} parent=5 // pred_check_branch
      %254 = sbr.rel (%p251) target = $region44
    $region43: #{_lambda_.22} parent=5 // pred_region
      %s255 = ssub.s32 %s12, 1
      %p256 = scmp.lt.s32.totalorder %s21, 1
      %s257 = scalar_select %p256, %s21, 1
      %p258 = scmp.lt.s32.totalorder %s22, 1
      %s259 = scalar_select %p258, %s22, 1
      %s260 = smul.addr %s257, 2
      %s261 = sadd.s32 %s259, %s260
      %s262 = smul.addr %s261, 4
      %s263 = scalar_lea.vmem %s0, %s262
      %p264 = pneg %p52
      %p265 = pneg %p49
      %s266 = sadd.s32 %s22, 1
      %p267 = scmp.lt.s32.totalorder %s21, 1
      %s268 = scalar_select %p267, %s21, 1
      %p269 = scmp.lt.s32.totalorder %s266, 1
      %s270 = scalar_select %p269, %s266, 1
      %s271 = smul.addr %s268, 2
      %s272 = sadd.s32 %s270, %s271
      %s273 = smul.addr %s272, 4
      %s274 = scalar_lea.vmem %s1, %s273
      %p275 = pneg %p82
      %p276 = pneg %p79
      %p277 = pneg %p103
      %p278 = pneg %p100
      %p279 = pneg %p124
      %p280 = pneg %p121
      %p281 = pneg %p145
      %p282 = pneg %p142
      %p283 = pneg %p166
      %p284 = pneg %p163
      %p285 = pneg %p194
      %p286 = pneg %p191
      %p287 = scmp.lt.s32.totalorder %s21, 1
      %s288 = scalar_select %p287, %s21, 1
      %p289 = scmp.lt.s32.totalorder %s22, 0
      %s290 = scalar_select %p289, %s22, 0
      %s291 = sadd.s32 %s290, %s288
      %s292 = smul.addr %s291, 4
      %s293 = scalar_lea.vmem %s6, %s292
      %p294 = scmp.lt.s32.totalorder %s21, 1
      %s295 = scalar_select %p294, %s21, 1
      %p296 = scmp.lt.s32.totalorder %s22, 1
      %s297 = scalar_select %p296, %s22, 1
      %s298 = smul.addr %s295, 2
      %s299 = sadd.s32 %s297, %s298
      %s300 = smul.addr %s299, 4
      %s301 = scalar_lea.vmem %s0, %s300
      %s302 = sadd.s32 %s22, 1
      %p303 = scmp.lt.s32.totalorder %s21, 1
      %s304 = scalar_select %p303, %s21, 1
      %p305 = scmp.lt.s32.totalorder %s302, 1
      %s306 = scalar_select %p305, %s302, 1
      %s307 = smul.addr %s304, 2
      %s308 = sadd.s32 %s306, %s307
      %s309 = smul.addr %s308, 4
      %s310 = scalar_lea.vmem %s1, %s309
      %s311 = sadd.s32 %s22, 1
      %p312 = scmp.lt.s32.totalorder %s21, 1
      %s313 = scalar_select %p312, %s21, 1
      %p314 = scmp.lt.s32.totalorder %s22, 0
      %s315 = scalar_select %p314, %s22, 0
      %s316 = sadd.s32 %s315, %s313
      %s317 = smul.addr %s316, 4
      %s318 = scalar_lea.vmem %s6, %s317
      %v320 = vld [vmem:[%s301] sm:$0xf]
      %v321 = vld [vmem:[%s310] sm:$0xf]
      %v322 = vunpack.c.l.bf16 %v320
      %v323 = vunpack.c.l.bf16 %v321
      %vm324 = vcmp.ge.f32.partialorder %v322, 0.0
      %vm325 = vcmp.ge.f32.partialorder %v323, 0.0
      %v326 = vmul.f32 %v322, 0.1
      %v327 = vmul.f32 %v323, 0.1
      %v328 = vsel %vm324, %v322, %v326
      %v329 = vsel %vm325, %v323, %v327
      %v330 = vpack.c.bf16 %v329, %v328
      %v332 = vunpack.c.l.b16 %v330
      %v333 = vunpack.c.h.b16 %v330
      %v334 = vpack.c.b16 %v332, %v332
      %v335 = vpack.c.b16 %v333, %v333
      %336 = vrot.lane.b32.xlu0 %v334, 125
      %v337 = vpop.permute.xlu0 %336
      %338 = vrot.lane.b32.xlu0 %v335, 125
      %v339 = vpop.permute.xlu0 %338
      %vm340 = vcmask 1022976
      %v341 = vsel %vm340, %v337, %v339
      %342 = vrot.lane.b32.xlu0 %v334, 122
      %v343 = vpop.permute.xlu0 %342
      %344 = vrot.lane.b32.xlu0 %v335, 122
      %v345 = vpop.permute.xlu0 %344
      %vm346 = vcmask 998400
      %v347 = vsel %vm346, %v343, %v345
      %348 = vrot.lane.b32.xlu0 %v334, 119
      %v349 = vpop.permute.xlu0 %348
      %350 = vrot.lane.b32.xlu0 %v335, 119
      %v351 = vpop.permute.xlu0 %350
      %vm352 = vcmask 973824
      %v353 = vsel %vm352, %v349, %v351
      %354 = vrot.lane.b32.xlu0 %v334, 116
      %v355 = vpop.permute.xlu0 %354
      %356 = vrot.lane.b32.xlu0 %v335, 116
      %v357 = vpop.permute.xlu0 %356
      %vm358 = vcmask 949248
      %v359 = vsel %vm358, %v355, %v357
      %vm360 = vcmask 1043456
      %v363 = vsel %vm360, %v334, %v341
      %v367 = vsel %vm360, %v335, %v339
      %v371 = vsel %vm360, %v347, %v353
      %v375 = vsel %vm360, %v345, %v351
      %v377 = vld [vmem:[%s2] sm:$0xf]
      %v378 = vld [vmem:[%s3] sm:$0xff]
      %380 = vset.pattern.permute.xlu0 0
      %381 = vperm.xlu0 %380, %v378
      %v382 = vpop.permute.xlu0 %381
      %vm384 = vcmask 326656
      %v386 = vsel %vm384, %v377, 0
      %v389 = vsel %vm360, %v359, 0
      %v392 = vsel %vm360, %v357, 0
      %394 = vmatpush.bf16.msra.mxu0 0
      %395 = vmatpush.bf16.msra.mxu0 0
      %396 = vmatpush.bf16.msra.mxu0 0
      %397 = vmatpush.bf16.msra.mxu0 0
      %398 = vmatpush.bf16.msra.mxu0 0
      %399 = vmatpush.bf16.msra.mxu0 %v389
      %400 = vmatpush.bf16.msra.mxu0 %v371
      %401 = vmatpush.bf16.msra.mxu0 %v363
      %402 = vmatmul.bf16.gmra.mxu0 %v386
      %v403 = vpop.f32.mrf.mxu0
      %v404 = vadd.f32 %v382, %v403
      %v405 = vpop.f32.mrf.mxu0
      %406 = vdwg.mxu0
      %407 = vmatpush.bf16.msra.mxu0 0
      %408 = vmatpush.bf16.msra.mxu0 0
      %409 = vmatpush.bf16.msra.mxu0 0
      %410 = vmatpush.bf16.msra.mxu0 0
      %411 = vmatpush.bf16.msra.mxu0 0
      %412 = vmatpush.bf16.msra.mxu0 %v392
      %413 = vmatpush.bf16.msra.mxu0 %v375
      %414 = vmatpush.bf16.msra.mxu0 %v367
      %415 = vmatmul.bf16.gmra.mxu0 %v386
      %v416 = vpop.f32.mrf.mxu0
      %v417 = vadd.f32 %v382, %v416
      %v418 = vpop.f32.mrf.mxu0
      %419 = vdwg.mxu0
      %vm420 = vcmp.ge.f32.partialorder %v404, 0.0
      %vm421 = vcmp.ge.f32.partialorder %v417, 0.0
      %v422 = vmul.f32 %v404, 0.1
      %v423 = vmul.f32 %v417, 0.1
      %v424 = vsel %vm420, %v404, %v422
      %v425 = vsel %vm421, %v417, %v423
      %s426 = smul.u32 %s22, 128
      %s427 = ssub.s32 %s426, 2
      %v428 = vlaneseq
      %v429 = vand.u32 %v428, 127
      %v430 = vadd.s32 %v429, 128
      %v431 = vstv %s427
      %v432 = vadd.s32 %v431, %v429
      %v433 = vadd.s32 %v431, %v430
      %vm434 = vcmp.ge.s32.totalorder %v432, 0
      %vm435 = vcmp.ge.s32.totalorder %v433, 0
      %vm436 = vcmp.lt.s32.totalorder %v432, 32
      %vm437 = vcmp.lt.s32.totalorder %v433, 32
      %vm438 = vmand %vm434, %vm436
      %vm439 = vmand %vm435, %vm437
      %v440 = vsel %vm438, 1, 0
      %v441 = vsel %vm439, 1, 0
      %vm442 = vcmp.eq.s32.totalorder %v440, 1
      %vm443 = vcmp.eq.s32.totalorder %v441, 1
      %v444 = vsel %vm442, %v424, 0.0
      %v445 = vsel %vm443, %v425, 0.0
      %v446 = vpack.c.bf16 %v445, %v444
      %v448 = vunpack.c.l.b16 %v446
      %v449 = vunpack.c.h.b16 %v446
      %v450 = vpack.c.b16 %v448, %v448
      %v451 = vpack.c.b16 %v449, %v449
      %452 = vrot.lane.b32.xlu0 %v450, 127
      %v453 = vpop.permute.xlu0 %452
      %454 = vrot.lane.b32.xlu0 %v451, 127
      %v455 = vpop.permute.xlu0 %454
      %vm456 = vcmask 1039360
      %v457 = vsel %vm456, %v453, %v455
      %458 = vrot.lane.b32.xlu0 %v450, 126
      %v459 = vpop.permute.xlu0 %458
      %460 = vrot.lane.b32.xlu0 %v451, 126
      %v461 = vpop.permute.xlu0 %460
      %vm462 = vcmask 1031168
      %v463 = vsel %vm462, %v459, %v461
      %464 = vrot.lane.b32.xlu0 %v450, 125
      %v465 = vpop.permute.xlu0 %464
      %466 = vrot.lane.b32.xlu0 %v451, 125
      %v467 = vpop.permute.xlu0 %466
      %v468 = vsel %vm340, %v465, %v467
      %469 = vrot.lane.b32.xlu0 %v450, 124
      %v470 = vpop.permute.xlu0 %469
      %471 = vrot.lane.b32.xlu0 %v451, 124
      %v472 = vpop.permute.xlu0 %471
      %vm473 = vcmask 1014784
      %v474 = vsel %vm473, %v470, %v472
      %v477 = vsel %vm360, %v446, %v457
      %v481 = vsel %vm360, %v463, %v468
      %v483 = vld [vmem:[%s4] sm:$0xf]
      %v484 = vld [vmem:[%s5] sm:$0xff]
      %486 = vset.pattern.permute.xlu0 0
      %487 = vperm.xlu0 %486, %v484
      %v488 = vpop.permute.xlu0 %487
      %v491 = vsel %vm384, %v483, 0
      %v494 = vsel %vm360, %v474, 0
      %496 = vmatpush.bf16.msra.mxu0 0
      %497 = vmatpush.bf16.msra.mxu0 0
      %498 = vmatpush.bf16.msra.mxu0 0
      %499 = vmatpush.bf16.msra.mxu0 0
      %500 = vmatpush.bf16.msra.mxu0 0
      %501 = vmatpush.bf16.msra.mxu0 %v494
      %502 = vmatpush.bf16.msra.mxu0 %v481
      %503 = vmatpush.bf16.msra.mxu0 %v477
      %504 = vmatmul.bf16.gmra.mxu0 %v491
      %v505 = vpop.f32.mrf.mxu0
      %v506 = vadd.f32 %v488, %v505
      %v507 = vpop.f32.mrf.mxu0
      %508 = vdwg.mxu0
      %511 = vrot.lane.b32.xlu0 %v322, 120
      %v512 = vpop.permute.xlu0 %511
      %513 = vrot.lane.b32.xlu0 %v323, 120
      %v514 = vpop.permute.xlu0 %513
      %vm515 = vcmask 982016
      %v516 = vsel %vm515, %v512, %v514
      %v518 = vadd.f32 %v506, %v516
      %v519 = vpack.c.bf16 %v518, %v518
      %520 = vst [vmem:[%s318] sm:$0xf] %v519
      %p521 = scmp.lt.s32.totalorder %s21, 1
      %s522 = scalar_select %p521, %s21, 1
      %p523 = scmp.lt.s32.totalorder %s22, 0
      %s524 = scalar_select %p523, %s22, 0
      %s525 = sadd.s32 %s524, %s522
      %s526 = smul.addr %s525, 4
      %s527 = scalar_lea.vmem %s6, %s526
      // Predicated region
      $region45: #{_lambda_.22} parent=43 // pred_check
        %p528 = pneg %p191
      $region46: #{_lambda_.22} parent=43 // pred_check_branch
        %530 = sbr.rel (%p528) target = $region48
      $region47: #{_lambda_.22} parent=43 // pred_region
        _
      $region48: #{_lambda_.22} parent=43 // pred_fallthru
        _
    $region44: #{_lambda_.22} parent=5 // pred_fallthru
      _
    %p531 = scmp.le.s32.totalorder 2, %s12
    // Predicated region
    $region49: #{_lambda_.22} parent=5 // pred_check
      %p532 = pneg %p531
    $region50: #{_lambda_.22} parent=5 // pred_check_branch
      %534 = sbr.rel (%p532) target = $region52
    $region51: #{_lambda_.22} parent=5 // pred_region
      %s535 = ssub.s32 %s12, 2
      // Predicated region
      $region53: #{_lambda_.22} parent=51 // pred_check
        %p536 = pneg %p197
      $region54: #{_lambda_.22} parent=51 // pred_check_branch
        %538 = sbr.rel (%p536) target = $region56
      $region55: #{_lambda_.22} parent=51 // pred_region
        %p539 = scmp.lt.s32.totalorder %s23, 1
        %s540 = scalar_select %p539, %s23, 1
        %p541 = scmp.lt.s32.totalorder %s24, 0
        %s542 = scalar_select %p541, %s24, 0
        %s543 = sadd.s32 %s542, %s540
        %s544 = smul.addr %s543, 4
        %s545 = scalar_lea.vmem %s6, %s544
      $region56: #{_lambda_.22} parent=51 // pred_fallthru
        _
    $region52: #{_lambda_.22} parent=5 // pred_fallthru
      _
  $region6: #{_lambda_.22} parent=0 // loop_footer
    %s16 = sadd.s32 1, %s12
  $region7: #{_lambda_.22} parent=0 // loop_footer_branch
    %11 = sbr.rel target = $region3
  $region8: #{_lambda_.22} parent=0 // loop_exit
    _

// kernel: _lambda_.23
$region0: #{_lambda_.23}
  #allocation0 [shape = 'u32[]', space=smem, size = 0x4, offset = 0x4, fixed_abs, tag = 'smem constant byte address 0x4 - core index']
  #allocation1 [shape = 'u32[72,128]{1,0:T(1,128)}', space=vmem, size = 0x9000, scoped, tag = 'internal scratch']
  #allocation2 [shape = 'f32[1,1]{1,0:T(1,128)S(1)}', space=vmem, size = 0x200, scoped, tag = 'scoped memory for _lambda_.23']
  %s0 = inlined_call_operand.vmem [shape: bf16[2,8,256], index: 0, kind: input, shape index: {}, may-alias: {0,1}]
  %s1 = inlined_call_operand.vmem [shape: bf16[2,8,256], index: 1, kind: input, shape index: {}, may-alias: {0,1}]
  %s2 = inlined_call_operand.vmem [shape: bf16[1,56], index: 2, kind: input, shape index: {}]
  %s3 = inlined_call_operand.<no memory space> [shape: f32[1,1], index: 3, kind: input, shape index: {}]
  %s4 = inlined_call_operand.hbm [shape: f32[2,1,128], index: 4, kind: output, shape index: {}]
  %s5 = sld [smem:[#allocation0]]
  $region49: #{_lambda_.23} parent=0
    _
  %s7 = ssub.s32 1, %s5
  %s8 = scalar_select 0, %s7, %s5
  %v9 = vstv %s3
  %10 = vst [vmem:[#allocation2] sm:$0x1] %v9
  $region1: #{_lambda_.23} parent=0
    #allocation3 [shape = 'u8[1024]{0}', space=vmem, size = 0x400, scoped, tag = 'output window, operand 0']
    #allocation4 [shape = 's32[2]{0}', space=sflag, size = 0x8, scoped, tag = 'scoped memory for _lambda_.23']
    %11 = vsyncpa [#allocation4], 0
    %s12 = scalar_lea.sflag [#allocation4], 1
    %13 = vsyncpa %s12, 0
    loop: start=0, step=1, limit=4
    $region2: #{_lambda_.23} parent=1 // loop_pre_header
      _
    $region3: #{_lambda_.23} parent=1 // loop_header
      %s15 = sphi 0, %s19
      %p16 = scmp.ge.s32.totalorder %s15, 4
      %s22 = sphi 0, %s34
      %s23 = sphi 0, %s30
      %s24 = sphi 0, %s22
      %s25 = sphi 0, %s23
      %s26 = sphi 0, %s24
      %s27 = sphi 0, %s25
      %s39 = sphi 0, %s41
      %s42 = sphi 0, %s39
      %s43 = sphi 0, %s42
      %s59 = sphi 0, %s43
      %s69 = sphi 0, %s71
      %s72 = sphi 0, %s69
      %s73 = sphi 0, %s72
      %s89 = sphi 0, %s73
      %s93 = sphi 0, %s93
      %s95 = sphi 0, %s93
      %s96 = sphi 0, %s95
      %s110 = sphi 0, %s96
      %s114 = sphi 0, %s114
      %s116 = sphi 0, %s114
      %s117 = sphi 0, %s116
      %s131 = sphi 0, %s117
      %s139 = sphi 0, %s141
      %s142 = sphi 0, %s139
      %s143 = sphi 0, %s142
      %s159 = sphi 0, %s143
    $region4: #{_lambda_.23} parent=1 // loop_header_branch
      %18 = sbr.rel (%p16) target = $region8
    $region5: #{_lambda_.23} parent=1 // loop_body
      %s20 = ssub.s32 %s15, 1
      %s21 = ssub.s32 %s15, 2
      %s28 = sadd.s32 1, %s23
      %p29 = scmp.ge.s32.totalorder %s28, 1
      %s30 = scalar_select %p29, 0, %s28
      %s31 = sadd.s32 1, %s22
      %s32 = scalar_select %p29, %s31, %s22
      %p33 = scmp.ge.s32.totalorder %s32, 2
      %s34 = scalar_select %p33, 0, %s32
      %s35 = ssub.s32 %s22, %s34
      %s36 = ssub.s32 %s23, %s30
      %s37 = sor.u32 %s35, %s36
      %p38 = scmp.eq.s32.totalorder %s37, 0
      %s40 = sadd.s32 %s39, 1
      %s41 = scalar_select %p38, %s39, %s40
      %p44 = pneg %p38
      %p45 = scmp.eq.s32.totalorder %s15, 1
      %p46 = por %p44, %p45
      %p47 = scmp.ne.s32.totalorder %s39, %s42
      %p48 = scmp.eq.s32.totalorder %s15, 0
      %p49 = por %p47, %p48
      %p50 = scmp.ne.s32.totalorder %s39, %s42
      %p51 = scmp.eq.s32.totalorder %s20, 1
      %p52 = por %p50, %p51
      %p53 = scmp.ne.s32.totalorder %s42, %s43
      %p54 = scmp.eq.s32.totalorder %s20, 0
      %p55 = por %p53, %p54
      %p56 = scmp.ne.s32.totalorder %s42, %s43
      %p57 = scmp.eq.s32.totalorder %s21, 1
      %p58 = por %p56, %p57
      %p60 = scmp.ne.s32.totalorder %s43, %s59
      %p61 = scmp.eq.s32.totalorder %s21, 0
      %p62 = por %p60, %p61
      %s63 = sadd.s32 %s23, 1
      %s64 = sadd.s32 %s30, 1
      %s65 = ssub.s32 %s22, %s34
      %s66 = ssub.s32 %s63, %s64
      %s67 = sor.u32 %s65, %s66
      %p68 = scmp.eq.s32.totalorder %s67, 0
      %s70 = sadd.s32 %s69, 1
      %s71 = scalar_select %p68, %s69, %s70
      %p74 = pneg %p68
      %p75 = scmp.eq.s32.totalorder %s15, 1
      %p76 = por %p74, %p75
      %p77 = scmp.ne.s32.totalorder %s69, %s72
      %p78 = scmp.eq.s32.totalorder %s15, 0
      %p79 = por %p77, %p78
      %p80 = scmp.ne.s32.totalorder %s69, %s72
      %p81 = scmp.eq.s32.totalorder %s20, 1
      %p82 = por %p80, %p81
      %p83 = scmp.ne.s32.totalorder %s72, %s73
      %p84 = scmp.eq.s32.totalorder %s20, 0
      %p85 = por %p83, %p84
      %p86 = scmp.ne.s32.totalorder %s72, %s73
      %p87 = scmp.eq.s32.totalorder %s21, 1
      %p88 = por %p86, %p87
      %p90 = scmp.ne.s32.totalorder %s73, %s89
      %p91 = scmp.eq.s32.totalorder %s21, 0
      %p92 = por %p90, %p91
      %s94 = sadd.s32 %s93, 1
      %p97 = scmp.eq.s32.totalorder %s15, 1
      %p98 = scmp.ne.s32.totalorder %s93, %s95
      %p99 = scmp.eq.s32.totalorder %s15, 0
      %p100 = por %p98, %p99
      %p101 = scmp.ne.s32.totalorder %s93, %s95
      %p102 = scmp.eq.s32.totalorder %s20, 1
      %p103 = por %p101, %p102
      %p104 = scmp.ne.s32.totalorder %s95, %s96
      %p105 = scmp.eq.s32.totalorder %s20, 0
      %p106 = por %p104, %p105
      %p107 = scmp.ne.s32.totalorder %s95, %s96
      %p108 = scmp.eq.s32.totalorder %s21, 1
      %p109 = por %p107, %p108
      %p111 = scmp.ne.s32.totalorder %s96, %s110
      %p112 = scmp.eq.s32.totalorder %s21, 0
      %p113 = por %p111, %p112
      %s115 = sadd.s32 %s114, 1
      %p118 = scmp.eq.s32.totalorder %s15, 1
      %p119 = scmp.ne.s32.totalorder %s114, %s116
      %p120 = scmp.eq.s32.totalorder %s15, 0
      %p121 = por %p119, %p120
      %p122 = scmp.ne.s32.totalorder %s114, %s116
      %p123 = scmp.eq.s32.totalorder %s20, 1
      %p124 = por %p122, %p123
      %p125 = scmp.ne.s32.totalorder %s116, %s117
      %p126 = scmp.eq.s32.totalorder %s20, 0
      %p127 = por %p125, %p126
      %p128 = scmp.ne.s32.totalorder %s116, %s117
      %p129 = scmp.eq.s32.totalorder %s21, 1
      %p130 = por %p128, %p129
      %p132 = scmp.ne.s32.totalorder %s117, %s131
      %p133 = scmp.eq.s32.totalorder %s21, 0
      %p134 = por %p132, %p133
      %s135 = ssub.s32 %s22, %s34
      %s136 = ssub.s32 %s23, %s30
      %s137 = sor.u32 %s135, %s136
      %p138 = scmp.eq.s32.totalorder %s137, 0
      %s140 = sadd.s32 %s139, 1
      %s141 = scalar_select %p138, %s139, %s140
      %p144 = pneg %p138
      %p145 = scmp.eq.s32.totalorder %s15, 1
      %p146 = por %p144, %p145
      %p147 = scmp.ne.s32.totalorder %s139, %s142
      %p148 = scmp.eq.s32.totalorder %s15, 0
      %p149 = por %p147, %p148
      %p150 = scmp.ne.s32.totalorder %s139, %s142
      %p151 = scmp.eq.s32.totalorder %s20, 1
      %p152 = por %p150, %p151
      %p153 = scmp.ne.s32.totalorder %s142, %s143
      %p154 = scmp.eq.s32.totalorder %s20, 0
      %p155 = por %p153, %p154
      %p156 = scmp.ne.s32.totalorder %s142, %s143
      %p157 = scmp.eq.s32.totalorder %s21, 1
      %p158 = por %p156, %p157
      %p160 = scmp.ne.s32.totalorder %s143, %s159
      %p161 = scmp.eq.s32.totalorder %s21, 0
      %p162 = por %p160, %p161
      %p163 = scmp.le.s32.totalorder 1, %s15
      %p164 = scmp.lt.s32.totalorder %s15, 3
      %p165 = pnand %p163, %p164
      %p166 = pneg %p165
      // Predicated region
      $region9: #{_lambda_.23} parent=5 // pred_check
        _
      $region10: #{_lambda_.23} parent=5 // pred_check_branch
        %168 = sbr.rel (%p165) target = $region12
      $region11: #{_lambda_.23} parent=5 // pred_region
        %s169 = ssub.s32 %s15, 1
        // Predicated region
        $region13: #{_lambda_.23} parent=11 // pred_check
          %p170 = pneg %p106
        $region14: #{_lambda_.23} parent=11 // pred_check_branch
          %172 = sbr.rel (%p170) target = $region16
        $region15: #{_lambda_.23} parent=11 // pred_region
          _
        $region16: #{_lambda_.23} parent=11 // pred_fallthru
          _
        // Predicated region
        $region17: #{_lambda_.23} parent=11 // pred_check
          %p173 = pneg %p127
        $region18: #{_lambda_.23} parent=11 // pred_check_branch
          %175 = sbr.rel (%p173) target = $region20
        $region19: #{_lambda_.23} parent=11 // pred_region
          _
        $region20: #{_lambda_.23} parent=11 // pred_fallthru
          _
      $region12: #{_lambda_.23} parent=5 // pred_fallthru
        _
      %p176 = scmp.lt.s32.totalorder %s15, 2
      // Predicated region
      $region21: #{_lambda_.23} parent=5 // pred_check
        %p177 = pneg %p176
      $region22: #{_lambda_.23} parent=5 // pred_check_branch
        %179 = sbr.rel (%p177) target = $region24
      $region23: #{_lambda_.23} parent=5 // pred_region
        // Predicated region
        $region25: #{_lambda_.23} parent=23 // pred_check
          %p180 = pneg %p49
        $region26: #{_lambda_.23} parent=23 // pred_check_branch
          %182 = sbr.rel (%p180) target = $region28
        $region27: #{_lambda_.23} parent=23 // pred_region
          %p183 = scmp.lt.s32.totalorder %s22, 1
          %s184 = scalar_select %p183, %s22, 1
          %p185 = scmp.lt.s32.totalorder %s23, 1
          %s186 = scalar_select %p185, %s23, 1
          %s187 = smul.addr %s184, 2
          %s188 = sadd.s32 %s186, %s187
          %s189 = smul.addr %s188, 4
          %s190 = scalar_lea.vmem %s0, %s189
        $region28: #{_lambda_.23} parent=23 // pred_fallthru
          _
        // Predicated region
        $region29: #{_lambda_.23} parent=23 // pred_check
          %p191 = pneg %p79
        $region30: #{_lambda_.23} parent=23 // pred_check_branch
          %193 = sbr.rel (%p191) target = $region32
        $region31: #{_lambda_.23} parent=23 // pred_region
          %s194 = sadd.s32 %s23, 1
          %p195 = scmp.lt.s32.totalorder %s22, 1
          %s196 = scalar_select %p195, %s22, 1
          %p197 = scmp.lt.s32.totalorder %s194, 1
          %s198 = scalar_select %p197, %s194, 1
          %s199 = smul.addr %s196, 2
          %s200 = sadd.s32 %s198, %s199
          %s201 = smul.addr %s200, 4
          %s202 = scalar_lea.vmem %s1, %s201
          %s203 = sadd.s32 %s23, 1
        $region32: #{_lambda_.23} parent=23 // pred_fallthru
          _
      $region24: #{_lambda_.23} parent=5 // pred_fallthru
        _
      %p204 = scmp.le.s32.totalorder 1, %s15
      %p205 = scmp.lt.s32.totalorder %s15, 3
      %p206 = pnand %p204, %p205
      %p207 = pneg %p206
      // Predicated region
      $region33: #{_lambda_.23} parent=5 // pred_check
        _
      $region34: #{_lambda_.23} parent=5 // pred_check_branch
        %209 = sbr.rel (%p206) target = $region36
      $region35: #{_lambda_.23} parent=5 // pred_region
        %s210 = ssub.s32 %s15, 1
        %p211 = scmp.lt.s32.totalorder %s24, 1
        %s212 = scalar_select %p211, %s24, 1
        %p213 = scmp.lt.s32.totalorder %s25, 1
        %s214 = scalar_select %p213, %s25, 1
        %s215 = smul.addr %s212, 2
        %s216 = sadd.s32 %s214, %s215
        %s217 = smul.addr %s216, 4
        %s218 = scalar_lea.vmem %s0, %s217
        %p219 = pneg %p55
        %p220 = pneg %p52
        %s221 = sadd.s32 %s25, 1
        %p222 = scmp.lt.s32.totalorder %s24, 1
        %s223 = scalar_select %p222, %s24, 1
        %p224 = scmp.lt.s32.totalorder %s221, 1
        %s225 = scalar_select %p224, %s221, 1
        %s226 = smul.addr %s223, 2
        %s227 = sadd.s32 %s225, %s226
        %s228 = smul.addr %s227, 4
        %s229 = scalar_lea.vmem %s1, %s228
        %p230 = pneg %p85
        %p231 = pneg %p82
        %p232 = pneg %p106
        %p233 = pneg %p103
        %p234 = pneg %p127
        %p235 = pneg %p124
        %p236 = pneg %p155
        %p237 = pneg %p152
        %s238 = sand.u32 %s142, 1
        %s239 = scalar_lea.sflag [#allocation4], %s238
        %s240 = sand.u32 %s142, 1
        %s241 = scalar_lea.vmem [#allocation3], %s240
        %p242 = scmp.lt.s32.totalorder %s24, 1
        %s243 = scalar_select %p242, %s24, 1
        %p244 = scmp.lt.s32.totalorder %s25, 1
        %s245 = scalar_select %p244, %s25, 1
        %s246 = smul.addr %s243, 2
        %s247 = sadd.s32 %s245, %s246
        %s248 = smul.addr %s247, 4
        %s249 = scalar_lea.vmem %s0, %s248
        %s250 = sadd.s32 %s25, 1
        %p251 = scmp.lt.s32.totalorder %s24, 1
        %s252 = scalar_select %p251, %s24, 1
        %p253 = scmp.lt.s32.totalorder %s250, 1
        %s254 = scalar_select %p253, %s250, 1
        %s255 = smul.addr %s252, 2
        %s256 = sadd.s32 %s254, %s255
        %s257 = smul.addr %s256, 4
        %s258 = scalar_lea.vmem %s1, %s257
        %s259 = sadd.s32 %s25, 1
        %v261 = vld [vmem:[%s249] sm:$0xf]
        %v262 = vld [vmem:[%s258] sm:$0xf]
        %v263 = vunpack.c.l.bf16 %v261
        %v264 = vunpack.c.l.bf16 %v262
        %vm265 = vcmp.ge.f32.partialorder %v263, 0.0
        %vm266 = vcmp.ge.f32.partialorder %v264, 0.0
        %v267 = vmul.f32 %v263, 0.01
        %v268 = vmul.f32 %v264, 0.01
        %v269 = vsel %vm265, %v263, %v267
        %v270 = vsel %vm266, %v264, %v268
        %v271 = vpack.c.bf16 %v270, %v269
        %v273 = vunpack.c.l.b16 %v271
        %v274 = vunpack.c.h.b16 %v271
        %v275 = vpack.c.b16 %v273, %v273
        %v276 = vpack.c.b16 %v274, %v274
        %277 = vrot.lane.b32.xlu0 %v275, 127
        %v278 = vpop.permute.xlu0 %277
        %279 = vrot.lane.b32.xlu0 %v276, 127
        %v280 = vpop.permute.xlu0 %279
        %vm281 = vcmask 1039360
        %v282 = vsel %vm281, %v278, %v280
        %283 = vrot.lane.b32.xlu0 %v275, 126
        %v284 = vpop.permute.xlu0 %283
        %285 = vrot.lane.b32.xlu0 %v276, 126
        %v286 = vpop.permute.xlu0 %285
        %vm287 = vcmask 1031168
        %v288 = vsel %vm287, %v284, %v286
        %289 = vrot.lane.b32.xlu0 %v275, 125
        %v290 = vpop.permute.xlu0 %289
        %291 = vrot.lane.b32.xlu0 %v276, 125
        %v292 = vpop.permute.xlu0 %291
        %vm293 = vcmask 1022976
        %v294 = vsel %vm293, %v290, %v292
        %295 = vrot.lane.b32.xlu0 %v275, 124
        %v296 = vpop.permute.xlu0 %295
        %297 = vrot.lane.b32.xlu0 %v276, 124
        %v298 = vpop.permute.xlu0 %297
        %vm299 = vcmask 1014784
        %v300 = vsel %vm299, %v296, %v298
        %301 = vrot.lane.b32.xlu0 %v275, 123
        %v302 = vpop.permute.xlu0 %301
        %303 = vrot.lane.b32.xlu0 %v276, 123
        %v304 = vpop.permute.xlu0 %303
        %vm305 = vcmask 1006592
        %v306 = vsel %vm305, %v302, %v304
        %307 = vrot.lane.b32.xlu0 %v275, 122
        %v308 = vpop.permute.xlu0 %307
        %309 = vrot.lane.b32.xlu0 %v276, 122
        %v310 = vpop.permute.xlu0 %309
        %vm311 = vcmask 998400
        %v312 = vsel %vm311, %v308, %v310
        %vm313 = vcmask 1043456
        %v316 = vsel %vm313, %v271, %v282
        %v320 = vsel %vm313, %v288, %v294
        %v324 = vsel %vm313, %v300, %v306
        %v326 = vld [vmem:[%s2] sm:$0x1]
        %v327 = vld [vmem:[#allocation2] sm:$0x1]
        %329 = vset.pattern.permute.xlu0 0
        %330 = vperm.xlu0 %329, %v327
        %v331 = vpop.permute.xlu0 %330
        %v333 = vperm.slane %v331, 0
        %vm334 = vcmask 457728
        %v336 = vsel %vm334, %v326, 0
        %v339 = vsel %vm313, %v312, 0
        %341 = vmatpush.bf16.msra.mxu0 0
        %342 = vmatpush.bf16.msra.mxu0 0
        %343 = vmatpush.bf16.msra.mxu0 0
        %344 = vmatpush.bf16.msra.mxu0 0
        %345 = vmatpush.bf16.msra.mxu0 %v339
        %346 = vmatpush.bf16.msra.mxu0 %v324
        %347 = vmatpush.bf16.msra.mxu0 %v320
        %348 = vmatpush.bf16.msra.mxu0 %v316
        %349 = vmatmul.bf16.gmra.mxu0 %v336
        %v350 = vpop.f32.mrf.mxu0
        %v351 = vadd.f32 %v333, %v350
        %v352 = vpop.f32.mrf.mxu0
        %353 = vdwg.mxu0
        %v354 = vtanh.pop %v351
        %355 = vst [vmem:[%s241] sm:$0x1] %v354
        %s356 = sand.u32 %s142, 1
        %s357 = scalar_lea.sflag [#allocation4], %s356
        %s358 = sand.u32 %s142, 1
        %s359 = scalar_lea.vmem [#allocation3], %s358
        // Predicated region
        $region37: #{_lambda_.23} parent=35 // pred_check
          %p360 = pneg %p152
        $region38: #{_lambda_.23} parent=35 // pred_check_branch
          %362 = sbr.rel (%p360) target = $region40
        $region39: #{_lambda_.23} parent=35 // pred_region
          %364 = vsyncadd %s357, 0
          %s365 = sadd.s32 %s25, %s24
          %s366 = scalar_lea.hbm %s4, %s365
          %s368 = sshll.u32 %s359, 4
          %s369 = int_to_ptr.vmem [resolvable:$true] %s368
          %s370 = sshll.u32 %s366, 4
          %s371 = int_to_ptr.hbm [resolvable:$true] %s370
          %373 = dma.vmem_to_hbm [thread:$0]  %s369, 16, %s371, %s357
        $region40: #{_lambda_.23} parent=35 // pred_fallthru
          _
      $region36: #{_lambda_.23} parent=5 // pred_fallthru
        _
      %p374 = scmp.le.s32.totalorder 2, %s15
      // Predicated region
      $region41: #{_lambda_.23} parent=5 // pred_check
        %p375 = pneg %p374
      $region42: #{_lambda_.23} parent=5 // pred_check_branch
        %377 = sbr.rel (%p375) target = $region44
      $region43: #{_lambda_.23} parent=5 // pred_region
        %s378 = ssub.s32 %s15, 2
        // Predicated region
        $region45: #{_lambda_.23} parent=43 // pred_check
          %p379 = pneg %p158
        $region46: #{_lambda_.23} parent=43 // pred_check_branch
          %381 = sbr.rel (%p379) target = $region48
        $region47: #{_lambda_.23} parent=43 // pred_region
          %s382 = sand.u32 %s143, 1
          %s383 = scalar_lea.sflag [#allocation4], %s382
          %s384 = sand.u32 %s143, 1
          %s385 = scalar_lea.vmem [#allocation3], %s384
          %387 = dma.done %s383, 16
        $region48: #{_lambda_.23} parent=43 // pred_fallthru
          _
      $region44: #{_lambda_.23} parent=5 // pred_fallthru
        _
    $region6: #{_lambda_.23} parent=1 // loop_footer
      %s19 = sadd.s32 1, %s15
    $region7: #{_lambda_.23} parent=1 // loop_footer_branch
      %14 = sbr.rel target = $region3
    $region8: #{_lambda_.23} parent=1 // loop_exit
      _
    %388 = vsyncpa [#allocation4], 1
    %s389 = scalar_lea.sflag [#allocation4], 1
    %390 = vsyncpa %s389, 1

</llo_original>
